<compile_context>
chip_gen: v7x
topology: tpu7x:2x2x1
jax: 0.10.0
libtpu: 0.0.40
codegen_flags: <defaults>
</compile_context>

<pallas_src>
import functools

import jax
import jax.numpy as jnp
from jax import lax
from jax.experimental import pallas as pl
from jax.experimental.pallas import tpu as pltpu

# Hidden widths of gc1..gc8 (gc9 goes to nclass, lane-padded to PADDED_NCLASS).
LAYER_DIMS = (1024, 1024, 1024, 512, 256, 128, 128, 64)
PADDED_NCLASS = 128


# ---------------------------------------------------------------------------
# Fused kernel: whole 9-layer forward in one body.
#   refs = (x, adj, w1, b1, w2, b2, ..., w9, b9, out)
# ---------------------------------------------------------------------------
def fused_gcn_kernel(*refs, num_layers, nclass):
    x_ref, adj_ref = refs[0], refs[1]
    out_ref = refs[-1]
    wb_refs = refs[2:-1]

    adj = adj_ref[...]                       # (N, N)  bf16
    h = x_ref[...]                           # (N, F0) bf16

    for i in range(num_layers):              # unrolled at trace time
        w = wb_refs[2 * i][...]              # (F_in, F_out) bf16
        b = wb_refs[2 * i + 1][...]          # (1,  F_out)   f32

        # support = h @ W        (MXU, f32 accumulate)
        support = jnp.dot(h, w, preferred_element_type=jnp.float32)
        # z = adj @ support + b  (MXU, f32 accumulate)
        z = jnp.dot(adj, support.astype(jnp.bfloat16),
                    preferred_element_type=jnp.float32)
        z = jnp.maximum(z + b, 0.0)          # ReLU after every layer (incl. gc9)

        if i < num_layers - 1:
            h = z.astype(jnp.bfloat16)       # feed next layer in bf16
        else:
            # log_softmax over the real classes only; lanes >= nclass are the
            # zero-padded columns of the last weight/bias.
            col = lax.broadcasted_iota(jnp.int32, z.shape, 1)
            valid = col < nclass
            zm = jnp.where(valid, z, -jnp.inf)
            m = jnp.max(zm, axis=1, keepdims=True)
            e = jnp.where(valid, jnp.exp(z - m), 0.0)
            lse = jnp.log(jnp.sum(e, axis=1, keepdims=True)) + m
            out_ref[...] = z - lse           # (N, PADDED_NCLASS) lane-dense store


# ---------------------------------------------------------------------------
# Wrapper: single grid-less pallas_call, everything resident in VMEM.
# ---------------------------------------------------------------------------
_VMEM_SPEC = pl.BlockSpec(memory_space=pltpu.MemorySpace.VMEM)


@functools.partial(jax.jit, static_argnames=("nclass",))
def gcn_ww_forward(x, adj, params, *, nclass):
    n = x.shape[0]
    flat = [x.astype(jnp.bfloat16), adj.astype(jnp.bfloat16)]
    for w, b in params:
        flat.append(w)
        flat.append(b)

    kernel = functools.partial(
        fused_gcn_kernel, num_layers=len(params), nclass=nclass)

    out = pl.pallas_call(
        kernel,
        out_shape=jax.ShapeDtypeStruct((n, PADDED_NCLASS), jnp.float32),
        in_specs=[_VMEM_SPEC] * len(flat),
        out_specs=_VMEM_SPEC,
        compiler_params=pltpu.CompilerParams(
            vmem_limit_bytes=32 * 1024 * 1024),
    )(*flat)
    return out[:, :nclass]


# ---------------------------------------------------------------------------
# Parameter construction matching GraphConvolution init:
# U(-1/sqrt(F_out), 1/sqrt(F_out)) for both weight and bias.
# Weights stored in bf16; biases kept f32 (shape (1, F_out) for broadcast).
# Last layer is lane-padded to PADDED_NCLASS with zeros.
# ---------------------------------------------------------------------------
def init_params(key, nfeat, nclass):
    dims = [nfeat] + list(LAYER_DIMS) + [nclass]
    params = []
    for i in range(len(dims) - 1):
        f_in, f_out = dims[i], dims[i + 1]
        key, kw, kb = jax.random.split(key, 3)
        stdv = 1.0 / float(f_out) ** 0.5
        w = jax.random.uniform(kw, (f_in, f_out), jnp.float32, -stdv, stdv)
        b = jax.random.uniform(kb, (f_out,), jnp.float32, -stdv, stdv)
        if i == len(dims) - 2 and f_out < PADDED_NCLASS:
            w = jnp.pad(w, ((0, 0), (0, PADDED_NCLASS - f_out)))
            b = jnp.pad(b, ((0, PADDED_NCLASS - f_out),))
        params.append((w.astype(jnp.bfloat16),
                       b.reshape(1, -1).astype(jnp.float32)))
    return params


# ---------------------------------------------------------------------------
if __name__ == "__main__":
    key = jax.random.PRNGKey(0)
    k_x, k_adj, k_params = jax.random.split(key, 3)

    N = 16       # number of graph nodes
    NFEAT = 32   # input feature dim
    NCLASS = 8   # output classes

    x = jax.random.normal(k_x, (N, NFEAT), jnp.float32)
    # Symmetric, row-normalized dense adjacency with self-loops.
    a = jax.random.uniform(k_adj, (N, N), jnp.float32)
    a = 0.5 * (a + a.T) + jnp.eye(N, dtype=jnp.float32)
    adj = a / jnp.sum(a, axis=1, keepdims=True)

    params = init_params(k_params, NFEAT, NCLASS)

    out = gcn_ww_forward(x, adj, params, nclass=NCLASS)
    out = jax.block_until_ready(out)

    assert out.shape == (N, NCLASS)
    assert bool(jnp.all(jnp.isfinite(out)))
    # log_softmax rows should exp-sum to ~1
    assert bool(jnp.allclose(jnp.sum(jnp.exp(out), axis=1), 1.0, atol=1e-3))

    print("KERNEL_OK")
</pallas_src>

<mosaic_0001>
module attributes {stable_mosaic.version = 11 : i64} {
  func.func @fused_gcn_kernel(%arg0: memref<16x32xbf16, #tpu.memory_space<vmem>>, %arg1: memref<16x16xbf16, #tpu.memory_space<vmem>>, %arg2: memref<32x1024xbf16, #tpu.memory_space<vmem>>, %arg3: memref<1x1024xf32, #tpu.memory_space<vmem>>, %arg4: memref<1024x1024xbf16, #tpu.memory_space<vmem>>, %arg5: memref<1x1024xf32, #tpu.memory_space<vmem>>, %arg6: memref<1024x1024xbf16, #tpu.memory_space<vmem>>, %arg7: memref<1x1024xf32, #tpu.memory_space<vmem>>, %arg8: memref<1024x512xbf16, #tpu.memory_space<vmem>>, %arg9: memref<1x512xf32, #tpu.memory_space<vmem>>, %arg10: memref<512x256xbf16, #tpu.memory_space<vmem>>, %arg11: memref<1x256xf32, #tpu.memory_space<vmem>>, %arg12: memref<256x128xbf16, #tpu.memory_space<vmem>>, %arg13: memref<1x128xf32, #tpu.memory_space<vmem>>, %arg14: memref<128x128xbf16, #tpu.memory_space<vmem>>, %arg15: memref<1x128xf32, #tpu.memory_space<vmem>>, %arg16: memref<128x64xbf16, #tpu.memory_space<vmem>>, %arg17: memref<1x64xf32, #tpu.memory_space<vmem>>, %arg18: memref<64x128xbf16, #tpu.memory_space<vmem>>, %arg19: memref<1x128xf32, #tpu.memory_space<vmem>>, %arg20: memref<16x128xf32, #tpu.memory_space<vmem>>) attributes {dimension_semantics = [], scalar_prefetch = 0 : i64, scratch_operands = 0 : i64, tpu.core_type = #tpu.core_type<tc>} {
    %c0 = arith.constant 0 : index
    %c0_0 = arith.constant 0 : index
    %0 = vector.load %arg1[%c0, %c0_0] : memref<16x16xbf16, #tpu.memory_space<vmem>>, vector<16x16xbf16>
    %c0_1 = arith.constant 0 : index
    %c0_2 = arith.constant 0 : index
    %1 = vector.load %arg0[%c0_1, %c0_2] : memref<16x32xbf16, #tpu.memory_space<vmem>>, vector<16x32xbf16>
    %c0_3 = arith.constant 0 : index
    %c0_4 = arith.constant 0 : index
    %2 = vector.load %arg2[%c0_3, %c0_4] : memref<32x1024xbf16, #tpu.memory_space<vmem>>, vector<32x1024xbf16>
    %c0_5 = arith.constant 0 : index
    %c0_6 = arith.constant 0 : index
    %3 = vector.load %arg3[%c0_5, %c0_6] : memref<1x1024xf32, #tpu.memory_space<vmem>>, vector<1x1024xf32>
    %cst = arith.constant dense<0.000000e+00> : vector<16x1024xf32>
    %4 = tpu.matmul %1, %2, %cst {dimension_numbers = #tpu.dot_dimension_numbers<[1], [0], [0], [1], [0, 0, 1, 1], [], []>} : vector<16x32xbf16>, vector<32x1024xbf16>, vector<16x1024xf32> -> vector<16x1024xf32>
    %5 = arith.truncf %4 : vector<16x1024xf32> to vector<16x1024xbf16>
    %cst_7 = arith.constant dense<0.000000e+00> : vector<16x1024xf32>
    %6 = tpu.matmul %0, %5, %cst_7 {dimension_numbers = #tpu.dot_dimension_numbers<[1], [0], [0], [1], [0, 0, 1, 1], [], []>} : vector<16x16xbf16>, vector<16x1024xbf16>, vector<16x1024xf32> -> vector<16x1024xf32>
    %7 = vector.broadcast %3 : vector<1x1024xf32> to vector<16x1024xf32>
    %8 = arith.addf %6, %7 : vector<16x1024xf32>
    %cst_8 = arith.constant 0.000000e+00 : f32
    %9 = vector.broadcast %cst_8 : f32 to vector<16x1024xf32>
    %10 = arith.maximumf %8, %9 : vector<16x1024xf32>
    %11 = arith.truncf %10 : vector<16x1024xf32> to vector<16x1024xbf16>
    %c0_9 = arith.constant 0 : index
    %c0_10 = arith.constant 0 : index
    %12 = vector.load %arg4[%c0_9, %c0_10] : memref<1024x1024xbf16, #tpu.memory_space<vmem>>, vector<1024x1024xbf16>
    %c0_11 = arith.constant 0 : index
    %c0_12 = arith.constant 0 : index
    %13 = vector.load %arg5[%c0_11, %c0_12] : memref<1x1024xf32, #tpu.memory_space<vmem>>, vector<1x1024xf32>
    %cst_13 = arith.constant dense<0.000000e+00> : vector<16x1024xf32>
    %14 = tpu.matmul %11, %12, %cst_13 {dimension_numbers = #tpu.dot_dimension_numbers<[1], [0], [0], [1], [0, 0, 1, 1], [], []>} : vector<16x1024xbf16>, vector<1024x1024xbf16>, vector<16x1024xf32> -> vector<16x1024xf32>
    %15 = arith.truncf %14 : vector<16x1024xf32> to vector<16x1024xbf16>
    %cst_14 = arith.constant dense<0.000000e+00> : vector<16x1024xf32>
    %16 = tpu.matmul %0, %15, %cst_14 {dimension_numbers = #tpu.dot_dimension_numbers<[1], [0], [0], [1], [0, 0, 1, 1], [], []>} : vector<16x16xbf16>, vector<16x1024xbf16>, vector<16x1024xf32> -> vector<16x1024xf32>
    %17 = vector.broadcast %13 : vector<1x1024xf32> to vector<16x1024xf32>
    %18 = arith.addf %16, %17 : vector<16x1024xf32>
    %cst_15 = arith.constant 0.000000e+00 : f32
    %19 = vector.broadcast %cst_15 : f32 to vector<16x1024xf32>
    %20 = arith.maximumf %18, %19 : vector<16x1024xf32>
    %21 = arith.truncf %20 : vector<16x1024xf32> to vector<16x1024xbf16>
    %c0_16 = arith.constant 0 : index
    %c0_17 = arith.constant 0 : index
    %22 = vector.load %arg6[%c0_16, %c0_17] : memref<1024x1024xbf16, #tpu.memory_space<vmem>>, vector<1024x1024xbf16>
    %c0_18 = arith.constant 0 : index
    %c0_19 = arith.constant 0 : index
    %23 = vector.load %arg7[%c0_18, %c0_19] : memref<1x1024xf32, #tpu.memory_space<vmem>>, vector<1x1024xf32>
    %cst_20 = arith.constant dense<0.000000e+00> : vector<16x1024xf32>
    %24 = tpu.matmul %21, %22, %cst_20 {dimension_numbers = #tpu.dot_dimension_numbers<[1], [0], [0], [1], [0, 0, 1, 1], [], []>} : vector<16x1024xbf16>, vector<1024x1024xbf16>, vector<16x1024xf32> -> vector<16x1024xf32>
    %25 = arith.truncf %24 : vector<16x1024xf32> to vector<16x1024xbf16>
    %cst_21 = arith.constant dense<0.000000e+00> : vector<16x1024xf32>
    %26 = tpu.matmul %0, %25, %cst_21 {dimension_numbers = #tpu.dot_dimension_numbers<[1], [0], [0], [1], [0, 0, 1, 1], [], []>} : vector<16x16xbf16>, vector<16x1024xbf16>, vector<16x1024xf32> -> vector<16x1024xf32>
    %27 = vector.broadcast %23 : vector<1x1024xf32> to vector<16x1024xf32>
    %28 = arith.addf %26, %27 : vector<16x1024xf32>
    %cst_22 = arith.constant 0.000000e+00 : f32
    %29 = vector.broadcast %cst_22 : f32 to vector<16x1024xf32>
    %30 = arith.maximumf %28, %29 : vector<16x1024xf32>
    %31 = arith.truncf %30 : vector<16x1024xf32> to vector<16x1024xbf16>
    %c0_23 = arith.constant 0 : index
    %c0_24 = arith.constant 0 : index
    %32 = vector.load %arg8[%c0_23, %c0_24] : memref<1024x512xbf16, #tpu.memory_space<vmem>>, vector<1024x512xbf16>
    %c0_25 = arith.constant 0 : index
    %c0_26 = arith.constant 0 : index
    %33 = vector.load %arg9[%c0_25, %c0_26] : memref<1x512xf32, #tpu.memory_space<vmem>>, vector<1x512xf32>
    %cst_27 = arith.constant dense<0.000000e+00> : vector<16x512xf32>
    %34 = tpu.matmul %31, %32, %cst_27 {dimension_numbers = #tpu.dot_dimension_numbers<[1], [0], [0], [1], [0, 0, 1, 1], [], []>} : vector<16x1024xbf16>, vector<1024x512xbf16>, vector<16x512xf32> -> vector<16x512xf32>
    %35 = arith.truncf %34 : vector<16x512xf32> to vector<16x512xbf16>
    %cst_28 = arith.constant dense<0.000000e+00> : vector<16x512xf32>
    %36 = tpu.matmul %0, %35, %cst_28 {dimension_numbers = #tpu.dot_dimension_numbers<[1], [0], [0], [1], [0, 0, 1, 1], [], []>} : vector<16x16xbf16>, vector<16x512xbf16>, vector<16x512xf32> -> vector<16x512xf32>
    %37 = vector.broadcast %33 : vector<1x512xf32> to vector<16x512xf32>
    %38 = arith.addf %36, %37 : vector<16x512xf32>
    %cst_29 = arith.constant 0.000000e+00 : f32
    %39 = vector.broadcast %cst_29 : f32 to vector<16x512xf32>
    %40 = arith.maximumf %38, %39 : vector<16x512xf32>
    %41 = arith.truncf %40 : vector<16x512xf32> to vector<16x512xbf16>
    %c0_30 = arith.constant 0 : index
    %c0_31 = arith.constant 0 : index
    %42 = vector.load %arg10[%c0_30, %c0_31] : memref<512x256xbf16, #tpu.memory_space<vmem>>, vector<512x256xbf16>
    %c0_32 = arith.constant 0 : index
    %c0_33 = arith.constant 0 : index
    %43 = vector.load %arg11[%c0_32, %c0_33] : memref<1x256xf32, #tpu.memory_space<vmem>>, vector<1x256xf32>
    %cst_34 = arith.constant dense<0.000000e+00> : vector<16x256xf32>
    %44 = tpu.matmul %41, %42, %cst_34 {dimension_numbers = #tpu.dot_dimension_numbers<[1], [0], [0], [1], [0, 0, 1, 1], [], []>} : vector<16x512xbf16>, vector<512x256xbf16>, vector<16x256xf32> -> vector<16x256xf32>
    %45 = arith.truncf %44 : vector<16x256xf32> to vector<16x256xbf16>
    %cst_35 = arith.constant dense<0.000000e+00> : vector<16x256xf32>
    %46 = tpu.matmul %0, %45, %cst_35 {dimension_numbers = #tpu.dot_dimension_numbers<[1], [0], [0], [1], [0, 0, 1, 1], [], []>} : vector<16x16xbf16>, vector<16x256xbf16>, vector<16x256xf32> -> vector<16x256xf32>
    %47 = vector.broadcast %43 : vector<1x256xf32> to vector<16x256xf32>
    %48 = arith.addf %46, %47 : vector<16x256xf32>
    %cst_36 = arith.constant 0.000000e+00 : f32
    %49 = vector.broadcast %cst_36 : f32 to vector<16x256xf32>
    %50 = arith.maximumf %48, %49 : vector<16x256xf32>
    %51 = arith.truncf %50 : vector<16x256xf32> to vector<16x256xbf16>
    %c0_37 = arith.constant 0 : index
    %c0_38 = arith.constant 0 : index
    %52 = vector.load %arg12[%c0_37, %c0_38] : memref<256x128xbf16, #tpu.memory_space<vmem>>, vector<256x128xbf16>
    %c0_39 = arith.constant 0 : index
    %c0_40 = arith.constant 0 : index
    %53 = vector.load %arg13[%c0_39, %c0_40] : memref<1x128xf32, #tpu.memory_space<vmem>>, vector<1x128xf32>
    %cst_41 = arith.constant dense<0.000000e+00> : vector<16x128xf32>
    %54 = tpu.matmul %51, %52, %cst_41 {dimension_numbers = #tpu.dot_dimension_numbers<[1], [0], [0], [1], [0, 0, 1, 1], [], []>} : vector<16x256xbf16>, vector<256x128xbf16>, vector<16x128xf32> -> vector<16x128xf32>
    %55 = arith.truncf %54 : vector<16x128xf32> to vector<16x128xbf16>
    %cst_42 = arith.constant dense<0.000000e+00> : vector<16x128xf32>
    %56 = tpu.matmul %0, %55, %cst_42 {dimension_numbers = #tpu.dot_dimension_numbers<[1], [0], [0], [1], [0, 0, 1, 1], [], []>} : vector<16x16xbf16>, vector<16x128xbf16>, vector<16x128xf32> -> vector<16x128xf32>
    %57 = vector.broadcast %53 : vector<1x128xf32> to vector<16x128xf32>
    %58 = arith.addf %56, %57 : vector<16x128xf32>
    %cst_43 = arith.constant 0.000000e+00 : f32
    %59 = vector.broadcast %cst_43 : f32 to vector<16x128xf32>
    %60 = arith.maximumf %58, %59 : vector<16x128xf32>
    %61 = arith.truncf %60 : vector<16x128xf32> to vector<16x128xbf16>
    %c0_44 = arith.constant 0 : index
    %c0_45 = arith.constant 0 : index
    %62 = vector.load %arg14[%c0_44, %c0_45] : memref<128x128xbf16, #tpu.memory_space<vmem>>, vector<128x128xbf16>
    %c0_46 = arith.constant 0 : index
    %c0_47 = arith.constant 0 : index
    %63 = vector.load %arg15[%c0_46, %c0_47] : memref<1x128xf32, #tpu.memory_space<vmem>>, vector<1x128xf32>
    %cst_48 = arith.constant dense<0.000000e+00> : vector<16x128xf32>
    %64 = tpu.matmul %61, %62, %cst_48 {dimension_numbers = #tpu.dot_dimension_numbers<[1], [0], [0], [1], [0, 0, 1, 1], [], []>} : vector<16x128xbf16>, vector<128x128xbf16>, vector<16x128xf32> -> vector<16x128xf32>
    %65 = arith.truncf %64 : vector<16x128xf32> to vector<16x128xbf16>
    %cst_49 = arith.constant dense<0.000000e+00> : vector<16x128xf32>
    %66 = tpu.matmul %0, %65, %cst_49 {dimension_numbers = #tpu.dot_dimension_numbers<[1], [0], [0], [1], [0, 0, 1, 1], [], []>} : vector<16x16xbf16>, vector<16x128xbf16>, vector<16x128xf32> -> vector<16x128xf32>
    %67 = vector.broadcast %63 : vector<1x128xf32> to vector<16x128xf32>
    %68 = arith.addf %66, %67 : vector<16x128xf32>
    %cst_50 = arith.constant 0.000000e+00 : f32
    %69 = vector.broadcast %cst_50 : f32 to vector<16x128xf32>
    %70 = arith.maximumf %68, %69 : vector<16x128xf32>
    %71 = arith.truncf %70 : vector<16x128xf32> to vector<16x128xbf16>
    %c0_51 = arith.constant 0 : index
    %c0_52 = arith.constant 0 : index
    %72 = vector.load %arg16[%c0_51, %c0_52] : memref<128x64xbf16, #tpu.memory_space<vmem>>, vector<128x64xbf16>
    %c0_53 = arith.constant 0 : index
    %c0_54 = arith.constant 0 : index
    %73 = vector.load %arg17[%c0_53, %c0_54] : memref<1x64xf32, #tpu.memory_space<vmem>>, vector<1x64xf32>
    %cst_55 = arith.constant dense<0.000000e+00> : vector<16x64xf32>
    %74 = tpu.matmul %71, %72, %cst_55 {dimension_numbers = #tpu.dot_dimension_numbers<[1], [0], [0], [1], [0, 0, 1, 1], [], []>} : vector<16x128xbf16>, vector<128x64xbf16>, vector<16x64xf32> -> vector<16x64xf32>
    %75 = arith.truncf %74 : vector<16x64xf32> to vector<16x64xbf16>
    %cst_56 = arith.constant dense<0.000000e+00> : vector<16x64xf32>
    %76 = tpu.matmul %0, %75, %cst_56 {dimension_numbers = #tpu.dot_dimension_numbers<[1], [0], [0], [1], [0, 0, 1, 1], [], []>} : vector<16x16xbf16>, vector<16x64xbf16>, vector<16x64xf32> -> vector<16x64xf32>
    %77 = vector.broadcast %73 : vector<1x64xf32> to vector<16x64xf32>
    %78 = arith.addf %76, %77 : vector<16x64xf32>
    %cst_57 = arith.constant 0.000000e+00 : f32
    %79 = vector.broadcast %cst_57 : f32 to vector<16x64xf32>
    %80 = arith.maximumf %78, %79 : vector<16x64xf32>
    %81 = arith.truncf %80 : vector<16x64xf32> to vector<16x64xbf16>
    %c0_58 = arith.constant 0 : index
    %c0_59 = arith.constant 0 : index
    %82 = vector.load %arg18[%c0_58, %c0_59] : memref<64x128xbf16, #tpu.memory_space<vmem>>, vector<64x128xbf16>
    %c0_60 = arith.constant 0 : index
    %c0_61 = arith.constant 0 : index
    %83 = vector.load %arg19[%c0_60, %c0_61] : memref<1x128xf32, #tpu.memory_space<vmem>>, vector<1x128xf32>
    %cst_62 = arith.constant dense<0.000000e+00> : vector<16x128xf32>
    %84 = tpu.matmul %81, %82, %cst_62 {dimension_numbers = #tpu.dot_dimension_numbers<[1], [0], [0], [1], [0, 0, 1, 1], [], []>} : vector<16x64xbf16>, vector<64x128xbf16>, vector<16x128xf32> -> vector<16x128xf32>
    %85 = arith.truncf %84 : vector<16x128xf32> to vector<16x128xbf16>
    %cst_63 = arith.constant dense<0.000000e+00> : vector<16x128xf32>
    %86 = tpu.matmul %0, %85, %cst_63 {dimension_numbers = #tpu.dot_dimension_numbers<[1], [0], [0], [1], [0, 0, 1, 1], [], []>} : vector<16x16xbf16>, vector<16x128xbf16>, vector<16x128xf32> -> vector<16x128xf32>
    %87 = vector.broadcast %83 : vector<1x128xf32> to vector<16x128xf32>
    %88 = arith.addf %86, %87 : vector<16x128xf32>
    %cst_64 = arith.constant 0.000000e+00 : f32
    %89 = vector.broadcast %cst_64 : f32 to vector<16x128xf32>
    %90 = arith.maximumf %88, %89 : vector<16x128xf32>
    %91 = tpu.iota {dimensions = array<i32: 1>} : vector<16x128xi32>
    %c8_i32 = arith.constant 8 : i32
    %92 = vector.broadcast %c8_i32 : i32 to vector<16x128xi32>
    %93 = arith.cmpi slt, %91, %92 : vector<16x128xi32>
    %cst_65 = arith.constant 0xFF800000 : f32
    %94 = vector.broadcast %cst_65 : f32 to vector<16x128xf32>
    %95 = arith.select %93, %90, %94 : vector<16x128xi1>, vector<16x128xf32>
    %cst_66 = arith.constant dense<0xFF800000> : vector<16xf32>
    %96 = vector.multi_reduction <maximumf>, %95, %cst_66 [1] : vector<16x128xf32> to vector<16xf32>
    %97 = vector.shape_cast %96 : vector<16xf32> to vector<16x1xf32>
    %98 = vector.broadcast %97 : vector<16x1xf32> to vector<16x128xf32>
    %99 = arith.subf %90, %98 : vector<16x128xf32>
    %100 = math.exp %99 : vector<16x128xf32>
    %cst_67 = arith.constant 0.000000e+00 : f32
    %101 = vector.broadcast %cst_67 : f32 to vector<16x128xf32>
    %102 = arith.select %93, %100, %101 : vector<16x128xi1>, vector<16x128xf32>
    %cst_68 = arith.constant dense<0.000000e+00> : vector<16xf32>
    %103 = vector.multi_reduction <add>, %102, %cst_68 [1] : vector<16x128xf32> to vector<16xf32>
    %104 = vector.shape_cast %103 : vector<16xf32> to vector<16x1xf32>
    %105 = math.log %104 : vector<16x1xf32>
    %106 = arith.addf %105, %97 : vector<16x1xf32>
    %107 = vector.broadcast %106 : vector<16x1xf32> to vector<16x128xf32>
    %108 = arith.subf %90, %107 : vector<16x128xf32>
    %c0_69 = arith.constant 0 : index
    %c0_70 = arith.constant 0 : index
    %109 = vector.load %arg20[%c0_69, %c0_70] : memref<16x128xf32, #tpu.memory_space<vmem>>, vector<16x128xf32>
    tpu.vector_store %arg20[%c0_69, %c0_70], %108 {strides = array<i32>} : memref<16x128xf32, #tpu.memory_space<vmem>>, vector<16x128xf32>,
    return
  }
}

</mosaic_0001>

<llo_original>
// kernel: gcn_ww_forward.1
$region0: #{gcn_ww_forward.1}
  #allocation0 [shape = 'u32[]', space=smem, size = 0x4, offset = 0x4, fixed_abs, tag = 'smem constant byte address 0x4 - core index']
  #allocation1 [shape = 'u32[144,128]{1,0:T(1,128)}', space=vmem, size = 0x12000, scoped, tag = 'internal scratch']
  %s0 = inlined_call_operand.vmem [shape: bf16[16,32], index: 0, kind: input, shape index: {}]
  %s1 = inlined_call_operand.vmem [shape: bf16[16,16], index: 1, kind: input, shape index: {}]
  %s2 = inlined_call_operand.hbm [shape: bf16[32,1024], index: 2, kind: input, shape index: {}]
  %s3 = inlined_call_operand.hbm [shape: f32[1,1024], index: 3, kind: input, shape index: {}]
  %s4 = inlined_call_operand.hbm [shape: bf16[1024,1024], index: 4, kind: input, shape index: {}]
  %s5 = inlined_call_operand.hbm [shape: f32[1,1024], index: 5, kind: input, shape index: {}]
  %s6 = inlined_call_operand.hbm [shape: bf16[1024,1024], index: 6, kind: input, shape index: {}]
  %s7 = inlined_call_operand.hbm [shape: f32[1,1024], index: 7, kind: input, shape index: {}]
  %s8 = inlined_call_operand.hbm [shape: bf16[1024,512], index: 8, kind: input, shape index: {}]
  %s9 = inlined_call_operand.hbm [shape: f32[1,512], index: 9, kind: input, shape index: {}]
  %s10 = inlined_call_operand.hbm [shape: bf16[512,256], index: 10, kind: input, shape index: {}]
  %s11 = inlined_call_operand.hbm [shape: f32[1,256], index: 11, kind: input, shape index: {}]
  %s12 = inlined_call_operand.hbm [shape: bf16[256,128], index: 12, kind: input, shape index: {}]
  %s13 = inlined_call_operand.hbm [shape: f32[1,128], index: 13, kind: input, shape index: {}]
  %s14 = inlined_call_operand.hbm [shape: bf16[128,128], index: 14, kind: input, shape index: {}]
  %s15 = inlined_call_operand.hbm [shape: f32[1,128], index: 15, kind: input, shape index: {}]
  %s16 = inlined_call_operand.vmem [shape: bf16[128,64], index: 16, kind: input, shape index: {}]
  %s17 = inlined_call_operand.hbm [shape: f32[1,64], index: 17, kind: input, shape index: {}]
  %s18 = inlined_call_operand.hbm [shape: bf16[64,128], index: 18, kind: input, shape index: {}]
  %s19 = inlined_call_operand.hbm [shape: f32[1,128], index: 19, kind: input, shape index: {}]
  %s20 = inlined_call_operand.vmem [shape: f32[16,128], index: 20, kind: output, shape index: {}]
  %s21 = sld [smem:[#allocation0]]
  $region158: #{gcn_ww_forward.1} parent=0
    _
  %s23 = ssub.s32 1, %s21
  %s24 = scalar_select 0, %s23, %s21
  $region1: #{gcn_ww_forward.1} parent=0
    #allocation2 [shape = 'u8[65536]{0}', space=vmem, size = 0x10000, scoped, tag = 'input window, operand 2, single buffered']
    #allocation3 [shape = 's32[1]{0}', space=sflag, size = 0x4, scoped, tag = 'scoped memory for gcn_ww_forward.1']
    #allocation4 [shape = 'u8[4096]{0}', space=vmem, size = 0x1000, scoped, tag = 'input window, operand 3, single buffered']
    #allocation5 [shape = 's32[1]{0}', space=sflag, size = 0x4, scoped, tag = 'scoped memory for gcn_ww_forward.1']
    #allocation6 [shape = 'u8[2097152]{0}', space=vmem, size = 0x200000, scoped, tag = 'input window, operand 4, single buffered']
    #allocation7 [shape = 'u8[4096]{0}', space=vmem, size = 0x1000, scoped, tag = 'input window, operand 5, single buffered']
    #allocation8 [shape = 's32[1]{0}', space=sflag, size = 0x4, scoped, tag = 'scoped memory for gcn_ww_forward.1']
    #allocation9 [shape = 'u8[2097152]{0}', space=vmem, size = 0x200000, scoped, tag = 'input window, operand 6, single buffered']
    #allocation10 [shape = 'u8[4096]{0}', space=vmem, size = 0x1000, scoped, tag = 'input window, operand 7, single buffered']
    #allocation11 [shape = 's32[1]{0}', space=sflag, size = 0x4, scoped, tag = 'scoped memory for gcn_ww_forward.1']
    #allocation12 [shape = 'u8[1048576]{0}', space=vmem, size = 0x100000, scoped, tag = 'input window, operand 8, single buffered']
    #allocation13 [shape = 'u8[2048]{0}', space=vmem, size = 0x800, scoped, tag = 'input window, operand 9, single buffered']
    #allocation14 [shape = 's32[1]{0}', space=sflag, size = 0x4, scoped, tag = 'scoped memory for gcn_ww_forward.1']
    #allocation15 [shape = 'u8[262144]{0}', space=vmem, size = 0x40000, scoped, tag = 'input window, operand 10, single buffered']
    #allocation16 [shape = 'u8[1024]{0}', space=vmem, size = 0x400, scoped, tag = 'input window, operand 11, single buffered']
    #allocation17 [shape = 's32[1]{0}', space=sflag, size = 0x4, scoped, tag = 'scoped memory for gcn_ww_forward.1']
    #allocation18 [shape = 'u8[65536]{0}', space=vmem, size = 0x10000, scoped, tag = 'input window, operand 12, single buffered']
    #allocation19 [shape = 'u8[512]{0}', space=vmem, size = 0x400, scoped, tag = 'input window, operand 13, single buffered']
    #allocation20 [shape = 's32[1]{0}', space=sflag, size = 0x4, scoped, tag = 'scoped memory for gcn_ww_forward.1']
    #allocation21 [shape = 'u8[32768]{0}', space=vmem, size = 0x8000, scoped, tag = 'input window, operand 14, single buffered']
    #allocation22 [shape = 'u8[512]{0}', space=vmem, size = 0x400, scoped, tag = 'input window, operand 15, single buffered']
    #allocation23 [shape = 's32[1]{0}', space=sflag, size = 0x4, scoped, tag = 'scoped memory for gcn_ww_forward.1']
    #allocation24 [shape = 'u8[512]{0}', space=vmem, size = 0x400, scoped, tag = 'input window, operand 17, single buffered']
    #allocation25 [shape = 'u8[16384]{0}', space=vmem, size = 0x4000, scoped, tag = 'input window, operand 18, single buffered']
    #allocation26 [shape = 's32[1]{0}', space=sflag, size = 0x4, scoped, tag = 'scoped memory for gcn_ww_forward.1']
    #allocation27 [shape = 'u8[512]{0}', space=vmem, size = 0x400, scoped, tag = 'input window, operand 19, single buffered']
    %25 = vsyncpa [#allocation3], 0
    %26 = vsyncpa [#allocation5], 0
    %27 = vsyncpa [#allocation8], 0
    %28 = vsyncpa [#allocation11], 0
    %29 = vsyncpa [#allocation14], 0
    %30 = vsyncpa [#allocation17], 0
    %31 = vsyncpa [#allocation20], 0
    %32 = vsyncpa [#allocation23], 0
    %33 = vsyncpa [#allocation26], 0
    // Predicated region
    $region2: #{gcn_ww_forward.1} parent=1 // pred_check
      _
    $region3: #{gcn_ww_forward.1} parent=1 // pred_check_branch
      %35 = sbr.rel (0) target = $region5
    $region4: #{gcn_ww_forward.1} parent=1 // pred_region
      _
    $region5: #{gcn_ww_forward.1} parent=1 // pred_fallthru
      _
    // Predicated region
    $region6: #{gcn_ww_forward.1} parent=1 // pred_check
      _
    $region7: #{gcn_ww_forward.1} parent=1 // pred_check_branch
      %37 = sbr.rel (0) target = $region9
    $region8: #{gcn_ww_forward.1} parent=1 // pred_region
      _
    $region9: #{gcn_ww_forward.1} parent=1 // pred_fallthru
      _
    // Predicated region
    $region10: #{gcn_ww_forward.1} parent=1 // pred_check
      _
    $region11: #{gcn_ww_forward.1} parent=1 // pred_check_branch
      %39 = sbr.rel (0) target = $region13
    $region12: #{gcn_ww_forward.1} parent=1 // pred_region
      %s41 = ssub.s32 2048, 2048
      %42 = vsyncadd [#allocation3], %s41
      %s43 = sshll.u32 [#allocation2], 4
      %s44 = int_to_ptr.vmem [resolvable:$true] %s43
      %49 = dma.hbm_to_vmem [thread:$0]  %s2, 2048, %s44, [#allocation3], 512, 512, 32
    $region13: #{gcn_ww_forward.1} parent=1 // pred_fallthru
      _
    // Predicated region
    $region14: #{gcn_ww_forward.1} parent=1 // pred_check
      _
    $region15: #{gcn_ww_forward.1} parent=1 // pred_check_branch
      %51 = sbr.rel (0) target = $region17
    $region16: #{gcn_ww_forward.1} parent=1 // pred_region
      %s53 = ssub.s32 128, 128
      %54 = vsyncadd [#allocation5], %s53
      %s56 = sshll.u32 [#allocation4], 4
      %s57 = int_to_ptr.vmem [resolvable:$true] %s56
      %59 = dma.hbm_to_vmem [thread:$0]  %s3, 128, %s57, [#allocation5]
    $region17: #{gcn_ww_forward.1} parent=1 // pred_fallthru
      _
    // Predicated region
    $region18: #{gcn_ww_forward.1} parent=1 // pred_check
      _
    $region19: #{gcn_ww_forward.1} parent=1 // pred_check_branch
      %61 = sbr.rel (0) target = $region21
    $region20: #{gcn_ww_forward.1} parent=1 // pred_region
      %s63 = ssub.s32 65536, 65536
      %64 = vsyncadd [#allocation5], %s63
      %s65 = sshll.u32 [#allocation6], 4
      %s66 = int_to_ptr.vmem [resolvable:$true] %s65
      %71 = dma.hbm_to_vmem [thread:$0]  %s4, 65536, %s66, [#allocation5], 512, 512, 32
    $region21: #{gcn_ww_forward.1} parent=1 // pred_fallthru
      _
    // Predicated region
    $region22: #{gcn_ww_forward.1} parent=1 // pred_check
      _
    $region23: #{gcn_ww_forward.1} parent=1 // pred_check_branch
      %73 = sbr.rel (0) target = $region25
    $region24: #{gcn_ww_forward.1} parent=1 // pred_region
      %s75 = ssub.s32 128, 128
      %76 = vsyncadd [#allocation8], %s75
      %s78 = sshll.u32 [#allocation7], 4
      %s79 = int_to_ptr.vmem [resolvable:$true] %s78
      %81 = dma.hbm_to_vmem [thread:$0]  %s5, 128, %s79, [#allocation8]
    $region25: #{gcn_ww_forward.1} parent=1 // pred_fallthru
      _
    // Predicated region
    $region26: #{gcn_ww_forward.1} parent=1 // pred_check
      _
    $region27: #{gcn_ww_forward.1} parent=1 // pred_check_branch
      %83 = sbr.rel (0) target = $region29
    $region28: #{gcn_ww_forward.1} parent=1 // pred_region
      %s85 = ssub.s32 65536, 65536
      %86 = vsyncadd [#allocation8], %s85
      %s87 = sshll.u32 [#allocation9], 4
      %s88 = int_to_ptr.vmem [resolvable:$true] %s87
      %93 = dma.hbm_to_vmem [thread:$0]  %s6, 65536, %s88, [#allocation8], 512, 512, 32
    $region29: #{gcn_ww_forward.1} parent=1 // pred_fallthru
      _
    // Predicated region
    $region30: #{gcn_ww_forward.1} parent=1 // pred_check
      _
    $region31: #{gcn_ww_forward.1} parent=1 // pred_check_branch
      %95 = sbr.rel (0) target = $region33
    $region32: #{gcn_ww_forward.1} parent=1 // pred_region
      %s97 = ssub.s32 128, 128
      %98 = vsyncadd [#allocation11], %s97
      %s100 = sshll.u32 [#allocation10], 4
      %s101 = int_to_ptr.vmem [resolvable:$true] %s100
      %103 = dma.hbm_to_vmem [thread:$0]  %s7, 128, %s101, [#allocation11]
    $region33: #{gcn_ww_forward.1} parent=1 // pred_fallthru
      _
    // Predicated region
    $region34: #{gcn_ww_forward.1} parent=1 // pred_check
      _
    $region35: #{gcn_ww_forward.1} parent=1 // pred_check_branch
      %105 = sbr.rel (0) target = $region37
    $region36: #{gcn_ww_forward.1} parent=1 // pred_region
      %s107 = ssub.s32 32768, 32768
      %108 = vsyncadd [#allocation11], %s107
      %s109 = sshll.u32 [#allocation12], 4
      %s110 = int_to_ptr.vmem [resolvable:$true] %s109
      %115 = dma.hbm_to_vmem [thread:$0]  %s8, 32768, %s110, [#allocation11], 256, 256, 16
    $region37: #{gcn_ww_forward.1} parent=1 // pred_fallthru
      _
    // Predicated region
    $region38: #{gcn_ww_forward.1} parent=1 // pred_check
      _
    $region39: #{gcn_ww_forward.1} parent=1 // pred_check_branch
      %117 = sbr.rel (0) target = $region41
    $region40: #{gcn_ww_forward.1} parent=1 // pred_region
      %s119 = ssub.s32 64, 64
      %120 = vsyncadd [#allocation14], %s119
      %s122 = sshll.u32 [#allocation13], 4
      %s123 = int_to_ptr.vmem [resolvable:$true] %s122
      %125 = dma.hbm_to_vmem [thread:$0]  %s9, 64, %s123, [#allocation14]
    $region41: #{gcn_ww_forward.1} parent=1 // pred_fallthru
      _
    // Predicated region
    $region42: #{gcn_ww_forward.1} parent=1 // pred_check
      _
    $region43: #{gcn_ww_forward.1} parent=1 // pred_check_branch
      %127 = sbr.rel (0) target = $region45
    $region44: #{gcn_ww_forward.1} parent=1 // pred_region
      %s129 = ssub.s32 8192, 8192
      %130 = vsyncadd [#allocation14], %s129
      %s131 = sshll.u32 [#allocation15], 4
      %s132 = int_to_ptr.vmem [resolvable:$true] %s131
      %137 = dma.hbm_to_vmem [thread:$0]  %s10, 8192, %s132, [#allocation14], 128, 128, 8
    $region45: #{gcn_ww_forward.1} parent=1 // pred_fallthru
      _
    // Predicated region
    $region46: #{gcn_ww_forward.1} parent=1 // pred_check
      _
    $region47: #{gcn_ww_forward.1} parent=1 // pred_check_branch
      %139 = sbr.rel (0) target = $region49
    $region48: #{gcn_ww_forward.1} parent=1 // pred_region
      %s141 = ssub.s32 32, 32
      %142 = vsyncadd [#allocation17], %s141
      %s144 = sshll.u32 [#allocation16], 4
      %s145 = int_to_ptr.vmem [resolvable:$true] %s144
      %147 = dma.hbm_to_vmem [thread:$0]  %s11, 32, %s145, [#allocation17]
    $region49: #{gcn_ww_forward.1} parent=1 // pred_fallthru
      _
    // Predicated region
    $region50: #{gcn_ww_forward.1} parent=1 // pred_check
      _
    $region51: #{gcn_ww_forward.1} parent=1 // pred_check_branch
      %149 = sbr.rel (0) target = $region53
    $region52: #{gcn_ww_forward.1} parent=1 // pred_region
      %s151 = ssub.s32 2048, 2048
      %152 = vsyncadd [#allocation17], %s151
      %s153 = sshll.u32 [#allocation18], 4
      %s154 = int_to_ptr.vmem [resolvable:$true] %s153
      %159 = dma.hbm_to_vmem [thread:$0]  %s12, 2048, %s154, [#allocation17], 64, 64, 4
    $region53: #{gcn_ww_forward.1} parent=1 // pred_fallthru
      _
    // Predicated region
    $region54: #{gcn_ww_forward.1} parent=1 // pred_check
      _
    $region55: #{gcn_ww_forward.1} parent=1 // pred_check_branch
      %161 = sbr.rel (0) target = $region57
    $region56: #{gcn_ww_forward.1} parent=1 // pred_region
      %s163 = ssub.s32 16, 16
      %164 = vsyncadd [#allocation20], %s163
      %s166 = sshll.u32 [#allocation19], 4
      %s167 = int_to_ptr.vmem [resolvable:$true] %s166
      %169 = dma.hbm_to_vmem [thread:$0]  %s13, 16, %s167, [#allocation20]
    $region57: #{gcn_ww_forward.1} parent=1 // pred_fallthru
      _
    // Predicated region
    $region58: #{gcn_ww_forward.1} parent=1 // pred_check
      _
    $region59: #{gcn_ww_forward.1} parent=1 // pred_check_branch
      %171 = sbr.rel (0) target = $region61
    $region60: #{gcn_ww_forward.1} parent=1 // pred_region
      %s173 = ssub.s32 1024, 1024
      %174 = vsyncadd [#allocation20], %s173
      %s175 = sshll.u32 [#allocation21], 4
      %s176 = int_to_ptr.vmem [resolvable:$true] %s175
      %181 = dma.hbm_to_vmem [thread:$0]  %s14, 1024, %s176, [#allocation20], 64, 64, 4
    $region61: #{gcn_ww_forward.1} parent=1 // pred_fallthru
      _
    // Predicated region
    $region62: #{gcn_ww_forward.1} parent=1 // pred_check
      _
    $region63: #{gcn_ww_forward.1} parent=1 // pred_check_branch
      %183 = sbr.rel (0) target = $region65
    $region64: #{gcn_ww_forward.1} parent=1 // pred_region
      %s185 = ssub.s32 16, 16
      %186 = vsyncadd [#allocation23], %s185
      %s188 = sshll.u32 [#allocation22], 4
      %s189 = int_to_ptr.vmem [resolvable:$true] %s188
      %191 = dma.hbm_to_vmem [thread:$0]  %s15, 16, %s189, [#allocation23]
    $region65: #{gcn_ww_forward.1} parent=1 // pred_fallthru
      _
    // Predicated region
    $region66: #{gcn_ww_forward.1} parent=1 // pred_check
      _
    $region67: #{gcn_ww_forward.1} parent=1 // pred_check_branch
      %193 = sbr.rel (0) target = $region69
    $region68: #{gcn_ww_forward.1} parent=1 // pred_region
      _
    $region69: #{gcn_ww_forward.1} parent=1 // pred_fallthru
      _
    // Predicated region
    $region70: #{gcn_ww_forward.1} parent=1 // pred_check
      _
    $region71: #{gcn_ww_forward.1} parent=1 // pred_check_branch
      %195 = sbr.rel (0) target = $region73
    $region72: #{gcn_ww_forward.1} parent=1 // pred_region
      %s197 = ssub.s32 16, 16
      %198 = vsyncadd [#allocation23], %s197
      %s200 = sshll.u32 [#allocation24], 4
      %s201 = int_to_ptr.vmem [resolvable:$true] %s200
      %203 = dma.hbm_to_vmem [thread:$0]  %s17, 16, %s201, [#allocation23]
    $region73: #{gcn_ww_forward.1} parent=1 // pred_fallthru
      _
    // Predicated region
    $region74: #{gcn_ww_forward.1} parent=1 // pred_check
      _
    $region75: #{gcn_ww_forward.1} parent=1 // pred_check_branch
      %205 = sbr.rel (0) target = $region77
    $region76: #{gcn_ww_forward.1} parent=1 // pred_region
      %s207 = ssub.s32 512, 512
      %208 = vsyncadd [#allocation26], %s207
      %s209 = sshll.u32 [#allocation25], 4
      %s210 = int_to_ptr.vmem [resolvable:$true] %s209
      %215 = dma.hbm_to_vmem [thread:$0]  %s18, 512, %s210, [#allocation26], 64, 64, 4
    $region77: #{gcn_ww_forward.1} parent=1 // pred_fallthru
      _
    // Predicated region
    $region78: #{gcn_ww_forward.1} parent=1 // pred_check
      _
    $region79: #{gcn_ww_forward.1} parent=1 // pred_check_branch
      %217 = sbr.rel (0) target = $region81
    $region80: #{gcn_ww_forward.1} parent=1 // pred_region
      %s219 = ssub.s32 16, 16
      %220 = vsyncadd [#allocation26], %s219
      %s222 = sshll.u32 [#allocation27], 4
      %s223 = int_to_ptr.vmem [resolvable:$true] %s222
      %225 = dma.hbm_to_vmem [thread:$0]  %s19, 16, %s223, [#allocation26]
    $region81: #{gcn_ww_forward.1} parent=1 // pred_fallthru
      _
    // Predicated region
    $region82: #{gcn_ww_forward.1} parent=1 // pred_check
      _
    $region83: #{gcn_ww_forward.1} parent=1 // pred_check_branch
      %227 = sbr.rel (0) target = $region85
    $region84: #{gcn_ww_forward.1} parent=1 // pred_region
      %228 = dma.done [#allocation3], 2048
    $region85: #{gcn_ww_forward.1} parent=1 // pred_fallthru
      _
    // Predicated region
    $region86: #{gcn_ww_forward.1} parent=1 // pred_check
      _
    $region87: #{gcn_ww_forward.1} parent=1 // pred_check_branch
      %230 = sbr.rel (0) target = $region89
    $region88: #{gcn_ww_forward.1} parent=1 // pred_region
      %231 = dma.done [#allocation5], 128
    $region89: #{gcn_ww_forward.1} parent=1 // pred_fallthru
      _
    // Predicated region
    $region90: #{gcn_ww_forward.1} parent=1 // pred_check
      _
    $region91: #{gcn_ww_forward.1} parent=1 // pred_check_branch
      %233 = sbr.rel (0) target = $region93
    $region92: #{gcn_ww_forward.1} parent=1 // pred_region
      %234 = dma.done [#allocation5], 65536
    $region93: #{gcn_ww_forward.1} parent=1 // pred_fallthru
      _
    // Predicated region
    $region94: #{gcn_ww_forward.1} parent=1 // pred_check
      _
    $region95: #{gcn_ww_forward.1} parent=1 // pred_check_branch
      %236 = sbr.rel (0) target = $region97
    $region96: #{gcn_ww_forward.1} parent=1 // pred_region
      %237 = dma.done [#allocation8], 128
    $region97: #{gcn_ww_forward.1} parent=1 // pred_fallthru
      _
    // Predicated region
    $region98: #{gcn_ww_forward.1} parent=1 // pred_check
      _
    $region99: #{gcn_ww_forward.1} parent=1 // pred_check_branch
      %239 = sbr.rel (0) target = $region101
    $region100: #{gcn_ww_forward.1} parent=1 // pred_region
      %240 = dma.done [#allocation8], 65536
    $region101: #{gcn_ww_forward.1} parent=1 // pred_fallthru
      _
    // Predicated region
    $region102: #{gcn_ww_forward.1} parent=1 // pred_check
      _
    $region103: #{gcn_ww_forward.1} parent=1 // pred_check_branch
      %242 = sbr.rel (0) target = $region105
    $region104: #{gcn_ww_forward.1} parent=1 // pred_region
      %243 = dma.done [#allocation11], 128
    $region105: #{gcn_ww_forward.1} parent=1 // pred_fallthru
      _
    // Predicated region
    $region106: #{gcn_ww_forward.1} parent=1 // pred_check
      _
    $region107: #{gcn_ww_forward.1} parent=1 // pred_check_branch
      %245 = sbr.rel (0) target = $region109
    $region108: #{gcn_ww_forward.1} parent=1 // pred_region
      %246 = dma.done [#allocation11], 32768
    $region109: #{gcn_ww_forward.1} parent=1 // pred_fallthru
      _
    // Predicated region
    $region110: #{gcn_ww_forward.1} parent=1 // pred_check
      _
    $region111: #{gcn_ww_forward.1} parent=1 // pred_check_branch
      %248 = sbr.rel (0) target = $region113
    $region112: #{gcn_ww_forward.1} parent=1 // pred_region
      %249 = dma.done [#allocation14], 64
    $region113: #{gcn_ww_forward.1} parent=1 // pred_fallthru
      _
    // Predicated region
    $region114: #{gcn_ww_forward.1} parent=1 // pred_check
      _
    $region115: #{gcn_ww_forward.1} parent=1 // pred_check_branch
      %251 = sbr.rel (0) target = $region117
    $region116: #{gcn_ww_forward.1} parent=1 // pred_region
      %252 = dma.done [#allocation14], 8192
    $region117: #{gcn_ww_forward.1} parent=1 // pred_fallthru
      _
    // Predicated region
    $region118: #{gcn_ww_forward.1} parent=1 // pred_check
      _
    $region119: #{gcn_ww_forward.1} parent=1 // pred_check_branch
      %254 = sbr.rel (0) target = $region121
    $region120: #{gcn_ww_forward.1} parent=1 // pred_region
      %255 = dma.done [#allocation17], 32
    $region121: #{gcn_ww_forward.1} parent=1 // pred_fallthru
      _
    // Predicated region
    $region122: #{gcn_ww_forward.1} parent=1 // pred_check
      _
    $region123: #{gcn_ww_forward.1} parent=1 // pred_check_branch
      %257 = sbr.rel (0) target = $region125
    $region124: #{gcn_ww_forward.1} parent=1 // pred_region
      %258 = dma.done [#allocation17], 2048
    $region125: #{gcn_ww_forward.1} parent=1 // pred_fallthru
      _
    // Predicated region
    $region126: #{gcn_ww_forward.1} parent=1 // pred_check
      _
    $region127: #{gcn_ww_forward.1} parent=1 // pred_check_branch
      %260 = sbr.rel (0) target = $region129
    $region128: #{gcn_ww_forward.1} parent=1 // pred_region
      %261 = dma.done [#allocation20], 16
    $region129: #{gcn_ww_forward.1} parent=1 // pred_fallthru
      _
    // Predicated region
    $region130: #{gcn_ww_forward.1} parent=1 // pred_check
      _
    $region131: #{gcn_ww_forward.1} parent=1 // pred_check_branch
      %263 = sbr.rel (0) target = $region133
    $region132: #{gcn_ww_forward.1} parent=1 // pred_region
      %264 = dma.done [#allocation20], 1024
    $region133: #{gcn_ww_forward.1} parent=1 // pred_fallthru
      _
    // Predicated region
    $region134: #{gcn_ww_forward.1} parent=1 // pred_check
      _
    $region135: #{gcn_ww_forward.1} parent=1 // pred_check_branch
      %266 = sbr.rel (0) target = $region137
    $region136: #{gcn_ww_forward.1} parent=1 // pred_region
      %267 = dma.done [#allocation23], 16
    $region137: #{gcn_ww_forward.1} parent=1 // pred_fallthru
      _
    // Predicated region
    $region138: #{gcn_ww_forward.1} parent=1 // pred_check
      _
    $region139: #{gcn_ww_forward.1} parent=1 // pred_check_branch
      %269 = sbr.rel (0) target = $region141
    $region140: #{gcn_ww_forward.1} parent=1 // pred_region
      %270 = dma.done [#allocation23], 16
    $region141: #{gcn_ww_forward.1} parent=1 // pred_fallthru
      _
    // Predicated region
    $region142: #{gcn_ww_forward.1} parent=1 // pred_check
      _
    $region143: #{gcn_ww_forward.1} parent=1 // pred_check_branch
      %272 = sbr.rel (0) target = $region145
    $region144: #{gcn_ww_forward.1} parent=1 // pred_region
      %273 = dma.done [#allocation26], 512
    $region145: #{gcn_ww_forward.1} parent=1 // pred_fallthru
      _
    // Predicated region
    $region146: #{gcn_ww_forward.1} parent=1 // pred_check
      _
    $region147: #{gcn_ww_forward.1} parent=1 // pred_check_branch
      %275 = sbr.rel (0) target = $region149
    $region148: #{gcn_ww_forward.1} parent=1 // pred_region
      %276 = dma.done [#allocation26], 16
    $region149: #{gcn_ww_forward.1} parent=1 // pred_fallthru
      _
    %v278 = vld [vmem:[%s1] sm:$0xf]
    %v279 = vld [vmem:[%s1 + $0x4] sm:$0xf]
    %v280 = vld [vmem:[%s0] sm:$0xf]
    %v281 = vld [vmem:[%s0 + $0x4] sm:$0xf]
    %v282 = vld [vmem:[#allocation2] sm:$0xff]
    %v283 = vld [vmem:[#allocation2 + $0x8] sm:$0xff]
    %v284 = vld [vmem:[#allocation2 + $0x10] sm:$0xff]
    %v285 = vld [vmem:[#allocation2 + $0x18] sm:$0xff]
    %v286 = vld [vmem:[#allocation2 + $0x20] sm:$0xff]
    %v287 = vld [vmem:[#allocation2 + $0x28] sm:$0xff]
    %v288 = vld [vmem:[#allocation2 + $0x30] sm:$0xff]
    %v289 = vld [vmem:[#allocation2 + $0x38] sm:$0xff]
    %v290 = vld [vmem:[#allocation2 + $0x40] sm:$0xff]
    %v291 = vld [vmem:[#allocation2 + $0x48] sm:$0xff]
    %v292 = vld [vmem:[#allocation2 + $0x50] sm:$0xff]
    %v293 = vld [vmem:[#allocation2 + $0x58] sm:$0xff]
    %v294 = vld [vmem:[#allocation2 + $0x60] sm:$0xff]
    %v295 = vld [vmem:[#allocation2 + $0x68] sm:$0xff]
    %v296 = vld [vmem:[#allocation2 + $0x70] sm:$0xff]
    %v297 = vld [vmem:[#allocation2 + $0x78] sm:$0xff]
    %v298 = vld [vmem:[#allocation4] sm:$0xff]
    %v301 = vunpack.c.l.b16 %v280
    %v302 = vunpack.c.l.b16 %v281
    %v303 = vpack.c.b16 %v302, %v301
    %v320 = vunpack.c.l.b16 %v282
    %v321 = vunpack.c.h.b16 %v282
    %v322 = vunpack.c.l.b16 %v283
    %v323 = vunpack.c.h.b16 %v283
    %v324 = vunpack.c.l.b16 %v284
    %v325 = vunpack.c.h.b16 %v284
    %v326 = vunpack.c.l.b16 %v285
    %v327 = vunpack.c.h.b16 %v285
    %v328 = vunpack.c.l.b16 %v286
    %v329 = vunpack.c.h.b16 %v286
    %v330 = vunpack.c.l.b16 %v287
    %v331 = vunpack.c.h.b16 %v287
    %v332 = vunpack.c.l.b16 %v288
    %v333 = vunpack.c.h.b16 %v288
    %v334 = vunpack.c.l.b16 %v289
    %v335 = vunpack.c.h.b16 %v289
    %v336 = vunpack.c.l.b16 %v290
    %v337 = vunpack.c.h.b16 %v290
    %v338 = vunpack.c.l.b16 %v291
    %v339 = vunpack.c.h.b16 %v291
    %v340 = vunpack.c.l.b16 %v292
    %v341 = vunpack.c.h.b16 %v292
    %v342 = vunpack.c.l.b16 %v293
    %v343 = vunpack.c.h.b16 %v293
    %v344 = vunpack.c.l.b16 %v294
    %v345 = vunpack.c.h.b16 %v294
    %v346 = vunpack.c.l.b16 %v295
    %v347 = vunpack.c.h.b16 %v295
    %v348 = vunpack.c.l.b16 %v296
    %v349 = vunpack.c.h.b16 %v296
    %v350 = vunpack.c.l.b16 %v297
    %v351 = vunpack.c.h.b16 %v297
    %v352 = vpack.c.b16 %v328, %v320
    %v353 = vpack.c.b16 %v329, %v321
    %v354 = vpack.c.b16 %v330, %v322
    %v355 = vpack.c.b16 %v331, %v323
    %v356 = vpack.c.b16 %v332, %v324
    %v357 = vpack.c.b16 %v333, %v325
    %v358 = vpack.c.b16 %v334, %v326
    %v359 = vpack.c.b16 %v335, %v327
    %v360 = vpack.c.b16 %v344, %v336
    %v361 = vpack.c.b16 %v345, %v337
    %v362 = vpack.c.b16 %v346, %v338
    %v363 = vpack.c.b16 %v347, %v339
    %v364 = vpack.c.b16 %v348, %v340
    %v365 = vpack.c.b16 %v349, %v341
    %v366 = vpack.c.b16 %v350, %v342
    %v367 = vpack.c.b16 %v351, %v343
    %vm384 = vcmask 261120
    %v386 = vsel %vm384, %v303, 0
    %388 = vmatprep.subr.bf16.mxu0 %v353
    %389 = vmatpush1.bf16.msra.mxu0 %v352
    %390 = vmatprep.subr.bf16.mxu0 %v361
    %391 = vmatpush1.bf16.msra.mxu0 %v360
    %392 = vmatprep.subr.bf16.mxu0 0
    %393 = vmatpush1.bf16.msra.mxu0 0
    %394 = vmatprep.subr.bf16.mxu0 0
    %395 = vmatpush1.bf16.msra.mxu0 0
    %396 = vmatprep.subr.bf16.mxu0 0
    %397 = vmatpush1.bf16.msra.mxu0 0
    %398 = vmatprep.subr.bf16.mxu0 0
    %399 = vmatpush1.bf16.msra.mxu0 0
    %400 = vmatprep.subr.bf16.mxu0 0
    %401 = vmatpush1.bf16.msra.mxu0 0
    %402 = vmatprep.subr.bf16.mxu0 0
    %403 = vmatpush1.bf16.msra.mxu0 0
    %404 = vmatprep.subr.bf16.mxu0 0
    %405 = vmatpush1.bf16.msra.mxu0 0
    %406 = vmatprep.subr.bf16.mxu0 0
    %407 = vmatpush1.bf16.msra.mxu0 0
    %408 = vmatprep.subr.bf16.mxu0 0
    %409 = vmatpush1.bf16.msra.mxu0 0
    %410 = vmatprep.subr.bf16.mxu0 0
    %411 = vmatpush1.bf16.msra.mxu0 0
    %412 = vmatprep.subr.bf16.mxu0 0
    %413 = vmatpush1.bf16.msra.mxu0 0
    %414 = vmatprep.subr.bf16.mxu0 0
    %415 = vmatpush1.bf16.msra.mxu0 0
    %416 = vmatprep.subr.bf16.mxu0 0
    %417 = vmatpush1.bf16.msra.mxu0 0
    %418 = vmatprep.subr.bf16.mxu0 0
    %419 = vmatpush1.bf16.msra.mxu0 0
    %420 = vmatprep.mubr.bf16.mxu0 0
    %421 = vmatmul.mubr.bf16.gmra.mrb[0].mxu0 %v386
    %v422 = vpop.f32.mrb[0].mxu0
    %v423 = vadd.f32 0.0, %v422
    %v424 = vpop.f32.mrb[0].mxu0
    %v425 = vadd.f32 0.0, %v424
    %v426 = vpop.f32.mrb[0].mxu0
    %v427 = vadd.f32 0.0, %v426
    %v428 = vpop.f32.mrb[0].mxu0
    %v429 = vadd.f32 0.0, %v428
    %430 = vdwg.mxu0
    %431 = vmatprep.subr.bf16.mxu0 %v355
    %432 = vmatpush1.bf16.msra.mxu0 %v354
    %433 = vmatprep.subr.bf16.mxu0 %v363
    %434 = vmatpush1.bf16.msra.mxu0 %v362
    %435 = vmatprep.subr.bf16.mxu0 0
    %436 = vmatpush1.bf16.msra.mxu0 0
    %437 = vmatprep.subr.bf16.mxu0 0
    %438 = vmatpush1.bf16.msra.mxu0 0
    %439 = vmatprep.subr.bf16.mxu0 0
    %440 = vmatpush1.bf16.msra.mxu0 0
    %441 = vmatprep.subr.bf16.mxu0 0
    %442 = vmatpush1.bf16.msra.mxu0 0
    %443 = vmatprep.subr.bf16.mxu0 0
    %444 = vmatpush1.bf16.msra.mxu0 0
    %445 = vmatprep.subr.bf16.mxu0 0
    %446 = vmatpush1.bf16.msra.mxu0 0
    %447 = vmatprep.subr.bf16.mxu0 0
    %448 = vmatpush1.bf16.msra.mxu0 0
    %449 = vmatprep.subr.bf16.mxu0 0
    %450 = vmatpush1.bf16.msra.mxu0 0
    %451 = vmatprep.subr.bf16.mxu0 0
    %452 = vmatpush1.bf16.msra.mxu0 0
    %453 = vmatprep.subr.bf16.mxu0 0
    %454 = vmatpush1.bf16.msra.mxu0 0
    %455 = vmatprep.subr.bf16.mxu0 0
    %456 = vmatpush1.bf16.msra.mxu0 0
    %457 = vmatprep.subr.bf16.mxu0 0
    %458 = vmatpush1.bf16.msra.mxu0 0
    %459 = vmatprep.subr.bf16.mxu0 0
    %460 = vmatpush1.bf16.msra.mxu0 0
    %461 = vmatprep.subr.bf16.mxu0 0
    %462 = vmatpush1.bf16.msra.mxu0 0
    %463 = vmatprep.mubr.bf16.mxu0 0
    %464 = vmatmul.mubr.bf16.gmra.mrb[0].mxu0 %v386
    %v465 = vpop.f32.mrb[0].mxu0
    %v466 = vadd.f32 0.0, %v465
    %v467 = vpop.f32.mrb[0].mxu0
    %v468 = vadd.f32 0.0, %v467
    %v469 = vpop.f32.mrb[0].mxu0
    %v470 = vadd.f32 0.0, %v469
    %v471 = vpop.f32.mrb[0].mxu0
    %v472 = vadd.f32 0.0, %v471
    %473 = vdwg.mxu0
    %474 = vmatprep.subr.bf16.mxu0 %v357
    %475 = vmatpush1.bf16.msra.mxu0 %v356
    %476 = vmatprep.subr.bf16.mxu0 %v365
    %477 = vmatpush1.bf16.msra.mxu0 %v364
    %478 = vmatprep.subr.bf16.mxu0 0
    %479 = vmatpush1.bf16.msra.mxu0 0
    %480 = vmatprep.subr.bf16.mxu0 0
    %481 = vmatpush1.bf16.msra.mxu0 0
    %482 = vmatprep.subr.bf16.mxu0 0
    %483 = vmatpush1.bf16.msra.mxu0 0
    %484 = vmatprep.subr.bf16.mxu0 0
    %485 = vmatpush1.bf16.msra.mxu0 0
    %486 = vmatprep.subr.bf16.mxu0 0
    %487 = vmatpush1.bf16.msra.mxu0 0
    %488 = vmatprep.subr.bf16.mxu0 0
    %489 = vmatpush1.bf16.msra.mxu0 0
    %490 = vmatprep.subr.bf16.mxu0 0
    %491 = vmatpush1.bf16.msra.mxu0 0
    %492 = vmatprep.subr.bf16.mxu0 0
    %493 = vmatpush1.bf16.msra.mxu0 0
    %494 = vmatprep.subr.bf16.mxu0 0
    %495 = vmatpush1.bf16.msra.mxu0 0
    %496 = vmatprep.subr.bf16.mxu0 0
    %497 = vmatpush1.bf16.msra.mxu0 0
    %498 = vmatprep.subr.bf16.mxu0 0
    %499 = vmatpush1.bf16.msra.mxu0 0
    %500 = vmatprep.subr.bf16.mxu0 0
    %501 = vmatpush1.bf16.msra.mxu0 0
    %502 = vmatprep.subr.bf16.mxu0 0
    %503 = vmatpush1.bf16.msra.mxu0 0
    %504 = vmatprep.subr.bf16.mxu0 0
    %505 = vmatpush1.bf16.msra.mxu0 0
    %506 = vmatprep.mubr.bf16.mxu0 0
    %507 = vmatmul.mubr.bf16.gmra.mrb[0].mxu0 %v386
    %v508 = vpop.f32.mrb[0].mxu0
    %v509 = vadd.f32 0.0, %v508
    %v510 = vpop.f32.mrb[0].mxu0
    %v511 = vadd.f32 0.0, %v510
    %v512 = vpop.f32.mrb[0].mxu0
    %v513 = vadd.f32 0.0, %v512
    %v514 = vpop.f32.mrb[0].mxu0
    %v515 = vadd.f32 0.0, %v514
    %516 = vdwg.mxu0
    %517 = vmatprep.subr.bf16.mxu0 %v359
    %518 = vmatpush1.bf16.msra.mxu0 %v358
    %519 = vmatprep.subr.bf16.mxu0 %v367
    %520 = vmatpush1.bf16.msra.mxu0 %v366
    %521 = vmatprep.subr.bf16.mxu0 0
    %522 = vmatpush1.bf16.msra.mxu0 0
    %523 = vmatprep.subr.bf16.mxu0 0
    %524 = vmatpush1.bf16.msra.mxu0 0
    %525 = vmatprep.subr.bf16.mxu0 0
    %526 = vmatpush1.bf16.msra.mxu0 0
    %527 = vmatprep.subr.bf16.mxu0 0
    %528 = vmatpush1.bf16.msra.mxu0 0
    %529 = vmatprep.subr.bf16.mxu0 0
    %530 = vmatpush1.bf16.msra.mxu0 0
    %531 = vmatprep.subr.bf16.mxu0 0
    %532 = vmatpush1.bf16.msra.mxu0 0
    %533 = vmatprep.subr.bf16.mxu0 0
    %534 = vmatpush1.bf16.msra.mxu0 0
    %535 = vmatprep.subr.bf16.mxu0 0
    %536 = vmatpush1.bf16.msra.mxu0 0
    %537 = vmatprep.subr.bf16.mxu0 0
    %538 = vmatpush1.bf16.msra.mxu0 0
    %539 = vmatprep.subr.bf16.mxu0 0
    %540 = vmatpush1.bf16.msra.mxu0 0
    %541 = vmatprep.subr.bf16.mxu0 0
    %542 = vmatpush1.bf16.msra.mxu0 0
    %543 = vmatprep.subr.bf16.mxu0 0
    %544 = vmatpush1.bf16.msra.mxu0 0
    %545 = vmatprep.subr.bf16.mxu0 0
    %546 = vmatpush1.bf16.msra.mxu0 0
    %547 = vmatprep.subr.bf16.mxu0 0
    %548 = vmatpush1.bf16.msra.mxu0 0
    %549 = vmatprep.mubr.bf16.mxu0 0
    %550 = vmatmul.mubr.bf16.gmra.mrb[0].mxu0 %v386
    %v551 = vpop.f32.mrb[0].mxu0
    %v552 = vadd.f32 0.0, %v551
    %v553 = vpop.f32.mrb[0].mxu0
    %v554 = vadd.f32 0.0, %v553
    %v555 = vpop.f32.mrb[0].mxu0
    %v556 = vadd.f32 0.0, %v555
    %v557 = vpop.f32.mrb[0].mxu0
    %v558 = vadd.f32 0.0, %v557
    %559 = vdwg.mxu0
    %v560 = vpack.c.bf16 %v427, %v423
    %v561 = vpack.c.bf16 %v429, %v425
    %v562 = vpack.c.bf16 %v470, %v466
    %v563 = vpack.c.bf16 %v472, %v468
    %v564 = vpack.c.bf16 %v513, %v509
    %v565 = vpack.c.bf16 %v515, %v511
    %v566 = vpack.c.bf16 %v556, %v552
    %v567 = vpack.c.bf16 %v558, %v554
    %v569 = vlaneseq
    %v570 = vshrl.u32 %v569, 7
    %v571 = vsub.s32 0, %v570
    %v572 = vrot.slane %v298, %v571
    %v573 = vlaneseq
    %v574 = vshrl.u32 %v573, 7
    %v575 = vsub.s32 1, %v574
    %v576 = vrot.slane %v298, %v575
    %v577 = vlaneseq
    %v578 = vshrl.u32 %v577, 7
    %v579 = vsub.s32 2, %v578
    %v580 = vrot.slane %v298, %v579
    %v581 = vlaneseq
    %v582 = vshrl.u32 %v581, 7
    %v583 = vsub.s32 3, %v582
    %v584 = vrot.slane %v298, %v583
    %v585 = vlaneseq
    %v586 = vshrl.u32 %v585, 7
    %v587 = vsub.s32 4, %v586
    %v588 = vrot.slane %v298, %v587
    %v589 = vlaneseq
    %v590 = vshrl.u32 %v589, 7
    %v591 = vsub.s32 5, %v590
    %v592 = vrot.slane %v298, %v591
    %v593 = vlaneseq
    %v594 = vshrl.u32 %v593, 7
    %v595 = vsub.s32 6, %v594
    %v596 = vrot.slane %v298, %v595
    %v597 = vlaneseq
    %v598 = vshrl.u32 %v597, 7
    %v599 = vsub.s32 7, %v598
    %v600 = vrot.slane %v298, %v599
    %v611 = vunpack.c.l.b16 %v278
    %v612 = vunpack.c.l.b16 %v279
    %v613 = vpack.c.b16 %v612, %v611
    %vm614 = vcmask 130048
    %v616 = vsel %vm614, %v613, 0
    %618 = vmatprep.subr.bf16.mxu0 %v561
    %619 = vmatpush1.bf16.msra.mxu0 %v560
    %620 = vmatprep.subr.bf16.mxu0 0
    %621 = vmatpush1.bf16.msra.mxu0 0
    %622 = vmatprep.subr.bf16.mxu0 0
    %623 = vmatpush1.bf16.msra.mxu0 0
    %624 = vmatprep.subr.bf16.mxu0 0
    %625 = vmatpush1.bf16.msra.mxu0 0
    %626 = vmatprep.subr.bf16.mxu0 0
    %627 = vmatpush1.bf16.msra.mxu0 0
    %628 = vmatprep.subr.bf16.mxu0 0
    %629 = vmatpush1.bf16.msra.mxu0 0
    %630 = vmatprep.subr.bf16.mxu0 0
    %631 = vmatpush1.bf16.msra.mxu0 0
    %632 = vmatprep.subr.bf16.mxu0 0
    %633 = vmatpush1.bf16.msra.mxu0 0
    %634 = vmatprep.subr.bf16.mxu0 0
    %635 = vmatpush1.bf16.msra.mxu0 0
    %636 = vmatprep.subr.bf16.mxu0 0
    %637 = vmatpush1.bf16.msra.mxu0 0
    %638 = vmatprep.subr.bf16.mxu0 0
    %639 = vmatpush1.bf16.msra.mxu0 0
    %640 = vmatprep.subr.bf16.mxu0 0
    %641 = vmatpush1.bf16.msra.mxu0 0
    %642 = vmatprep.subr.bf16.mxu0 0
    %643 = vmatpush1.bf16.msra.mxu0 0
    %644 = vmatprep.subr.bf16.mxu0 0
    %645 = vmatpush1.bf16.msra.mxu0 0
    %646 = vmatprep.subr.bf16.mxu0 0
    %647 = vmatpush1.bf16.msra.mxu0 0
    %648 = vmatprep.subr.bf16.mxu0 0
    %649 = vmatpush1.bf16.msra.mxu0 0
    %650 = vmatprep.mubr.bf16.mxu0 0
    %651 = vmatmul.mubr.bf16.gmra.mrb[0].mxu0 %v616
    %v652 = vpop.f32.mrb[0].mxu0
    %v653 = vadd.f32 %v572, %v652
    %v654 = vpop.f32.mrb[0].mxu0
    %v655 = vadd.f32 %v576, %v654
    %v656 = vpop.f32.mrb[0].mxu0
    %v657 = vadd.f32 %v572, %v656
    %v658 = vpop.f32.mrb[0].mxu0
    %v659 = vadd.f32 %v576, %v658
    %660 = vdwg.mxu0
    %661 = vmatprep.subr.bf16.mxu0 %v563
    %662 = vmatpush1.bf16.msra.mxu0 %v562
    %663 = vmatprep.subr.bf16.mxu0 0
    %664 = vmatpush1.bf16.msra.mxu0 0
    %665 = vmatprep.subr.bf16.mxu0 0
    %666 = vmatpush1.bf16.msra.mxu0 0
    %667 = vmatprep.subr.bf16.mxu0 0
    %668 = vmatpush1.bf16.msra.mxu0 0
    %669 = vmatprep.subr.bf16.mxu0 0
    %670 = vmatpush1.bf16.msra.mxu0 0
    %671 = vmatprep.subr.bf16.mxu0 0
    %672 = vmatpush1.bf16.msra.mxu0 0
    %673 = vmatprep.subr.bf16.mxu0 0
    %674 = vmatpush1.bf16.msra.mxu0 0
    %675 = vmatprep.subr.bf16.mxu0 0
    %676 = vmatpush1.bf16.msra.mxu0 0
    %677 = vmatprep.subr.bf16.mxu0 0
    %678 = vmatpush1.bf16.msra.mxu0 0
    %679 = vmatprep.subr.bf16.mxu0 0
    %680 = vmatpush1.bf16.msra.mxu0 0
    %681 = vmatprep.subr.bf16.mxu0 0
    %682 = vmatpush1.bf16.msra.mxu0 0
    %683 = vmatprep.subr.bf16.mxu0 0
    %684 = vmatpush1.bf16.msra.mxu0 0
    %685 = vmatprep.subr.bf16.mxu0 0
    %686 = vmatpush1.bf16.msra.mxu0 0
    %687 = vmatprep.subr.bf16.mxu0 0
    %688 = vmatpush1.bf16.msra.mxu0 0
    %689 = vmatprep.subr.bf16.mxu0 0
    %690 = vmatpush1.bf16.msra.mxu0 0
    %691 = vmatprep.subr.bf16.mxu0 0
    %692 = vmatpush1.bf16.msra.mxu0 0
    %693 = vmatprep.mubr.bf16.mxu0 0
    %694 = vmatmul.mubr.bf16.gmra.mrb[0].mxu0 %v616
    %v695 = vpop.f32.mrb[0].mxu0
    %v696 = vadd.f32 %v580, %v695
    %v697 = vpop.f32.mrb[0].mxu0
    %v698 = vadd.f32 %v584, %v697
    %v699 = vpop.f32.mrb[0].mxu0
    %v700 = vadd.f32 %v580, %v699
    %v701 = vpop.f32.mrb[0].mxu0
    %v702 = vadd.f32 %v584, %v701
    %703 = vdwg.mxu0
    %704 = vmatprep.subr.bf16.mxu0 %v565
    %705 = vmatpush1.bf16.msra.mxu0 %v564
    %706 = vmatprep.subr.bf16.mxu0 0
    %707 = vmatpush1.bf16.msra.mxu0 0
    %708 = vmatprep.subr.bf16.mxu0 0
    %709 = vmatpush1.bf16.msra.mxu0 0
    %710 = vmatprep.subr.bf16.mxu0 0
    %711 = vmatpush1.bf16.msra.mxu0 0
    %712 = vmatprep.subr.bf16.mxu0 0
    %713 = vmatpush1.bf16.msra.mxu0 0
    %714 = vmatprep.subr.bf16.mxu0 0
    %715 = vmatpush1.bf16.msra.mxu0 0
    %716 = vmatprep.subr.bf16.mxu0 0
    %717 = vmatpush1.bf16.msra.mxu0 0
    %718 = vmatprep.subr.bf16.mxu0 0
    %719 = vmatpush1.bf16.msra.mxu0 0
    %720 = vmatprep.subr.bf16.mxu0 0
    %721 = vmatpush1.bf16.msra.mxu0 0
    %722 = vmatprep.subr.bf16.mxu0 0
    %723 = vmatpush1.bf16.msra.mxu0 0
    %724 = vmatprep.subr.bf16.mxu0 0
    %725 = vmatpush1.bf16.msra.mxu0 0
    %726 = vmatprep.subr.bf16.mxu0 0
    %727 = vmatpush1.bf16.msra.mxu0 0
    %728 = vmatprep.subr.bf16.mxu0 0
    %729 = vmatpush1.bf16.msra.mxu0 0
    %730 = vmatprep.subr.bf16.mxu0 0
    %731 = vmatpush1.bf16.msra.mxu0 0
    %732 = vmatprep.subr.bf16.mxu0 0
    %733 = vmatpush1.bf16.msra.mxu0 0
    %734 = vmatprep.subr.bf16.mxu0 0
    %735 = vmatpush1.bf16.msra.mxu0 0
    %736 = vmatprep.mubr.bf16.mxu0 0
    %737 = vmatmul.mubr.bf16.gmra.mrb[0].mxu0 %v616
    %v738 = vpop.f32.mrb[0].mxu0
    %v739 = vadd.f32 %v588, %v738
    %v740 = vpop.f32.mrb[0].mxu0
    %v741 = vadd.f32 %v592, %v740
    %v742 = vpop.f32.mrb[0].mxu0
    %v743 = vadd.f32 %v588, %v742
    %v744 = vpop.f32.mrb[0].mxu0
    %v745 = vadd.f32 %v592, %v744
    %746 = vdwg.mxu0
    %747 = vmatprep.subr.bf16.mxu0 %v567
    %748 = vmatpush1.bf16.msra.mxu0 %v566
    %749 = vmatprep.subr.bf16.mxu0 0
    %750 = vmatpush1.bf16.msra.mxu0 0
    %751 = vmatprep.subr.bf16.mxu0 0
    %752 = vmatpush1.bf16.msra.mxu0 0
    %753 = vmatprep.subr.bf16.mxu0 0
    %754 = vmatpush1.bf16.msra.mxu0 0
    %755 = vmatprep.subr.bf16.mxu0 0
    %756 = vmatpush1.bf16.msra.mxu0 0
    %757 = vmatprep.subr.bf16.mxu0 0
    %758 = vmatpush1.bf16.msra.mxu0 0
    %759 = vmatprep.subr.bf16.mxu0 0
    %760 = vmatpush1.bf16.msra.mxu0 0
    %761 = vmatprep.subr.bf16.mxu0 0
    %762 = vmatpush1.bf16.msra.mxu0 0
    %763 = vmatprep.subr.bf16.mxu0 0
    %764 = vmatpush1.bf16.msra.mxu0 0
    %765 = vmatprep.subr.bf16.mxu0 0
    %766 = vmatpush1.bf16.msra.mxu0 0
    %767 = vmatprep.subr.bf16.mxu0 0
    %768 = vmatpush1.bf16.msra.mxu0 0
    %769 = vmatprep.subr.bf16.mxu0 0
    %770 = vmatpush1.bf16.msra.mxu0 0
    %771 = vmatprep.subr.bf16.mxu0 0
    %772 = vmatpush1.bf16.msra.mxu0 0
    %773 = vmatprep.subr.bf16.mxu0 0
    %774 = vmatpush1.bf16.msra.mxu0 0
    %775 = vmatprep.subr.bf16.mxu0 0
    %776 = vmatpush1.bf16.msra.mxu0 0
    %777 = vmatprep.subr.bf16.mxu0 0
    %778 = vmatpush1.bf16.msra.mxu0 0
    %779 = vmatprep.mubr.bf16.mxu0 0
    %780 = vmatmul.mubr.bf16.gmra.mrb[0].mxu0 %v616
    %v781 = vpop.f32.mrb[0].mxu0
    %v782 = vadd.f32 %v596, %v781
    %v783 = vpop.f32.mrb[0].mxu0
    %v784 = vadd.f32 %v600, %v783
    %v785 = vpop.f32.mrb[0].mxu0
    %v786 = vadd.f32 %v596, %v785
    %v787 = vpop.f32.mrb[0].mxu0
    %v788 = vadd.f32 %v600, %v787
    %789 = vdwg.mxu0
    %v790 = vmax.f32 %v653, 0.0
    %v791 = vmax.f32 %v655, 0.0
    %v792 = vmax.f32 %v696, 0.0
    %v793 = vmax.f32 %v698, 0.0
    %v794 = vmax.f32 %v739, 0.0
    %v795 = vmax.f32 %v741, 0.0
    %v796 = vmax.f32 %v782, 0.0
    %v797 = vmax.f32 %v784, 0.0
    %v798 = vmax.f32 %v657, 0.0
    %v799 = vmax.f32 %v659, 0.0
    %v800 = vmax.f32 %v700, 0.0
    %v801 = vmax.f32 %v702, 0.0
    %v802 = vmax.f32 %v743, 0.0
    %v803 = vmax.f32 %v745, 0.0
    %v804 = vmax.f32 %v786, 0.0
    %v805 = vmax.f32 %v788, 0.0
    %v806 = vpack.c.bf16 %v798, %v790
    %v807 = vpack.c.bf16 %v799, %v791
    %v808 = vpack.c.bf16 %v800, %v792
    %v809 = vpack.c.bf16 %v801, %v793
    %v810 = vpack.c.bf16 %v802, %v794
    %v811 = vpack.c.bf16 %v803, %v795
    %v812 = vpack.c.bf16 %v804, %v796
    %v813 = vpack.c.bf16 %v805, %v797
    %v814 = vld [vmem:[#allocation6] sm:$0xff]
    %v815 = vld [vmem:[#allocation6 + $0x8] sm:$0xff]
    %v816 = vld [vmem:[#allocation6 + $0x10] sm:$0xff]
    %v817 = vld [vmem:[#allocation6 + $0x18] sm:$0xff]
    %v818 = vld [vmem:[#allocation6 + $0x20] sm:$0xff]
    %v819 = vld [vmem:[#allocation6 + $0x28] sm:$0xff]
    %v820 = vld [vmem:[#allocation6 + $0x30] sm:$0xff]
    %v821 = vld [vmem:[#allocation6 + $0x38] sm:$0xff]
    %v822 = vld [vmem:[#allocation6 + $0x40] sm:$0xff]
    %v823 = vld [vmem:[#allocation6 + $0x48] sm:$0xff]
    %v824 = vld [vmem:[#allocation6 + $0x50] sm:$0xff]
    %v825 = vld [vmem:[#allocation6 + $0x58] sm:$0xff]
    %v826 = vld [vmem:[#allocation6 + $0x60] sm:$0xff]
    %v827 = vld [vmem:[#allocation6 + $0x68] sm:$0xff]
    %v828 = vld [vmem:[#allocation6 + $0x70] sm:$0xff]
    %v829 = vld [vmem:[#allocation6 + $0x78] sm:$0xff]
    %v830 = vld [vmem:[#allocation6 + $0x80] sm:$0xff]
    %v831 = vld [vmem:[#allocation6 + $0x88] sm:$0xff]
    %v832 = vld [vmem:[#allocation6 + $0x90] sm:$0xff]
    %v833 = vld [vmem:[#allocation6 + $0x98] sm:$0xff]
    %v834 = vld [vmem:[#allocation6 + $0xa0] sm:$0xff]
    %v835 = vld [vmem:[#allocation6 + $0xa8] sm:$0xff]
    %v836 = vld [vmem:[#allocation6 + $0xb0] sm:$0xff]
    %v837 = vld [vmem:[#allocation6 + $0xb8] sm:$0xff]
    %v838 = vld [vmem:[#allocation6 + $0xc0] sm:$0xff]
    %v839 = vld [vmem:[#allocation6 + $0xc8] sm:$0xff]
    %v840 = vld [vmem:[#allocation6 + $0xd0] sm:$0xff]
    %v841 = vld [vmem:[#allocation6 + $0xd8] sm:$0xff]
    %v842 = vld [vmem:[#allocation6 + $0xe0] sm:$0xff]
    %v843 = vld [vmem:[#allocation6 + $0xe8] sm:$0xff]
    %v844 = vld [vmem:[#allocation6 + $0xf0] sm:$0xff]
    %v845 = vld [vmem:[#allocation6 + $0xf8] sm:$0xff]
    %v846 = vld [vmem:[#allocation6 + $0x100] sm:$0xff]
    %v847 = vld [vmem:[#allocation6 + $0x108] sm:$0xff]
    %v848 = vld [vmem:[#allocation6 + $0x110] sm:$0xff]
    %v849 = vld [vmem:[#allocation6 + $0x118] sm:$0xff]
    %v850 = vld [vmem:[#allocation6 + $0x120] sm:$0xff]
    %v851 = vld [vmem:[#allocation6 + $0x128] sm:$0xff]
    %v852 = vld [vmem:[#allocation6 + $0x130] sm:$0xff]
    %v853 = vld [vmem:[#allocation6 + $0x138] sm:$0xff]
    %v854 = vld [vmem:[#allocation6 + $0x140] sm:$0xff]
    %v855 = vld [vmem:[#allocation6 + $0x148] sm:$0xff]
    %v856 = vld [vmem:[#allocation6 + $0x150] sm:$0xff]
    %v857 = vld [vmem:[#allocation6 + $0x158] sm:$0xff]
    %v858 = vld [vmem:[#allocation6 + $0x160] sm:$0xff]
    %v859 = vld [vmem:[#allocation6 + $0x168] sm:$0xff]
    %v860 = vld [vmem:[#allocation6 + $0x170] sm:$0xff]
    %v861 = vld [vmem:[#allocation6 + $0x178] sm:$0xff]
    %v862 = vld [vmem:[#allocation6 + $0x180] sm:$0xff]
    %v863 = vld [vmem:[#allocation6 + $0x188] sm:$0xff]
    %v864 = vld [vmem:[#allocation6 + $0x190] sm:$0xff]
    %v865 = vld [vmem:[#allocation6 + $0x198] sm:$0xff]
    %v866 = vld [vmem:[#allocation6 + $0x1a0] sm:$0xff]
    %v867 = vld [vmem:[#allocation6 + $0x1a8] sm:$0xff]
    %v868 = vld [vmem:[#allocation6 + $0x1b0] sm:$0xff]
    %v869 = vld [vmem:[#allocation6 + $0x1b8] sm:$0xff]
    %v870 = vld [vmem:[#allocation6 + $0x1c0] sm:$0xff]
    %v871 = vld [vmem:[#allocation6 + $0x1c8] sm:$0xff]
    %v872 = vld [vmem:[#allocation6 + $0x1d0] sm:$0xff]
    %v873 = vld [vmem:[#allocation6 + $0x1d8] sm:$0xff]
    %v874 = vld [vmem:[#allocation6 + $0x1e0] sm:$0xff]
    %v875 = vld [vmem:[#allocation6 + $0x1e8] sm:$0xff]
    %v876 = vld [vmem:[#allocation6 + $0x1f0] sm:$0xff]
    %v877 = vld [vmem:[#allocation6 + $0x1f8] sm:$0xff]
    %v878 = vld [vmem:[#allocation6 + $0x200] sm:$0xff]
    %v879 = vld [vmem:[#allocation6 + $0x208] sm:$0xff]
    %v880 = vld [vmem:[#allocation6 + $0x210] sm:$0xff]
    %v881 = vld [vmem:[#allocation6 + $0x218] sm:$0xff]
    %v882 = vld [vmem:[#allocation6 + $0x220] sm:$0xff]
    %v883 = vld [vmem:[#allocation6 + $0x228] sm:$0xff]
    %v884 = vld [vmem:[#allocation6 + $0x230] sm:$0xff]
    %v885 = vld [vmem:[#allocation6 + $0x238] sm:$0xff]
    %v886 = vld [vmem:[#allocation6 + $0x240] sm:$0xff]
    %v887 = vld [vmem:[#allocation6 + $0x248] sm:$0xff]
    %v888 = vld [vmem:[#allocation6 + $0x250] sm:$0xff]
    %v889 = vld [vmem:[#allocation6 + $0x258] sm:$0xff]
    %v890 = vld [vmem:[#allocation6 + $0x260] sm:$0xff]
    %v891 = vld [vmem:[#allocation6 + $0x268] sm:$0xff]
    %v892 = vld [vmem:[#allocation6 + $0x270] sm:$0xff]
    %v893 = vld [vmem:[#allocation6 + $0x278] sm:$0xff]
    %v894 = vld [vmem:[#allocation6 + $0x280] sm:$0xff]
    %v895 = vld [vmem:[#allocation6 + $0x288] sm:$0xff]
    %v896 = vld [vmem:[#allocation6 + $0x290] sm:$0xff]
    %v897 = vld [vmem:[#allocation6 + $0x298] sm:$0xff]
    %v898 = vld [vmem:[#allocation6 + $0x2a0] sm:$0xff]
    %v899 = vld [vmem:[#allocation6 + $0x2a8] sm:$0xff]
    %v900 = vld [vmem:[#allocation6 + $0x2b0] sm:$0xff]
    %v901 = vld [vmem:[#allocation6 + $0x2b8] sm:$0xff]
    %v902 = vld [vmem:[#allocation6 + $0x2c0] sm:$0xff]
    %v903 = vld [vmem:[#allocation6 + $0x2c8] sm:$0xff]
    %v904 = vld [vmem:[#allocation6 + $0x2d0] sm:$0xff]
    %v905 = vld [vmem:[#allocation6 + $0x2d8] sm:$0xff]
    %v906 = vld [vmem:[#allocation6 + $0x2e0] sm:$0xff]
    %v907 = vld [vmem:[#allocation6 + $0x2e8] sm:$0xff]
    %v908 = vld [vmem:[#allocation6 + $0x2f0] sm:$0xff]
    %v909 = vld [vmem:[#allocation6 + $0x2f8] sm:$0xff]
    %v910 = vld [vmem:[#allocation6 + $0x300] sm:$0xff]
    %v911 = vld [vmem:[#allocation6 + $0x308] sm:$0xff]
    %v912 = vld [vmem:[#allocation6 + $0x310] sm:$0xff]
    %v913 = vld [vmem:[#allocation6 + $0x318] sm:$0xff]
    %v914 = vld [vmem:[#allocation6 + $0x320] sm:$0xff]
    %v915 = vld [vmem:[#allocation6 + $0x328] sm:$0xff]
    %v916 = vld [vmem:[#allocation6 + $0x330] sm:$0xff]
    %v917 = vld [vmem:[#allocation6 + $0x338] sm:$0xff]
    %v918 = vld [vmem:[#allocation6 + $0x340] sm:$0xff]
    %v919 = vld [vmem:[#allocation6 + $0x348] sm:$0xff]
    %v920 = vld [vmem:[#allocation6 + $0x350] sm:$0xff]
    %v921 = vld [vmem:[#allocation6 + $0x358] sm:$0xff]
    %v922 = vld [vmem:[#allocation6 + $0x360] sm:$0xff]
    %v923 = vld [vmem:[#allocation6 + $0x368] sm:$0xff]
    %v924 = vld [vmem:[#allocation6 + $0x370] sm:$0xff]
    %v925 = vld [vmem:[#allocation6 + $0x378] sm:$0xff]
    %v926 = vld [vmem:[#allocation6 + $0x380] sm:$0xff]
    %v927 = vld [vmem:[#allocation6 + $0x388] sm:$0xff]
    %v928 = vld [vmem:[#allocation6 + $0x390] sm:$0xff]
    %v929 = vld [vmem:[#allocation6 + $0x398] sm:$0xff]
    %v930 = vld [vmem:[#allocation6 + $0x3a0] sm:$0xff]
    %v931 = vld [vmem:[#allocation6 + $0x3a8] sm:$0xff]
    %v932 = vld [vmem:[#allocation6 + $0x3b0] sm:$0xff]
    %v933 = vld [vmem:[#allocation6 + $0x3b8] sm:$0xff]
    %v934 = vld [vmem:[#allocation6 + $0x3c0] sm:$0xff]
    %v935 = vld [vmem:[#allocation6 + $0x3c8] sm:$0xff]
    %v936 = vld [vmem:[#allocation6 + $0x3d0] sm:$0xff]
    %v937 = vld [vmem:[#allocation6 + $0x3d8] sm:$0xff]
    %v938 = vld [vmem:[#allocation6 + $0x3e0] sm:$0xff]
    %v939 = vld [vmem:[#allocation6 + $0x3e8] sm:$0xff]
    %v940 = vld [vmem:[#allocation6 + $0x3f0] sm:$0xff]
    %v941 = vld [vmem:[#allocation6 + $0x3f8] sm:$0xff]
    %v942 = vld [vmem:[#allocation6 + $0x400] sm:$0xff]
    %v943 = vld [vmem:[#allocation6 + $0x408] sm:$0xff]
    %v944 = vld [vmem:[#allocation6 + $0x410] sm:$0xff]
    %v945 = vld [vmem:[#allocation6 + $0x418] sm:$0xff]
    %v946 = vld [vmem:[#allocation6 + $0x420] sm:$0xff]
    %v947 = vld [vmem:[#allocation6 + $0x428] sm:$0xff]
    %v948 = vld [vmem:[#allocation6 + $0x430] sm:$0xff]
    %v949 = vld [vmem:[#allocation6 + $0x438] sm:$0xff]
    %v950 = vld [vmem:[#allocation6 + $0x440] sm:$0xff]
    %v951 = vld [vmem:[#allocation6 + $0x448] sm:$0xff]
    %v952 = vld [vmem:[#allocation6 + $0x450] sm:$0xff]
    %v953 = vld [vmem:[#allocation6 + $0x458] sm:$0xff]
    %v954 = vld [vmem:[#allocation6 + $0x460] sm:$0xff]
    %v955 = vld [vmem:[#allocation6 + $0x468] sm:$0xff]
    %v956 = vld [vmem:[#allocation6 + $0x470] sm:$0xff]
    %v957 = vld [vmem:[#allocation6 + $0x478] sm:$0xff]
    %v958 = vld [vmem:[#allocation6 + $0x480] sm:$0xff]
    %v959 = vld [vmem:[#allocation6 + $0x488] sm:$0xff]
    %v960 = vld [vmem:[#allocation6 + $0x490] sm:$0xff]
    %v961 = vld [vmem:[#allocation6 + $0x498] sm:$0xff]
    %v962 = vld [vmem:[#allocation6 + $0x4a0] sm:$0xff]
    %v963 = vld [vmem:[#allocation6 + $0x4a8] sm:$0xff]
    %v964 = vld [vmem:[#allocation6 + $0x4b0] sm:$0xff]
    %v965 = vld [vmem:[#allocation6 + $0x4b8] sm:$0xff]
    %v966 = vld [vmem:[#allocation6 + $0x4c0] sm:$0xff]
    %v967 = vld [vmem:[#allocation6 + $0x4c8] sm:$0xff]
    %v968 = vld [vmem:[#allocation6 + $0x4d0] sm:$0xff]
    %v969 = vld [vmem:[#allocation6 + $0x4d8] sm:$0xff]
    %v970 = vld [vmem:[#allocation6 + $0x4e0] sm:$0xff]
    %v971 = vld [vmem:[#allocation6 + $0x4e8] sm:$0xff]
    %v972 = vld [vmem:[#allocation6 + $0x4f0] sm:$0xff]
    %v973 = vld [vmem:[#allocation6 + $0x4f8] sm:$0xff]
    %v974 = vld [vmem:[#allocation6 + $0x500] sm:$0xff]
    %v975 = vld [vmem:[#allocation6 + $0x508] sm:$0xff]
    %v976 = vld [vmem:[#allocation6 + $0x510] sm:$0xff]
    %v977 = vld [vmem:[#allocation6 + $0x518] sm:$0xff]
    %v978 = vld [vmem:[#allocation6 + $0x520] sm:$0xff]
    %v979 = vld [vmem:[#allocation6 + $0x528] sm:$0xff]
    %v980 = vld [vmem:[#allocation6 + $0x530] sm:$0xff]
    %v981 = vld [vmem:[#allocation6 + $0x538] sm:$0xff]
    %v982 = vld [vmem:[#allocation6 + $0x540] sm:$0xff]
    %v983 = vld [vmem:[#allocation6 + $0x548] sm:$0xff]
    %v984 = vld [vmem:[#allocation6 + $0x550] sm:$0xff]
    %v985 = vld [vmem:[#allocation6 + $0x558] sm:$0xff]
    %v986 = vld [vmem:[#allocation6 + $0x560] sm:$0xff]
    %v987 = vld [vmem:[#allocation6 + $0x568] sm:$0xff]
    %v988 = vld [vmem:[#allocation6 + $0x570] sm:$0xff]
    %v989 = vld [vmem:[#allocation6 + $0x578] sm:$0xff]
    %v990 = vld [vmem:[#allocation6 + $0x580] sm:$0xff]
    %v991 = vld [vmem:[#allocation6 + $0x588] sm:$0xff]
    %v992 = vld [vmem:[#allocation6 + $0x590] sm:$0xff]
    %v993 = vld [vmem:[#allocation6 + $0x598] sm:$0xff]
    %v994 = vld [vmem:[#allocation6 + $0x5a0] sm:$0xff]
    %v995 = vld [vmem:[#allocation6 + $0x5a8] sm:$0xff]
    %v996 = vld [vmem:[#allocation6 + $0x5b0] sm:$0xff]
    %v997 = vld [vmem:[#allocation6 + $0x5b8] sm:$0xff]
    %v998 = vld [vmem:[#allocation6 + $0x5c0] sm:$0xff]
    %v999 = vld [vmem:[#allocation6 + $0x5c8] sm:$0xff]
    %v1000 = vld [vmem:[#allocation6 + $0x5d0] sm:$0xff]
    %v1001 = vld [vmem:[#allocation6 + $0x5d8] sm:$0xff]
    %v1002 = vld [vmem:[#allocation6 + $0x5e0] sm:$0xff]
    %v1003 = vld [vmem:[#allocation6 + $0x5e8] sm:$0xff]
    %v1004 = vld [vmem:[#allocation6 + $0x5f0] sm:$0xff]
    %v1005 = vld [vmem:[#allocation6 + $0x5f8] sm:$0xff]
    %v1006 = vld [vmem:[#allocation6 + $0x600] sm:$0xff]
    %v1007 = vld [vmem:[#allocation6 + $0x608] sm:$0xff]
    %v1008 = vld [vmem:[#allocation6 + $0x610] sm:$0xff]
    %v1009 = vld [vmem:[#allocation6 + $0x618] sm:$0xff]
    %v1010 = vld [vmem:[#allocation6 + $0x620] sm:$0xff]
    %v1011 = vld [vmem:[#allocation6 + $0x628] sm:$0xff]
    %v1012 = vld [vmem:[#allocation6 + $0x630] sm:$0xff]
    %v1013 = vld [vmem:[#allocation6 + $0x638] sm:$0xff]
    %v1014 = vld [vmem:[#allocation6 + $0x640] sm:$0xff]
    %v1015 = vld [vmem:[#allocation6 + $0x648] sm:$0xff]
    %v1016 = vld [vmem:[#allocation6 + $0x650] sm:$0xff]
    %v1017 = vld [vmem:[#allocation6 + $0x658] sm:$0xff]
    %v1018 = vld [vmem:[#allocation6 + $0x660] sm:$0xff]
    %v1019 = vld [vmem:[#allocation6 + $0x668] sm:$0xff]
    %v1020 = vld [vmem:[#allocation6 + $0x670] sm:$0xff]
    %v1021 = vld [vmem:[#allocation6 + $0x678] sm:$0xff]
    %v1022 = vld [vmem:[#allocation6 + $0x680] sm:$0xff]
    %v1023 = vld [vmem:[#allocation6 + $0x688] sm:$0xff]
    %v1024 = vld [vmem:[#allocation6 + $0x690] sm:$0xff]
    %v1025 = vld [vmem:[#allocation6 + $0x698] sm:$0xff]
    %v1026 = vld [vmem:[#allocation6 + $0x6a0] sm:$0xff]
    %v1027 = vld [vmem:[#allocation6 + $0x6a8] sm:$0xff]
    %v1028 = vld [vmem:[#allocation6 + $0x6b0] sm:$0xff]
    %v1029 = vld [vmem:[#allocation6 + $0x6b8] sm:$0xff]
    %v1030 = vld [vmem:[#allocation6 + $0x6c0] sm:$0xff]
    %v1031 = vld [vmem:[#allocation6 + $0x6c8] sm:$0xff]
    %v1032 = vld [vmem:[#allocation6 + $0x6d0] sm:$0xff]
    %v1033 = vld [vmem:[#allocation6 + $0x6d8] sm:$0xff]
    %v1034 = vld [vmem:[#allocation6 + $0x6e0] sm:$0xff]
    %v1035 = vld [vmem:[#allocation6 + $0x6e8] sm:$0xff]
    %v1036 = vld [vmem:[#allocation6 + $0x6f0] sm:$0xff]
    %v1037 = vld [vmem:[#allocation6 + $0x6f8] sm:$0xff]
    %v1038 = vld [vmem:[#allocation6 + $0x700] sm:$0xff]
    %v1039 = vld [vmem:[#allocation6 + $0x708] sm:$0xff]
    %v1040 = vld [vmem:[#allocation6 + $0x710] sm:$0xff]
    %v1041 = vld [vmem:[#allocation6 + $0x718] sm:$0xff]
    %v1042 = vld [vmem:[#allocation6 + $0x720] sm:$0xff]
    %v1043 = vld [vmem:[#allocation6 + $0x728] sm:$0xff]
    %v1044 = vld [vmem:[#allocation6 + $0x730] sm:$0xff]
    %v1045 = vld [vmem:[#allocation6 + $0x738] sm:$0xff]
    %v1046 = vld [vmem:[#allocation6 + $0x740] sm:$0xff]
    %v1047 = vld [vmem:[#allocation6 + $0x748] sm:$0xff]
    %v1048 = vld [vmem:[#allocation6 + $0x750] sm:$0xff]
    %v1049 = vld [vmem:[#allocation6 + $0x758] sm:$0xff]
    %v1050 = vld [vmem:[#allocation6 + $0x760] sm:$0xff]
    %v1051 = vld [vmem:[#allocation6 + $0x768] sm:$0xff]
    %v1052 = vld [vmem:[#allocation6 + $0x770] sm:$0xff]
    %v1053 = vld [vmem:[#allocation6 + $0x778] sm:$0xff]
    %v1054 = vld [vmem:[#allocation6 + $0x780] sm:$0xff]
    %v1055 = vld [vmem:[#allocation6 + $0x788] sm:$0xff]
    %v1056 = vld [vmem:[#allocation6 + $0x790] sm:$0xff]
    %v1057 = vld [vmem:[#allocation6 + $0x798] sm:$0xff]
    %v1058 = vld [vmem:[#allocation6 + $0x7a0] sm:$0xff]
    %v1059 = vld [vmem:[#allocation6 + $0x7a8] sm:$0xff]
    %v1060 = vld [vmem:[#allocation6 + $0x7b0] sm:$0xff]
    %v1061 = vld [vmem:[#allocation6 + $0x7b8] sm:$0xff]
    %v1062 = vld [vmem:[#allocation6 + $0x7c0] sm:$0xff]
    %v1063 = vld [vmem:[#allocation6 + $0x7c8] sm:$0xff]
    %v1064 = vld [vmem:[#allocation6 + $0x7d0] sm:$0xff]
    %v1065 = vld [vmem:[#allocation6 + $0x7d8] sm:$0xff]
    %v1066 = vld [vmem:[#allocation6 + $0x7e0] sm:$0xff]
    %v1067 = vld [vmem:[#allocation6 + $0x7e8] sm:$0xff]
    %v1068 = vld [vmem:[#allocation6 + $0x7f0] sm:$0xff]
    %v1069 = vld [vmem:[#allocation6 + $0x7f8] sm:$0xff]
    %v1070 = vld [vmem:[#allocation6 + $0x800] sm:$0xff]
    %v1071 = vld [vmem:[#allocation6 + $0x808] sm:$0xff]
    %v1072 = vld [vmem:[#allocation6 + $0x810] sm:$0xff]
    %v1073 = vld [vmem:[#allocation6 + $0x818] sm:$0xff]
    %v1074 = vld [vmem:[#allocation6 + $0x820] sm:$0xff]
    %v1075 = vld [vmem:[#allocation6 + $0x828] sm:$0xff]
    %v1076 = vld [vmem:[#allocation6 + $0x830] sm:$0xff]
    %v1077 = vld [vmem:[#allocation6 + $0x838] sm:$0xff]
    %v1078 = vld [vmem:[#allocation6 + $0x840] sm:$0xff]
    %v1079 = vld [vmem:[#allocation6 + $0x848] sm:$0xff]
    %v1080 = vld [vmem:[#allocation6 + $0x850] sm:$0xff]
    %v1081 = vld [vmem:[#allocation6 + $0x858] sm:$0xff]
    %v1082 = vld [vmem:[#allocation6 + $0x860] sm:$0xff]
    %v1083 = vld [vmem:[#allocation6 + $0x868] sm:$0xff]
    %v1084 = vld [vmem:[#allocation6 + $0x870] sm:$0xff]
    %v1085 = vld [vmem:[#allocation6 + $0x878] sm:$0xff]
    %v1086 = vld [vmem:[#allocation6 + $0x880] sm:$0xff]
    %v1087 = vld [vmem:[#allocation6 + $0x888] sm:$0xff]
    %v1088 = vld [vmem:[#allocation6 + $0x890] sm:$0xff]
    %v1089 = vld [vmem:[#allocation6 + $0x898] sm:$0xff]
    %v1090 = vld [vmem:[#allocation6 + $0x8a0] sm:$0xff]
    %v1091 = vld [vmem:[#allocation6 + $0x8a8] sm:$0xff]
    %v1092 = vld [vmem:[#allocation6 + $0x8b0] sm:$0xff]
    %v1093 = vld [vmem:[#allocation6 + $0x8b8] sm:$0xff]
    %v1094 = vld [vmem:[#allocation6 + $0x8c0] sm:$0xff]
    %v1095 = vld [vmem:[#allocation6 + $0x8c8] sm:$0xff]
    %v1096 = vld [vmem:[#allocation6 + $0x8d0] sm:$0xff]
    %v1097 = vld [vmem:[#allocation6 + $0x8d8] sm:$0xff]
    %v1098 = vld [vmem:[#allocation6 + $0x8e0] sm:$0xff]
    %v1099 = vld [vmem:[#allocation6 + $0x8e8] sm:$0xff]
    %v1100 = vld [vmem:[#allocation6 + $0x8f0] sm:$0xff]
    %v1101 = vld [vmem:[#allocation6 + $0x8f8] sm:$0xff]
    %v1102 = vld [vmem:[#allocation6 + $0x900] sm:$0xff]
    %v1103 = vld [vmem:[#allocation6 + $0x908] sm:$0xff]
    %v1104 = vld [vmem:[#allocation6 + $0x910] sm:$0xff]
    %v1105 = vld [vmem:[#allocation6 + $0x918] sm:$0xff]
    %v1106 = vld [vmem:[#allocation6 + $0x920] sm:$0xff]
    %v1107 = vld [vmem:[#allocation6 + $0x928] sm:$0xff]
    %v1108 = vld [vmem:[#allocation6 + $0x930] sm:$0xff]
    %v1109 = vld [vmem:[#allocation6 + $0x938] sm:$0xff]
    %v1110 = vld [vmem:[#allocation6 + $0x940] sm:$0xff]
    %v1111 = vld [vmem:[#allocation6 + $0x948] sm:$0xff]
    %v1112 = vld [vmem:[#allocation6 + $0x950] sm:$0xff]
    %v1113 = vld [vmem:[#allocation6 + $0x958] sm:$0xff]
    %v1114 = vld [vmem:[#allocation6 + $0x960] sm:$0xff]
    %v1115 = vld [vmem:[#allocation6 + $0x968] sm:$0xff]
    %v1116 = vld [vmem:[#allocation6 + $0x970] sm:$0xff]
    %v1117 = vld [vmem:[#allocation6 + $0x978] sm:$0xff]
    %v1118 = vld [vmem:[#allocation6 + $0x980] sm:$0xff]
    %v1119 = vld [vmem:[#allocation6 + $0x988] sm:$0xff]
    %v1120 = vld [vmem:[#allocation6 + $0x990] sm:$0xff]
    %v1121 = vld [vmem:[#allocation6 + $0x998] sm:$0xff]
    %v1122 = vld [vmem:[#allocation6 + $0x9a0] sm:$0xff]
    %v1123 = vld [vmem:[#allocation6 + $0x9a8] sm:$0xff]
    %v1124 = vld [vmem:[#allocation6 + $0x9b0] sm:$0xff]
    %v1125 = vld [vmem:[#allocation6 + $0x9b8] sm:$0xff]
    %v1126 = vld [vmem:[#allocation6 + $0x9c0] sm:$0xff]
    %v1127 = vld [vmem:[#allocation6 + $0x9c8] sm:$0xff]
    %v1128 = vld [vmem:[#allocation6 + $0x9d0] sm:$0xff]
    %v1129 = vld [vmem:[#allocation6 + $0x9d8] sm:$0xff]
    %v1130 = vld [vmem:[#allocation6 + $0x9e0] sm:$0xff]
    %v1131 = vld [vmem:[#allocation6 + $0x9e8] sm:$0xff]
    %v1132 = vld [vmem:[#allocation6 + $0x9f0] sm:$0xff]
    %v1133 = vld [vmem:[#allocation6 + $0x9f8] sm:$0xff]
    %v1134 = vld [vmem:[#allocation6 + $0xa00] sm:$0xff]
    %v1135 = vld [vmem:[#allocation6 + $0xa08] sm:$0xff]
    %v1136 = vld [vmem:[#allocation6 + $0xa10] sm:$0xff]
    %v1137 = vld [vmem:[#allocation6 + $0xa18] sm:$0xff]
    %v1138 = vld [vmem:[#allocation6 + $0xa20] sm:$0xff]
    %v1139 = vld [vmem:[#allocation6 + $0xa28] sm:$0xff]
    %v1140 = vld [vmem:[#allocation6 + $0xa30] sm:$0xff]
    %v1141 = vld [vmem:[#allocation6 + $0xa38] sm:$0xff]
    %v1142 = vld [vmem:[#allocation6 + $0xa40] sm:$0xff]
    %v1143 = vld [vmem:[#allocation6 + $0xa48] sm:$0xff]
    %v1144 = vld [vmem:[#allocation6 + $0xa50] sm:$0xff]
    %v1145 = vld [vmem:[#allocation6 + $0xa58] sm:$0xff]
    %v1146 = vld [vmem:[#allocation6 + $0xa60] sm:$0xff]
    %v1147 = vld [vmem:[#allocation6 + $0xa68] sm:$0xff]
    %v1148 = vld [vmem:[#allocation6 + $0xa70] sm:$0xff]
    %v1149 = vld [vmem:[#allocation6 + $0xa78] sm:$0xff]
    %v1150 = vld [vmem:[#allocation6 + $0xa80] sm:$0xff]
    %v1151 = vld [vmem:[#allocation6 + $0xa88] sm:$0xff]
    %v1152 = vld [vmem:[#allocation6 + $0xa90] sm:$0xff]
    %v1153 = vld [vmem:[#allocation6 + $0xa98] sm:$0xff]
    %v1154 = vld [vmem:[#allocation6 + $0xaa0] sm:$0xff]
    %v1155 = vld [vmem:[#allocation6 + $0xaa8] sm:$0xff]
    %v1156 = vld [vmem:[#allocation6 + $0xab0] sm:$0xff]
    %v1157 = vld [vmem:[#allocation6 + $0xab8] sm:$0xff]
    %v1158 = vld [vmem:[#allocation6 + $0xac0] sm:$0xff]
    %v1159 = vld [vmem:[#allocation6 + $0xac8] sm:$0xff]
    %v1160 = vld [vmem:[#allocation6 + $0xad0] sm:$0xff]
    %v1161 = vld [vmem:[#allocation6 + $0xad8] sm:$0xff]
    %v1162 = vld [vmem:[#allocation6 + $0xae0] sm:$0xff]
    %v1163 = vld [vmem:[#allocation6 + $0xae8] sm:$0xff]
    %v1164 = vld [vmem:[#allocation6 + $0xaf0] sm:$0xff]
    %v1165 = vld [vmem:[#allocation6 + $0xaf8] sm:$0xff]
    %v1166 = vld [vmem:[#allocation6 + $0xb00] sm:$0xff]
    %v1167 = vld [vmem:[#allocation6 + $0xb08] sm:$0xff]
    %v1168 = vld [vmem:[#allocation6 + $0xb10] sm:$0xff]
    %v1169 = vld [vmem:[#allocation6 + $0xb18] sm:$0xff]
    %v1170 = vld [vmem:[#allocation6 + $0xb20] sm:$0xff]
    %v1171 = vld [vmem:[#allocation6 + $0xb28] sm:$0xff]
    %v1172 = vld [vmem:[#allocation6 + $0xb30] sm:$0xff]
    %v1173 = vld [vmem:[#allocation6 + $0xb38] sm:$0xff]
    %v1174 = vld [vmem:[#allocation6 + $0xb40] sm:$0xff]
    %v1175 = vld [vmem:[#allocation6 + $0xb48] sm:$0xff]
    %v1176 = vld [vmem:[#allocation6 + $0xb50] sm:$0xff]
    %v1177 = vld [vmem:[#allocation6 + $0xb58] sm:$0xff]
    %v1178 = vld [vmem:[#allocation6 + $0xb60] sm:$0xff]
    %v1179 = vld [vmem:[#allocation6 + $0xb68] sm:$0xff]
    %v1180 = vld [vmem:[#allocation6 + $0xb70] sm:$0xff]
    %v1181 = vld [vmem:[#allocation6 + $0xb78] sm:$0xff]
    %v1182 = vld [vmem:[#allocation6 + $0xb80] sm:$0xff]
    %v1183 = vld [vmem:[#allocation6 + $0xb88] sm:$0xff]
    %v1184 = vld [vmem:[#allocation6 + $0xb90] sm:$0xff]
    %v1185 = vld [vmem:[#allocation6 + $0xb98] sm:$0xff]
    %v1186 = vld [vmem:[#allocation6 + $0xba0] sm:$0xff]
    %v1187 = vld [vmem:[#allocation6 + $0xba8] sm:$0xff]
    %v1188 = vld [vmem:[#allocation6 + $0xbb0] sm:$0xff]
    %v1189 = vld [vmem:[#allocation6 + $0xbb8] sm:$0xff]
    %v1190 = vld [vmem:[#allocation6 + $0xbc0] sm:$0xff]
    %v1191 = vld [vmem:[#allocation6 + $0xbc8] sm:$0xff]
    %v1192 = vld [vmem:[#allocation6 + $0xbd0] sm:$0xff]
    %v1193 = vld [vmem:[#allocation6 + $0xbd8] sm:$0xff]
    %v1194 = vld [vmem:[#allocation6 + $0xbe0] sm:$0xff]
    %v1195 = vld [vmem:[#allocation6 + $0xbe8] sm:$0xff]
    %v1196 = vld [vmem:[#allocation6 + $0xbf0] sm:$0xff]
    %v1197 = vld [vmem:[#allocation6 + $0xbf8] sm:$0xff]
    %v1198 = vld [vmem:[#allocation6 + $0xc00] sm:$0xff]
    %v1199 = vld [vmem:[#allocation6 + $0xc08] sm:$0xff]
    %v1200 = vld [vmem:[#allocation6 + $0xc10] sm:$0xff]
    %v1201 = vld [vmem:[#allocation6 + $0xc18] sm:$0xff]
    %v1202 = vld [vmem:[#allocation6 + $0xc20] sm:$0xff]
    %v1203 = vld [vmem:[#allocation6 + $0xc28] sm:$0xff]
    %v1204 = vld [vmem:[#allocation6 + $0xc30] sm:$0xff]
    %v1205 = vld [vmem:[#allocation6 + $0xc38] sm:$0xff]
    %v1206 = vld [vmem:[#allocation6 + $0xc40] sm:$0xff]
    %v1207 = vld [vmem:[#allocation6 + $0xc48] sm:$0xff]
    %v1208 = vld [vmem:[#allocation6 + $0xc50] sm:$0xff]
    %v1209 = vld [vmem:[#allocation6 + $0xc58] sm:$0xff]
    %v1210 = vld [vmem:[#allocation6 + $0xc60] sm:$0xff]
    %v1211 = vld [vmem:[#allocation6 + $0xc68] sm:$0xff]
    %v1212 = vld [vmem:[#allocation6 + $0xc70] sm:$0xff]
    %v1213 = vld [vmem:[#allocation6 + $0xc78] sm:$0xff]
    %v1214 = vld [vmem:[#allocation6 + $0xc80] sm:$0xff]
    %v1215 = vld [vmem:[#allocation6 + $0xc88] sm:$0xff]
    %v1216 = vld [vmem:[#allocation6 + $0xc90] sm:$0xff]
    %v1217 = vld [vmem:[#allocation6 + $0xc98] sm:$0xff]
    %v1218 = vld [vmem:[#allocation6 + $0xca0] sm:$0xff]
    %v1219 = vld [vmem:[#allocation6 + $0xca8] sm:$0xff]
    %v1220 = vld [vmem:[#allocation6 + $0xcb0] sm:$0xff]
    %v1221 = vld [vmem:[#allocation6 + $0xcb8] sm:$0xff]
    %v1222 = vld [vmem:[#allocation6 + $0xcc0] sm:$0xff]
    %v1223 = vld [vmem:[#allocation6 + $0xcc8] sm:$0xff]
    %v1224 = vld [vmem:[#allocation6 + $0xcd0] sm:$0xff]
    %v1225 = vld [vmem:[#allocation6 + $0xcd8] sm:$0xff]
    %v1226 = vld [vmem:[#allocation6 + $0xce0] sm:$0xff]
    %v1227 = vld [vmem:[#allocation6 + $0xce8] sm:$0xff]
    %v1228 = vld [vmem:[#allocation6 + $0xcf0] sm:$0xff]
    %v1229 = vld [vmem:[#allocation6 + $0xcf8] sm:$0xff]
    %v1230 = vld [vmem:[#allocation6 + $0xd00] sm:$0xff]
    %v1231 = vld [vmem:[#allocation6 + $0xd08] sm:$0xff]
    %v1232 = vld [vmem:[#allocation6 + $0xd10] sm:$0xff]
    %v1233 = vld [vmem:[#allocation6 + $0xd18] sm:$0xff]
    %v1234 = vld [vmem:[#allocation6 + $0xd20] sm:$0xff]
    %v1235 = vld [vmem:[#allocation6 + $0xd28] sm:$0xff]
    %v1236 = vld [vmem:[#allocation6 + $0xd30] sm:$0xff]
    %v1237 = vld [vmem:[#allocation6 + $0xd38] sm:$0xff]
    %v1238 = vld [vmem:[#allocation6 + $0xd40] sm:$0xff]
    %v1239 = vld [vmem:[#allocation6 + $0xd48] sm:$0xff]
    %v1240 = vld [vmem:[#allocation6 + $0xd50] sm:$0xff]
    %v1241 = vld [vmem:[#allocation6 + $0xd58] sm:$0xff]
    %v1242 = vld [vmem:[#allocation6 + $0xd60] sm:$0xff]
    %v1243 = vld [vmem:[#allocation6 + $0xd68] sm:$0xff]
    %v1244 = vld [vmem:[#allocation6 + $0xd70] sm:$0xff]
    %v1245 = vld [vmem:[#allocation6 + $0xd78] sm:$0xff]
    %v1246 = vld [vmem:[#allocation6 + $0xd80] sm:$0xff]
    %v1247 = vld [vmem:[#allocation6 + $0xd88] sm:$0xff]
    %v1248 = vld [vmem:[#allocation6 + $0xd90] sm:$0xff]
    %v1249 = vld [vmem:[#allocation6 + $0xd98] sm:$0xff]
    %v1250 = vld [vmem:[#allocation6 + $0xda0] sm:$0xff]
    %v1251 = vld [vmem:[#allocation6 + $0xda8] sm:$0xff]
    %v1252 = vld [vmem:[#allocation6 + $0xdb0] sm:$0xff]
    %v1253 = vld [vmem:[#allocation6 + $0xdb8] sm:$0xff]
    %v1254 = vld [vmem:[#allocation6 + $0xdc0] sm:$0xff]
    %v1255 = vld [vmem:[#allocation6 + $0xdc8] sm:$0xff]
    %v1256 = vld [vmem:[#allocation6 + $0xdd0] sm:$0xff]
    %v1257 = vld [vmem:[#allocation6 + $0xdd8] sm:$0xff]
    %v1258 = vld [vmem:[#allocation6 + $0xde0] sm:$0xff]
    %v1259 = vld [vmem:[#allocation6 + $0xde8] sm:$0xff]
    %v1260 = vld [vmem:[#allocation6 + $0xdf0] sm:$0xff]
    %v1261 = vld [vmem:[#allocation6 + $0xdf8] sm:$0xff]
    %v1262 = vld [vmem:[#allocation6 + $0xe00] sm:$0xff]
    %v1263 = vld [vmem:[#allocation6 + $0xe08] sm:$0xff]
    %v1264 = vld [vmem:[#allocation6 + $0xe10] sm:$0xff]
    %v1265 = vld [vmem:[#allocation6 + $0xe18] sm:$0xff]
    %v1266 = vld [vmem:[#allocation6 + $0xe20] sm:$0xff]
    %v1267 = vld [vmem:[#allocation6 + $0xe28] sm:$0xff]
    %v1268 = vld [vmem:[#allocation6 + $0xe30] sm:$0xff]
    %v1269 = vld [vmem:[#allocation6 + $0xe38] sm:$0xff]
    %v1270 = vld [vmem:[#allocation6 + $0xe40] sm:$0xff]
    %v1271 = vld [vmem:[#allocation6 + $0xe48] sm:$0xff]
    %v1272 = vld [vmem:[#allocation6 + $0xe50] sm:$0xff]
    %v1273 = vld [vmem:[#allocation6 + $0xe58] sm:$0xff]
    %v1274 = vld [vmem:[#allocation6 + $0xe60] sm:$0xff]
    %v1275 = vld [vmem:[#allocation6 + $0xe68] sm:$0xff]
    %v1276 = vld [vmem:[#allocation6 + $0xe70] sm:$0xff]
    %v1277 = vld [vmem:[#allocation6 + $0xe78] sm:$0xff]
    %v1278 = vld [vmem:[#allocation6 + $0xe80] sm:$0xff]
    %v1279 = vld [vmem:[#allocation6 + $0xe88] sm:$0xff]
    %v1280 = vld [vmem:[#allocation6 + $0xe90] sm:$0xff]
    %v1281 = vld [vmem:[#allocation6 + $0xe98] sm:$0xff]
    %v1282 = vld [vmem:[#allocation6 + $0xea0] sm:$0xff]
    %v1283 = vld [vmem:[#allocation6 + $0xea8] sm:$0xff]
    %v1284 = vld [vmem:[#allocation6 + $0xeb0] sm:$0xff]
    %v1285 = vld [vmem:[#allocation6 + $0xeb8] sm:$0xff]
    %v1286 = vld [vmem:[#allocation6 + $0xec0] sm:$0xff]
    %v1287 = vld [vmem:[#allocation6 + $0xec8] sm:$0xff]
    %v1288 = vld [vmem:[#allocation6 + $0xed0] sm:$0xff]
    %v1289 = vld [vmem:[#allocation6 + $0xed8] sm:$0xff]
    %v1290 = vld [vmem:[#allocation6 + $0xee0] sm:$0xff]
    %v1291 = vld [vmem:[#allocation6 + $0xee8] sm:$0xff]
    %v1292 = vld [vmem:[#allocation6 + $0xef0] sm:$0xff]
    %v1293 = vld [vmem:[#allocation6 + $0xef8] sm:$0xff]
    %v1294 = vld [vmem:[#allocation6 + $0xf00] sm:$0xff]
    %v1295 = vld [vmem:[#allocation6 + $0xf08] sm:$0xff]
    %v1296 = vld [vmem:[#allocation6 + $0xf10] sm:$0xff]
    %v1297 = vld [vmem:[#allocation6 + $0xf18] sm:$0xff]
    %v1298 = vld [vmem:[#allocation6 + $0xf20] sm:$0xff]
    %v1299 = vld [vmem:[#allocation6 + $0xf28] sm:$0xff]
    %v1300 = vld [vmem:[#allocation6 + $0xf30] sm:$0xff]
    %v1301 = vld [vmem:[#allocation6 + $0xf38] sm:$0xff]
    %v1302 = vld [vmem:[#allocation6 + $0xf40] sm:$0xff]
    %v1303 = vld [vmem:[#allocation6 + $0xf48] sm:$0xff]
    %v1304 = vld [vmem:[#allocation6 + $0xf50] sm:$0xff]
    %v1305 = vld [vmem:[#allocation6 + $0xf58] sm:$0xff]
    %v1306 = vld [vmem:[#allocation6 + $0xf60] sm:$0xff]
    %v1307 = vld [vmem:[#allocation6 + $0xf68] sm:$0xff]
    %v1308 = vld [vmem:[#allocation6 + $0xf70] sm:$0xff]
    %v1309 = vld [vmem:[#allocation6 + $0xf78] sm:$0xff]
    %v1310 = vld [vmem:[#allocation6 + $0xf80] sm:$0xff]
    %v1311 = vld [vmem:[#allocation6 + $0xf88] sm:$0xff]
    %v1312 = vld [vmem:[#allocation6 + $0xf90] sm:$0xff]
    %v1313 = vld [vmem:[#allocation6 + $0xf98] sm:$0xff]
    %v1314 = vld [vmem:[#allocation6 + $0xfa0] sm:$0xff]
    %v1315 = vld [vmem:[#allocation6 + $0xfa8] sm:$0xff]
    %v1316 = vld [vmem:[#allocation6 + $0xfb0] sm:$0xff]
    %v1317 = vld [vmem:[#allocation6 + $0xfb8] sm:$0xff]
    %v1318 = vld [vmem:[#allocation6 + $0xfc0] sm:$0xff]
    %v1319 = vld [vmem:[#allocation6 + $0xfc8] sm:$0xff]
    %v1320 = vld [vmem:[#allocation6 + $0xfd0] sm:$0xff]
    %v1321 = vld [vmem:[#allocation6 + $0xfd8] sm:$0xff]
    %v1322 = vld [vmem:[#allocation6 + $0xfe0] sm:$0xff]
    %v1323 = vld [vmem:[#allocation6 + $0xfe8] sm:$0xff]
    %v1324 = vld [vmem:[#allocation6 + $0xff0] sm:$0xff]
    %v1325 = vld [vmem:[#allocation6 + $0xff8] sm:$0xff]
    %v1326 = vld [vmem:[#allocation7] sm:$0xff]
    %v1839 = vunpack.c.l.b16 %v814
    %v1840 = vunpack.c.h.b16 %v814
    %v1841 = vunpack.c.l.b16 %v815
    %v1842 = vunpack.c.h.b16 %v815
    %v1843 = vunpack.c.l.b16 %v816
    %v1844 = vunpack.c.h.b16 %v816
    %v1845 = vunpack.c.l.b16 %v817
    %v1846 = vunpack.c.h.b16 %v817
    %v1847 = vunpack.c.l.b16 %v818
    %v1848 = vunpack.c.h.b16 %v818
    %v1849 = vunpack.c.l.b16 %v819
    %v1850 = vunpack.c.h.b16 %v819
    %v1851 = vunpack.c.l.b16 %v820
    %v1852 = vunpack.c.h.b16 %v820
    %v1853 = vunpack.c.l.b16 %v821
    %v1854 = vunpack.c.h.b16 %v821
    %v1855 = vunpack.c.l.b16 %v822
    %v1856 = vunpack.c.h.b16 %v822
    %v1857 = vunpack.c.l.b16 %v823
    %v1858 = vunpack.c.h.b16 %v823
    %v1859 = vunpack.c.l.b16 %v824
    %v1860 = vunpack.c.h.b16 %v824
    %v1861 = vunpack.c.l.b16 %v825
    %v1862 = vunpack.c.h.b16 %v825
    %v1863 = vunpack.c.l.b16 %v826
    %v1864 = vunpack.c.h.b16 %v826
    %v1865 = vunpack.c.l.b16 %v827
    %v1866 = vunpack.c.h.b16 %v827
    %v1867 = vunpack.c.l.b16 %v828
    %v1868 = vunpack.c.h.b16 %v828
    %v1869 = vunpack.c.l.b16 %v829
    %v1870 = vunpack.c.h.b16 %v829
    %v1871 = vunpack.c.l.b16 %v830
    %v1872 = vunpack.c.h.b16 %v830
    %v1873 = vunpack.c.l.b16 %v831
    %v1874 = vunpack.c.h.b16 %v831
    %v1875 = vunpack.c.l.b16 %v832
    %v1876 = vunpack.c.h.b16 %v832
    %v1877 = vunpack.c.l.b16 %v833
    %v1878 = vunpack.c.h.b16 %v833
    %v1879 = vunpack.c.l.b16 %v834
    %v1880 = vunpack.c.h.b16 %v834
    %v1881 = vunpack.c.l.b16 %v835
    %v1882 = vunpack.c.h.b16 %v835
    %v1883 = vunpack.c.l.b16 %v836
    %v1884 = vunpack.c.h.b16 %v836
    %v1885 = vunpack.c.l.b16 %v837
    %v1886 = vunpack.c.h.b16 %v837
    %v1887 = vunpack.c.l.b16 %v838
    %v1888 = vunpack.c.h.b16 %v838
    %v1889 = vunpack.c.l.b16 %v839
    %v1890 = vunpack.c.h.b16 %v839
    %v1891 = vunpack.c.l.b16 %v840
    %v1892 = vunpack.c.h.b16 %v840
    %v1893 = vunpack.c.l.b16 %v841
    %v1894 = vunpack.c.h.b16 %v841
    %v1895 = vunpack.c.l.b16 %v842
    %v1896 = vunpack.c.h.b16 %v842
    %v1897 = vunpack.c.l.b16 %v843
    %v1898 = vunpack.c.h.b16 %v843
    %v1899 = vunpack.c.l.b16 %v844
    %v1900 = vunpack.c.h.b16 %v844
    %v1901 = vunpack.c.l.b16 %v845
    %v1902 = vunpack.c.h.b16 %v845
    %v1903 = vunpack.c.l.b16 %v846
    %v1904 = vunpack.c.h.b16 %v846
    %v1905 = vunpack.c.l.b16 %v847
    %v1906 = vunpack.c.h.b16 %v847
    %v1907 = vunpack.c.l.b16 %v848
    %v1908 = vunpack.c.h.b16 %v848
    %v1909 = vunpack.c.l.b16 %v849
    %v1910 = vunpack.c.h.b16 %v849
    %v1911 = vunpack.c.l.b16 %v850
    %v1912 = vunpack.c.h.b16 %v850
    %v1913 = vunpack.c.l.b16 %v851
    %v1914 = vunpack.c.h.b16 %v851
    %v1915 = vunpack.c.l.b16 %v852
    %v1916 = vunpack.c.h.b16 %v852
    %v1917 = vunpack.c.l.b16 %v853
    %v1918 = vunpack.c.h.b16 %v853
    %v1919 = vunpack.c.l.b16 %v854
    %v1920 = vunpack.c.h.b16 %v854
    %v1921 = vunpack.c.l.b16 %v855
    %v1922 = vunpack.c.h.b16 %v855
    %v1923 = vunpack.c.l.b16 %v856
    %v1924 = vunpack.c.h.b16 %v856
    %v1925 = vunpack.c.l.b16 %v857
    %v1926 = vunpack.c.h.b16 %v857
    %v1927 = vunpack.c.l.b16 %v858
    %v1928 = vunpack.c.h.b16 %v858
    %v1929 = vunpack.c.l.b16 %v859
    %v1930 = vunpack.c.h.b16 %v859
    %v1931 = vunpack.c.l.b16 %v860
    %v1932 = vunpack.c.h.b16 %v860
    %v1933 = vunpack.c.l.b16 %v861
    %v1934 = vunpack.c.h.b16 %v861
    %v1935 = vunpack.c.l.b16 %v862
    %v1936 = vunpack.c.h.b16 %v862
    %v1937 = vunpack.c.l.b16 %v863
    %v1938 = vunpack.c.h.b16 %v863
    %v1939 = vunpack.c.l.b16 %v864
    %v1940 = vunpack.c.h.b16 %v864
    %v1941 = vunpack.c.l.b16 %v865
    %v1942 = vunpack.c.h.b16 %v865
    %v1943 = vunpack.c.l.b16 %v866
    %v1944 = vunpack.c.h.b16 %v866
    %v1945 = vunpack.c.l.b16 %v867
    %v1946 = vunpack.c.h.b16 %v867
    %v1947 = vunpack.c.l.b16 %v868
    %v1948 = vunpack.c.h.b16 %v868
    %v1949 = vunpack.c.l.b16 %v869
    %v1950 = vunpack.c.h.b16 %v869
    %v1951 = vunpack.c.l.b16 %v870
    %v1952 = vunpack.c.h.b16 %v870
    %v1953 = vunpack.c.l.b16 %v871
    %v1954 = vunpack.c.h.b16 %v871
    %v1955 = vunpack.c.l.b16 %v872
    %v1956 = vunpack.c.h.b16 %v872
    %v1957 = vunpack.c.l.b16 %v873
    %v1958 = vunpack.c.h.b16 %v873
    %v1959 = vunpack.c.l.b16 %v874
    %v1960 = vunpack.c.h.b16 %v874
    %v1961 = vunpack.c.l.b16 %v875
    %v1962 = vunpack.c.h.b16 %v875
    %v1963 = vunpack.c.l.b16 %v876
    %v1964 = vunpack.c.h.b16 %v876
    %v1965 = vunpack.c.l.b16 %v877
    %v1966 = vunpack.c.h.b16 %v877
    %v1967 = vunpack.c.l.b16 %v878
    %v1968 = vunpack.c.h.b16 %v878
    %v1969 = vunpack.c.l.b16 %v879
    %v1970 = vunpack.c.h.b16 %v879
    %v1971 = vunpack.c.l.b16 %v880
    %v1972 = vunpack.c.h.b16 %v880
    %v1973 = vunpack.c.l.b16 %v881
    %v1974 = vunpack.c.h.b16 %v881
    %v1975 = vunpack.c.l.b16 %v882
    %v1976 = vunpack.c.h.b16 %v882
    %v1977 = vunpack.c.l.b16 %v883
    %v1978 = vunpack.c.h.b16 %v883
    %v1979 = vunpack.c.l.b16 %v884
    %v1980 = vunpack.c.h.b16 %v884
    %v1981 = vunpack.c.l.b16 %v885
    %v1982 = vunpack.c.h.b16 %v885
    %v1983 = vunpack.c.l.b16 %v886
    %v1984 = vunpack.c.h.b16 %v886
    %v1985 = vunpack.c.l.b16 %v887
    %v1986 = vunpack.c.h.b16 %v887
    %v1987 = vunpack.c.l.b16 %v888
    %v1988 = vunpack.c.h.b16 %v888
    %v1989 = vunpack.c.l.b16 %v889
    %v1990 = vunpack.c.h.b16 %v889
    %v1991 = vunpack.c.l.b16 %v890
    %v1992 = vunpack.c.h.b16 %v890
    %v1993 = vunpack.c.l.b16 %v891
    %v1994 = vunpack.c.h.b16 %v891
    %v1995 = vunpack.c.l.b16 %v892
    %v1996 = vunpack.c.h.b16 %v892
    %v1997 = vunpack.c.l.b16 %v893
    %v1998 = vunpack.c.h.b16 %v893
    %v1999 = vunpack.c.l.b16 %v894
    %v2000 = vunpack.c.h.b16 %v894
    %v2001 = vunpack.c.l.b16 %v895
    %v2002 = vunpack.c.h.b16 %v895
    %v2003 = vunpack.c.l.b16 %v896
    %v2004 = vunpack.c.h.b16 %v896
    %v2005 = vunpack.c.l.b16 %v897
    %v2006 = vunpack.c.h.b16 %v897
    %v2007 = vunpack.c.l.b16 %v898
    %v2008 = vunpack.c.h.b16 %v898
    %v2009 = vunpack.c.l.b16 %v899
    %v2010 = vunpack.c.h.b16 %v899
    %v2011 = vunpack.c.l.b16 %v900
    %v2012 = vunpack.c.h.b16 %v900
    %v2013 = vunpack.c.l.b16 %v901
    %v2014 = vunpack.c.h.b16 %v901
    %v2015 = vunpack.c.l.b16 %v902
    %v2016 = vunpack.c.h.b16 %v902
    %v2017 = vunpack.c.l.b16 %v903
    %v2018 = vunpack.c.h.b16 %v903
    %v2019 = vunpack.c.l.b16 %v904
    %v2020 = vunpack.c.h.b16 %v904
    %v2021 = vunpack.c.l.b16 %v905
    %v2022 = vunpack.c.h.b16 %v905
    %v2023 = vunpack.c.l.b16 %v906
    %v2024 = vunpack.c.h.b16 %v906
    %v2025 = vunpack.c.l.b16 %v907
    %v2026 = vunpack.c.h.b16 %v907
    %v2027 = vunpack.c.l.b16 %v908
    %v2028 = vunpack.c.h.b16 %v908
    %v2029 = vunpack.c.l.b16 %v909
    %v2030 = vunpack.c.h.b16 %v909
    %v2031 = vunpack.c.l.b16 %v910
    %v2032 = vunpack.c.h.b16 %v910
    %v2033 = vunpack.c.l.b16 %v911
    %v2034 = vunpack.c.h.b16 %v911
    %v2035 = vunpack.c.l.b16 %v912
    %v2036 = vunpack.c.h.b16 %v912
    %v2037 = vunpack.c.l.b16 %v913
    %v2038 = vunpack.c.h.b16 %v913
    %v2039 = vunpack.c.l.b16 %v914
    %v2040 = vunpack.c.h.b16 %v914
    %v2041 = vunpack.c.l.b16 %v915
    %v2042 = vunpack.c.h.b16 %v915
    %v2043 = vunpack.c.l.b16 %v916
    %v2044 = vunpack.c.h.b16 %v916
    %v2045 = vunpack.c.l.b16 %v917
    %v2046 = vunpack.c.h.b16 %v917
    %v2047 = vunpack.c.l.b16 %v918
    %v2048 = vunpack.c.h.b16 %v918
    %v2049 = vunpack.c.l.b16 %v919
    %v2050 = vunpack.c.h.b16 %v919
    %v2051 = vunpack.c.l.b16 %v920
    %v2052 = vunpack.c.h.b16 %v920
    %v2053 = vunpack.c.l.b16 %v921
    %v2054 = vunpack.c.h.b16 %v921
    %v2055 = vunpack.c.l.b16 %v922
    %v2056 = vunpack.c.h.b16 %v922
    %v2057 = vunpack.c.l.b16 %v923
    %v2058 = vunpack.c.h.b16 %v923
    %v2059 = vunpack.c.l.b16 %v924
    %v2060 = vunpack.c.h.b16 %v924
    %v2061 = vunpack.c.l.b16 %v925
    %v2062 = vunpack.c.h.b16 %v925
    %v2063 = vunpack.c.l.b16 %v926
    %v2064 = vunpack.c.h.b16 %v926
    %v2065 = vunpack.c.l.b16 %v927
    %v2066 = vunpack.c.h.b16 %v927
    %v2067 = vunpack.c.l.b16 %v928
    %v2068 = vunpack.c.h.b16 %v928
    %v2069 = vunpack.c.l.b16 %v929
    %v2070 = vunpack.c.h.b16 %v929
    %v2071 = vunpack.c.l.b16 %v930
    %v2072 = vunpack.c.h.b16 %v930
    %v2073 = vunpack.c.l.b16 %v931
    %v2074 = vunpack.c.h.b16 %v931
    %v2075 = vunpack.c.l.b16 %v932
    %v2076 = vunpack.c.h.b16 %v932
    %v2077 = vunpack.c.l.b16 %v933
    %v2078 = vunpack.c.h.b16 %v933
    %v2079 = vunpack.c.l.b16 %v934
    %v2080 = vunpack.c.h.b16 %v934
    %v2081 = vunpack.c.l.b16 %v935
    %v2082 = vunpack.c.h.b16 %v935
    %v2083 = vunpack.c.l.b16 %v936
    %v2084 = vunpack.c.h.b16 %v936
    %v2085 = vunpack.c.l.b16 %v937
    %v2086 = vunpack.c.h.b16 %v937
    %v2087 = vunpack.c.l.b16 %v938
    %v2088 = vunpack.c.h.b16 %v938
    %v2089 = vunpack.c.l.b16 %v939
    %v2090 = vunpack.c.h.b16 %v939
    %v2091 = vunpack.c.l.b16 %v940
    %v2092 = vunpack.c.h.b16 %v940
    %v2093 = vunpack.c.l.b16 %v941
    %v2094 = vunpack.c.h.b16 %v941
    %v2095 = vunpack.c.l.b16 %v942
    %v2096 = vunpack.c.h.b16 %v942
    %v2097 = vunpack.c.l.b16 %v943
    %v2098 = vunpack.c.h.b16 %v943
    %v2099 = vunpack.c.l.b16 %v944
    %v2100 = vunpack.c.h.b16 %v944
    %v2101 = vunpack.c.l.b16 %v945
    %v2102 = vunpack.c.h.b16 %v945
    %v2103 = vunpack.c.l.b16 %v946
    %v2104 = vunpack.c.h.b16 %v946
    %v2105 = vunpack.c.l.b16 %v947
    %v2106 = vunpack.c.h.b16 %v947
    %v2107 = vunpack.c.l.b16 %v948
    %v2108 = vunpack.c.h.b16 %v948
    %v2109 = vunpack.c.l.b16 %v949
    %v2110 = vunpack.c.h.b16 %v949
    %v2111 = vunpack.c.l.b16 %v950
    %v2112 = vunpack.c.h.b16 %v950
    %v2113 = vunpack.c.l.b16 %v951
    %v2114 = vunpack.c.h.b16 %v951
    %v2115 = vunpack.c.l.b16 %v952
    %v2116 = vunpack.c.h.b16 %v952
    %v2117 = vunpack.c.l.b16 %v953
    %v2118 = vunpack.c.h.b16 %v953
    %v2119 = vunpack.c.l.b16 %v954
    %v2120 = vunpack.c.h.b16 %v954
    %v2121 = vunpack.c.l.b16 %v955
    %v2122 = vunpack.c.h.b16 %v955
    %v2123 = vunpack.c.l.b16 %v956
    %v2124 = vunpack.c.h.b16 %v956
    %v2125 = vunpack.c.l.b16 %v957
    %v2126 = vunpack.c.h.b16 %v957
    %v2127 = vunpack.c.l.b16 %v958
    %v2128 = vunpack.c.h.b16 %v958
    %v2129 = vunpack.c.l.b16 %v959
    %v2130 = vunpack.c.h.b16 %v959
    %v2131 = vunpack.c.l.b16 %v960
    %v2132 = vunpack.c.h.b16 %v960
    %v2133 = vunpack.c.l.b16 %v961
    %v2134 = vunpack.c.h.b16 %v961
    %v2135 = vunpack.c.l.b16 %v962
    %v2136 = vunpack.c.h.b16 %v962
    %v2137 = vunpack.c.l.b16 %v963
    %v2138 = vunpack.c.h.b16 %v963
    %v2139 = vunpack.c.l.b16 %v964
    %v2140 = vunpack.c.h.b16 %v964
    %v2141 = vunpack.c.l.b16 %v965
    %v2142 = vunpack.c.h.b16 %v965
    %v2143 = vunpack.c.l.b16 %v966
    %v2144 = vunpack.c.h.b16 %v966
    %v2145 = vunpack.c.l.b16 %v967
    %v2146 = vunpack.c.h.b16 %v967
    %v2147 = vunpack.c.l.b16 %v968
    %v2148 = vunpack.c.h.b16 %v968
    %v2149 = vunpack.c.l.b16 %v969
    %v2150 = vunpack.c.h.b16 %v969
    %v2151 = vunpack.c.l.b16 %v970
    %v2152 = vunpack.c.h.b16 %v970
    %v2153 = vunpack.c.l.b16 %v971
    %v2154 = vunpack.c.h.b16 %v971
    %v2155 = vunpack.c.l.b16 %v972
    %v2156 = vunpack.c.h.b16 %v972
    %v2157 = vunpack.c.l.b16 %v973
    %v2158 = vunpack.c.h.b16 %v973
    %v2159 = vunpack.c.l.b16 %v974
    %v2160 = vunpack.c.h.b16 %v974
    %v2161 = vunpack.c.l.b16 %v975
    %v2162 = vunpack.c.h.b16 %v975
    %v2163 = vunpack.c.l.b16 %v976
    %v2164 = vunpack.c.h.b16 %v976
    %v2165 = vunpack.c.l.b16 %v977
    %v2166 = vunpack.c.h.b16 %v977
    %v2167 = vunpack.c.l.b16 %v978
    %v2168 = vunpack.c.h.b16 %v978
    %v2169 = vunpack.c.l.b16 %v979
    %v2170 = vunpack.c.h.b16 %v979
    %v2171 = vunpack.c.l.b16 %v980
    %v2172 = vunpack.c.h.b16 %v980
    %v2173 = vunpack.c.l.b16 %v981
    %v2174 = vunpack.c.h.b16 %v981
    %v2175 = vunpack.c.l.b16 %v982
    %v2176 = vunpack.c.h.b16 %v982
    %v2177 = vunpack.c.l.b16 %v983
    %v2178 = vunpack.c.h.b16 %v983
    %v2179 = vunpack.c.l.b16 %v984
    %v2180 = vunpack.c.h.b16 %v984
    %v2181 = vunpack.c.l.b16 %v985
    %v2182 = vunpack.c.h.b16 %v985
    %v2183 = vunpack.c.l.b16 %v986
    %v2184 = vunpack.c.h.b16 %v986
    %v2185 = vunpack.c.l.b16 %v987
    %v2186 = vunpack.c.h.b16 %v987
    %v2187 = vunpack.c.l.b16 %v988
    %v2188 = vunpack.c.h.b16 %v988
    %v2189 = vunpack.c.l.b16 %v989
    %v2190 = vunpack.c.h.b16 %v989
    %v2191 = vunpack.c.l.b16 %v990
    %v2192 = vunpack.c.h.b16 %v990
    %v2193 = vunpack.c.l.b16 %v991
    %v2194 = vunpack.c.h.b16 %v991
    %v2195 = vunpack.c.l.b16 %v992
    %v2196 = vunpack.c.h.b16 %v992
    %v2197 = vunpack.c.l.b16 %v993
    %v2198 = vunpack.c.h.b16 %v993
    %v2199 = vunpack.c.l.b16 %v994
    %v2200 = vunpack.c.h.b16 %v994
    %v2201 = vunpack.c.l.b16 %v995
    %v2202 = vunpack.c.h.b16 %v995
    %v2203 = vunpack.c.l.b16 %v996
    %v2204 = vunpack.c.h.b16 %v996
    %v2205 = vunpack.c.l.b16 %v997
    %v2206 = vunpack.c.h.b16 %v997
    %v2207 = vunpack.c.l.b16 %v998
    %v2208 = vunpack.c.h.b16 %v998
    %v2209 = vunpack.c.l.b16 %v999
    %v2210 = vunpack.c.h.b16 %v999
    %v2211 = vunpack.c.l.b16 %v1000
    %v2212 = vunpack.c.h.b16 %v1000
    %v2213 = vunpack.c.l.b16 %v1001
    %v2214 = vunpack.c.h.b16 %v1001
    %v2215 = vunpack.c.l.b16 %v1002
    %v2216 = vunpack.c.h.b16 %v1002
    %v2217 = vunpack.c.l.b16 %v1003
    %v2218 = vunpack.c.h.b16 %v1003
    %v2219 = vunpack.c.l.b16 %v1004
    %v2220 = vunpack.c.h.b16 %v1004
    %v2221 = vunpack.c.l.b16 %v1005
    %v2222 = vunpack.c.h.b16 %v1005
    %v2223 = vunpack.c.l.b16 %v1006
    %v2224 = vunpack.c.h.b16 %v1006
    %v2225 = vunpack.c.l.b16 %v1007
    %v2226 = vunpack.c.h.b16 %v1007
    %v2227 = vunpack.c.l.b16 %v1008
    %v2228 = vunpack.c.h.b16 %v1008
    %v2229 = vunpack.c.l.b16 %v1009
    %v2230 = vunpack.c.h.b16 %v1009
    %v2231 = vunpack.c.l.b16 %v1010
    %v2232 = vunpack.c.h.b16 %v1010
    %v2233 = vunpack.c.l.b16 %v1011
    %v2234 = vunpack.c.h.b16 %v1011
    %v2235 = vunpack.c.l.b16 %v1012
    %v2236 = vunpack.c.h.b16 %v1012
    %v2237 = vunpack.c.l.b16 %v1013
    %v2238 = vunpack.c.h.b16 %v1013
    %v2239 = vunpack.c.l.b16 %v1014
    %v2240 = vunpack.c.h.b16 %v1014
    %v2241 = vunpack.c.l.b16 %v1015
    %v2242 = vunpack.c.h.b16 %v1015
    %v2243 = vunpack.c.l.b16 %v1016
    %v2244 = vunpack.c.h.b16 %v1016
    %v2245 = vunpack.c.l.b16 %v1017
    %v2246 = vunpack.c.h.b16 %v1017
    %v2247 = vunpack.c.l.b16 %v1018
    %v2248 = vunpack.c.h.b16 %v1018
    %v2249 = vunpack.c.l.b16 %v1019
    %v2250 = vunpack.c.h.b16 %v1019
    %v2251 = vunpack.c.l.b16 %v1020
    %v2252 = vunpack.c.h.b16 %v1020
    %v2253 = vunpack.c.l.b16 %v1021
    %v2254 = vunpack.c.h.b16 %v1021
    %v2255 = vunpack.c.l.b16 %v1022
    %v2256 = vunpack.c.h.b16 %v1022
    %v2257 = vunpack.c.l.b16 %v1023
    %v2258 = vunpack.c.h.b16 %v1023
    %v2259 = vunpack.c.l.b16 %v1024
    %v2260 = vunpack.c.h.b16 %v1024
    %v2261 = vunpack.c.l.b16 %v1025
    %v2262 = vunpack.c.h.b16 %v1025
    %v2263 = vunpack.c.l.b16 %v1026
    %v2264 = vunpack.c.h.b16 %v1026
    %v2265 = vunpack.c.l.b16 %v1027
    %v2266 = vunpack.c.h.b16 %v1027
    %v2267 = vunpack.c.l.b16 %v1028
    %v2268 = vunpack.c.h.b16 %v1028
    %v2269 = vunpack.c.l.b16 %v1029
    %v2270 = vunpack.c.h.b16 %v1029
    %v2271 = vunpack.c.l.b16 %v1030
    %v2272 = vunpack.c.h.b16 %v1030
    %v2273 = vunpack.c.l.b16 %v1031
    %v2274 = vunpack.c.h.b16 %v1031
    %v2275 = vunpack.c.l.b16 %v1032
    %v2276 = vunpack.c.h.b16 %v1032
    %v2277 = vunpack.c.l.b16 %v1033
    %v2278 = vunpack.c.h.b16 %v1033
    %v2279 = vunpack.c.l.b16 %v1034
    %v2280 = vunpack.c.h.b16 %v1034
    %v2281 = vunpack.c.l.b16 %v1035
    %v2282 = vunpack.c.h.b16 %v1035
    %v2283 = vunpack.c.l.b16 %v1036
    %v2284 = vunpack.c.h.b16 %v1036
    %v2285 = vunpack.c.l.b16 %v1037
    %v2286 = vunpack.c.h.b16 %v1037
    %v2287 = vunpack.c.l.b16 %v1038
    %v2288 = vunpack.c.h.b16 %v1038
    %v2289 = vunpack.c.l.b16 %v1039
    %v2290 = vunpack.c.h.b16 %v1039
    %v2291 = vunpack.c.l.b16 %v1040
    %v2292 = vunpack.c.h.b16 %v1040
    %v2293 = vunpack.c.l.b16 %v1041
    %v2294 = vunpack.c.h.b16 %v1041
    %v2295 = vunpack.c.l.b16 %v1042
    %v2296 = vunpack.c.h.b16 %v1042
    %v2297 = vunpack.c.l.b16 %v1043
    %v2298 = vunpack.c.h.b16 %v1043
    %v2299 = vunpack.c.l.b16 %v1044
    %v2300 = vunpack.c.h.b16 %v1044
    %v2301 = vunpack.c.l.b16 %v1045
    %v2302 = vunpack.c.h.b16 %v1045
    %v2303 = vunpack.c.l.b16 %v1046
    %v2304 = vunpack.c.h.b16 %v1046
    %v2305 = vunpack.c.l.b16 %v1047
    %v2306 = vunpack.c.h.b16 %v1047
    %v2307 = vunpack.c.l.b16 %v1048
    %v2308 = vunpack.c.h.b16 %v1048
    %v2309 = vunpack.c.l.b16 %v1049
    %v2310 = vunpack.c.h.b16 %v1049
    %v2311 = vunpack.c.l.b16 %v1050
    %v2312 = vunpack.c.h.b16 %v1050
    %v2313 = vunpack.c.l.b16 %v1051
    %v2314 = vunpack.c.h.b16 %v1051
    %v2315 = vunpack.c.l.b16 %v1052
    %v2316 = vunpack.c.h.b16 %v1052
    %v2317 = vunpack.c.l.b16 %v1053
    %v2318 = vunpack.c.h.b16 %v1053
    %v2319 = vunpack.c.l.b16 %v1054
    %v2320 = vunpack.c.h.b16 %v1054
    %v2321 = vunpack.c.l.b16 %v1055
    %v2322 = vunpack.c.h.b16 %v1055
    %v2323 = vunpack.c.l.b16 %v1056
    %v2324 = vunpack.c.h.b16 %v1056
    %v2325 = vunpack.c.l.b16 %v1057
    %v2326 = vunpack.c.h.b16 %v1057
    %v2327 = vunpack.c.l.b16 %v1058
    %v2328 = vunpack.c.h.b16 %v1058
    %v2329 = vunpack.c.l.b16 %v1059
    %v2330 = vunpack.c.h.b16 %v1059
    %v2331 = vunpack.c.l.b16 %v1060
    %v2332 = vunpack.c.h.b16 %v1060
    %v2333 = vunpack.c.l.b16 %v1061
    %v2334 = vunpack.c.h.b16 %v1061
    %v2335 = vunpack.c.l.b16 %v1062
    %v2336 = vunpack.c.h.b16 %v1062
    %v2337 = vunpack.c.l.b16 %v1063
    %v2338 = vunpack.c.h.b16 %v1063
    %v2339 = vunpack.c.l.b16 %v1064
    %v2340 = vunpack.c.h.b16 %v1064
    %v2341 = vunpack.c.l.b16 %v1065
    %v2342 = vunpack.c.h.b16 %v1065
    %v2343 = vunpack.c.l.b16 %v1066
    %v2344 = vunpack.c.h.b16 %v1066
    %v2345 = vunpack.c.l.b16 %v1067
    %v2346 = vunpack.c.h.b16 %v1067
    %v2347 = vunpack.c.l.b16 %v1068
    %v2348 = vunpack.c.h.b16 %v1068
    %v2349 = vunpack.c.l.b16 %v1069
    %v2350 = vunpack.c.h.b16 %v1069
    %v2351 = vunpack.c.l.b16 %v1070
    %v2352 = vunpack.c.h.b16 %v1070
    %v2353 = vunpack.c.l.b16 %v1071
    %v2354 = vunpack.c.h.b16 %v1071
    %v2355 = vunpack.c.l.b16 %v1072
    %v2356 = vunpack.c.h.b16 %v1072
    %v2357 = vunpack.c.l.b16 %v1073
    %v2358 = vunpack.c.h.b16 %v1073
    %v2359 = vunpack.c.l.b16 %v1074
    %v2360 = vunpack.c.h.b16 %v1074
    %v2361 = vunpack.c.l.b16 %v1075
    %v2362 = vunpack.c.h.b16 %v1075
    %v2363 = vunpack.c.l.b16 %v1076
    %v2364 = vunpack.c.h.b16 %v1076
    %v2365 = vunpack.c.l.b16 %v1077
    %v2366 = vunpack.c.h.b16 %v1077
    %v2367 = vunpack.c.l.b16 %v1078
    %v2368 = vunpack.c.h.b16 %v1078
    %v2369 = vunpack.c.l.b16 %v1079
    %v2370 = vunpack.c.h.b16 %v1079
    %v2371 = vunpack.c.l.b16 %v1080
    %v2372 = vunpack.c.h.b16 %v1080
    %v2373 = vunpack.c.l.b16 %v1081
    %v2374 = vunpack.c.h.b16 %v1081
    %v2375 = vunpack.c.l.b16 %v1082
    %v2376 = vunpack.c.h.b16 %v1082
    %v2377 = vunpack.c.l.b16 %v1083
    %v2378 = vunpack.c.h.b16 %v1083
    %v2379 = vunpack.c.l.b16 %v1084
    %v2380 = vunpack.c.h.b16 %v1084
    %v2381 = vunpack.c.l.b16 %v1085
    %v2382 = vunpack.c.h.b16 %v1085
    %v2383 = vunpack.c.l.b16 %v1086
    %v2384 = vunpack.c.h.b16 %v1086
    %v2385 = vunpack.c.l.b16 %v1087
    %v2386 = vunpack.c.h.b16 %v1087
    %v2387 = vunpack.c.l.b16 %v1088
    %v2388 = vunpack.c.h.b16 %v1088
    %v2389 = vunpack.c.l.b16 %v1089
    %v2390 = vunpack.c.h.b16 %v1089
    %v2391 = vunpack.c.l.b16 %v1090
    %v2392 = vunpack.c.h.b16 %v1090
    %v2393 = vunpack.c.l.b16 %v1091
    %v2394 = vunpack.c.h.b16 %v1091
    %v2395 = vunpack.c.l.b16 %v1092
    %v2396 = vunpack.c.h.b16 %v1092
    %v2397 = vunpack.c.l.b16 %v1093
    %v2398 = vunpack.c.h.b16 %v1093
    %v2399 = vunpack.c.l.b16 %v1094
    %v2400 = vunpack.c.h.b16 %v1094
    %v2401 = vunpack.c.l.b16 %v1095
    %v2402 = vunpack.c.h.b16 %v1095
    %v2403 = vunpack.c.l.b16 %v1096
    %v2404 = vunpack.c.h.b16 %v1096
    %v2405 = vunpack.c.l.b16 %v1097
    %v2406 = vunpack.c.h.b16 %v1097
    %v2407 = vunpack.c.l.b16 %v1098
    %v2408 = vunpack.c.h.b16 %v1098
    %v2409 = vunpack.c.l.b16 %v1099
    %v2410 = vunpack.c.h.b16 %v1099
    %v2411 = vunpack.c.l.b16 %v1100
    %v2412 = vunpack.c.h.b16 %v1100
    %v2413 = vunpack.c.l.b16 %v1101
    %v2414 = vunpack.c.h.b16 %v1101
    %v2415 = vunpack.c.l.b16 %v1102
    %v2416 = vunpack.c.h.b16 %v1102
    %v2417 = vunpack.c.l.b16 %v1103
    %v2418 = vunpack.c.h.b16 %v1103
    %v2419 = vunpack.c.l.b16 %v1104
    %v2420 = vunpack.c.h.b16 %v1104
    %v2421 = vunpack.c.l.b16 %v1105
    %v2422 = vunpack.c.h.b16 %v1105
    %v2423 = vunpack.c.l.b16 %v1106
    %v2424 = vunpack.c.h.b16 %v1106
    %v2425 = vunpack.c.l.b16 %v1107
    %v2426 = vunpack.c.h.b16 %v1107
    %v2427 = vunpack.c.l.b16 %v1108
    %v2428 = vunpack.c.h.b16 %v1108
    %v2429 = vunpack.c.l.b16 %v1109
    %v2430 = vunpack.c.h.b16 %v1109
    %v2431 = vunpack.c.l.b16 %v1110
    %v2432 = vunpack.c.h.b16 %v1110
    %v2433 = vunpack.c.l.b16 %v1111
    %v2434 = vunpack.c.h.b16 %v1111
    %v2435 = vunpack.c.l.b16 %v1112
    %v2436 = vunpack.c.h.b16 %v1112
    %v2437 = vunpack.c.l.b16 %v1113
    %v2438 = vunpack.c.h.b16 %v1113
    %v2439 = vunpack.c.l.b16 %v1114
    %v2440 = vunpack.c.h.b16 %v1114
    %v2441 = vunpack.c.l.b16 %v1115
    %v2442 = vunpack.c.h.b16 %v1115
    %v2443 = vunpack.c.l.b16 %v1116
    %v2444 = vunpack.c.h.b16 %v1116
    %v2445 = vunpack.c.l.b16 %v1117
    %v2446 = vunpack.c.h.b16 %v1117
    %v2447 = vunpack.c.l.b16 %v1118
    %v2448 = vunpack.c.h.b16 %v1118
    %v2449 = vunpack.c.l.b16 %v1119
    %v2450 = vunpack.c.h.b16 %v1119
    %v2451 = vunpack.c.l.b16 %v1120
    %v2452 = vunpack.c.h.b16 %v1120
    %v2453 = vunpack.c.l.b16 %v1121
    %v2454 = vunpack.c.h.b16 %v1121
    %v2455 = vunpack.c.l.b16 %v1122
    %v2456 = vunpack.c.h.b16 %v1122
    %v2457 = vunpack.c.l.b16 %v1123
    %v2458 = vunpack.c.h.b16 %v1123
    %v2459 = vunpack.c.l.b16 %v1124
    %v2460 = vunpack.c.h.b16 %v1124
    %v2461 = vunpack.c.l.b16 %v1125
    %v2462 = vunpack.c.h.b16 %v1125
    %v2463 = vunpack.c.l.b16 %v1126
    %v2464 = vunpack.c.h.b16 %v1126
    %v2465 = vunpack.c.l.b16 %v1127
    %v2466 = vunpack.c.h.b16 %v1127
    %v2467 = vunpack.c.l.b16 %v1128
    %v2468 = vunpack.c.h.b16 %v1128
    %v2469 = vunpack.c.l.b16 %v1129
    %v2470 = vunpack.c.h.b16 %v1129
    %v2471 = vunpack.c.l.b16 %v1130
    %v2472 = vunpack.c.h.b16 %v1130
    %v2473 = vunpack.c.l.b16 %v1131
    %v2474 = vunpack.c.h.b16 %v1131
    %v2475 = vunpack.c.l.b16 %v1132
    %v2476 = vunpack.c.h.b16 %v1132
    %v2477 = vunpack.c.l.b16 %v1133
    %v2478 = vunpack.c.h.b16 %v1133
    %v2479 = vunpack.c.l.b16 %v1134
    %v2480 = vunpack.c.h.b16 %v1134
    %v2481 = vunpack.c.l.b16 %v1135
    %v2482 = vunpack.c.h.b16 %v1135
    %v2483 = vunpack.c.l.b16 %v1136
    %v2484 = vunpack.c.h.b16 %v1136
    %v2485 = vunpack.c.l.b16 %v1137
    %v2486 = vunpack.c.h.b16 %v1137
    %v2487 = vunpack.c.l.b16 %v1138
    %v2488 = vunpack.c.h.b16 %v1138
    %v2489 = vunpack.c.l.b16 %v1139
    %v2490 = vunpack.c.h.b16 %v1139
    %v2491 = vunpack.c.l.b16 %v1140
    %v2492 = vunpack.c.h.b16 %v1140
    %v2493 = vunpack.c.l.b16 %v1141
    %v2494 = vunpack.c.h.b16 %v1141
    %v2495 = vunpack.c.l.b16 %v1142
    %v2496 = vunpack.c.h.b16 %v1142
    %v2497 = vunpack.c.l.b16 %v1143
    %v2498 = vunpack.c.h.b16 %v1143
    %v2499 = vunpack.c.l.b16 %v1144
    %v2500 = vunpack.c.h.b16 %v1144
    %v2501 = vunpack.c.l.b16 %v1145
    %v2502 = vunpack.c.h.b16 %v1145
    %v2503 = vunpack.c.l.b16 %v1146
    %v2504 = vunpack.c.h.b16 %v1146
    %v2505 = vunpack.c.l.b16 %v1147
    %v2506 = vunpack.c.h.b16 %v1147
    %v2507 = vunpack.c.l.b16 %v1148
    %v2508 = vunpack.c.h.b16 %v1148
    %v2509 = vunpack.c.l.b16 %v1149
    %v2510 = vunpack.c.h.b16 %v1149
    %v2511 = vunpack.c.l.b16 %v1150
    %v2512 = vunpack.c.h.b16 %v1150
    %v2513 = vunpack.c.l.b16 %v1151
    %v2514 = vunpack.c.h.b16 %v1151
    %v2515 = vunpack.c.l.b16 %v1152
    %v2516 = vunpack.c.h.b16 %v1152
    %v2517 = vunpack.c.l.b16 %v1153
    %v2518 = vunpack.c.h.b16 %v1153
    %v2519 = vunpack.c.l.b16 %v1154
    %v2520 = vunpack.c.h.b16 %v1154
    %v2521 = vunpack.c.l.b16 %v1155
    %v2522 = vunpack.c.h.b16 %v1155
    %v2523 = vunpack.c.l.b16 %v1156
    %v2524 = vunpack.c.h.b16 %v1156
    %v2525 = vunpack.c.l.b16 %v1157
    %v2526 = vunpack.c.h.b16 %v1157
    %v2527 = vunpack.c.l.b16 %v1158
    %v2528 = vunpack.c.h.b16 %v1158
    %v2529 = vunpack.c.l.b16 %v1159
    %v2530 = vunpack.c.h.b16 %v1159
    %v2531 = vunpack.c.l.b16 %v1160
    %v2532 = vunpack.c.h.b16 %v1160
    %v2533 = vunpack.c.l.b16 %v1161
    %v2534 = vunpack.c.h.b16 %v1161
    %v2535 = vunpack.c.l.b16 %v1162
    %v2536 = vunpack.c.h.b16 %v1162
    %v2537 = vunpack.c.l.b16 %v1163
    %v2538 = vunpack.c.h.b16 %v1163
    %v2539 = vunpack.c.l.b16 %v1164
    %v2540 = vunpack.c.h.b16 %v1164
    %v2541 = vunpack.c.l.b16 %v1165
    %v2542 = vunpack.c.h.b16 %v1165
    %v2543 = vunpack.c.l.b16 %v1166
    %v2544 = vunpack.c.h.b16 %v1166
    %v2545 = vunpack.c.l.b16 %v1167
    %v2546 = vunpack.c.h.b16 %v1167
    %v2547 = vunpack.c.l.b16 %v1168
    %v2548 = vunpack.c.h.b16 %v1168
    %v2549 = vunpack.c.l.b16 %v1169
    %v2550 = vunpack.c.h.b16 %v1169
    %v2551 = vunpack.c.l.b16 %v1170
    %v2552 = vunpack.c.h.b16 %v1170
    %v2553 = vunpack.c.l.b16 %v1171
    %v2554 = vunpack.c.h.b16 %v1171
    %v2555 = vunpack.c.l.b16 %v1172
    %v2556 = vunpack.c.h.b16 %v1172
    %v2557 = vunpack.c.l.b16 %v1173
    %v2558 = vunpack.c.h.b16 %v1173
    %v2559 = vunpack.c.l.b16 %v1174
    %v2560 = vunpack.c.h.b16 %v1174
    %v2561 = vunpack.c.l.b16 %v1175
    %v2562 = vunpack.c.h.b16 %v1175
    %v2563 = vunpack.c.l.b16 %v1176
    %v2564 = vunpack.c.h.b16 %v1176
    %v2565 = vunpack.c.l.b16 %v1177
    %v2566 = vunpack.c.h.b16 %v1177
    %v2567 = vunpack.c.l.b16 %v1178
    %v2568 = vunpack.c.h.b16 %v1178
    %v2569 = vunpack.c.l.b16 %v1179
    %v2570 = vunpack.c.h.b16 %v1179
    %v2571 = vunpack.c.l.b16 %v1180
    %v2572 = vunpack.c.h.b16 %v1180
    %v2573 = vunpack.c.l.b16 %v1181
    %v2574 = vunpack.c.h.b16 %v1181
    %v2575 = vunpack.c.l.b16 %v1182
    %v2576 = vunpack.c.h.b16 %v1182
    %v2577 = vunpack.c.l.b16 %v1183
    %v2578 = vunpack.c.h.b16 %v1183
    %v2579 = vunpack.c.l.b16 %v1184
    %v2580 = vunpack.c.h.b16 %v1184
    %v2581 = vunpack.c.l.b16 %v1185
    %v2582 = vunpack.c.h.b16 %v1185
    %v2583 = vunpack.c.l.b16 %v1186
    %v2584 = vunpack.c.h.b16 %v1186
    %v2585 = vunpack.c.l.b16 %v1187
    %v2586 = vunpack.c.h.b16 %v1187
    %v2587 = vunpack.c.l.b16 %v1188
    %v2588 = vunpack.c.h.b16 %v1188
    %v2589 = vunpack.c.l.b16 %v1189
    %v2590 = vunpack.c.h.b16 %v1189
    %v2591 = vunpack.c.l.b16 %v1190
    %v2592 = vunpack.c.h.b16 %v1190
    %v2593 = vunpack.c.l.b16 %v1191
    %v2594 = vunpack.c.h.b16 %v1191
    %v2595 = vunpack.c.l.b16 %v1192
    %v2596 = vunpack.c.h.b16 %v1192
    %v2597 = vunpack.c.l.b16 %v1193
    %v2598 = vunpack.c.h.b16 %v1193
    %v2599 = vunpack.c.l.b16 %v1194
    %v2600 = vunpack.c.h.b16 %v1194
    %v2601 = vunpack.c.l.b16 %v1195
    %v2602 = vunpack.c.h.b16 %v1195
    %v2603 = vunpack.c.l.b16 %v1196
    %v2604 = vunpack.c.h.b16 %v1196
    %v2605 = vunpack.c.l.b16 %v1197
    %v2606 = vunpack.c.h.b16 %v1197
    %v2607 = vunpack.c.l.b16 %v1198
    %v2608 = vunpack.c.h.b16 %v1198
    %v2609 = vunpack.c.l.b16 %v1199
    %v2610 = vunpack.c.h.b16 %v1199
    %v2611 = vunpack.c.l.b16 %v1200
    %v2612 = vunpack.c.h.b16 %v1200
    %v2613 = vunpack.c.l.b16 %v1201
    %v2614 = vunpack.c.h.b16 %v1201
    %v2615 = vunpack.c.l.b16 %v1202
    %v2616 = vunpack.c.h.b16 %v1202
    %v2617 = vunpack.c.l.b16 %v1203
    %v2618 = vunpack.c.h.b16 %v1203
    %v2619 = vunpack.c.l.b16 %v1204
    %v2620 = vunpack.c.h.b16 %v1204
    %v2621 = vunpack.c.l.b16 %v1205
    %v2622 = vunpack.c.h.b16 %v1205
    %v2623 = vunpack.c.l.b16 %v1206
    %v2624 = vunpack.c.h.b16 %v1206
    %v2625 = vunpack.c.l.b16 %v1207
    %v2626 = vunpack.c.h.b16 %v1207
    %v2627 = vunpack.c.l.b16 %v1208
    %v2628 = vunpack.c.h.b16 %v1208
    %v2629 = vunpack.c.l.b16 %v1209
    %v2630 = vunpack.c.h.b16 %v1209
    %v2631 = vunpack.c.l.b16 %v1210
    %v2632 = vunpack.c.h.b16 %v1210
    %v2633 = vunpack.c.l.b16 %v1211
    %v2634 = vunpack.c.h.b16 %v1211
    %v2635 = vunpack.c.l.b16 %v1212
    %v2636 = vunpack.c.h.b16 %v1212
    %v2637 = vunpack.c.l.b16 %v1213
    %v2638 = vunpack.c.h.b16 %v1213
    %v2639 = vunpack.c.l.b16 %v1214
    %v2640 = vunpack.c.h.b16 %v1214
    %v2641 = vunpack.c.l.b16 %v1215
    %v2642 = vunpack.c.h.b16 %v1215
    %v2643 = vunpack.c.l.b16 %v1216
    %v2644 = vunpack.c.h.b16 %v1216
    %v2645 = vunpack.c.l.b16 %v1217
    %v2646 = vunpack.c.h.b16 %v1217
    %v2647 = vunpack.c.l.b16 %v1218
    %v2648 = vunpack.c.h.b16 %v1218
    %v2649 = vunpack.c.l.b16 %v1219
    %v2650 = vunpack.c.h.b16 %v1219
    %v2651 = vunpack.c.l.b16 %v1220
    %v2652 = vunpack.c.h.b16 %v1220
    %v2653 = vunpack.c.l.b16 %v1221
    %v2654 = vunpack.c.h.b16 %v1221
    %v2655 = vunpack.c.l.b16 %v1222
    %v2656 = vunpack.c.h.b16 %v1222
    %v2657 = vunpack.c.l.b16 %v1223
    %v2658 = vunpack.c.h.b16 %v1223
    %v2659 = vunpack.c.l.b16 %v1224
    %v2660 = vunpack.c.h.b16 %v1224
    %v2661 = vunpack.c.l.b16 %v1225
    %v2662 = vunpack.c.h.b16 %v1225
    %v2663 = vunpack.c.l.b16 %v1226
    %v2664 = vunpack.c.h.b16 %v1226
    %v2665 = vunpack.c.l.b16 %v1227
    %v2666 = vunpack.c.h.b16 %v1227
    %v2667 = vunpack.c.l.b16 %v1228
    %v2668 = vunpack.c.h.b16 %v1228
    %v2669 = vunpack.c.l.b16 %v1229
    %v2670 = vunpack.c.h.b16 %v1229
    %v2671 = vunpack.c.l.b16 %v1230
    %v2672 = vunpack.c.h.b16 %v1230
    %v2673 = vunpack.c.l.b16 %v1231
    %v2674 = vunpack.c.h.b16 %v1231
    %v2675 = vunpack.c.l.b16 %v1232
    %v2676 = vunpack.c.h.b16 %v1232
    %v2677 = vunpack.c.l.b16 %v1233
    %v2678 = vunpack.c.h.b16 %v1233
    %v2679 = vunpack.c.l.b16 %v1234
    %v2680 = vunpack.c.h.b16 %v1234
    %v2681 = vunpack.c.l.b16 %v1235
    %v2682 = vunpack.c.h.b16 %v1235
    %v2683 = vunpack.c.l.b16 %v1236
    %v2684 = vunpack.c.h.b16 %v1236
    %v2685 = vunpack.c.l.b16 %v1237
    %v2686 = vunpack.c.h.b16 %v1237
    %v2687 = vunpack.c.l.b16 %v1238
    %v2688 = vunpack.c.h.b16 %v1238
    %v2689 = vunpack.c.l.b16 %v1239
    %v2690 = vunpack.c.h.b16 %v1239
    %v2691 = vunpack.c.l.b16 %v1240
    %v2692 = vunpack.c.h.b16 %v1240
    %v2693 = vunpack.c.l.b16 %v1241
    %v2694 = vunpack.c.h.b16 %v1241
    %v2695 = vunpack.c.l.b16 %v1242
    %v2696 = vunpack.c.h.b16 %v1242
    %v2697 = vunpack.c.l.b16 %v1243
    %v2698 = vunpack.c.h.b16 %v1243
    %v2699 = vunpack.c.l.b16 %v1244
    %v2700 = vunpack.c.h.b16 %v1244
    %v2701 = vunpack.c.l.b16 %v1245
    %v2702 = vunpack.c.h.b16 %v1245
    %v2703 = vunpack.c.l.b16 %v1246
    %v2704 = vunpack.c.h.b16 %v1246
    %v2705 = vunpack.c.l.b16 %v1247
    %v2706 = vunpack.c.h.b16 %v1247
    %v2707 = vunpack.c.l.b16 %v1248
    %v2708 = vunpack.c.h.b16 %v1248
    %v2709 = vunpack.c.l.b16 %v1249
    %v2710 = vunpack.c.h.b16 %v1249
    %v2711 = vunpack.c.l.b16 %v1250
    %v2712 = vunpack.c.h.b16 %v1250
    %v2713 = vunpack.c.l.b16 %v1251
    %v2714 = vunpack.c.h.b16 %v1251
    %v2715 = vunpack.c.l.b16 %v1252
    %v2716 = vunpack.c.h.b16 %v1252
    %v2717 = vunpack.c.l.b16 %v1253
    %v2718 = vunpack.c.h.b16 %v1253
    %v2719 = vunpack.c.l.b16 %v1254
    %v2720 = vunpack.c.h.b16 %v1254
    %v2721 = vunpack.c.l.b16 %v1255
    %v2722 = vunpack.c.h.b16 %v1255
    %v2723 = vunpack.c.l.b16 %v1256
    %v2724 = vunpack.c.h.b16 %v1256
    %v2725 = vunpack.c.l.b16 %v1257
    %v2726 = vunpack.c.h.b16 %v1257
    %v2727 = vunpack.c.l.b16 %v1258
    %v2728 = vunpack.c.h.b16 %v1258
    %v2729 = vunpack.c.l.b16 %v1259
    %v2730 = vunpack.c.h.b16 %v1259
    %v2731 = vunpack.c.l.b16 %v1260
    %v2732 = vunpack.c.h.b16 %v1260
    %v2733 = vunpack.c.l.b16 %v1261
    %v2734 = vunpack.c.h.b16 %v1261
    %v2735 = vunpack.c.l.b16 %v1262
    %v2736 = vunpack.c.h.b16 %v1262
    %v2737 = vunpack.c.l.b16 %v1263
    %v2738 = vunpack.c.h.b16 %v1263
    %v2739 = vunpack.c.l.b16 %v1264
    %v2740 = vunpack.c.h.b16 %v1264
    %v2741 = vunpack.c.l.b16 %v1265
    %v2742 = vunpack.c.h.b16 %v1265
    %v2743 = vunpack.c.l.b16 %v1266
    %v2744 = vunpack.c.h.b16 %v1266
    %v2745 = vunpack.c.l.b16 %v1267
    %v2746 = vunpack.c.h.b16 %v1267
    %v2747 = vunpack.c.l.b16 %v1268
    %v2748 = vunpack.c.h.b16 %v1268
    %v2749 = vunpack.c.l.b16 %v1269
    %v2750 = vunpack.c.h.b16 %v1269
    %v2751 = vunpack.c.l.b16 %v1270
    %v2752 = vunpack.c.h.b16 %v1270
    %v2753 = vunpack.c.l.b16 %v1271
    %v2754 = vunpack.c.h.b16 %v1271
    %v2755 = vunpack.c.l.b16 %v1272
    %v2756 = vunpack.c.h.b16 %v1272
    %v2757 = vunpack.c.l.b16 %v1273
    %v2758 = vunpack.c.h.b16 %v1273
    %v2759 = vunpack.c.l.b16 %v1274
    %v2760 = vunpack.c.h.b16 %v1274
    %v2761 = vunpack.c.l.b16 %v1275
    %v2762 = vunpack.c.h.b16 %v1275
    %v2763 = vunpack.c.l.b16 %v1276
    %v2764 = vunpack.c.h.b16 %v1276
    %v2765 = vunpack.c.l.b16 %v1277
    %v2766 = vunpack.c.h.b16 %v1277
    %v2767 = vunpack.c.l.b16 %v1278
    %v2768 = vunpack.c.h.b16 %v1278
    %v2769 = vunpack.c.l.b16 %v1279
    %v2770 = vunpack.c.h.b16 %v1279
    %v2771 = vunpack.c.l.b16 %v1280
    %v2772 = vunpack.c.h.b16 %v1280
    %v2773 = vunpack.c.l.b16 %v1281
    %v2774 = vunpack.c.h.b16 %v1281
    %v2775 = vunpack.c.l.b16 %v1282
    %v2776 = vunpack.c.h.b16 %v1282
    %v2777 = vunpack.c.l.b16 %v1283
    %v2778 = vunpack.c.h.b16 %v1283
    %v2779 = vunpack.c.l.b16 %v1284
    %v2780 = vunpack.c.h.b16 %v1284
    %v2781 = vunpack.c.l.b16 %v1285
    %v2782 = vunpack.c.h.b16 %v1285
    %v2783 = vunpack.c.l.b16 %v1286
    %v2784 = vunpack.c.h.b16 %v1286
    %v2785 = vunpack.c.l.b16 %v1287
    %v2786 = vunpack.c.h.b16 %v1287
    %v2787 = vunpack.c.l.b16 %v1288
    %v2788 = vunpack.c.h.b16 %v1288
    %v2789 = vunpack.c.l.b16 %v1289
    %v2790 = vunpack.c.h.b16 %v1289
    %v2791 = vunpack.c.l.b16 %v1290
    %v2792 = vunpack.c.h.b16 %v1290
    %v2793 = vunpack.c.l.b16 %v1291
    %v2794 = vunpack.c.h.b16 %v1291
    %v2795 = vunpack.c.l.b16 %v1292
    %v2796 = vunpack.c.h.b16 %v1292
    %v2797 = vunpack.c.l.b16 %v1293
    %v2798 = vunpack.c.h.b16 %v1293
    %v2799 = vunpack.c.l.b16 %v1294
    %v2800 = vunpack.c.h.b16 %v1294
    %v2801 = vunpack.c.l.b16 %v1295
    %v2802 = vunpack.c.h.b16 %v1295
    %v2803 = vunpack.c.l.b16 %v1296
    %v2804 = vunpack.c.h.b16 %v1296
    %v2805 = vunpack.c.l.b16 %v1297
    %v2806 = vunpack.c.h.b16 %v1297
    %v2807 = vunpack.c.l.b16 %v1298
    %v2808 = vunpack.c.h.b16 %v1298
    %v2809 = vunpack.c.l.b16 %v1299
    %v2810 = vunpack.c.h.b16 %v1299
    %v2811 = vunpack.c.l.b16 %v1300
    %v2812 = vunpack.c.h.b16 %v1300
    %v2813 = vunpack.c.l.b16 %v1301
    %v2814 = vunpack.c.h.b16 %v1301
    %v2815 = vunpack.c.l.b16 %v1302
    %v2816 = vunpack.c.h.b16 %v1302
    %v2817 = vunpack.c.l.b16 %v1303
    %v2818 = vunpack.c.h.b16 %v1303
    %v2819 = vunpack.c.l.b16 %v1304
    %v2820 = vunpack.c.h.b16 %v1304
    %v2821 = vunpack.c.l.b16 %v1305
    %v2822 = vunpack.c.h.b16 %v1305
    %v2823 = vunpack.c.l.b16 %v1306
    %v2824 = vunpack.c.h.b16 %v1306
    %v2825 = vunpack.c.l.b16 %v1307
    %v2826 = vunpack.c.h.b16 %v1307
    %v2827 = vunpack.c.l.b16 %v1308
    %v2828 = vunpack.c.h.b16 %v1308
    %v2829 = vunpack.c.l.b16 %v1309
    %v2830 = vunpack.c.h.b16 %v1309
    %v2831 = vunpack.c.l.b16 %v1310
    %v2832 = vunpack.c.h.b16 %v1310
    %v2833 = vunpack.c.l.b16 %v1311
    %v2834 = vunpack.c.h.b16 %v1311
    %v2835 = vunpack.c.l.b16 %v1312
    %v2836 = vunpack.c.h.b16 %v1312
    %v2837 = vunpack.c.l.b16 %v1313
    %v2838 = vunpack.c.h.b16 %v1313
    %v2839 = vunpack.c.l.b16 %v1314
    %v2840 = vunpack.c.h.b16 %v1314
    %v2841 = vunpack.c.l.b16 %v1315
    %v2842 = vunpack.c.h.b16 %v1315
    %v2843 = vunpack.c.l.b16 %v1316
    %v2844 = vunpack.c.h.b16 %v1316
    %v2845 = vunpack.c.l.b16 %v1317
    %v2846 = vunpack.c.h.b16 %v1317
    %v2847 = vunpack.c.l.b16 %v1318
    %v2848 = vunpack.c.h.b16 %v1318
    %v2849 = vunpack.c.l.b16 %v1319
    %v2850 = vunpack.c.h.b16 %v1319
    %v2851 = vunpack.c.l.b16 %v1320
    %v2852 = vunpack.c.h.b16 %v1320
    %v2853 = vunpack.c.l.b16 %v1321
    %v2854 = vunpack.c.h.b16 %v1321
    %v2855 = vunpack.c.l.b16 %v1322
    %v2856 = vunpack.c.h.b16 %v1322
    %v2857 = vunpack.c.l.b16 %v1323
    %v2858 = vunpack.c.h.b16 %v1323
    %v2859 = vunpack.c.l.b16 %v1324
    %v2860 = vunpack.c.h.b16 %v1324
    %v2861 = vunpack.c.l.b16 %v1325
    %v2862 = vunpack.c.h.b16 %v1325
    %v2863 = vpack.c.b16 %v1847, %v1839
    %v2864 = vpack.c.b16 %v1848, %v1840
    %v2865 = vpack.c.b16 %v1849, %v1841
    %v2866 = vpack.c.b16 %v1850, %v1842
    %v2867 = vpack.c.b16 %v1851, %v1843
    %v2868 = vpack.c.b16 %v1852, %v1844
    %v2869 = vpack.c.b16 %v1853, %v1845
    %v2870 = vpack.c.b16 %v1854, %v1846
    %v2871 = vpack.c.b16 %v1863, %v1855
    %v2872 = vpack.c.b16 %v1864, %v1856
    %v2873 = vpack.c.b16 %v1865, %v1857
    %v2874 = vpack.c.b16 %v1866, %v1858
    %v2875 = vpack.c.b16 %v1867, %v1859
    %v2876 = vpack.c.b16 %v1868, %v1860
    %v2877 = vpack.c.b16 %v1869, %v1861
    %v2878 = vpack.c.b16 %v1870, %v1862
    %v2879 = vpack.c.b16 %v1879, %v1871
    %v2880 = vpack.c.b16 %v1880, %v1872
    %v2881 = vpack.c.b16 %v1881, %v1873
    %v2882 = vpack.c.b16 %v1882, %v1874
    %v2883 = vpack.c.b16 %v1883, %v1875
    %v2884 = vpack.c.b16 %v1884, %v1876
    %v2885 = vpack.c.b16 %v1885, %v1877
    %v2886 = vpack.c.b16 %v1886, %v1878
    %v2887 = vpack.c.b16 %v1895, %v1887
    %v2888 = vpack.c.b16 %v1896, %v1888
    %v2889 = vpack.c.b16 %v1897, %v1889
    %v2890 = vpack.c.b16 %v1898, %v1890
    %v2891 = vpack.c.b16 %v1899, %v1891
    %v2892 = vpack.c.b16 %v1900, %v1892
    %v2893 = vpack.c.b16 %v1901, %v1893
    %v2894 = vpack.c.b16 %v1902, %v1894
    %v2895 = vpack.c.b16 %v1911, %v1903
    %v2896 = vpack.c.b16 %v1912, %v1904
    %v2897 = vpack.c.b16 %v1913, %v1905
    %v2898 = vpack.c.b16 %v1914, %v1906
    %v2899 = vpack.c.b16 %v1915, %v1907
    %v2900 = vpack.c.b16 %v1916, %v1908
    %v2901 = vpack.c.b16 %v1917, %v1909
    %v2902 = vpack.c.b16 %v1918, %v1910
    %v2903 = vpack.c.b16 %v1927, %v1919
    %v2904 = vpack.c.b16 %v1928, %v1920
    %v2905 = vpack.c.b16 %v1929, %v1921
    %v2906 = vpack.c.b16 %v1930, %v1922
    %v2907 = vpack.c.b16 %v1931, %v1923
    %v2908 = vpack.c.b16 %v1932, %v1924
    %v2909 = vpack.c.b16 %v1933, %v1925
    %v2910 = vpack.c.b16 %v1934, %v1926
    %v2911 = vpack.c.b16 %v1943, %v1935
    %v2912 = vpack.c.b16 %v1944, %v1936
    %v2913 = vpack.c.b16 %v1945, %v1937
    %v2914 = vpack.c.b16 %v1946, %v1938
    %v2915 = vpack.c.b16 %v1947, %v1939
    %v2916 = vpack.c.b16 %v1948, %v1940
    %v2917 = vpack.c.b16 %v1949, %v1941
    %v2918 = vpack.c.b16 %v1950, %v1942
    %v2919 = vpack.c.b16 %v1959, %v1951
    %v2920 = vpack.c.b16 %v1960, %v1952
    %v2921 = vpack.c.b16 %v1961, %v1953
    %v2922 = vpack.c.b16 %v1962, %v1954
    %v2923 = vpack.c.b16 %v1963, %v1955
    %v2924 = vpack.c.b16 %v1964, %v1956
    %v2925 = vpack.c.b16 %v1965, %v1957
    %v2926 = vpack.c.b16 %v1966, %v1958
    %v2927 = vpack.c.b16 %v1975, %v1967
    %v2928 = vpack.c.b16 %v1976, %v1968
    %v2929 = vpack.c.b16 %v1977, %v1969
    %v2930 = vpack.c.b16 %v1978, %v1970
    %v2931 = vpack.c.b16 %v1979, %v1971
    %v2932 = vpack.c.b16 %v1980, %v1972
    %v2933 = vpack.c.b16 %v1981, %v1973
    %v2934 = vpack.c.b16 %v1982, %v1974
    %v2935 = vpack.c.b16 %v1991, %v1983
    %v2936 = vpack.c.b16 %v1992, %v1984
    %v2937 = vpack.c.b16 %v1993, %v1985
    %v2938 = vpack.c.b16 %v1994, %v1986
    %v2939 = vpack.c.b16 %v1995, %v1987
    %v2940 = vpack.c.b16 %v1996, %v1988
    %v2941 = vpack.c.b16 %v1997, %v1989
    %v2942 = vpack.c.b16 %v1998, %v1990
    %v2943 = vpack.c.b16 %v2007, %v1999
    %v2944 = vpack.c.b16 %v2008, %v2000
    %v2945 = vpack.c.b16 %v2009, %v2001
    %v2946 = vpack.c.b16 %v2010, %v2002
    %v2947 = vpack.c.b16 %v2011, %v2003
    %v2948 = vpack.c.b16 %v2012, %v2004
    %v2949 = vpack.c.b16 %v2013, %v2005
    %v2950 = vpack.c.b16 %v2014, %v2006
    %v2951 = vpack.c.b16 %v2023, %v2015
    %v2952 = vpack.c.b16 %v2024, %v2016
    %v2953 = vpack.c.b16 %v2025, %v2017
    %v2954 = vpack.c.b16 %v2026, %v2018
    %v2955 = vpack.c.b16 %v2027, %v2019
    %v2956 = vpack.c.b16 %v2028, %v2020
    %v2957 = vpack.c.b16 %v2029, %v2021
    %v2958 = vpack.c.b16 %v2030, %v2022
    %v2959 = vpack.c.b16 %v2039, %v2031
    %v2960 = vpack.c.b16 %v2040, %v2032
    %v2961 = vpack.c.b16 %v2041, %v2033
    %v2962 = vpack.c.b16 %v2042, %v2034
    %v2963 = vpack.c.b16 %v2043, %v2035
    %v2964 = vpack.c.b16 %v2044, %v2036
    %v2965 = vpack.c.b16 %v2045, %v2037
    %v2966 = vpack.c.b16 %v2046, %v2038
    %v2967 = vpack.c.b16 %v2055, %v2047
    %v2968 = vpack.c.b16 %v2056, %v2048
    %v2969 = vpack.c.b16 %v2057, %v2049
    %v2970 = vpack.c.b16 %v2058, %v2050
    %v2971 = vpack.c.b16 %v2059, %v2051
    %v2972 = vpack.c.b16 %v2060, %v2052
    %v2973 = vpack.c.b16 %v2061, %v2053
    %v2974 = vpack.c.b16 %v2062, %v2054
    %v2975 = vpack.c.b16 %v2071, %v2063
    %v2976 = vpack.c.b16 %v2072, %v2064
    %v2977 = vpack.c.b16 %v2073, %v2065
    %v2978 = vpack.c.b16 %v2074, %v2066
    %v2979 = vpack.c.b16 %v2075, %v2067
    %v2980 = vpack.c.b16 %v2076, %v2068
    %v2981 = vpack.c.b16 %v2077, %v2069
    %v2982 = vpack.c.b16 %v2078, %v2070
    %v2983 = vpack.c.b16 %v2087, %v2079
    %v2984 = vpack.c.b16 %v2088, %v2080
    %v2985 = vpack.c.b16 %v2089, %v2081
    %v2986 = vpack.c.b16 %v2090, %v2082
    %v2987 = vpack.c.b16 %v2091, %v2083
    %v2988 = vpack.c.b16 %v2092, %v2084
    %v2989 = vpack.c.b16 %v2093, %v2085
    %v2990 = vpack.c.b16 %v2094, %v2086
    %v2991 = vpack.c.b16 %v2103, %v2095
    %v2992 = vpack.c.b16 %v2104, %v2096
    %v2993 = vpack.c.b16 %v2105, %v2097
    %v2994 = vpack.c.b16 %v2106, %v2098
    %v2995 = vpack.c.b16 %v2107, %v2099
    %v2996 = vpack.c.b16 %v2108, %v2100
    %v2997 = vpack.c.b16 %v2109, %v2101
    %v2998 = vpack.c.b16 %v2110, %v2102
    %v2999 = vpack.c.b16 %v2119, %v2111
    %v3000 = vpack.c.b16 %v2120, %v2112
    %v3001 = vpack.c.b16 %v2121, %v2113
    %v3002 = vpack.c.b16 %v2122, %v2114
    %v3003 = vpack.c.b16 %v2123, %v2115
    %v3004 = vpack.c.b16 %v2124, %v2116
    %v3005 = vpack.c.b16 %v2125, %v2117
    %v3006 = vpack.c.b16 %v2126, %v2118
    %v3007 = vpack.c.b16 %v2135, %v2127
    %v3008 = vpack.c.b16 %v2136, %v2128
    %v3009 = vpack.c.b16 %v2137, %v2129
    %v3010 = vpack.c.b16 %v2138, %v2130
    %v3011 = vpack.c.b16 %v2139, %v2131
    %v3012 = vpack.c.b16 %v2140, %v2132
    %v3013 = vpack.c.b16 %v2141, %v2133
    %v3014 = vpack.c.b16 %v2142, %v2134
    %v3015 = vpack.c.b16 %v2151, %v2143
    %v3016 = vpack.c.b16 %v2152, %v2144
    %v3017 = vpack.c.b16 %v2153, %v2145
    %v3018 = vpack.c.b16 %v2154, %v2146
    %v3019 = vpack.c.b16 %v2155, %v2147
    %v3020 = vpack.c.b16 %v2156, %v2148
    %v3021 = vpack.c.b16 %v2157, %v2149
    %v3022 = vpack.c.b16 %v2158, %v2150
    %v3023 = vpack.c.b16 %v2167, %v2159
    %v3024 = vpack.c.b16 %v2168, %v2160
    %v3025 = vpack.c.b16 %v2169, %v2161
    %v3026 = vpack.c.b16 %v2170, %v2162
    %v3027 = vpack.c.b16 %v2171, %v2163
    %v3028 = vpack.c.b16 %v2172, %v2164
    %v3029 = vpack.c.b16 %v2173, %v2165
    %v3030 = vpack.c.b16 %v2174, %v2166
    %v3031 = vpack.c.b16 %v2183, %v2175
    %v3032 = vpack.c.b16 %v2184, %v2176
    %v3033 = vpack.c.b16 %v2185, %v2177
    %v3034 = vpack.c.b16 %v2186, %v2178
    %v3035 = vpack.c.b16 %v2187, %v2179
    %v3036 = vpack.c.b16 %v2188, %v2180
    %v3037 = vpack.c.b16 %v2189, %v2181
    %v3038 = vpack.c.b16 %v2190, %v2182
    %v3039 = vpack.c.b16 %v2199, %v2191
    %v3040 = vpack.c.b16 %v2200, %v2192
    %v3041 = vpack.c.b16 %v2201, %v2193
    %v3042 = vpack.c.b16 %v2202, %v2194
    %v3043 = vpack.c.b16 %v2203, %v2195
    %v3044 = vpack.c.b16 %v2204, %v2196
    %v3045 = vpack.c.b16 %v2205, %v2197
    %v3046 = vpack.c.b16 %v2206, %v2198
    %v3047 = vpack.c.b16 %v2215, %v2207
    %v3048 = vpack.c.b16 %v2216, %v2208
    %v3049 = vpack.c.b16 %v2217, %v2209
    %v3050 = vpack.c.b16 %v2218, %v2210
    %v3051 = vpack.c.b16 %v2219, %v2211
    %v3052 = vpack.c.b16 %v2220, %v2212
    %v3053 = vpack.c.b16 %v2221, %v2213
    %v3054 = vpack.c.b16 %v2222, %v2214
    %v3055 = vpack.c.b16 %v2231, %v2223
    %v3056 = vpack.c.b16 %v2232, %v2224
    %v3057 = vpack.c.b16 %v2233, %v2225
    %v3058 = vpack.c.b16 %v2234, %v2226
    %v3059 = vpack.c.b16 %v2235, %v2227
    %v3060 = vpack.c.b16 %v2236, %v2228
    %v3061 = vpack.c.b16 %v2237, %v2229
    %v3062 = vpack.c.b16 %v2238, %v2230
    %v3063 = vpack.c.b16 %v2247, %v2239
    %v3064 = vpack.c.b16 %v2248, %v2240
    %v3065 = vpack.c.b16 %v2249, %v2241
    %v3066 = vpack.c.b16 %v2250, %v2242
    %v3067 = vpack.c.b16 %v2251, %v2243
    %v3068 = vpack.c.b16 %v2252, %v2244
    %v3069 = vpack.c.b16 %v2253, %v2245
    %v3070 = vpack.c.b16 %v2254, %v2246
    %v3071 = vpack.c.b16 %v2263, %v2255
    %v3072 = vpack.c.b16 %v2264, %v2256
    %v3073 = vpack.c.b16 %v2265, %v2257
    %v3074 = vpack.c.b16 %v2266, %v2258
    %v3075 = vpack.c.b16 %v2267, %v2259
    %v3076 = vpack.c.b16 %v2268, %v2260
    %v3077 = vpack.c.b16 %v2269, %v2261
    %v3078 = vpack.c.b16 %v2270, %v2262
    %v3079 = vpack.c.b16 %v2279, %v2271
    %v3080 = vpack.c.b16 %v2280, %v2272
    %v3081 = vpack.c.b16 %v2281, %v2273
    %v3082 = vpack.c.b16 %v2282, %v2274
    %v3083 = vpack.c.b16 %v2283, %v2275
    %v3084 = vpack.c.b16 %v2284, %v2276
    %v3085 = vpack.c.b16 %v2285, %v2277
    %v3086 = vpack.c.b16 %v2286, %v2278
    %v3087 = vpack.c.b16 %v2295, %v2287
    %v3088 = vpack.c.b16 %v2296, %v2288
    %v3089 = vpack.c.b16 %v2297, %v2289
    %v3090 = vpack.c.b16 %v2298, %v2290
    %v3091 = vpack.c.b16 %v2299, %v2291
    %v3092 = vpack.c.b16 %v2300, %v2292
    %v3093 = vpack.c.b16 %v2301, %v2293
    %v3094 = vpack.c.b16 %v2302, %v2294
    %v3095 = vpack.c.b16 %v2311, %v2303
    %v3096 = vpack.c.b16 %v2312, %v2304
    %v3097 = vpack.c.b16 %v2313, %v2305
    %v3098 = vpack.c.b16 %v2314, %v2306
    %v3099 = vpack.c.b16 %v2315, %v2307
    %v3100 = vpack.c.b16 %v2316, %v2308
    %v3101 = vpack.c.b16 %v2317, %v2309
    %v3102 = vpack.c.b16 %v2318, %v2310
    %v3103 = vpack.c.b16 %v2327, %v2319
    %v3104 = vpack.c.b16 %v2328, %v2320
    %v3105 = vpack.c.b16 %v2329, %v2321
    %v3106 = vpack.c.b16 %v2330, %v2322
    %v3107 = vpack.c.b16 %v2331, %v2323
    %v3108 = vpack.c.b16 %v2332, %v2324
    %v3109 = vpack.c.b16 %v2333, %v2325
    %v3110 = vpack.c.b16 %v2334, %v2326
    %v3111 = vpack.c.b16 %v2343, %v2335
    %v3112 = vpack.c.b16 %v2344, %v2336
    %v3113 = vpack.c.b16 %v2345, %v2337
    %v3114 = vpack.c.b16 %v2346, %v2338
    %v3115 = vpack.c.b16 %v2347, %v2339
    %v3116 = vpack.c.b16 %v2348, %v2340
    %v3117 = vpack.c.b16 %v2349, %v2341
    %v3118 = vpack.c.b16 %v2350, %v2342
    %v3119 = vpack.c.b16 %v2359, %v2351
    %v3120 = vpack.c.b16 %v2360, %v2352
    %v3121 = vpack.c.b16 %v2361, %v2353
    %v3122 = vpack.c.b16 %v2362, %v2354
    %v3123 = vpack.c.b16 %v2363, %v2355
    %v3124 = vpack.c.b16 %v2364, %v2356
    %v3125 = vpack.c.b16 %v2365, %v2357
    %v3126 = vpack.c.b16 %v2366, %v2358
    %v3127 = vpack.c.b16 %v2375, %v2367
    %v3128 = vpack.c.b16 %v2376, %v2368
    %v3129 = vpack.c.b16 %v2377, %v2369
    %v3130 = vpack.c.b16 %v2378, %v2370
    %v3131 = vpack.c.b16 %v2379, %v2371
    %v3132 = vpack.c.b16 %v2380, %v2372
    %v3133 = vpack.c.b16 %v2381, %v2373
    %v3134 = vpack.c.b16 %v2382, %v2374
    %v3135 = vpack.c.b16 %v2391, %v2383
    %v3136 = vpack.c.b16 %v2392, %v2384
    %v3137 = vpack.c.b16 %v2393, %v2385
    %v3138 = vpack.c.b16 %v2394, %v2386
    %v3139 = vpack.c.b16 %v2395, %v2387
    %v3140 = vpack.c.b16 %v2396, %v2388
    %v3141 = vpack.c.b16 %v2397, %v2389
    %v3142 = vpack.c.b16 %v2398, %v2390
    %v3143 = vpack.c.b16 %v2407, %v2399
    %v3144 = vpack.c.b16 %v2408, %v2400
    %v3145 = vpack.c.b16 %v2409, %v2401
    %v3146 = vpack.c.b16 %v2410, %v2402
    %v3147 = vpack.c.b16 %v2411, %v2403
    %v3148 = vpack.c.b16 %v2412, %v2404
    %v3149 = vpack.c.b16 %v2413, %v2405
    %v3150 = vpack.c.b16 %v2414, %v2406
    %v3151 = vpack.c.b16 %v2423, %v2415
    %v3152 = vpack.c.b16 %v2424, %v2416
    %v3153 = vpack.c.b16 %v2425, %v2417
    %v3154 = vpack.c.b16 %v2426, %v2418
    %v3155 = vpack.c.b16 %v2427, %v2419
    %v3156 = vpack.c.b16 %v2428, %v2420
    %v3157 = vpack.c.b16 %v2429, %v2421
    %v3158 = vpack.c.b16 %v2430, %v2422
    %v3159 = vpack.c.b16 %v2439, %v2431
    %v3160 = vpack.c.b16 %v2440, %v2432
    %v3161 = vpack.c.b16 %v2441, %v2433
    %v3162 = vpack.c.b16 %v2442, %v2434
    %v3163 = vpack.c.b16 %v2443, %v2435
    %v3164 = vpack.c.b16 %v2444, %v2436
    %v3165 = vpack.c.b16 %v2445, %v2437
    %v3166 = vpack.c.b16 %v2446, %v2438
    %v3167 = vpack.c.b16 %v2455, %v2447
    %v3168 = vpack.c.b16 %v2456, %v2448
    %v3169 = vpack.c.b16 %v2457, %v2449
    %v3170 = vpack.c.b16 %v2458, %v2450
    %v3171 = vpack.c.b16 %v2459, %v2451
    %v3172 = vpack.c.b16 %v2460, %v2452
    %v3173 = vpack.c.b16 %v2461, %v2453
    %v3174 = vpack.c.b16 %v2462, %v2454
    %v3175 = vpack.c.b16 %v2471, %v2463
    %v3176 = vpack.c.b16 %v2472, %v2464
    %v3177 = vpack.c.b16 %v2473, %v2465
    %v3178 = vpack.c.b16 %v2474, %v2466
    %v3179 = vpack.c.b16 %v2475, %v2467
    %v3180 = vpack.c.b16 %v2476, %v2468
    %v3181 = vpack.c.b16 %v2477, %v2469
    %v3182 = vpack.c.b16 %v2478, %v2470
    %v3183 = vpack.c.b16 %v2487, %v2479
    %v3184 = vpack.c.b16 %v2488, %v2480
    %v3185 = vpack.c.b16 %v2489, %v2481
    %v3186 = vpack.c.b16 %v2490, %v2482
    %v3187 = vpack.c.b16 %v2491, %v2483
    %v3188 = vpack.c.b16 %v2492, %v2484
    %v3189 = vpack.c.b16 %v2493, %v2485
    %v3190 = vpack.c.b16 %v2494, %v2486
    %v3191 = vpack.c.b16 %v2503, %v2495
    %v3192 = vpack.c.b16 %v2504, %v2496
    %v3193 = vpack.c.b16 %v2505, %v2497
    %v3194 = vpack.c.b16 %v2506, %v2498
    %v3195 = vpack.c.b16 %v2507, %v2499
    %v3196 = vpack.c.b16 %v2508, %v2500
    %v3197 = vpack.c.b16 %v2509, %v2501
    %v3198 = vpack.c.b16 %v2510, %v2502
    %v3199 = vpack.c.b16 %v2519, %v2511
    %v3200 = vpack.c.b16 %v2520, %v2512
    %v3201 = vpack.c.b16 %v2521, %v2513
    %v3202 = vpack.c.b16 %v2522, %v2514
    %v3203 = vpack.c.b16 %v2523, %v2515
    %v3204 = vpack.c.b16 %v2524, %v2516
    %v3205 = vpack.c.b16 %v2525, %v2517
    %v3206 = vpack.c.b16 %v2526, %v2518
    %v3207 = vpack.c.b16 %v2535, %v2527
    %v3208 = vpack.c.b16 %v2536, %v2528
    %v3209 = vpack.c.b16 %v2537, %v2529
    %v3210 = vpack.c.b16 %v2538, %v2530
    %v3211 = vpack.c.b16 %v2539, %v2531
    %v3212 = vpack.c.b16 %v2540, %v2532
    %v3213 = vpack.c.b16 %v2541, %v2533
    %v3214 = vpack.c.b16 %v2542, %v2534
    %v3215 = vpack.c.b16 %v2551, %v2543
    %v3216 = vpack.c.b16 %v2552, %v2544
    %v3217 = vpack.c.b16 %v2553, %v2545
    %v3218 = vpack.c.b16 %v2554, %v2546
    %v3219 = vpack.c.b16 %v2555, %v2547
    %v3220 = vpack.c.b16 %v2556, %v2548
    %v3221 = vpack.c.b16 %v2557, %v2549
    %v3222 = vpack.c.b16 %v2558, %v2550
    %v3223 = vpack.c.b16 %v2567, %v2559
    %v3224 = vpack.c.b16 %v2568, %v2560
    %v3225 = vpack.c.b16 %v2569, %v2561
    %v3226 = vpack.c.b16 %v2570, %v2562
    %v3227 = vpack.c.b16 %v2571, %v2563
    %v3228 = vpack.c.b16 %v2572, %v2564
    %v3229 = vpack.c.b16 %v2573, %v2565
    %v3230 = vpack.c.b16 %v2574, %v2566
    %v3231 = vpack.c.b16 %v2583, %v2575
    %v3232 = vpack.c.b16 %v2584, %v2576
    %v3233 = vpack.c.b16 %v2585, %v2577
    %v3234 = vpack.c.b16 %v2586, %v2578
    %v3235 = vpack.c.b16 %v2587, %v2579
    %v3236 = vpack.c.b16 %v2588, %v2580
    %v3237 = vpack.c.b16 %v2589, %v2581
    %v3238 = vpack.c.b16 %v2590, %v2582
    %v3239 = vpack.c.b16 %v2599, %v2591
    %v3240 = vpack.c.b16 %v2600, %v2592
    %v3241 = vpack.c.b16 %v2601, %v2593
    %v3242 = vpack.c.b16 %v2602, %v2594
    %v3243 = vpack.c.b16 %v2603, %v2595
    %v3244 = vpack.c.b16 %v2604, %v2596
    %v3245 = vpack.c.b16 %v2605, %v2597
    %v3246 = vpack.c.b16 %v2606, %v2598
    %v3247 = vpack.c.b16 %v2615, %v2607
    %v3248 = vpack.c.b16 %v2616, %v2608
    %v3249 = vpack.c.b16 %v2617, %v2609
    %v3250 = vpack.c.b16 %v2618, %v2610
    %v3251 = vpack.c.b16 %v2619, %v2611
    %v3252 = vpack.c.b16 %v2620, %v2612
    %v3253 = vpack.c.b16 %v2621, %v2613
    %v3254 = vpack.c.b16 %v2622, %v2614
    %v3255 = vpack.c.b16 %v2631, %v2623
    %v3256 = vpack.c.b16 %v2632, %v2624
    %v3257 = vpack.c.b16 %v2633, %v2625
    %v3258 = vpack.c.b16 %v2634, %v2626
    %v3259 = vpack.c.b16 %v2635, %v2627
    %v3260 = vpack.c.b16 %v2636, %v2628
    %v3261 = vpack.c.b16 %v2637, %v2629
    %v3262 = vpack.c.b16 %v2638, %v2630
    %v3263 = vpack.c.b16 %v2647, %v2639
    %v3264 = vpack.c.b16 %v2648, %v2640
    %v3265 = vpack.c.b16 %v2649, %v2641
    %v3266 = vpack.c.b16 %v2650, %v2642
    %v3267 = vpack.c.b16 %v2651, %v2643
    %v3268 = vpack.c.b16 %v2652, %v2644
    %v3269 = vpack.c.b16 %v2653, %v2645
    %v3270 = vpack.c.b16 %v2654, %v2646
    %v3271 = vpack.c.b16 %v2663, %v2655
    %v3272 = vpack.c.b16 %v2664, %v2656
    %v3273 = vpack.c.b16 %v2665, %v2657
    %v3274 = vpack.c.b16 %v2666, %v2658
    %v3275 = vpack.c.b16 %v2667, %v2659
    %v3276 = vpack.c.b16 %v2668, %v2660
    %v3277 = vpack.c.b16 %v2669, %v2661
    %v3278 = vpack.c.b16 %v2670, %v2662
    %v3279 = vpack.c.b16 %v2679, %v2671
    %v3280 = vpack.c.b16 %v2680, %v2672
    %v3281 = vpack.c.b16 %v2681, %v2673
    %v3282 = vpack.c.b16 %v2682, %v2674
    %v3283 = vpack.c.b16 %v2683, %v2675
    %v3284 = vpack.c.b16 %v2684, %v2676
    %v3285 = vpack.c.b16 %v2685, %v2677
    %v3286 = vpack.c.b16 %v2686, %v2678
    %v3287 = vpack.c.b16 %v2695, %v2687
    %v3288 = vpack.c.b16 %v2696, %v2688
    %v3289 = vpack.c.b16 %v2697, %v2689
    %v3290 = vpack.c.b16 %v2698, %v2690
    %v3291 = vpack.c.b16 %v2699, %v2691
    %v3292 = vpack.c.b16 %v2700, %v2692
    %v3293 = vpack.c.b16 %v2701, %v2693
    %v3294 = vpack.c.b16 %v2702, %v2694
    %v3295 = vpack.c.b16 %v2711, %v2703
    %v3296 = vpack.c.b16 %v2712, %v2704
    %v3297 = vpack.c.b16 %v2713, %v2705
    %v3298 = vpack.c.b16 %v2714, %v2706
    %v3299 = vpack.c.b16 %v2715, %v2707
    %v3300 = vpack.c.b16 %v2716, %v2708
    %v3301 = vpack.c.b16 %v2717, %v2709
    %v3302 = vpack.c.b16 %v2718, %v2710
    %v3303 = vpack.c.b16 %v2727, %v2719
    %v3304 = vpack.c.b16 %v2728, %v2720
    %v3305 = vpack.c.b16 %v2729, %v2721
    %v3306 = vpack.c.b16 %v2730, %v2722
    %v3307 = vpack.c.b16 %v2731, %v2723
    %v3308 = vpack.c.b16 %v2732, %v2724
    %v3309 = vpack.c.b16 %v2733, %v2725
    %v3310 = vpack.c.b16 %v2734, %v2726
    %v3311 = vpack.c.b16 %v2743, %v2735
    %v3312 = vpack.c.b16 %v2744, %v2736
    %v3313 = vpack.c.b16 %v2745, %v2737
    %v3314 = vpack.c.b16 %v2746, %v2738
    %v3315 = vpack.c.b16 %v2747, %v2739
    %v3316 = vpack.c.b16 %v2748, %v2740
    %v3317 = vpack.c.b16 %v2749, %v2741
    %v3318 = vpack.c.b16 %v2750, %v2742
    %v3319 = vpack.c.b16 %v2759, %v2751
    %v3320 = vpack.c.b16 %v2760, %v2752
    %v3321 = vpack.c.b16 %v2761, %v2753
    %v3322 = vpack.c.b16 %v2762, %v2754
    %v3323 = vpack.c.b16 %v2763, %v2755
    %v3324 = vpack.c.b16 %v2764, %v2756
    %v3325 = vpack.c.b16 %v2765, %v2757
    %v3326 = vpack.c.b16 %v2766, %v2758
    %v3327 = vpack.c.b16 %v2775, %v2767
    %v3328 = vpack.c.b16 %v2776, %v2768
    %v3329 = vpack.c.b16 %v2777, %v2769
    %v3330 = vpack.c.b16 %v2778, %v2770
    %v3331 = vpack.c.b16 %v2779, %v2771
    %v3332 = vpack.c.b16 %v2780, %v2772
    %v3333 = vpack.c.b16 %v2781, %v2773
    %v3334 = vpack.c.b16 %v2782, %v2774
    %v3335 = vpack.c.b16 %v2791, %v2783
    %v3336 = vpack.c.b16 %v2792, %v2784
    %v3337 = vpack.c.b16 %v2793, %v2785
    %v3338 = vpack.c.b16 %v2794, %v2786
    %v3339 = vpack.c.b16 %v2795, %v2787
    %v3340 = vpack.c.b16 %v2796, %v2788
    %v3341 = vpack.c.b16 %v2797, %v2789
    %v3342 = vpack.c.b16 %v2798, %v2790
    %v3343 = vpack.c.b16 %v2807, %v2799
    %v3344 = vpack.c.b16 %v2808, %v2800
    %v3345 = vpack.c.b16 %v2809, %v2801
    %v3346 = vpack.c.b16 %v2810, %v2802
    %v3347 = vpack.c.b16 %v2811, %v2803
    %v3348 = vpack.c.b16 %v2812, %v2804
    %v3349 = vpack.c.b16 %v2813, %v2805
    %v3350 = vpack.c.b16 %v2814, %v2806
    %v3351 = vpack.c.b16 %v2823, %v2815
    %v3352 = vpack.c.b16 %v2824, %v2816
    %v3353 = vpack.c.b16 %v2825, %v2817
    %v3354 = vpack.c.b16 %v2826, %v2818
    %v3355 = vpack.c.b16 %v2827, %v2819
    %v3356 = vpack.c.b16 %v2828, %v2820
    %v3357 = vpack.c.b16 %v2829, %v2821
    %v3358 = vpack.c.b16 %v2830, %v2822
    %v3359 = vpack.c.b16 %v2839, %v2831
    %v3360 = vpack.c.b16 %v2840, %v2832
    %v3361 = vpack.c.b16 %v2841, %v2833
    %v3362 = vpack.c.b16 %v2842, %v2834
    %v3363 = vpack.c.b16 %v2843, %v2835
    %v3364 = vpack.c.b16 %v2844, %v2836
    %v3365 = vpack.c.b16 %v2845, %v2837
    %v3366 = vpack.c.b16 %v2846, %v2838
    %v3367 = vpack.c.b16 %v2855, %v2847
    %v3368 = vpack.c.b16 %v2856, %v2848
    %v3369 = vpack.c.b16 %v2857, %v2849
    %v3370 = vpack.c.b16 %v2858, %v2850
    %v3371 = vpack.c.b16 %v2859, %v2851
    %v3372 = vpack.c.b16 %v2860, %v2852
    %v3373 = vpack.c.b16 %v2861, %v2853
    %v3374 = vpack.c.b16 %v2862, %v2854
    %3887 = vmatprep.subr.bf16.mxu0 %v2864
    %3888 = vmatpush1.bf16.msra.mxu0 %v2863
    %3889 = vmatprep.subr.bf16.mxu0 %v2872
    %3890 = vmatpush1.bf16.msra.mxu0 %v2871
    %3891 = vmatprep.subr.bf16.mxu0 %v2880
    %3892 = vmatpush1.bf16.msra.mxu0 %v2879
    %3893 = vmatprep.subr.bf16.mxu0 %v2888
    %3894 = vmatpush1.bf16.msra.mxu0 %v2887
    %3895 = vmatprep.subr.bf16.mxu0 %v2896
    %3896 = vmatpush1.bf16.msra.mxu0 %v2895
    %3897 = vmatprep.subr.bf16.mxu0 %v2904
    %3898 = vmatpush1.bf16.msra.mxu0 %v2903
    %3899 = vmatprep.subr.bf16.mxu0 %v2912
    %3900 = vmatpush1.bf16.msra.mxu0 %v2911
    %3901 = vmatprep.subr.bf16.mxu0 %v2920
    %3902 = vmatpush1.bf16.msra.mxu0 %v2919
    %3903 = vmatprep.subr.bf16.mxu0 %v2928
    %3904 = vmatpush1.bf16.msra.mxu0 %v2927
    %3905 = vmatprep.subr.bf16.mxu0 %v2936
    %3906 = vmatpush1.bf16.msra.mxu0 %v2935
    %3907 = vmatprep.subr.bf16.mxu0 %v2944
    %3908 = vmatpush1.bf16.msra.mxu0 %v2943
    %3909 = vmatprep.subr.bf16.mxu0 %v2952
    %3910 = vmatpush1.bf16.msra.mxu0 %v2951
    %3911 = vmatprep.subr.bf16.mxu0 %v2960
    %3912 = vmatpush1.bf16.msra.mxu0 %v2959
    %3913 = vmatprep.subr.bf16.mxu0 %v2968
    %3914 = vmatpush1.bf16.msra.mxu0 %v2967
    %3915 = vmatprep.subr.bf16.mxu0 %v2976
    %3916 = vmatpush1.bf16.msra.mxu0 %v2975
    %3917 = vmatprep.subr.bf16.mxu0 %v2984
    %3918 = vmatpush1.bf16.msra.mxu0 %v2983
    %3919 = vmatprep.mubr.bf16.mxu0 %v807
    %3920 = vmatmul.mubr.bf16.gmra.mrb[0].mxu0 %v806
    %v3921 = vpop.f32.mrb[0].mxu0
    %v3922 = vadd.f32 0.0, %v3921
    %v3923 = vpop.f32.mrb[0].mxu0
    %v3924 = vadd.f32 0.0, %v3923
    %v3925 = vpop.f32.mrb[0].mxu0
    %v3926 = vadd.f32 0.0, %v3925
    %v3927 = vpop.f32.mrb[0].mxu0
    %v3928 = vadd.f32 0.0, %v3927
    %3929 = vdwg.mxu0
    %3930 = vmatprep.subr.bf16.mxu0 %v2992
    %3931 = vmatpush1.bf16.msra.mxu0 %v2991
    %3932 = vmatprep.subr.bf16.mxu0 %v3000
    %3933 = vmatpush1.bf16.msra.mxu0 %v2999
    %3934 = vmatprep.subr.bf16.mxu0 %v3008
    %3935 = vmatpush1.bf16.msra.mxu0 %v3007
    %3936 = vmatprep.subr.bf16.mxu0 %v3016
    %3937 = vmatpush1.bf16.msra.mxu0 %v3015
    %3938 = vmatprep.subr.bf16.mxu0 %v3024
    %3939 = vmatpush1.bf16.msra.mxu0 %v3023
    %3940 = vmatprep.subr.bf16.mxu0 %v3032
    %3941 = vmatpush1.bf16.msra.mxu0 %v3031
    %3942 = vmatprep.subr.bf16.mxu0 %v3040
    %3943 = vmatpush1.bf16.msra.mxu0 %v3039
    %3944 = vmatprep.subr.bf16.mxu0 %v3048
    %3945 = vmatpush1.bf16.msra.mxu0 %v3047
    %3946 = vmatprep.subr.bf16.mxu0 %v3056
    %3947 = vmatpush1.bf16.msra.mxu0 %v3055
    %3948 = vmatprep.subr.bf16.mxu0 %v3064
    %3949 = vmatpush1.bf16.msra.mxu0 %v3063
    %3950 = vmatprep.subr.bf16.mxu0 %v3072
    %3951 = vmatpush1.bf16.msra.mxu0 %v3071
    %3952 = vmatprep.subr.bf16.mxu0 %v3080
    %3953 = vmatpush1.bf16.msra.mxu0 %v3079
    %3954 = vmatprep.subr.bf16.mxu0 %v3088
    %3955 = vmatpush1.bf16.msra.mxu0 %v3087
    %3956 = vmatprep.subr.bf16.mxu0 %v3096
    %3957 = vmatpush1.bf16.msra.mxu0 %v3095
    %3958 = vmatprep.subr.bf16.mxu0 %v3104
    %3959 = vmatpush1.bf16.msra.mxu0 %v3103
    %3960 = vmatprep.subr.bf16.mxu0 %v3112
    %3961 = vmatpush1.bf16.msra.mxu0 %v3111
    %3962 = vmatprep.mubr.bf16.mxu0 %v809
    %3963 = vmatmul.mubr.bf16.gmra.mrb[0].mxu0 %v808
    %v3964 = vpop.f32.mrb[0].mxu0
    %v3965 = vadd.f32 %v3922, %v3964
    %v3966 = vpop.f32.mrb[0].mxu0
    %v3967 = vadd.f32 %v3924, %v3966
    %v3968 = vpop.f32.mrb[0].mxu0
    %v3969 = vadd.f32 %v3926, %v3968
    %v3970 = vpop.f32.mrb[0].mxu0
    %v3971 = vadd.f32 %v3928, %v3970
    %3972 = vdwg.mxu0
    %3973 = vmatprep.subr.bf16.mxu0 %v3120
    %3974 = vmatpush1.bf16.msra.mxu0 %v3119
    %3975 = vmatprep.subr.bf16.mxu0 %v3128
    %3976 = vmatpush1.bf16.msra.mxu0 %v3127
    %3977 = vmatprep.subr.bf16.mxu0 %v3136
    %3978 = vmatpush1.bf16.msra.mxu0 %v3135
    %3979 = vmatprep.subr.bf16.mxu0 %v3144
    %3980 = vmatpush1.bf16.msra.mxu0 %v3143
    %3981 = vmatprep.subr.bf16.mxu0 %v3152
    %3982 = vmatpush1.bf16.msra.mxu0 %v3151
    %3983 = vmatprep.subr.bf16.mxu0 %v3160
    %3984 = vmatpush1.bf16.msra.mxu0 %v3159
    %3985 = vmatprep.subr.bf16.mxu0 %v3168
    %3986 = vmatpush1.bf16.msra.mxu0 %v3167
    %3987 = vmatprep.subr.bf16.mxu0 %v3176
    %3988 = vmatpush1.bf16.msra.mxu0 %v3175
    %3989 = vmatprep.subr.bf16.mxu0 %v3184
    %3990 = vmatpush1.bf16.msra.mxu0 %v3183
    %3991 = vmatprep.subr.bf16.mxu0 %v3192
    %3992 = vmatpush1.bf16.msra.mxu0 %v3191
    %3993 = vmatprep.subr.bf16.mxu0 %v3200
    %3994 = vmatpush1.bf16.msra.mxu0 %v3199
    %3995 = vmatprep.subr.bf16.mxu0 %v3208
    %3996 = vmatpush1.bf16.msra.mxu0 %v3207
    %3997 = vmatprep.subr.bf16.mxu0 %v3216
    %3998 = vmatpush1.bf16.msra.mxu0 %v3215
    %3999 = vmatprep.subr.bf16.mxu0 %v3224
    %4000 = vmatpush1.bf16.msra.mxu0 %v3223
    %4001 = vmatprep.subr.bf16.mxu0 %v3232
    %4002 = vmatpush1.bf16.msra.mxu0 %v3231
    %4003 = vmatprep.subr.bf16.mxu0 %v3240
    %4004 = vmatpush1.bf16.msra.mxu0 %v3239
    %4005 = vmatprep.mubr.bf16.mxu0 %v811
    %4006 = vmatmul.mubr.bf16.gmra.mrb[0].mxu0 %v810
    %v4007 = vpop.f32.mrb[0].mxu0
    %v4008 = vadd.f32 %v3965, %v4007
    %v4009 = vpop.f32.mrb[0].mxu0
    %v4010 = vadd.f32 %v3967, %v4009
    %v4011 = vpop.f32.mrb[0].mxu0
    %v4012 = vadd.f32 %v3969, %v4011
    %v4013 = vpop.f32.mrb[0].mxu0
    %v4014 = vadd.f32 %v3971, %v4013
    %4015 = vdwg.mxu0
    %4016 = vmatprep.subr.bf16.mxu0 %v3248
    %4017 = vmatpush1.bf16.msra.mxu0 %v3247
    %4018 = vmatprep.subr.bf16.mxu0 %v3256
    %4019 = vmatpush1.bf16.msra.mxu0 %v3255
    %4020 = vmatprep.subr.bf16.mxu0 %v3264
    %4021 = vmatpush1.bf16.msra.mxu0 %v3263
    %4022 = vmatprep.subr.bf16.mxu0 %v3272
    %4023 = vmatpush1.bf16.msra.mxu0 %v3271
    %4024 = vmatprep.subr.bf16.mxu0 %v3280
    %4025 = vmatpush1.bf16.msra.mxu0 %v3279
    %4026 = vmatprep.subr.bf16.mxu0 %v3288
    %4027 = vmatpush1.bf16.msra.mxu0 %v3287
    %4028 = vmatprep.subr.bf16.mxu0 %v3296
    %4029 = vmatpush1.bf16.msra.mxu0 %v3295
    %4030 = vmatprep.subr.bf16.mxu0 %v3304
    %4031 = vmatpush1.bf16.msra.mxu0 %v3303
    %4032 = vmatprep.subr.bf16.mxu0 %v3312
    %4033 = vmatpush1.bf16.msra.mxu0 %v3311
    %4034 = vmatprep.subr.bf16.mxu0 %v3320
    %4035 = vmatpush1.bf16.msra.mxu0 %v3319
    %4036 = vmatprep.subr.bf16.mxu0 %v3328
    %4037 = vmatpush1.bf16.msra.mxu0 %v3327
    %4038 = vmatprep.subr.bf16.mxu0 %v3336
    %4039 = vmatpush1.bf16.msra.mxu0 %v3335
    %4040 = vmatprep.subr.bf16.mxu0 %v3344
    %4041 = vmatpush1.bf16.msra.mxu0 %v3343
    %4042 = vmatprep.subr.bf16.mxu0 %v3352
    %4043 = vmatpush1.bf16.msra.mxu0 %v3351
    %4044 = vmatprep.subr.bf16.mxu0 %v3360
    %4045 = vmatpush1.bf16.msra.mxu0 %v3359
    %4046 = vmatprep.subr.bf16.mxu0 %v3368
    %4047 = vmatpush1.bf16.msra.mxu0 %v3367
    %4048 = vmatprep.mubr.bf16.mxu0 %v813
    %4049 = vmatmul.mubr.bf16.gmra.mrb[0].mxu0 %v812
    %v4050 = vpop.f32.mrb[0].mxu0
    %v4051 = vadd.f32 %v4008, %v4050
    %v4052 = vpop.f32.mrb[0].mxu0
    %v4053 = vadd.f32 %v4010, %v4052
    %v4054 = vpop.f32.mrb[0].mxu0
    %v4055 = vadd.f32 %v4012, %v4054
    %v4056 = vpop.f32.mrb[0].mxu0
    %v4057 = vadd.f32 %v4014, %v4056
    %4058 = vdwg.mxu0
    %4059 = vmatprep.subr.bf16.mxu0 %v2866
    %4060 = vmatpush1.bf16.msra.mxu0 %v2865
    %4061 = vmatprep.subr.bf16.mxu0 %v2874
    %4062 = vmatpush1.bf16.msra.mxu0 %v2873
    %4063 = vmatprep.subr.bf16.mxu0 %v2882
    %4064 = vmatpush1.bf16.msra.mxu0 %v2881
    %4065 = vmatprep.subr.bf16.mxu0 %v2890
    %4066 = vmatpush1.bf16.msra.mxu0 %v2889
    %4067 = vmatprep.subr.bf16.mxu0 %v2898
    %4068 = vmatpush1.bf16.msra.mxu0 %v2897
    %4069 = vmatprep.subr.bf16.mxu0 %v2906
    %4070 = vmatpush1.bf16.msra.mxu0 %v2905
    %4071 = vmatprep.subr.bf16.mxu0 %v2914
    %4072 = vmatpush1.bf16.msra.mxu0 %v2913
    %4073 = vmatprep.subr.bf16.mxu0 %v2922
    %4074 = vmatpush1.bf16.msra.mxu0 %v2921
    %4075 = vmatprep.subr.bf16.mxu0 %v2930
    %4076 = vmatpush1.bf16.msra.mxu0 %v2929
    %4077 = vmatprep.subr.bf16.mxu0 %v2938
    %4078 = vmatpush1.bf16.msra.mxu0 %v2937
    %4079 = vmatprep.subr.bf16.mxu0 %v2946
    %4080 = vmatpush1.bf16.msra.mxu0 %v2945
    %4081 = vmatprep.subr.bf16.mxu0 %v2954
    %4082 = vmatpush1.bf16.msra.mxu0 %v2953
    %4083 = vmatprep.subr.bf16.mxu0 %v2962
    %4084 = vmatpush1.bf16.msra.mxu0 %v2961
    %4085 = vmatprep.subr.bf16.mxu0 %v2970
    %4086 = vmatpush1.bf16.msra.mxu0 %v2969
    %4087 = vmatprep.subr.bf16.mxu0 %v2978
    %4088 = vmatpush1.bf16.msra.mxu0 %v2977
    %4089 = vmatprep.subr.bf16.mxu0 %v2986
    %4090 = vmatpush1.bf16.msra.mxu0 %v2985
    %4091 = vmatprep.mubr.bf16.mxu0 %v807
    %4092 = vmatmul.mubr.bf16.gmra.mrb[0].mxu0 %v806
    %v4093 = vpop.f32.mrb[0].mxu0
    %v4094 = vadd.f32 0.0, %v4093
    %v4095 = vpop.f32.mrb[0].mxu0
    %v4096 = vadd.f32 0.0, %v4095
    %v4097 = vpop.f32.mrb[0].mxu0
    %v4098 = vadd.f32 0.0, %v4097
    %v4099 = vpop.f32.mrb[0].mxu0
    %v4100 = vadd.f32 0.0, %v4099
    %4101 = vdwg.mxu0
    %4102 = vmatprep.subr.bf16.mxu0 %v2994
    %4103 = vmatpush1.bf16.msra.mxu0 %v2993
    %4104 = vmatprep.subr.bf16.mxu0 %v3002
    %4105 = vmatpush1.bf16.msra.mxu0 %v3001
    %4106 = vmatprep.subr.bf16.mxu0 %v3010
    %4107 = vmatpush1.bf16.msra.mxu0 %v3009
    %4108 = vmatprep.subr.bf16.mxu0 %v3018
    %4109 = vmatpush1.bf16.msra.mxu0 %v3017
    %4110 = vmatprep.subr.bf16.mxu0 %v3026
    %4111 = vmatpush1.bf16.msra.mxu0 %v3025
    %4112 = vmatprep.subr.bf16.mxu0 %v3034
    %4113 = vmatpush1.bf16.msra.mxu0 %v3033
    %4114 = vmatprep.subr.bf16.mxu0 %v3042
    %4115 = vmatpush1.bf16.msra.mxu0 %v3041
    %4116 = vmatprep.subr.bf16.mxu0 %v3050
    %4117 = vmatpush1.bf16.msra.mxu0 %v3049
    %4118 = vmatprep.subr.bf16.mxu0 %v3058
    %4119 = vmatpush1.bf16.msra.mxu0 %v3057
    %4120 = vmatprep.subr.bf16.mxu0 %v3066
    %4121 = vmatpush1.bf16.msra.mxu0 %v3065
    %4122 = vmatprep.subr.bf16.mxu0 %v3074
    %4123 = vmatpush1.bf16.msra.mxu0 %v3073
    %4124 = vmatprep.subr.bf16.mxu0 %v3082
    %4125 = vmatpush1.bf16.msra.mxu0 %v3081
    %4126 = vmatprep.subr.bf16.mxu0 %v3090
    %4127 = vmatpush1.bf16.msra.mxu0 %v3089
    %4128 = vmatprep.subr.bf16.mxu0 %v3098
    %4129 = vmatpush1.bf16.msra.mxu0 %v3097
    %4130 = vmatprep.subr.bf16.mxu0 %v3106
    %4131 = vmatpush1.bf16.msra.mxu0 %v3105
    %4132 = vmatprep.subr.bf16.mxu0 %v3114
    %4133 = vmatpush1.bf16.msra.mxu0 %v3113
    %4134 = vmatprep.mubr.bf16.mxu0 %v809
    %4135 = vmatmul.mubr.bf16.gmra.mrb[0].mxu0 %v808
    %v4136 = vpop.f32.mrb[0].mxu0
    %v4137 = vadd.f32 %v4094, %v4136
    %v4138 = vpop.f32.mrb[0].mxu0
    %v4139 = vadd.f32 %v4096, %v4138
    %v4140 = vpop.f32.mrb[0].mxu0
    %v4141 = vadd.f32 %v4098, %v4140
    %v4142 = vpop.f32.mrb[0].mxu0
    %v4143 = vadd.f32 %v4100, %v4142
    %4144 = vdwg.mxu0
    %4145 = vmatprep.subr.bf16.mxu0 %v3122
    %4146 = vmatpush1.bf16.msra.mxu0 %v3121
    %4147 = vmatprep.subr.bf16.mxu0 %v3130
    %4148 = vmatpush1.bf16.msra.mxu0 %v3129
    %4149 = vmatprep.subr.bf16.mxu0 %v3138
    %4150 = vmatpush1.bf16.msra.mxu0 %v3137
    %4151 = vmatprep.subr.bf16.mxu0 %v3146
    %4152 = vmatpush1.bf16.msra.mxu0 %v3145
    %4153 = vmatprep.subr.bf16.mxu0 %v3154
    %4154 = vmatpush1.bf16.msra.mxu0 %v3153
    %4155 = vmatprep.subr.bf16.mxu0 %v3162
    %4156 = vmatpush1.bf16.msra.mxu0 %v3161
    %4157 = vmatprep.subr.bf16.mxu0 %v3170
    %4158 = vmatpush1.bf16.msra.mxu0 %v3169
    %4159 = vmatprep.subr.bf16.mxu0 %v3178
    %4160 = vmatpush1.bf16.msra.mxu0 %v3177
    %4161 = vmatprep.subr.bf16.mxu0 %v3186
    %4162 = vmatpush1.bf16.msra.mxu0 %v3185
    %4163 = vmatprep.subr.bf16.mxu0 %v3194
    %4164 = vmatpush1.bf16.msra.mxu0 %v3193
    %4165 = vmatprep.subr.bf16.mxu0 %v3202
    %4166 = vmatpush1.bf16.msra.mxu0 %v3201
    %4167 = vmatprep.subr.bf16.mxu0 %v3210
    %4168 = vmatpush1.bf16.msra.mxu0 %v3209
    %4169 = vmatprep.subr.bf16.mxu0 %v3218
    %4170 = vmatpush1.bf16.msra.mxu0 %v3217
    %4171 = vmatprep.subr.bf16.mxu0 %v3226
    %4172 = vmatpush1.bf16.msra.mxu0 %v3225
    %4173 = vmatprep.subr.bf16.mxu0 %v3234
    %4174 = vmatpush1.bf16.msra.mxu0 %v3233
    %4175 = vmatprep.subr.bf16.mxu0 %v3242
    %4176 = vmatpush1.bf16.msra.mxu0 %v3241
    %4177 = vmatprep.mubr.bf16.mxu0 %v811
    %4178 = vmatmul.mubr.bf16.gmra.mrb[0].mxu0 %v810
    %v4179 = vpop.f32.mrb[0].mxu0
    %v4180 = vadd.f32 %v4137, %v4179
    %v4181 = vpop.f32.mrb[0].mxu0
    %v4182 = vadd.f32 %v4139, %v4181
    %v4183 = vpop.f32.mrb[0].mxu0
    %v4184 = vadd.f32 %v4141, %v4183
    %v4185 = vpop.f32.mrb[0].mxu0
    %v4186 = vadd.f32 %v4143, %v4185
    %4187 = vdwg.mxu0
    %4188 = vmatprep.subr.bf16.mxu0 %v3250
    %4189 = vmatpush1.bf16.msra.mxu0 %v3249
    %4190 = vmatprep.subr.bf16.mxu0 %v3258
    %4191 = vmatpush1.bf16.msra.mxu0 %v3257
    %4192 = vmatprep.subr.bf16.mxu0 %v3266
    %4193 = vmatpush1.bf16.msra.mxu0 %v3265
    %4194 = vmatprep.subr.bf16.mxu0 %v3274
    %4195 = vmatpush1.bf16.msra.mxu0 %v3273
    %4196 = vmatprep.subr.bf16.mxu0 %v3282
    %4197 = vmatpush1.bf16.msra.mxu0 %v3281
    %4198 = vmatprep.subr.bf16.mxu0 %v3290
    %4199 = vmatpush1.bf16.msra.mxu0 %v3289
    %4200 = vmatprep.subr.bf16.mxu0 %v3298
    %4201 = vmatpush1.bf16.msra.mxu0 %v3297
    %4202 = vmatprep.subr.bf16.mxu0 %v3306
    %4203 = vmatpush1.bf16.msra.mxu0 %v3305
    %4204 = vmatprep.subr.bf16.mxu0 %v3314
    %4205 = vmatpush1.bf16.msra.mxu0 %v3313
    %4206 = vmatprep.subr.bf16.mxu0 %v3322
    %4207 = vmatpush1.bf16.msra.mxu0 %v3321
    %4208 = vmatprep.subr.bf16.mxu0 %v3330
    %4209 = vmatpush1.bf16.msra.mxu0 %v3329
    %4210 = vmatprep.subr.bf16.mxu0 %v3338
    %4211 = vmatpush1.bf16.msra.mxu0 %v3337
    %4212 = vmatprep.subr.bf16.mxu0 %v3346
    %4213 = vmatpush1.bf16.msra.mxu0 %v3345
    %4214 = vmatprep.subr.bf16.mxu0 %v3354
    %4215 = vmatpush1.bf16.msra.mxu0 %v3353
    %4216 = vmatprep.subr.bf16.mxu0 %v3362
    %4217 = vmatpush1.bf16.msra.mxu0 %v3361
    %4218 = vmatprep.subr.bf16.mxu0 %v3370
    %4219 = vmatpush1.bf16.msra.mxu0 %v3369
    %4220 = vmatprep.mubr.bf16.mxu0 %v813
    %4221 = vmatmul.mubr.bf16.gmra.mrb[0].mxu0 %v812
    %v4222 = vpop.f32.mrb[0].mxu0
    %v4223 = vadd.f32 %v4180, %v4222
    %v4224 = vpop.f32.mrb[0].mxu0
    %v4225 = vadd.f32 %v4182, %v4224
    %v4226 = vpop.f32.mrb[0].mxu0
    %v4227 = vadd.f32 %v4184, %v4226
    %v4228 = vpop.f32.mrb[0].mxu0
    %v4229 = vadd.f32 %v4186, %v4228
    %4230 = vdwg.mxu0
    %4231 = vmatprep.subr.bf16.mxu0 %v2868
    %4232 = vmatpush1.bf16.msra.mxu0 %v2867
    %4233 = vmatprep.subr.bf16.mxu0 %v2876
    %4234 = vmatpush1.bf16.msra.mxu0 %v2875
    %4235 = vmatprep.subr.bf16.mxu0 %v2884
    %4236 = vmatpush1.bf16.msra.mxu0 %v2883
    %4237 = vmatprep.subr.bf16.mxu0 %v2892
    %4238 = vmatpush1.bf16.msra.mxu0 %v2891
    %4239 = vmatprep.subr.bf16.mxu0 %v2900
    %4240 = vmatpush1.bf16.msra.mxu0 %v2899
    %4241 = vmatprep.subr.bf16.mxu0 %v2908
    %4242 = vmatpush1.bf16.msra.mxu0 %v2907
    %4243 = vmatprep.subr.bf16.mxu0 %v2916
    %4244 = vmatpush1.bf16.msra.mxu0 %v2915
    %4245 = vmatprep.subr.bf16.mxu0 %v2924
    %4246 = vmatpush1.bf16.msra.mxu0 %v2923
    %4247 = vmatprep.subr.bf16.mxu0 %v2932
    %4248 = vmatpush1.bf16.msra.mxu0 %v2931
    %4249 = vmatprep.subr.bf16.mxu0 %v2940
    %4250 = vmatpush1.bf16.msra.mxu0 %v2939
    %4251 = vmatprep.subr.bf16.mxu0 %v2948
    %4252 = vmatpush1.bf16.msra.mxu0 %v2947
    %4253 = vmatprep.subr.bf16.mxu0 %v2956
    %4254 = vmatpush1.bf16.msra.mxu0 %v2955
    %4255 = vmatprep.subr.bf16.mxu0 %v2964
    %4256 = vmatpush1.bf16.msra.mxu0 %v2963
    %4257 = vmatprep.subr.bf16.mxu0 %v2972
    %4258 = vmatpush1.bf16.msra.mxu0 %v2971
    %4259 = vmatprep.subr.bf16.mxu0 %v2980
    %4260 = vmatpush1.bf16.msra.mxu0 %v2979
    %4261 = vmatprep.subr.bf16.mxu0 %v2988
    %4262 = vmatpush1.bf16.msra.mxu0 %v2987
    %4263 = vmatprep.mubr.bf16.mxu0 %v807
    %4264 = vmatmul.mubr.bf16.gmra.mrb[0].mxu0 %v806
    %v4265 = vpop.f32.mrb[0].mxu0
    %v4266 = vadd.f32 0.0, %v4265
    %v4267 = vpop.f32.mrb[0].mxu0
    %v4268 = vadd.f32 0.0, %v4267
    %v4269 = vpop.f32.mrb[0].mxu0
    %v4270 = vadd.f32 0.0, %v4269
    %v4271 = vpop.f32.mrb[0].mxu0
    %v4272 = vadd.f32 0.0, %v4271
    %4273 = vdwg.mxu0
    %4274 = vmatprep.subr.bf16.mxu0 %v2996
    %4275 = vmatpush1.bf16.msra.mxu0 %v2995
    %4276 = vmatprep.subr.bf16.mxu0 %v3004
    %4277 = vmatpush1.bf16.msra.mxu0 %v3003
    %4278 = vmatprep.subr.bf16.mxu0 %v3012
    %4279 = vmatpush1.bf16.msra.mxu0 %v3011
    %4280 = vmatprep.subr.bf16.mxu0 %v3020
    %4281 = vmatpush1.bf16.msra.mxu0 %v3019
    %4282 = vmatprep.subr.bf16.mxu0 %v3028
    %4283 = vmatpush1.bf16.msra.mxu0 %v3027
    %4284 = vmatprep.subr.bf16.mxu0 %v3036
    %4285 = vmatpush1.bf16.msra.mxu0 %v3035
    %4286 = vmatprep.subr.bf16.mxu0 %v3044
    %4287 = vmatpush1.bf16.msra.mxu0 %v3043
    %4288 = vmatprep.subr.bf16.mxu0 %v3052
    %4289 = vmatpush1.bf16.msra.mxu0 %v3051
    %4290 = vmatprep.subr.bf16.mxu0 %v3060
    %4291 = vmatpush1.bf16.msra.mxu0 %v3059
    %4292 = vmatprep.subr.bf16.mxu0 %v3068
    %4293 = vmatpush1.bf16.msra.mxu0 %v3067
    %4294 = vmatprep.subr.bf16.mxu0 %v3076
    %4295 = vmatpush1.bf16.msra.mxu0 %v3075
    %4296 = vmatprep.subr.bf16.mxu0 %v3084
    %4297 = vmatpush1.bf16.msra.mxu0 %v3083
    %4298 = vmatprep.subr.bf16.mxu0 %v3092
    %4299 = vmatpush1.bf16.msra.mxu0 %v3091
    %4300 = vmatprep.subr.bf16.mxu0 %v3100
    %4301 = vmatpush1.bf16.msra.mxu0 %v3099
    %4302 = vmatprep.subr.bf16.mxu0 %v3108
    %4303 = vmatpush1.bf16.msra.mxu0 %v3107
    %4304 = vmatprep.subr.bf16.mxu0 %v3116
    %4305 = vmatpush1.bf16.msra.mxu0 %v3115
    %4306 = vmatprep.mubr.bf16.mxu0 %v809
    %4307 = vmatmul.mubr.bf16.gmra.mrb[0].mxu0 %v808
    %v4308 = vpop.f32.mrb[0].mxu0
    %v4309 = vadd.f32 %v4266, %v4308
    %v4310 = vpop.f32.mrb[0].mxu0
    %v4311 = vadd.f32 %v4268, %v4310
    %v4312 = vpop.f32.mrb[0].mxu0
    %v4313 = vadd.f32 %v4270, %v4312
    %v4314 = vpop.f32.mrb[0].mxu0
    %v4315 = vadd.f32 %v4272, %v4314
    %4316 = vdwg.mxu0
    %4317 = vmatprep.subr.bf16.mxu0 %v3124
    %4318 = vmatpush1.bf16.msra.mxu0 %v3123
    %4319 = vmatprep.subr.bf16.mxu0 %v3132
    %4320 = vmatpush1.bf16.msra.mxu0 %v3131
    %4321 = vmatprep.subr.bf16.mxu0 %v3140
    %4322 = vmatpush1.bf16.msra.mxu0 %v3139
    %4323 = vmatprep.subr.bf16.mxu0 %v3148
    %4324 = vmatpush1.bf16.msra.mxu0 %v3147
    %4325 = vmatprep.subr.bf16.mxu0 %v3156
    %4326 = vmatpush1.bf16.msra.mxu0 %v3155
    %4327 = vmatprep.subr.bf16.mxu0 %v3164
    %4328 = vmatpush1.bf16.msra.mxu0 %v3163
    %4329 = vmatprep.subr.bf16.mxu0 %v3172
    %4330 = vmatpush1.bf16.msra.mxu0 %v3171
    %4331 = vmatprep.subr.bf16.mxu0 %v3180
    %4332 = vmatpush1.bf16.msra.mxu0 %v3179
    %4333 = vmatprep.subr.bf16.mxu0 %v3188
    %4334 = vmatpush1.bf16.msra.mxu0 %v3187
    %4335 = vmatprep.subr.bf16.mxu0 %v3196
    %4336 = vmatpush1.bf16.msra.mxu0 %v3195
    %4337 = vmatprep.subr.bf16.mxu0 %v3204
    %4338 = vmatpush1.bf16.msra.mxu0 %v3203
    %4339 = vmatprep.subr.bf16.mxu0 %v3212
    %4340 = vmatpush1.bf16.msra.mxu0 %v3211
    %4341 = vmatprep.subr.bf16.mxu0 %v3220
    %4342 = vmatpush1.bf16.msra.mxu0 %v3219
    %4343 = vmatprep.subr.bf16.mxu0 %v3228
    %4344 = vmatpush1.bf16.msra.mxu0 %v3227
    %4345 = vmatprep.subr.bf16.mxu0 %v3236
    %4346 = vmatpush1.bf16.msra.mxu0 %v3235
    %4347 = vmatprep.subr.bf16.mxu0 %v3244
    %4348 = vmatpush1.bf16.msra.mxu0 %v3243
    %4349 = vmatprep.mubr.bf16.mxu0 %v811
    %4350 = vmatmul.mubr.bf16.gmra.mrb[0].mxu0 %v810
    %v4351 = vpop.f32.mrb[0].mxu0
    %v4352 = vadd.f32 %v4309, %v4351
    %v4353 = vpop.f32.mrb[0].mxu0
    %v4354 = vadd.f32 %v4311, %v4353
    %v4355 = vpop.f32.mrb[0].mxu0
    %v4356 = vadd.f32 %v4313, %v4355
    %v4357 = vpop.f32.mrb[0].mxu0
    %v4358 = vadd.f32 %v4315, %v4357
    %4359 = vdwg.mxu0
    %4360 = vmatprep.subr.bf16.mxu0 %v3252
    %4361 = vmatpush1.bf16.msra.mxu0 %v3251
    %4362 = vmatprep.subr.bf16.mxu0 %v3260
    %4363 = vmatpush1.bf16.msra.mxu0 %v3259
    %4364 = vmatprep.subr.bf16.mxu0 %v3268
    %4365 = vmatpush1.bf16.msra.mxu0 %v3267
    %4366 = vmatprep.subr.bf16.mxu0 %v3276
    %4367 = vmatpush1.bf16.msra.mxu0 %v3275
    %4368 = vmatprep.subr.bf16.mxu0 %v3284
    %4369 = vmatpush1.bf16.msra.mxu0 %v3283
    %4370 = vmatprep.subr.bf16.mxu0 %v3292
    %4371 = vmatpush1.bf16.msra.mxu0 %v3291
    %4372 = vmatprep.subr.bf16.mxu0 %v3300
    %4373 = vmatpush1.bf16.msra.mxu0 %v3299
    %4374 = vmatprep.subr.bf16.mxu0 %v3308
    %4375 = vmatpush1.bf16.msra.mxu0 %v3307
    %4376 = vmatprep.subr.bf16.mxu0 %v3316
    %4377 = vmatpush1.bf16.msra.mxu0 %v3315
    %4378 = vmatprep.subr.bf16.mxu0 %v3324
    %4379 = vmatpush1.bf16.msra.mxu0 %v3323
    %4380 = vmatprep.subr.bf16.mxu0 %v3332
    %4381 = vmatpush1.bf16.msra.mxu0 %v3331
    %4382 = vmatprep.subr.bf16.mxu0 %v3340
    %4383 = vmatpush1.bf16.msra.mxu0 %v3339
    %4384 = vmatprep.subr.bf16.mxu0 %v3348
    %4385 = vmatpush1.bf16.msra.mxu0 %v3347
    %4386 = vmatprep.subr.bf16.mxu0 %v3356
    %4387 = vmatpush1.bf16.msra.mxu0 %v3355
    %4388 = vmatprep.subr.bf16.mxu0 %v3364
    %4389 = vmatpush1.bf16.msra.mxu0 %v3363
    %4390 = vmatprep.subr.bf16.mxu0 %v3372
    %4391 = vmatpush1.bf16.msra.mxu0 %v3371
    %4392 = vmatprep.mubr.bf16.mxu0 %v813
    %4393 = vmatmul.mubr.bf16.gmra.mrb[0].mxu0 %v812
    %v4394 = vpop.f32.mrb[0].mxu0
    %v4395 = vadd.f32 %v4352, %v4394
    %v4396 = vpop.f32.mrb[0].mxu0
    %v4397 = vadd.f32 %v4354, %v4396
    %v4398 = vpop.f32.mrb[0].mxu0
    %v4399 = vadd.f32 %v4356, %v4398
    %v4400 = vpop.f32.mrb[0].mxu0
    %v4401 = vadd.f32 %v4358, %v4400
    %4402 = vdwg.mxu0
    %4403 = vmatprep.subr.bf16.mxu0 %v2870
    %4404 = vmatpush1.bf16.msra.mxu0 %v2869
    %4405 = vmatprep.subr.bf16.mxu0 %v2878
    %4406 = vmatpush1.bf16.msra.mxu0 %v2877
    %4407 = vmatprep.subr.bf16.mxu0 %v2886
    %4408 = vmatpush1.bf16.msra.mxu0 %v2885
    %4409 = vmatprep.subr.bf16.mxu0 %v2894
    %4410 = vmatpush1.bf16.msra.mxu0 %v2893
    %4411 = vmatprep.subr.bf16.mxu0 %v2902
    %4412 = vmatpush1.bf16.msra.mxu0 %v2901
    %4413 = vmatprep.subr.bf16.mxu0 %v2910
    %4414 = vmatpush1.bf16.msra.mxu0 %v2909
    %4415 = vmatprep.subr.bf16.mxu0 %v2918
    %4416 = vmatpush1.bf16.msra.mxu0 %v2917
    %4417 = vmatprep.subr.bf16.mxu0 %v2926
    %4418 = vmatpush1.bf16.msra.mxu0 %v2925
    %4419 = vmatprep.subr.bf16.mxu0 %v2934
    %4420 = vmatpush1.bf16.msra.mxu0 %v2933
    %4421 = vmatprep.subr.bf16.mxu0 %v2942
    %4422 = vmatpush1.bf16.msra.mxu0 %v2941
    %4423 = vmatprep.subr.bf16.mxu0 %v2950
    %4424 = vmatpush1.bf16.msra.mxu0 %v2949
    %4425 = vmatprep.subr.bf16.mxu0 %v2958
    %4426 = vmatpush1.bf16.msra.mxu0 %v2957
    %4427 = vmatprep.subr.bf16.mxu0 %v2966
    %4428 = vmatpush1.bf16.msra.mxu0 %v2965
    %4429 = vmatprep.subr.bf16.mxu0 %v2974
    %4430 = vmatpush1.bf16.msra.mxu0 %v2973
    %4431 = vmatprep.subr.bf16.mxu0 %v2982
    %4432 = vmatpush1.bf16.msra.mxu0 %v2981
    %4433 = vmatprep.subr.bf16.mxu0 %v2990
    %4434 = vmatpush1.bf16.msra.mxu0 %v2989
    %4435 = vmatprep.mubr.bf16.mxu0 %v807
    %4436 = vmatmul.mubr.bf16.gmra.mrb[0].mxu0 %v806
    %v4437 = vpop.f32.mrb[0].mxu0
    %v4438 = vadd.f32 0.0, %v4437
    %v4439 = vpop.f32.mrb[0].mxu0
    %v4440 = vadd.f32 0.0, %v4439
    %v4441 = vpop.f32.mrb[0].mxu0
    %v4442 = vadd.f32 0.0, %v4441
    %v4443 = vpop.f32.mrb[0].mxu0
    %v4444 = vadd.f32 0.0, %v4443
    %4445 = vdwg.mxu0
    %4446 = vmatprep.subr.bf16.mxu0 %v2998
    %4447 = vmatpush1.bf16.msra.mxu0 %v2997
    %4448 = vmatprep.subr.bf16.mxu0 %v3006
    %4449 = vmatpush1.bf16.msra.mxu0 %v3005
    %4450 = vmatprep.subr.bf16.mxu0 %v3014
    %4451 = vmatpush1.bf16.msra.mxu0 %v3013
    %4452 = vmatprep.subr.bf16.mxu0 %v3022
    %4453 = vmatpush1.bf16.msra.mxu0 %v3021
    %4454 = vmatprep.subr.bf16.mxu0 %v3030
    %4455 = vmatpush1.bf16.msra.mxu0 %v3029
    %4456 = vmatprep.subr.bf16.mxu0 %v3038
    %4457 = vmatpush1.bf16.msra.mxu0 %v3037
    %4458 = vmatprep.subr.bf16.mxu0 %v3046
    %4459 = vmatpush1.bf16.msra.mxu0 %v3045
    %4460 = vmatprep.subr.bf16.mxu0 %v3054
    %4461 = vmatpush1.bf16.msra.mxu0 %v3053
    %4462 = vmatprep.subr.bf16.mxu0 %v3062
    %4463 = vmatpush1.bf16.msra.mxu0 %v3061
    %4464 = vmatprep.subr.bf16.mxu0 %v3070
    %4465 = vmatpush1.bf16.msra.mxu0 %v3069
    %4466 = vmatprep.subr.bf16.mxu0 %v3078
    %4467 = vmatpush1.bf16.msra.mxu0 %v3077
    %4468 = vmatprep.subr.bf16.mxu0 %v3086
    %4469 = vmatpush1.bf16.msra.mxu0 %v3085
    %4470 = vmatprep.subr.bf16.mxu0 %v3094
    %4471 = vmatpush1.bf16.msra.mxu0 %v3093
    %4472 = vmatprep.subr.bf16.mxu0 %v3102
    %4473 = vmatpush1.bf16.msra.mxu0 %v3101
    %4474 = vmatprep.subr.bf16.mxu0 %v3110
    %4475 = vmatpush1.bf16.msra.mxu0 %v3109
    %4476 = vmatprep.subr.bf16.mxu0 %v3118
    %4477 = vmatpush1.bf16.msra.mxu0 %v3117
    %4478 = vmatprep.mubr.bf16.mxu0 %v809
    %4479 = vmatmul.mubr.bf16.gmra.mrb[0].mxu0 %v808
    %v4480 = vpop.f32.mrb[0].mxu0
    %v4481 = vadd.f32 %v4438, %v4480
    %v4482 = vpop.f32.mrb[0].mxu0
    %v4483 = vadd.f32 %v4440, %v4482
    %v4484 = vpop.f32.mrb[0].mxu0
    %v4485 = vadd.f32 %v4442, %v4484
    %v4486 = vpop.f32.mrb[0].mxu0
    %v4487 = vadd.f32 %v4444, %v4486
    %4488 = vdwg.mxu0
    %4489 = vmatprep.subr.bf16.mxu0 %v3126
    %4490 = vmatpush1.bf16.msra.mxu0 %v3125
    %4491 = vmatprep.subr.bf16.mxu0 %v3134
    %4492 = vmatpush1.bf16.msra.mxu0 %v3133
    %4493 = vmatprep.subr.bf16.mxu0 %v3142
    %4494 = vmatpush1.bf16.msra.mxu0 %v3141
    %4495 = vmatprep.subr.bf16.mxu0 %v3150
    %4496 = vmatpush1.bf16.msra.mxu0 %v3149
    %4497 = vmatprep.subr.bf16.mxu0 %v3158
    %4498 = vmatpush1.bf16.msra.mxu0 %v3157
    %4499 = vmatprep.subr.bf16.mxu0 %v3166
    %4500 = vmatpush1.bf16.msra.mxu0 %v3165
    %4501 = vmatprep.subr.bf16.mxu0 %v3174
    %4502 = vmatpush1.bf16.msra.mxu0 %v3173
    %4503 = vmatprep.subr.bf16.mxu0 %v3182
    %4504 = vmatpush1.bf16.msra.mxu0 %v3181
    %4505 = vmatprep.subr.bf16.mxu0 %v3190
    %4506 = vmatpush1.bf16.msra.mxu0 %v3189
    %4507 = vmatprep.subr.bf16.mxu0 %v3198
    %4508 = vmatpush1.bf16.msra.mxu0 %v3197
    %4509 = vmatprep.subr.bf16.mxu0 %v3206
    %4510 = vmatpush1.bf16.msra.mxu0 %v3205
    %4511 = vmatprep.subr.bf16.mxu0 %v3214
    %4512 = vmatpush1.bf16.msra.mxu0 %v3213
    %4513 = vmatprep.subr.bf16.mxu0 %v3222
    %4514 = vmatpush1.bf16.msra.mxu0 %v3221
    %4515 = vmatprep.subr.bf16.mxu0 %v3230
    %4516 = vmatpush1.bf16.msra.mxu0 %v3229
    %4517 = vmatprep.subr.bf16.mxu0 %v3238
    %4518 = vmatpush1.bf16.msra.mxu0 %v3237
    %4519 = vmatprep.subr.bf16.mxu0 %v3246
    %4520 = vmatpush1.bf16.msra.mxu0 %v3245
    %4521 = vmatprep.mubr.bf16.mxu0 %v811
    %4522 = vmatmul.mubr.bf16.gmra.mrb[0].mxu0 %v810
    %v4523 = vpop.f32.mrb[0].mxu0
    %v4524 = vadd.f32 %v4481, %v4523
    %v4525 = vpop.f32.mrb[0].mxu0
    %v4526 = vadd.f32 %v4483, %v4525
    %v4527 = vpop.f32.mrb[0].mxu0
    %v4528 = vadd.f32 %v4485, %v4527
    %v4529 = vpop.f32.mrb[0].mxu0
    %v4530 = vadd.f32 %v4487, %v4529
    %4531 = vdwg.mxu0
    %4532 = vmatprep.subr.bf16.mxu0 %v3254
    %4533 = vmatpush1.bf16.msra.mxu0 %v3253
    %4534 = vmatprep.subr.bf16.mxu0 %v3262
    %4535 = vmatpush1.bf16.msra.mxu0 %v3261
    %4536 = vmatprep.subr.bf16.mxu0 %v3270
    %4537 = vmatpush1.bf16.msra.mxu0 %v3269
    %4538 = vmatprep.subr.bf16.mxu0 %v3278
    %4539 = vmatpush1.bf16.msra.mxu0 %v3277
    %4540 = vmatprep.subr.bf16.mxu0 %v3286
    %4541 = vmatpush1.bf16.msra.mxu0 %v3285
    %4542 = vmatprep.subr.bf16.mxu0 %v3294
    %4543 = vmatpush1.bf16.msra.mxu0 %v3293
    %4544 = vmatprep.subr.bf16.mxu0 %v3302
    %4545 = vmatpush1.bf16.msra.mxu0 %v3301
    %4546 = vmatprep.subr.bf16.mxu0 %v3310
    %4547 = vmatpush1.bf16.msra.mxu0 %v3309
    %4548 = vmatprep.subr.bf16.mxu0 %v3318
    %4549 = vmatpush1.bf16.msra.mxu0 %v3317
    %4550 = vmatprep.subr.bf16.mxu0 %v3326
    %4551 = vmatpush1.bf16.msra.mxu0 %v3325
    %4552 = vmatprep.subr.bf16.mxu0 %v3334
    %4553 = vmatpush1.bf16.msra.mxu0 %v3333
    %4554 = vmatprep.subr.bf16.mxu0 %v3342
    %4555 = vmatpush1.bf16.msra.mxu0 %v3341
    %4556 = vmatprep.subr.bf16.mxu0 %v3350
    %4557 = vmatpush1.bf16.msra.mxu0 %v3349
    %4558 = vmatprep.subr.bf16.mxu0 %v3358
    %4559 = vmatpush1.bf16.msra.mxu0 %v3357
    %4560 = vmatprep.subr.bf16.mxu0 %v3366
    %4561 = vmatpush1.bf16.msra.mxu0 %v3365
    %4562 = vmatprep.subr.bf16.mxu0 %v3374
    %4563 = vmatpush1.bf16.msra.mxu0 %v3373
    %4564 = vmatprep.mubr.bf16.mxu0 %v813
    %4565 = vmatmul.mubr.bf16.gmra.mrb[0].mxu0 %v812
    %v4566 = vpop.f32.mrb[0].mxu0
    %v4567 = vadd.f32 %v4524, %v4566
    %v4568 = vpop.f32.mrb[0].mxu0
    %v4569 = vadd.f32 %v4526, %v4568
    %v4570 = vpop.f32.mrb[0].mxu0
    %v4571 = vadd.f32 %v4528, %v4570
    %v4572 = vpop.f32.mrb[0].mxu0
    %v4573 = vadd.f32 %v4530, %v4572
    %4574 = vdwg.mxu0
    %v4575 = vpack.c.bf16 %v4055, %v4051
    %v4576 = vpack.c.bf16 %v4057, %v4053
    %v4577 = vpack.c.bf16 %v4227, %v4223
    %v4578 = vpack.c.bf16 %v4229, %v4225
    %v4579 = vpack.c.bf16 %v4399, %v4395
    %v4580 = vpack.c.bf16 %v4401, %v4397
    %v4581 = vpack.c.bf16 %v4571, %v4567
    %v4582 = vpack.c.bf16 %v4573, %v4569
    %v4584 = vlaneseq
    %v4585 = vshrl.u32 %v4584, 7
    %v4586 = vsub.s32 0, %v4585
    %v4587 = vrot.slane %v1326, %v4586
    %v4588 = vlaneseq
    %v4589 = vshrl.u32 %v4588, 7
    %v4590 = vsub.s32 1, %v4589
    %v4591 = vrot.slane %v1326, %v4590
    %v4592 = vlaneseq
    %v4593 = vshrl.u32 %v4592, 7
    %v4594 = vsub.s32 2, %v4593
    %v4595 = vrot.slane %v1326, %v4594
    %v4596 = vlaneseq
    %v4597 = vshrl.u32 %v4596, 7
    %v4598 = vsub.s32 3, %v4597
    %v4599 = vrot.slane %v1326, %v4598
    %v4600 = vlaneseq
    %v4601 = vshrl.u32 %v4600, 7
    %v4602 = vsub.s32 4, %v4601
    %v4603 = vrot.slane %v1326, %v4602
    %v4604 = vlaneseq
    %v4605 = vshrl.u32 %v4604, 7
    %v4606 = vsub.s32 5, %v4605
    %v4607 = vrot.slane %v1326, %v4606
    %v4608 = vlaneseq
    %v4609 = vshrl.u32 %v4608, 7
    %v4610 = vsub.s32 6, %v4609
    %v4611 = vrot.slane %v1326, %v4610
    %v4612 = vlaneseq
    %v4613 = vshrl.u32 %v4612, 7
    %v4614 = vsub.s32 7, %v4613
    %v4615 = vrot.slane %v1326, %v4614
    %4624 = vmatprep.subr.bf16.mxu0 %v4576
    %4625 = vmatpush1.bf16.msra.mxu0 %v4575
    %4626 = vmatprep.subr.bf16.mxu0 0
    %4627 = vmatpush1.bf16.msra.mxu0 0
    %4628 = vmatprep.subr.bf16.mxu0 0
    %4629 = vmatpush1.bf16.msra.mxu0 0
    %4630 = vmatprep.subr.bf16.mxu0 0
    %4631 = vmatpush1.bf16.msra.mxu0 0
    %4632 = vmatprep.subr.bf16.mxu0 0
    %4633 = vmatpush1.bf16.msra.mxu0 0
    %4634 = vmatprep.subr.bf16.mxu0 0
    %4635 = vmatpush1.bf16.msra.mxu0 0
    %4636 = vmatprep.subr.bf16.mxu0 0
    %4637 = vmatpush1.bf16.msra.mxu0 0
    %4638 = vmatprep.subr.bf16.mxu0 0
    %4639 = vmatpush1.bf16.msra.mxu0 0
    %4640 = vmatprep.subr.bf16.mxu0 0
    %4641 = vmatpush1.bf16.msra.mxu0 0
    %4642 = vmatprep.subr.bf16.mxu0 0
    %4643 = vmatpush1.bf16.msra.mxu0 0
    %4644 = vmatprep.subr.bf16.mxu0 0
    %4645 = vmatpush1.bf16.msra.mxu0 0
    %4646 = vmatprep.subr.bf16.mxu0 0
    %4647 = vmatpush1.bf16.msra.mxu0 0
    %4648 = vmatprep.subr.bf16.mxu0 0
    %4649 = vmatpush1.bf16.msra.mxu0 0
    %4650 = vmatprep.subr.bf16.mxu0 0
    %4651 = vmatpush1.bf16.msra.mxu0 0
    %4652 = vmatprep.subr.bf16.mxu0 0
    %4653 = vmatpush1.bf16.msra.mxu0 0
    %4654 = vmatprep.subr.bf16.mxu0 0
    %4655 = vmatpush1.bf16.msra.mxu0 0
    %4656 = vmatprep.mubr.bf16.mxu0 0
    %4657 = vmatmul.mubr.bf16.gmra.mrb[0].mxu0 %v616
    %v4658 = vpop.f32.mrb[0].mxu0
    %v4659 = vadd.f32 %v4587, %v4658
    %v4660 = vpop.f32.mrb[0].mxu0
    %v4661 = vadd.f32 %v4591, %v4660
    %v4662 = vpop.f32.mrb[0].mxu0
    %v4663 = vadd.f32 %v4587, %v4662
    %v4664 = vpop.f32.mrb[0].mxu0
    %v4665 = vadd.f32 %v4591, %v4664
    %4666 = vdwg.mxu0
    %4667 = vmatprep.subr.bf16.mxu0 %v4578
    %4668 = vmatpush1.bf16.msra.mxu0 %v4577
    %4669 = vmatprep.subr.bf16.mxu0 0
    %4670 = vmatpush1.bf16.msra.mxu0 0
    %4671 = vmatprep.subr.bf16.mxu0 0
    %4672 = vmatpush1.bf16.msra.mxu0 0
    %4673 = vmatprep.subr.bf16.mxu0 0
    %4674 = vmatpush1.bf16.msra.mxu0 0
    %4675 = vmatprep.subr.bf16.mxu0 0
    %4676 = vmatpush1.bf16.msra.mxu0 0
    %4677 = vmatprep.subr.bf16.mxu0 0
    %4678 = vmatpush1.bf16.msra.mxu0 0
    %4679 = vmatprep.subr.bf16.mxu0 0
    %4680 = vmatpush1.bf16.msra.mxu0 0
    %4681 = vmatprep.subr.bf16.mxu0 0
    %4682 = vmatpush1.bf16.msra.mxu0 0
    %4683 = vmatprep.subr.bf16.mxu0 0
    %4684 = vmatpush1.bf16.msra.mxu0 0
    %4685 = vmatprep.subr.bf16.mxu0 0
    %4686 = vmatpush1.bf16.msra.mxu0 0
    %4687 = vmatprep.subr.bf16.mxu0 0
    %4688 = vmatpush1.bf16.msra.mxu0 0
    %4689 = vmatprep.subr.bf16.mxu0 0
    %4690 = vmatpush1.bf16.msra.mxu0 0
    %4691 = vmatprep.subr.bf16.mxu0 0
    %4692 = vmatpush1.bf16.msra.mxu0 0
    %4693 = vmatprep.subr.bf16.mxu0 0
    %4694 = vmatpush1.bf16.msra.mxu0 0
    %4695 = vmatprep.subr.bf16.mxu0 0
    %4696 = vmatpush1.bf16.msra.mxu0 0
    %4697 = vmatprep.subr.bf16.mxu0 0
    %4698 = vmatpush1.bf16.msra.mxu0 0
    %4699 = vmatprep.mubr.bf16.mxu0 0
    %4700 = vmatmul.mubr.bf16.gmra.mrb[0].mxu0 %v616
    %v4701 = vpop.f32.mrb[0].mxu0
    %v4702 = vadd.f32 %v4595, %v4701
    %v4703 = vpop.f32.mrb[0].mxu0
    %v4704 = vadd.f32 %v4599, %v4703
    %v4705 = vpop.f32.mrb[0].mxu0
    %v4706 = vadd.f32 %v4595, %v4705
    %v4707 = vpop.f32.mrb[0].mxu0
    %v4708 = vadd.f32 %v4599, %v4707
    %4709 = vdwg.mxu0
    %4710 = vmatprep.subr.bf16.mxu0 %v4580
    %4711 = vmatpush1.bf16.msra.mxu0 %v4579
    %4712 = vmatprep.subr.bf16.mxu0 0
    %4713 = vmatpush1.bf16.msra.mxu0 0
    %4714 = vmatprep.subr.bf16.mxu0 0
    %4715 = vmatpush1.bf16.msra.mxu0 0
    %4716 = vmatprep.subr.bf16.mxu0 0
    %4717 = vmatpush1.bf16.msra.mxu0 0
    %4718 = vmatprep.subr.bf16.mxu0 0
    %4719 = vmatpush1.bf16.msra.mxu0 0
    %4720 = vmatprep.subr.bf16.mxu0 0
    %4721 = vmatpush1.bf16.msra.mxu0 0
    %4722 = vmatprep.subr.bf16.mxu0 0
    %4723 = vmatpush1.bf16.msra.mxu0 0
    %4724 = vmatprep.subr.bf16.mxu0 0
    %4725 = vmatpush1.bf16.msra.mxu0 0
    %4726 = vmatprep.subr.bf16.mxu0 0
    %4727 = vmatpush1.bf16.msra.mxu0 0
    %4728 = vmatprep.subr.bf16.mxu0 0
    %4729 = vmatpush1.bf16.msra.mxu0 0
    %4730 = vmatprep.subr.bf16.mxu0 0
    %4731 = vmatpush1.bf16.msra.mxu0 0
    %4732 = vmatprep.subr.bf16.mxu0 0
    %4733 = vmatpush1.bf16.msra.mxu0 0
    %4734 = vmatprep.subr.bf16.mxu0 0
    %4735 = vmatpush1.bf16.msra.mxu0 0
    %4736 = vmatprep.subr.bf16.mxu0 0
    %4737 = vmatpush1.bf16.msra.mxu0 0
    %4738 = vmatprep.subr.bf16.mxu0 0
    %4739 = vmatpush1.bf16.msra.mxu0 0
    %4740 = vmatprep.subr.bf16.mxu0 0
    %4741 = vmatpush1.bf16.msra.mxu0 0
    %4742 = vmatprep.mubr.bf16.mxu0 0
    %4743 = vmatmul.mubr.bf16.gmra.mrb[0].mxu0 %v616
    %v4744 = vpop.f32.mrb[0].mxu0
    %v4745 = vadd.f32 %v4603, %v4744
    %v4746 = vpop.f32.mrb[0].mxu0
    %v4747 = vadd.f32 %v4607, %v4746
    %v4748 = vpop.f32.mrb[0].mxu0
    %v4749 = vadd.f32 %v4603, %v4748
    %v4750 = vpop.f32.mrb[0].mxu0
    %v4751 = vadd.f32 %v4607, %v4750
    %4752 = vdwg.mxu0
    %4753 = vmatprep.subr.bf16.mxu0 %v4582
    %4754 = vmatpush1.bf16.msra.mxu0 %v4581
    %4755 = vmatprep.subr.bf16.mxu0 0
    %4756 = vmatpush1.bf16.msra.mxu0 0
    %4757 = vmatprep.subr.bf16.mxu0 0
    %4758 = vmatpush1.bf16.msra.mxu0 0
    %4759 = vmatprep.subr.bf16.mxu0 0
    %4760 = vmatpush1.bf16.msra.mxu0 0
    %4761 = vmatprep.subr.bf16.mxu0 0
    %4762 = vmatpush1.bf16.msra.mxu0 0
    %4763 = vmatprep.subr.bf16.mxu0 0
    %4764 = vmatpush1.bf16.msra.mxu0 0
    %4765 = vmatprep.subr.bf16.mxu0 0
    %4766 = vmatpush1.bf16.msra.mxu0 0
    %4767 = vmatprep.subr.bf16.mxu0 0
    %4768 = vmatpush1.bf16.msra.mxu0 0
    %4769 = vmatprep.subr.bf16.mxu0 0
    %4770 = vmatpush1.bf16.msra.mxu0 0
    %4771 = vmatprep.subr.bf16.mxu0 0
    %4772 = vmatpush1.bf16.msra.mxu0 0
    %4773 = vmatprep.subr.bf16.mxu0 0
    %4774 = vmatpush1.bf16.msra.mxu0 0
    %4775 = vmatprep.subr.bf16.mxu0 0
    %4776 = vmatpush1.bf16.msra.mxu0 0
    %4777 = vmatprep.subr.bf16.mxu0 0
    %4778 = vmatpush1.bf16.msra.mxu0 0
    %4779 = vmatprep.subr.bf16.mxu0 0
    %4780 = vmatpush1.bf16.msra.mxu0 0
    %4781 = vmatprep.subr.bf16.mxu0 0
    %4782 = vmatpush1.bf16.msra.mxu0 0
    %4783 = vmatprep.subr.bf16.mxu0 0
    %4784 = vmatpush1.bf16.msra.mxu0 0
    %4785 = vmatprep.mubr.bf16.mxu0 0
    %4786 = vmatmul.mubr.bf16.gmra.mrb[0].mxu0 %v616
    %v4787 = vpop.f32.mrb[0].mxu0
    %v4788 = vadd.f32 %v4611, %v4787
    %v4789 = vpop.f32.mrb[0].mxu0
    %v4790 = vadd.f32 %v4615, %v4789
    %v4791 = vpop.f32.mrb[0].mxu0
    %v4792 = vadd.f32 %v4611, %v4791
    %v4793 = vpop.f32.mrb[0].mxu0
    %v4794 = vadd.f32 %v4615, %v4793
    %4795 = vdwg.mxu0
    %v4796 = vmax.f32 %v4659, 0.0
    %v4797 = vmax.f32 %v4661, 0.0
    %v4798 = vmax.f32 %v4702, 0.0
    %v4799 = vmax.f32 %v4704, 0.0
    %v4800 = vmax.f32 %v4745, 0.0
    %v4801 = vmax.f32 %v4747, 0.0
    %v4802 = vmax.f32 %v4788, 0.0
    %v4803 = vmax.f32 %v4790, 0.0
    %v4804 = vmax.f32 %v4663, 0.0
    %v4805 = vmax.f32 %v4665, 0.0
    %v4806 = vmax.f32 %v4706, 0.0
    %v4807 = vmax.f32 %v4708, 0.0
    %v4808 = vmax.f32 %v4749, 0.0
    %v4809 = vmax.f32 %v4751, 0.0
    %v4810 = vmax.f32 %v4792, 0.0
    %v4811 = vmax.f32 %v4794, 0.0
    %v4812 = vpack.c.bf16 %v4804, %v4796
    %v4813 = vpack.c.bf16 %v4805, %v4797
    %v4814 = vpack.c.bf16 %v4806, %v4798
    %v4815 = vpack.c.bf16 %v4807, %v4799
    %v4816 = vpack.c.bf16 %v4808, %v4800
    %v4817 = vpack.c.bf16 %v4809, %v4801
    %v4818 = vpack.c.bf16 %v4810, %v4802
    %v4819 = vpack.c.bf16 %v4811, %v4803
    %v4820 = vld [vmem:[#allocation9] sm:$0xff]
    %v4821 = vld [vmem:[#allocation9 + $0x8] sm:$0xff]
    %v4822 = vld [vmem:[#allocation9 + $0x10] sm:$0xff]
    %v4823 = vld [vmem:[#allocation9 + $0x18] sm:$0xff]
    %v4824 = vld [vmem:[#allocation9 + $0x20] sm:$0xff]
    %v4825 = vld [vmem:[#allocation9 + $0x28] sm:$0xff]
    %v4826 = vld [vmem:[#allocation9 + $0x30] sm:$0xff]
    %v4827 = vld [vmem:[#allocation9 + $0x38] sm:$0xff]
    %v4828 = vld [vmem:[#allocation9 + $0x40] sm:$0xff]
    %v4829 = vld [vmem:[#allocation9 + $0x48] sm:$0xff]
    %v4830 = vld [vmem:[#allocation9 + $0x50] sm:$0xff]
    %v4831 = vld [vmem:[#allocation9 + $0x58] sm:$0xff]
    %v4832 = vld [vmem:[#allocation9 + $0x60] sm:$0xff]
    %v4833 = vld [vmem:[#allocation9 + $0x68] sm:$0xff]
    %v4834 = vld [vmem:[#allocation9 + $0x70] sm:$0xff]
    %v4835 = vld [vmem:[#allocation9 + $0x78] sm:$0xff]
    %v4836 = vld [vmem:[#allocation9 + $0x80] sm:$0xff]
    %v4837 = vld [vmem:[#allocation9 + $0x88] sm:$0xff]
    %v4838 = vld [vmem:[#allocation9 + $0x90] sm:$0xff]
    %v4839 = vld [vmem:[#allocation9 + $0x98] sm:$0xff]
    %v4840 = vld [vmem:[#allocation9 + $0xa0] sm:$0xff]
    %v4841 = vld [vmem:[#allocation9 + $0xa8] sm:$0xff]
    %v4842 = vld [vmem:[#allocation9 + $0xb0] sm:$0xff]
    %v4843 = vld [vmem:[#allocation9 + $0xb8] sm:$0xff]
    %v4844 = vld [vmem:[#allocation9 + $0xc0] sm:$0xff]
    %v4845 = vld [vmem:[#allocation9 + $0xc8] sm:$0xff]
    %v4846 = vld [vmem:[#allocation9 + $0xd0] sm:$0xff]
    %v4847 = vld [vmem:[#allocation9 + $0xd8] sm:$0xff]
    %v4848 = vld [vmem:[#allocation9 + $0xe0] sm:$0xff]
    %v4849 = vld [vmem:[#allocation9 + $0xe8] sm:$0xff]
    %v4850 = vld [vmem:[#allocation9 + $0xf0] sm:$0xff]
    %v4851 = vld [vmem:[#allocation9 + $0xf8] sm:$0xff]
    %v4852 = vld [vmem:[#allocation9 + $0x100] sm:$0xff]
    %v4853 = vld [vmem:[#allocation9 + $0x108] sm:$0xff]
    %v4854 = vld [vmem:[#allocation9 + $0x110] sm:$0xff]
    %v4855 = vld [vmem:[#allocation9 + $0x118] sm:$0xff]
    %v4856 = vld [vmem:[#allocation9 + $0x120] sm:$0xff]
    %v4857 = vld [vmem:[#allocation9 + $0x128] sm:$0xff]
    %v4858 = vld [vmem:[#allocation9 + $0x130] sm:$0xff]
    %v4859 = vld [vmem:[#allocation9 + $0x138] sm:$0xff]
    %v4860 = vld [vmem:[#allocation9 + $0x140] sm:$0xff]
    %v4861 = vld [vmem:[#allocation9 + $0x148] sm:$0xff]
    %v4862 = vld [vmem:[#allocation9 + $0x150] sm:$0xff]
    %v4863 = vld [vmem:[#allocation9 + $0x158] sm:$0xff]
    %v4864 = vld [vmem:[#allocation9 + $0x160] sm:$0xff]
    %v4865 = vld [vmem:[#allocation9 + $0x168] sm:$0xff]
    %v4866 = vld [vmem:[#allocation9 + $0x170] sm:$0xff]
    %v4867 = vld [vmem:[#allocation9 + $0x178] sm:$0xff]
    %v4868 = vld [vmem:[#allocation9 + $0x180] sm:$0xff]
    %v4869 = vld [vmem:[#allocation9 + $0x188] sm:$0xff]
    %v4870 = vld [vmem:[#allocation9 + $0x190] sm:$0xff]
    %v4871 = vld [vmem:[#allocation9 + $0x198] sm:$0xff]
    %v4872 = vld [vmem:[#allocation9 + $0x1a0] sm:$0xff]
    %v4873 = vld [vmem:[#allocation9 + $0x1a8] sm:$0xff]
    %v4874 = vld [vmem:[#allocation9 + $0x1b0] sm:$0xff]
    %v4875 = vld [vmem:[#allocation9 + $0x1b8] sm:$0xff]
    %v4876 = vld [vmem:[#allocation9 + $0x1c0] sm:$0xff]
    %v4877 = vld [vmem:[#allocation9 + $0x1c8] sm:$0xff]
    %v4878 = vld [vmem:[#allocation9 + $0x1d0] sm:$0xff]
    %v4879 = vld [vmem:[#allocation9 + $0x1d8] sm:$0xff]
    %v4880 = vld [vmem:[#allocation9 + $0x1e0] sm:$0xff]
    %v4881 = vld [vmem:[#allocation9 + $0x1e8] sm:$0xff]
    %v4882 = vld [vmem:[#allocation9 + $0x1f0] sm:$0xff]
    %v4883 = vld [vmem:[#allocation9 + $0x1f8] sm:$0xff]
    %v4884 = vld [vmem:[#allocation9 + $0x200] sm:$0xff]
    %v4885 = vld [vmem:[#allocation9 + $0x208] sm:$0xff]
    %v4886 = vld [vmem:[#allocation9 + $0x210] sm:$0xff]
    %v4887 = vld [vmem:[#allocation9 + $0x218] sm:$0xff]
    %v4888 = vld [vmem:[#allocation9 + $0x220] sm:$0xff]
    %v4889 = vld [vmem:[#allocation9 + $0x228] sm:$0xff]
    %v4890 = vld [vmem:[#allocation9 + $0x230] sm:$0xff]
    %v4891 = vld [vmem:[#allocation9 + $0x238] sm:$0xff]
    %v4892 = vld [vmem:[#allocation9 + $0x240] sm:$0xff]
    %v4893 = vld [vmem:[#allocation9 + $0x248] sm:$0xff]
    %v4894 = vld [vmem:[#allocation9 + $0x250] sm:$0xff]
    %v4895 = vld [vmem:[#allocation9 + $0x258] sm:$0xff]
    %v4896 = vld [vmem:[#allocation9 + $0x260] sm:$0xff]
    %v4897 = vld [vmem:[#allocation9 + $0x268] sm:$0xff]
    %v4898 = vld [vmem:[#allocation9 + $0x270] sm:$0xff]
    %v4899 = vld [vmem:[#allocation9 + $0x278] sm:$0xff]
    %v4900 = vld [vmem:[#allocation9 + $0x280] sm:$0xff]
    %v4901 = vld [vmem:[#allocation9 + $0x288] sm:$0xff]
    %v4902 = vld [vmem:[#allocation9 + $0x290] sm:$0xff]
    %v4903 = vld [vmem:[#allocation9 + $0x298] sm:$0xff]
    %v4904 = vld [vmem:[#allocation9 + $0x2a0] sm:$0xff]
    %v4905 = vld [vmem:[#allocation9 + $0x2a8] sm:$0xff]
    %v4906 = vld [vmem:[#allocation9 + $0x2b0] sm:$0xff]
    %v4907 = vld [vmem:[#allocation9 + $0x2b8] sm:$0xff]
    %v4908 = vld [vmem:[#allocation9 + $0x2c0] sm:$0xff]
    %v4909 = vld [vmem:[#allocation9 + $0x2c8] sm:$0xff]
    %v4910 = vld [vmem:[#allocation9 + $0x2d0] sm:$0xff]
    %v4911 = vld [vmem:[#allocation9 + $0x2d8] sm:$0xff]
    %v4912 = vld [vmem:[#allocation9 + $0x2e0] sm:$0xff]
    %v4913 = vld [vmem:[#allocation9 + $0x2e8] sm:$0xff]
    %v4914 = vld [vmem:[#allocation9 + $0x2f0] sm:$0xff]
    %v4915 = vld [vmem:[#allocation9 + $0x2f8] sm:$0xff]
    %v4916 = vld [vmem:[#allocation9 + $0x300] sm:$0xff]
    %v4917 = vld [vmem:[#allocation9 + $0x308] sm:$0xff]
    %v4918 = vld [vmem:[#allocation9 + $0x310] sm:$0xff]
    %v4919 = vld [vmem:[#allocation9 + $0x318] sm:$0xff]
    %v4920 = vld [vmem:[#allocation9 + $0x320] sm:$0xff]
    %v4921 = vld [vmem:[#allocation9 + $0x328] sm:$0xff]
    %v4922 = vld [vmem:[#allocation9 + $0x330] sm:$0xff]
    %v4923 = vld [vmem:[#allocation9 + $0x338] sm:$0xff]
    %v4924 = vld [vmem:[#allocation9 + $0x340] sm:$0xff]
    %v4925 = vld [vmem:[#allocation9 + $0x348] sm:$0xff]
    %v4926 = vld [vmem:[#allocation9 + $0x350] sm:$0xff]
    %v4927 = vld [vmem:[#allocation9 + $0x358] sm:$0xff]
    %v4928 = vld [vmem:[#allocation9 + $0x360] sm:$0xff]
    %v4929 = vld [vmem:[#allocation9 + $0x368] sm:$0xff]
    %v4930 = vld [vmem:[#allocation9 + $0x370] sm:$0xff]
    %v4931 = vld [vmem:[#allocation9 + $0x378] sm:$0xff]
    %v4932 = vld [vmem:[#allocation9 + $0x380] sm:$0xff]
    %v4933 = vld [vmem:[#allocation9 + $0x388] sm:$0xff]
    %v4934 = vld [vmem:[#allocation9 + $0x390] sm:$0xff]
    %v4935 = vld [vmem:[#allocation9 + $0x398] sm:$0xff]
    %v4936 = vld [vmem:[#allocation9 + $0x3a0] sm:$0xff]
    %v4937 = vld [vmem:[#allocation9 + $0x3a8] sm:$0xff]
    %v4938 = vld [vmem:[#allocation9 + $0x3b0] sm:$0xff]
    %v4939 = vld [vmem:[#allocation9 + $0x3b8] sm:$0xff]
    %v4940 = vld [vmem:[#allocation9 + $0x3c0] sm:$0xff]
    %v4941 = vld [vmem:[#allocation9 + $0x3c8] sm:$0xff]
    %v4942 = vld [vmem:[#allocation9 + $0x3d0] sm:$0xff]
    %v4943 = vld [vmem:[#allocation9 + $0x3d8] sm:$0xff]
    %v4944 = vld [vmem:[#allocation9 + $0x3e0] sm:$0xff]
    %v4945 = vld [vmem:[#allocation9 + $0x3e8] sm:$0xff]
    %v4946 = vld [vmem:[#allocation9 + $0x3f0] sm:$0xff]
    %v4947 = vld [vmem:[#allocation9 + $0x3f8] sm:$0xff]
    %v4948 = vld [vmem:[#allocation9 + $0x400] sm:$0xff]
    %v4949 = vld [vmem:[#allocation9 + $0x408] sm:$0xff]
    %v4950 = vld [vmem:[#allocation9 + $0x410] sm:$0xff]
    %v4951 = vld [vmem:[#allocation9 + $0x418] sm:$0xff]
    %v4952 = vld [vmem:[#allocation9 + $0x420] sm:$0xff]
    %v4953 = vld [vmem:[#allocation9 + $0x428] sm:$0xff]
    %v4954 = vld [vmem:[#allocation9 + $0x430] sm:$0xff]
    %v4955 = vld [vmem:[#allocation9 + $0x438] sm:$0xff]
    %v4956 = vld [vmem:[#allocation9 + $0x440] sm:$0xff]
    %v4957 = vld [vmem:[#allocation9 + $0x448] sm:$0xff]
    %v4958 = vld [vmem:[#allocation9 + $0x450] sm:$0xff]
    %v4959 = vld [vmem:[#allocation9 + $0x458] sm:$0xff]
    %v4960 = vld [vmem:[#allocation9 + $0x460] sm:$0xff]
    %v4961 = vld [vmem:[#allocation9 + $0x468] sm:$0xff]
    %v4962 = vld [vmem:[#allocation9 + $0x470] sm:$0xff]
    %v4963 = vld [vmem:[#allocation9 + $0x478] sm:$0xff]
    %v4964 = vld [vmem:[#allocation9 + $0x480] sm:$0xff]
    %v4965 = vld [vmem:[#allocation9 + $0x488] sm:$0xff]
    %v4966 = vld [vmem:[#allocation9 + $0x490] sm:$0xff]
    %v4967 = vld [vmem:[#allocation9 + $0x498] sm:$0xff]
    %v4968 = vld [vmem:[#allocation9 + $0x4a0] sm:$0xff]
    %v4969 = vld [vmem:[#allocation9 + $0x4a8] sm:$0xff]
    %v4970 = vld [vmem:[#allocation9 + $0x4b0] sm:$0xff]
    %v4971 = vld [vmem:[#allocation9 + $0x4b8] sm:$0xff]
    %v4972 = vld [vmem:[#allocation9 + $0x4c0] sm:$0xff]
    %v4973 = vld [vmem:[#allocation9 + $0x4c8] sm:$0xff]
    %v4974 = vld [vmem:[#allocation9 + $0x4d0] sm:$0xff]
    %v4975 = vld [vmem:[#allocation9 + $0x4d8] sm:$0xff]
    %v4976 = vld [vmem:[#allocation9 + $0x4e0] sm:$0xff]
    %v4977 = vld [vmem:[#allocation9 + $0x4e8] sm:$0xff]
    %v4978 = vld [vmem:[#allocation9 + $0x4f0] sm:$0xff]
    %v4979 = vld [vmem:[#allocation9 + $0x4f8] sm:$0xff]
    %v4980 = vld [vmem:[#allocation9 + $0x500] sm:$0xff]
    %v4981 = vld [vmem:[#allocation9 + $0x508] sm:$0xff]
    %v4982 = vld [vmem:[#allocation9 + $0x510] sm:$0xff]
    %v4983 = vld [vmem:[#allocation9 + $0x518] sm:$0xff]
    %v4984 = vld [vmem:[#allocation9 + $0x520] sm:$0xff]
    %v4985 = vld [vmem:[#allocation9 + $0x528] sm:$0xff]
    %v4986 = vld [vmem:[#allocation9 + $0x530] sm:$0xff]
    %v4987 = vld [vmem:[#allocation9 + $0x538] sm:$0xff]
    %v4988 = vld [vmem:[#allocation9 + $0x540] sm:$0xff]
    %v4989 = vld [vmem:[#allocation9 + $0x548] sm:$0xff]
    %v4990 = vld [vmem:[#allocation9 + $0x550] sm:$0xff]
    %v4991 = vld [vmem:[#allocation9 + $0x558] sm:$0xff]
    %v4992 = vld [vmem:[#allocation9 + $0x560] sm:$0xff]
    %v4993 = vld [vmem:[#allocation9 + $0x568] sm:$0xff]
    %v4994 = vld [vmem:[#allocation9 + $0x570] sm:$0xff]
    %v4995 = vld [vmem:[#allocation9 + $0x578] sm:$0xff]
    %v4996 = vld [vmem:[#allocation9 + $0x580] sm:$0xff]
    %v4997 = vld [vmem:[#allocation9 + $0x588] sm:$0xff]
    %v4998 = vld [vmem:[#allocation9 + $0x590] sm:$0xff]
    %v4999 = vld [vmem:[#allocation9 + $0x598] sm:$0xff]
    %v5000 = vld [vmem:[#allocation9 + $0x5a0] sm:$0xff]
    %v5001 = vld [vmem:[#allocation9 + $0x5a8] sm:$0xff]
    %v5002 = vld [vmem:[#allocation9 + $0x5b0] sm:$0xff]
    %v5003 = vld [vmem:[#allocation9 + $0x5b8] sm:$0xff]
    %v5004 = vld [vmem:[#allocation9 + $0x5c0] sm:$0xff]
    %v5005 = vld [vmem:[#allocation9 + $0x5c8] sm:$0xff]
    %v5006 = vld [vmem:[#allocation9 + $0x5d0] sm:$0xff]
    %v5007 = vld [vmem:[#allocation9 + $0x5d8] sm:$0xff]
    %v5008 = vld [vmem:[#allocation9 + $0x5e0] sm:$0xff]
    %v5009 = vld [vmem:[#allocation9 + $0x5e8] sm:$0xff]
    %v5010 = vld [vmem:[#allocation9 + $0x5f0] sm:$0xff]
    %v5011 = vld [vmem:[#allocation9 + $0x5f8] sm:$0xff]
    %v5012 = vld [vmem:[#allocation9 + $0x600] sm:$0xff]
    %v5013 = vld [vmem:[#allocation9 + $0x608] sm:$0xff]
    %v5014 = vld [vmem:[#allocation9 + $0x610] sm:$0xff]
    %v5015 = vld [vmem:[#allocation9 + $0x618] sm:$0xff]
    %v5016 = vld [vmem:[#allocation9 + $0x620] sm:$0xff]
    %v5017 = vld [vmem:[#allocation9 + $0x628] sm:$0xff]
    %v5018 = vld [vmem:[#allocation9 + $0x630] sm:$0xff]
    %v5019 = vld [vmem:[#allocation9 + $0x638] sm:$0xff]
    %v5020 = vld [vmem:[#allocation9 + $0x640] sm:$0xff]
    %v5021 = vld [vmem:[#allocation9 + $0x648] sm:$0xff]
    %v5022 = vld [vmem:[#allocation9 + $0x650] sm:$0xff]
    %v5023 = vld [vmem:[#allocation9 + $0x658] sm:$0xff]
    %v5024 = vld [vmem:[#allocation9 + $0x660] sm:$0xff]
    %v5025 = vld [vmem:[#allocation9 + $0x668] sm:$0xff]
    %v5026 = vld [vmem:[#allocation9 + $0x670] sm:$0xff]
    %v5027 = vld [vmem:[#allocation9 + $0x678] sm:$0xff]
    %v5028 = vld [vmem:[#allocation9 + $0x680] sm:$0xff]
    %v5029 = vld [vmem:[#allocation9 + $0x688] sm:$0xff]
    %v5030 = vld [vmem:[#allocation9 + $0x690] sm:$0xff]
    %v5031 = vld [vmem:[#allocation9 + $0x698] sm:$0xff]
    %v5032 = vld [vmem:[#allocation9 + $0x6a0] sm:$0xff]
    %v5033 = vld [vmem:[#allocation9 + $0x6a8] sm:$0xff]
    %v5034 = vld [vmem:[#allocation9 + $0x6b0] sm:$0xff]
    %v5035 = vld [vmem:[#allocation9 + $0x6b8] sm:$0xff]
    %v5036 = vld [vmem:[#allocation9 + $0x6c0] sm:$0xff]
    %v5037 = vld [vmem:[#allocation9 + $0x6c8] sm:$0xff]
    %v5038 = vld [vmem:[#allocation9 + $0x6d0] sm:$0xff]
    %v5039 = vld [vmem:[#allocation9 + $0x6d8] sm:$0xff]
    %v5040 = vld [vmem:[#allocation9 + $0x6e0] sm:$0xff]
    %v5041 = vld [vmem:[#allocation9 + $0x6e8] sm:$0xff]
    %v5042 = vld [vmem:[#allocation9 + $0x6f0] sm:$0xff]
    %v5043 = vld [vmem:[#allocation9 + $0x6f8] sm:$0xff]
    %v5044 = vld [vmem:[#allocation9 + $0x700] sm:$0xff]
    %v5045 = vld [vmem:[#allocation9 + $0x708] sm:$0xff]
    %v5046 = vld [vmem:[#allocation9 + $0x710] sm:$0xff]
    %v5047 = vld [vmem:[#allocation9 + $0x718] sm:$0xff]
    %v5048 = vld [vmem:[#allocation9 + $0x720] sm:$0xff]
    %v5049 = vld [vmem:[#allocation9 + $0x728] sm:$0xff]
    %v5050 = vld [vmem:[#allocation9 + $0x730] sm:$0xff]
    %v5051 = vld [vmem:[#allocation9 + $0x738] sm:$0xff]
    %v5052 = vld [vmem:[#allocation9 + $0x740] sm:$0xff]
    %v5053 = vld [vmem:[#allocation9 + $0x748] sm:$0xff]
    %v5054 = vld [vmem:[#allocation9 + $0x750] sm:$0xff]
    %v5055 = vld [vmem:[#allocation9 + $0x758] sm:$0xff]
    %v5056 = vld [vmem:[#allocation9 + $0x760] sm:$0xff]
    %v5057 = vld [vmem:[#allocation9 + $0x768] sm:$0xff]
    %v5058 = vld [vmem:[#allocation9 + $0x770] sm:$0xff]
    %v5059 = vld [vmem:[#allocation9 + $0x778] sm:$0xff]
    %v5060 = vld [vmem:[#allocation9 + $0x780] sm:$0xff]
    %v5061 = vld [vmem:[#allocation9 + $0x788] sm:$0xff]
    %v5062 = vld [vmem:[#allocation9 + $0x790] sm:$0xff]
    %v5063 = vld [vmem:[#allocation9 + $0x798] sm:$0xff]
    %v5064 = vld [vmem:[#allocation9 + $0x7a0] sm:$0xff]
    %v5065 = vld [vmem:[#allocation9 + $0x7a8] sm:$0xff]
    %v5066 = vld [vmem:[#allocation9 + $0x7b0] sm:$0xff]
    %v5067 = vld [vmem:[#allocation9 + $0x7b8] sm:$0xff]
    %v5068 = vld [vmem:[#allocation9 + $0x7c0] sm:$0xff]
    %v5069 = vld [vmem:[#allocation9 + $0x7c8] sm:$0xff]
    %v5070 = vld [vmem:[#allocation9 + $0x7d0] sm:$0xff]
    %v5071 = vld [vmem:[#allocation9 + $0x7d8] sm:$0xff]
    %v5072 = vld [vmem:[#allocation9 + $0x7e0] sm:$0xff]
    %v5073 = vld [vmem:[#allocation9 + $0x7e8] sm:$0xff]
    %v5074 = vld [vmem:[#allocation9 + $0x7f0] sm:$0xff]
    %v5075 = vld [vmem:[#allocation9 + $0x7f8] sm:$0xff]
    %v5076 = vld [vmem:[#allocation9 + $0x800] sm:$0xff]
    %v5077 = vld [vmem:[#allocation9 + $0x808] sm:$0xff]
    %v5078 = vld [vmem:[#allocation9 + $0x810] sm:$0xff]
    %v5079 = vld [vmem:[#allocation9 + $0x818] sm:$0xff]
    %v5080 = vld [vmem:[#allocation9 + $0x820] sm:$0xff]
    %v5081 = vld [vmem:[#allocation9 + $0x828] sm:$0xff]
    %v5082 = vld [vmem:[#allocation9 + $0x830] sm:$0xff]
    %v5083 = vld [vmem:[#allocation9 + $0x838] sm:$0xff]
    %v5084 = vld [vmem:[#allocation9 + $0x840] sm:$0xff]
    %v5085 = vld [vmem:[#allocation9 + $0x848] sm:$0xff]
    %v5086 = vld [vmem:[#allocation9 + $0x850] sm:$0xff]
    %v5087 = vld [vmem:[#allocation9 + $0x858] sm:$0xff]
    %v5088 = vld [vmem:[#allocation9 + $0x860] sm:$0xff]
    %v5089 = vld [vmem:[#allocation9 + $0x868] sm:$0xff]
    %v5090 = vld [vmem:[#allocation9 + $0x870] sm:$0xff]
    %v5091 = vld [vmem:[#allocation9 + $0x878] sm:$0xff]
    %v5092 = vld [vmem:[#allocation9 + $0x880] sm:$0xff]
    %v5093 = vld [vmem:[#allocation9 + $0x888] sm:$0xff]
    %v5094 = vld [vmem:[#allocation9 + $0x890] sm:$0xff]
    %v5095 = vld [vmem:[#allocation9 + $0x898] sm:$0xff]
    %v5096 = vld [vmem:[#allocation9 + $0x8a0] sm:$0xff]
    %v5097 = vld [vmem:[#allocation9 + $0x8a8] sm:$0xff]
    %v5098 = vld [vmem:[#allocation9 + $0x8b0] sm:$0xff]
    %v5099 = vld [vmem:[#allocation9 + $0x8b8] sm:$0xff]
    %v5100 = vld [vmem:[#allocation9 + $0x8c0] sm:$0xff]
    %v5101 = vld [vmem:[#allocation9 + $0x8c8] sm:$0xff]
    %v5102 = vld [vmem:[#allocation9 + $0x8d0] sm:$0xff]
    %v5103 = vld [vmem:[#allocation9 + $0x8d8] sm:$0xff]
    %v5104 = vld [vmem:[#allocation9 + $0x8e0] sm:$0xff]
    %v5105 = vld [vmem:[#allocation9 + $0x8e8] sm:$0xff]
    %v5106 = vld [vmem:[#allocation9 + $0x8f0] sm:$0xff]
    %v5107 = vld [vmem:[#allocation9 + $0x8f8] sm:$0xff]
    %v5108 = vld [vmem:[#allocation9 + $0x900] sm:$0xff]
    %v5109 = vld [vmem:[#allocation9 + $0x908] sm:$0xff]
    %v5110 = vld [vmem:[#allocation9 + $0x910] sm:$0xff]
    %v5111 = vld [vmem:[#allocation9 + $0x918] sm:$0xff]
    %v5112 = vld [vmem:[#allocation9 + $0x920] sm:$0xff]
    %v5113 = vld [vmem:[#allocation9 + $0x928] sm:$0xff]
    %v5114 = vld [vmem:[#allocation9 + $0x930] sm:$0xff]
    %v5115 = vld [vmem:[#allocation9 + $0x938] sm:$0xff]
    %v5116 = vld [vmem:[#allocation9 + $0x940] sm:$0xff]
    %v5117 = vld [vmem:[#allocation9 + $0x948] sm:$0xff]
    %v5118 = vld [vmem:[#allocation9 + $0x950] sm:$0xff]
    %v5119 = vld [vmem:[#allocation9 + $0x958] sm:$0xff]
    %v5120 = vld [vmem:[#allocation9 + $0x960] sm:$0xff]
    %v5121 = vld [vmem:[#allocation9 + $0x968] sm:$0xff]
    %v5122 = vld [vmem:[#allocation9 + $0x970] sm:$0xff]
    %v5123 = vld [vmem:[#allocation9 + $0x978] sm:$0xff]
    %v5124 = vld [vmem:[#allocation9 + $0x980] sm:$0xff]
    %v5125 = vld [vmem:[#allocation9 + $0x988] sm:$0xff]
    %v5126 = vld [vmem:[#allocation9 + $0x990] sm:$0xff]
    %v5127 = vld [vmem:[#allocation9 + $0x998] sm:$0xff]
    %v5128 = vld [vmem:[#allocation9 + $0x9a0] sm:$0xff]
    %v5129 = vld [vmem:[#allocation9 + $0x9a8] sm:$0xff]
    %v5130 = vld [vmem:[#allocation9 + $0x9b0] sm:$0xff]
    %v5131 = vld [vmem:[#allocation9 + $0x9b8] sm:$0xff]
    %v5132 = vld [vmem:[#allocation9 + $0x9c0] sm:$0xff]
    %v5133 = vld [vmem:[#allocation9 + $0x9c8] sm:$0xff]
    %v5134 = vld [vmem:[#allocation9 + $0x9d0] sm:$0xff]
    %v5135 = vld [vmem:[#allocation9 + $0x9d8] sm:$0xff]
    %v5136 = vld [vmem:[#allocation9 + $0x9e0] sm:$0xff]
    %v5137 = vld [vmem:[#allocation9 + $0x9e8] sm:$0xff]
    %v5138 = vld [vmem:[#allocation9 + $0x9f0] sm:$0xff]
    %v5139 = vld [vmem:[#allocation9 + $0x9f8] sm:$0xff]
    %v5140 = vld [vmem:[#allocation9 + $0xa00] sm:$0xff]
    %v5141 = vld [vmem:[#allocation9 + $0xa08] sm:$0xff]
    %v5142 = vld [vmem:[#allocation9 + $0xa10] sm:$0xff]
    %v5143 = vld [vmem:[#allocation9 + $0xa18] sm:$0xff]
    %v5144 = vld [vmem:[#allocation9 + $0xa20] sm:$0xff]
    %v5145 = vld [vmem:[#allocation9 + $0xa28] sm:$0xff]
    %v5146 = vld [vmem:[#allocation9 + $0xa30] sm:$0xff]
    %v5147 = vld [vmem:[#allocation9 + $0xa38] sm:$0xff]
    %v5148 = vld [vmem:[#allocation9 + $0xa40] sm:$0xff]
    %v5149 = vld [vmem:[#allocation9 + $0xa48] sm:$0xff]
    %v5150 = vld [vmem:[#allocation9 + $0xa50] sm:$0xff]
    %v5151 = vld [vmem:[#allocation9 + $0xa58] sm:$0xff]
    %v5152 = vld [vmem:[#allocation9 + $0xa60] sm:$0xff]
    %v5153 = vld [vmem:[#allocation9 + $0xa68] sm:$0xff]
    %v5154 = vld [vmem:[#allocation9 + $0xa70] sm:$0xff]
    %v5155 = vld [vmem:[#allocation9 + $0xa78] sm:$0xff]
    %v5156 = vld [vmem:[#allocation9 + $0xa80] sm:$0xff]
    %v5157 = vld [vmem:[#allocation9 + $0xa88] sm:$0xff]
    %v5158 = vld [vmem:[#allocation9 + $0xa90] sm:$0xff]
    %v5159 = vld [vmem:[#allocation9 + $0xa98] sm:$0xff]
    %v5160 = vld [vmem:[#allocation9 + $0xaa0] sm:$0xff]
    %v5161 = vld [vmem:[#allocation9 + $0xaa8] sm:$0xff]
    %v5162 = vld [vmem:[#allocation9 + $0xab0] sm:$0xff]
    %v5163 = vld [vmem:[#allocation9 + $0xab8] sm:$0xff]
    %v5164 = vld [vmem:[#allocation9 + $0xac0] sm:$0xff]
    %v5165 = vld [vmem:[#allocation9 + $0xac8] sm:$0xff]
    %v5166 = vld [vmem:[#allocation9 + $0xad0] sm:$0xff]
    %v5167 = vld [vmem:[#allocation9 + $0xad8] sm:$0xff]
    %v5168 = vld [vmem:[#allocation9 + $0xae0] sm:$0xff]
    %v5169 = vld [vmem:[#allocation9 + $0xae8] sm:$0xff]
    %v5170 = vld [vmem:[#allocation9 + $0xaf0] sm:$0xff]
    %v5171 = vld [vmem:[#allocation9 + $0xaf8] sm:$0xff]
    %v5172 = vld [vmem:[#allocation9 + $0xb00] sm:$0xff]
    %v5173 = vld [vmem:[#allocation9 + $0xb08] sm:$0xff]
    %v5174 = vld [vmem:[#allocation9 + $0xb10] sm:$0xff]
    %v5175 = vld [vmem:[#allocation9 + $0xb18] sm:$0xff]
    %v5176 = vld [vmem:[#allocation9 + $0xb20] sm:$0xff]
    %v5177 = vld [vmem:[#allocation9 + $0xb28] sm:$0xff]
    %v5178 = vld [vmem:[#allocation9 + $0xb30] sm:$0xff]
    %v5179 = vld [vmem:[#allocation9 + $0xb38] sm:$0xff]
    %v5180 = vld [vmem:[#allocation9 + $0xb40] sm:$0xff]
    %v5181 = vld [vmem:[#allocation9 + $0xb48] sm:$0xff]
    %v5182 = vld [vmem:[#allocation9 + $0xb50] sm:$0xff]
    %v5183 = vld [vmem:[#allocation9 + $0xb58] sm:$0xff]
    %v5184 = vld [vmem:[#allocation9 + $0xb60] sm:$0xff]
    %v5185 = vld [vmem:[#allocation9 + $0xb68] sm:$0xff]
    %v5186 = vld [vmem:[#allocation9 + $0xb70] sm:$0xff]
    %v5187 = vld [vmem:[#allocation9 + $0xb78] sm:$0xff]
    %v5188 = vld [vmem:[#allocation9 + $0xb80] sm:$0xff]
    %v5189 = vld [vmem:[#allocation9 + $0xb88] sm:$0xff]
    %v5190 = vld [vmem:[#allocation9 + $0xb90] sm:$0xff]
    %v5191 = vld [vmem:[#allocation9 + $0xb98] sm:$0xff]
    %v5192 = vld [vmem:[#allocation9 + $0xba0] sm:$0xff]
    %v5193 = vld [vmem:[#allocation9 + $0xba8] sm:$0xff]
    %v5194 = vld [vmem:[#allocation9 + $0xbb0] sm:$0xff]
    %v5195 = vld [vmem:[#allocation9 + $0xbb8] sm:$0xff]
    %v5196 = vld [vmem:[#allocation9 + $0xbc0] sm:$0xff]
    %v5197 = vld [vmem:[#allocation9 + $0xbc8] sm:$0xff]
    %v5198 = vld [vmem:[#allocation9 + $0xbd0] sm:$0xff]
    %v5199 = vld [vmem:[#allocation9 + $0xbd8] sm:$0xff]
    %v5200 = vld [vmem:[#allocation9 + $0xbe0] sm:$0xff]
    %v5201 = vld [vmem:[#allocation9 + $0xbe8] sm:$0xff]
    %v5202 = vld [vmem:[#allocation9 + $0xbf0] sm:$0xff]
    %v5203 = vld [vmem:[#allocation9 + $0xbf8] sm:$0xff]
    %v5204 = vld [vmem:[#allocation9 + $0xc00] sm:$0xff]
    %v5205 = vld [vmem:[#allocation9 + $0xc08] sm:$0xff]
    %v5206 = vld [vmem:[#allocation9 + $0xc10] sm:$0xff]
    %v5207 = vld [vmem:[#allocation9 + $0xc18] sm:$0xff]
    %v5208 = vld [vmem:[#allocation9 + $0xc20] sm:$0xff]
    %v5209 = vld [vmem:[#allocation9 + $0xc28] sm:$0xff]
    %v5210 = vld [vmem:[#allocation9 + $0xc30] sm:$0xff]
    %v5211 = vld [vmem:[#allocation9 + $0xc38] sm:$0xff]
    %v5212 = vld [vmem:[#allocation9 + $0xc40] sm:$0xff]
    %v5213 = vld [vmem:[#allocation9 + $0xc48] sm:$0xff]
    %v5214 = vld [vmem:[#allocation9 + $0xc50] sm:$0xff]
    %v5215 = vld [vmem:[#allocation9 + $0xc58] sm:$0xff]
    %v5216 = vld [vmem:[#allocation9 + $0xc60] sm:$0xff]
    %v5217 = vld [vmem:[#allocation9 + $0xc68] sm:$0xff]
    %v5218 = vld [vmem:[#allocation9 + $0xc70] sm:$0xff]
    %v5219 = vld [vmem:[#allocation9 + $0xc78] sm:$0xff]
    %v5220 = vld [vmem:[#allocation9 + $0xc80] sm:$0xff]
    %v5221 = vld [vmem:[#allocation9 + $0xc88] sm:$0xff]
    %v5222 = vld [vmem:[#allocation9 + $0xc90] sm:$0xff]
    %v5223 = vld [vmem:[#allocation9 + $0xc98] sm:$0xff]
    %v5224 = vld [vmem:[#allocation9 + $0xca0] sm:$0xff]
    %v5225 = vld [vmem:[#allocation9 + $0xca8] sm:$0xff]
    %v5226 = vld [vmem:[#allocation9 + $0xcb0] sm:$0xff]
    %v5227 = vld [vmem:[#allocation9 + $0xcb8] sm:$0xff]
    %v5228 = vld [vmem:[#allocation9 + $0xcc0] sm:$0xff]
    %v5229 = vld [vmem:[#allocation9 + $0xcc8] sm:$0xff]
    %v5230 = vld [vmem:[#allocation9 + $0xcd0] sm:$0xff]
    %v5231 = vld [vmem:[#allocation9 + $0xcd8] sm:$0xff]
    %v5232 = vld [vmem:[#allocation9 + $0xce0] sm:$0xff]
    %v5233 = vld [vmem:[#allocation9 + $0xce8] sm:$0xff]
    %v5234 = vld [vmem:[#allocation9 + $0xcf0] sm:$0xff]
    %v5235 = vld [vmem:[#allocation9 + $0xcf8] sm:$0xff]
    %v5236 = vld [vmem:[#allocation9 + $0xd00] sm:$0xff]
    %v5237 = vld [vmem:[#allocation9 + $0xd08] sm:$0xff]
    %v5238 = vld [vmem:[#allocation9 + $0xd10] sm:$0xff]
    %v5239 = vld [vmem:[#allocation9 + $0xd18] sm:$0xff]
    %v5240 = vld [vmem:[#allocation9 + $0xd20] sm:$0xff]
    %v5241 = vld [vmem:[#allocation9 + $0xd28] sm:$0xff]
    %v5242 = vld [vmem:[#allocation9 + $0xd30] sm:$0xff]
    %v5243 = vld [vmem:[#allocation9 + $0xd38] sm:$0xff]
    %v5244 = vld [vmem:[#allocation9 + $0xd40] sm:$0xff]
    %v5245 = vld [vmem:[#allocation9 + $0xd48] sm:$0xff]
    %v5246 = vld [vmem:[#allocation9 + $0xd50] sm:$0xff]
    %v5247 = vld [vmem:[#allocation9 + $0xd58] sm:$0xff]
    %v5248 = vld [vmem:[#allocation9 + $0xd60] sm:$0xff]
    %v5249 = vld [vmem:[#allocation9 + $0xd68] sm:$0xff]
    %v5250 = vld [vmem:[#allocation9 + $0xd70] sm:$0xff]
    %v5251 = vld [vmem:[#allocation9 + $0xd78] sm:$0xff]
    %v5252 = vld [vmem:[#allocation9 + $0xd80] sm:$0xff]
    %v5253 = vld [vmem:[#allocation9 + $0xd88] sm:$0xff]
    %v5254 = vld [vmem:[#allocation9 + $0xd90] sm:$0xff]
    %v5255 = vld [vmem:[#allocation9 + $0xd98] sm:$0xff]
    %v5256 = vld [vmem:[#allocation9 + $0xda0] sm:$0xff]
    %v5257 = vld [vmem:[#allocation9 + $0xda8] sm:$0xff]
    %v5258 = vld [vmem:[#allocation9 + $0xdb0] sm:$0xff]
    %v5259 = vld [vmem:[#allocation9 + $0xdb8] sm:$0xff]
    %v5260 = vld [vmem:[#allocation9 + $0xdc0] sm:$0xff]
    %v5261 = vld [vmem:[#allocation9 + $0xdc8] sm:$0xff]
    %v5262 = vld [vmem:[#allocation9 + $0xdd0] sm:$0xff]
    %v5263 = vld [vmem:[#allocation9 + $0xdd8] sm:$0xff]
    %v5264 = vld [vmem:[#allocation9 + $0xde0] sm:$0xff]
    %v5265 = vld [vmem:[#allocation9 + $0xde8] sm:$0xff]
    %v5266 = vld [vmem:[#allocation9 + $0xdf0] sm:$0xff]
    %v5267 = vld [vmem:[#allocation9 + $0xdf8] sm:$0xff]
    %v5268 = vld [vmem:[#allocation9 + $0xe00] sm:$0xff]
    %v5269 = vld [vmem:[#allocation9 + $0xe08] sm:$0xff]
    %v5270 = vld [vmem:[#allocation9 + $0xe10] sm:$0xff]
    %v5271 = vld [vmem:[#allocation9 + $0xe18] sm:$0xff]
    %v5272 = vld [vmem:[#allocation9 + $0xe20] sm:$0xff]
    %v5273 = vld [vmem:[#allocation9 + $0xe28] sm:$0xff]
    %v5274 = vld [vmem:[#allocation9 + $0xe30] sm:$0xff]
    %v5275 = vld [vmem:[#allocation9 + $0xe38] sm:$0xff]
    %v5276 = vld [vmem:[#allocation9 + $0xe40] sm:$0xff]
    %v5277 = vld [vmem:[#allocation9 + $0xe48] sm:$0xff]
    %v5278 = vld [vmem:[#allocation9 + $0xe50] sm:$0xff]
    %v5279 = vld [vmem:[#allocation9 + $0xe58] sm:$0xff]
    %v5280 = vld [vmem:[#allocation9 + $0xe60] sm:$0xff]
    %v5281 = vld [vmem:[#allocation9 + $0xe68] sm:$0xff]
    %v5282 = vld [vmem:[#allocation9 + $0xe70] sm:$0xff]
    %v5283 = vld [vmem:[#allocation9 + $0xe78] sm:$0xff]
    %v5284 = vld [vmem:[#allocation9 + $0xe80] sm:$0xff]
    %v5285 = vld [vmem:[#allocation9 + $0xe88] sm:$0xff]
    %v5286 = vld [vmem:[#allocation9 + $0xe90] sm:$0xff]
    %v5287 = vld [vmem:[#allocation9 + $0xe98] sm:$0xff]
    %v5288 = vld [vmem:[#allocation9 + $0xea0] sm:$0xff]
    %v5289 = vld [vmem:[#allocation9 + $0xea8] sm:$0xff]
    %v5290 = vld [vmem:[#allocation9 + $0xeb0] sm:$0xff]
    %v5291 = vld [vmem:[#allocation9 + $0xeb8] sm:$0xff]
    %v5292 = vld [vmem:[#allocation9 + $0xec0] sm:$0xff]
    %v5293 = vld [vmem:[#allocation9 + $0xec8] sm:$0xff]
    %v5294 = vld [vmem:[#allocation9 + $0xed0] sm:$0xff]
    %v5295 = vld [vmem:[#allocation9 + $0xed8] sm:$0xff]
    %v5296 = vld [vmem:[#allocation9 + $0xee0] sm:$0xff]
    %v5297 = vld [vmem:[#allocation9 + $0xee8] sm:$0xff]
    %v5298 = vld [vmem:[#allocation9 + $0xef0] sm:$0xff]
    %v5299 = vld [vmem:[#allocation9 + $0xef8] sm:$0xff]
    %v5300 = vld [vmem:[#allocation9 + $0xf00] sm:$0xff]
    %v5301 = vld [vmem:[#allocation9 + $0xf08] sm:$0xff]
    %v5302 = vld [vmem:[#allocation9 + $0xf10] sm:$0xff]
    %v5303 = vld [vmem:[#allocation9 + $0xf18] sm:$0xff]
    %v5304 = vld [vmem:[#allocation9 + $0xf20] sm:$0xff]
    %v5305 = vld [vmem:[#allocation9 + $0xf28] sm:$0xff]
    %v5306 = vld [vmem:[#allocation9 + $0xf30] sm:$0xff]
    %v5307 = vld [vmem:[#allocation9 + $0xf38] sm:$0xff]
    %v5308 = vld [vmem:[#allocation9 + $0xf40] sm:$0xff]
    %v5309 = vld [vmem:[#allocation9 + $0xf48] sm:$0xff]
    %v5310 = vld [vmem:[#allocation9 + $0xf50] sm:$0xff]
    %v5311 = vld [vmem:[#allocation9 + $0xf58] sm:$0xff]
    %v5312 = vld [vmem:[#allocation9 + $0xf60] sm:$0xff]
    %v5313 = vld [vmem:[#allocation9 + $0xf68] sm:$0xff]
    %v5314 = vld [vmem:[#allocation9 + $0xf70] sm:$0xff]
    %v5315 = vld [vmem:[#allocation9 + $0xf78] sm:$0xff]
    %v5316 = vld [vmem:[#allocation9 + $0xf80] sm:$0xff]
    %v5317 = vld [vmem:[#allocation9 + $0xf88] sm:$0xff]
    %v5318 = vld [vmem:[#allocation9 + $0xf90] sm:$0xff]
    %v5319 = vld [vmem:[#allocation9 + $0xf98] sm:$0xff]
    %v5320 = vld [vmem:[#allocation9 + $0xfa0] sm:$0xff]
    %v5321 = vld [vmem:[#allocation9 + $0xfa8] sm:$0xff]
    %v5322 = vld [vmem:[#allocation9 + $0xfb0] sm:$0xff]
    %v5323 = vld [vmem:[#allocation9 + $0xfb8] sm:$0xff]
    %v5324 = vld [vmem:[#allocation9 + $0xfc0] sm:$0xff]
    %v5325 = vld [vmem:[#allocation9 + $0xfc8] sm:$0xff]
    %v5326 = vld [vmem:[#allocation9 + $0xfd0] sm:$0xff]
    %v5327 = vld [vmem:[#allocation9 + $0xfd8] sm:$0xff]
    %v5328 = vld [vmem:[#allocation9 + $0xfe0] sm:$0xff]
    %v5329 = vld [vmem:[#allocation9 + $0xfe8] sm:$0xff]
    %v5330 = vld [vmem:[#allocation9 + $0xff0] sm:$0xff]
    %v5331 = vld [vmem:[#allocation9 + $0xff8] sm:$0xff]
    %v5332 = vld [vmem:[#allocation10] sm:$0xff]
    %v5845 = vunpack.c.l.b16 %v4820
    %v5846 = vunpack.c.h.b16 %v4820
    %v5847 = vunpack.c.l.b16 %v4821
    %v5848 = vunpack.c.h.b16 %v4821
    %v5849 = vunpack.c.l.b16 %v4822
    %v5850 = vunpack.c.h.b16 %v4822
    %v5851 = vunpack.c.l.b16 %v4823
    %v5852 = vunpack.c.h.b16 %v4823
    %v5853 = vunpack.c.l.b16 %v4824
    %v5854 = vunpack.c.h.b16 %v4824
    %v5855 = vunpack.c.l.b16 %v4825
    %v5856 = vunpack.c.h.b16 %v4825
    %v5857 = vunpack.c.l.b16 %v4826
    %v5858 = vunpack.c.h.b16 %v4826
    %v5859 = vunpack.c.l.b16 %v4827
    %v5860 = vunpack.c.h.b16 %v4827
    %v5861 = vunpack.c.l.b16 %v4828
    %v5862 = vunpack.c.h.b16 %v4828
    %v5863 = vunpack.c.l.b16 %v4829
    %v5864 = vunpack.c.h.b16 %v4829
    %v5865 = vunpack.c.l.b16 %v4830
    %v5866 = vunpack.c.h.b16 %v4830
    %v5867 = vunpack.c.l.b16 %v4831
    %v5868 = vunpack.c.h.b16 %v4831
    %v5869 = vunpack.c.l.b16 %v4832
    %v5870 = vunpack.c.h.b16 %v4832
    %v5871 = vunpack.c.l.b16 %v4833
    %v5872 = vunpack.c.h.b16 %v4833
    %v5873 = vunpack.c.l.b16 %v4834
    %v5874 = vunpack.c.h.b16 %v4834
    %v5875 = vunpack.c.l.b16 %v4835
    %v5876 = vunpack.c.h.b16 %v4835
    %v5877 = vunpack.c.l.b16 %v4836
    %v5878 = vunpack.c.h.b16 %v4836
    %v5879 = vunpack.c.l.b16 %v4837
    %v5880 = vunpack.c.h.b16 %v4837
    %v5881 = vunpack.c.l.b16 %v4838
    %v5882 = vunpack.c.h.b16 %v4838
    %v5883 = vunpack.c.l.b16 %v4839
    %v5884 = vunpack.c.h.b16 %v4839
    %v5885 = vunpack.c.l.b16 %v4840
    %v5886 = vunpack.c.h.b16 %v4840
    %v5887 = vunpack.c.l.b16 %v4841
    %v5888 = vunpack.c.h.b16 %v4841
    %v5889 = vunpack.c.l.b16 %v4842
    %v5890 = vunpack.c.h.b16 %v4842
    %v5891 = vunpack.c.l.b16 %v4843
    %v5892 = vunpack.c.h.b16 %v4843
    %v5893 = vunpack.c.l.b16 %v4844
    %v5894 = vunpack.c.h.b16 %v4844
    %v5895 = vunpack.c.l.b16 %v4845
    %v5896 = vunpack.c.h.b16 %v4845
    %v5897 = vunpack.c.l.b16 %v4846
    %v5898 = vunpack.c.h.b16 %v4846
    %v5899 = vunpack.c.l.b16 %v4847
    %v5900 = vunpack.c.h.b16 %v4847
    %v5901 = vunpack.c.l.b16 %v4848
    %v5902 = vunpack.c.h.b16 %v4848
    %v5903 = vunpack.c.l.b16 %v4849
    %v5904 = vunpack.c.h.b16 %v4849
    %v5905 = vunpack.c.l.b16 %v4850
    %v5906 = vunpack.c.h.b16 %v4850
    %v5907 = vunpack.c.l.b16 %v4851
    %v5908 = vunpack.c.h.b16 %v4851
    %v5909 = vunpack.c.l.b16 %v4852
    %v5910 = vunpack.c.h.b16 %v4852
    %v5911 = vunpack.c.l.b16 %v4853
    %v5912 = vunpack.c.h.b16 %v4853
    %v5913 = vunpack.c.l.b16 %v4854
    %v5914 = vunpack.c.h.b16 %v4854
    %v5915 = vunpack.c.l.b16 %v4855
    %v5916 = vunpack.c.h.b16 %v4855
    %v5917 = vunpack.c.l.b16 %v4856
    %v5918 = vunpack.c.h.b16 %v4856
    %v5919 = vunpack.c.l.b16 %v4857
    %v5920 = vunpack.c.h.b16 %v4857
    %v5921 = vunpack.c.l.b16 %v4858
    %v5922 = vunpack.c.h.b16 %v4858
    %v5923 = vunpack.c.l.b16 %v4859
    %v5924 = vunpack.c.h.b16 %v4859
    %v5925 = vunpack.c.l.b16 %v4860
    %v5926 = vunpack.c.h.b16 %v4860
    %v5927 = vunpack.c.l.b16 %v4861
    %v5928 = vunpack.c.h.b16 %v4861
    %v5929 = vunpack.c.l.b16 %v4862
    %v5930 = vunpack.c.h.b16 %v4862
    %v5931 = vunpack.c.l.b16 %v4863
    %v5932 = vunpack.c.h.b16 %v4863
    %v5933 = vunpack.c.l.b16 %v4864
    %v5934 = vunpack.c.h.b16 %v4864
    %v5935 = vunpack.c.l.b16 %v4865
    %v5936 = vunpack.c.h.b16 %v4865
    %v5937 = vunpack.c.l.b16 %v4866
    %v5938 = vunpack.c.h.b16 %v4866
    %v5939 = vunpack.c.l.b16 %v4867
    %v5940 = vunpack.c.h.b16 %v4867
    %v5941 = vunpack.c.l.b16 %v4868
    %v5942 = vunpack.c.h.b16 %v4868
    %v5943 = vunpack.c.l.b16 %v4869
    %v5944 = vunpack.c.h.b16 %v4869
    %v5945 = vunpack.c.l.b16 %v4870
    %v5946 = vunpack.c.h.b16 %v4870
    %v5947 = vunpack.c.l.b16 %v4871
    %v5948 = vunpack.c.h.b16 %v4871
    %v5949 = vunpack.c.l.b16 %v4872
    %v5950 = vunpack.c.h.b16 %v4872
    %v5951 = vunpack.c.l.b16 %v4873
    %v5952 = vunpack.c.h.b16 %v4873
    %v5953 = vunpack.c.l.b16 %v4874
    %v5954 = vunpack.c.h.b16 %v4874
    %v5955 = vunpack.c.l.b16 %v4875
    %v5956 = vunpack.c.h.b16 %v4875
    %v5957 = vunpack.c.l.b16 %v4876
    %v5958 = vunpack.c.h.b16 %v4876
    %v5959 = vunpack.c.l.b16 %v4877
    %v5960 = vunpack.c.h.b16 %v4877
    %v5961 = vunpack.c.l.b16 %v4878
    %v5962 = vunpack.c.h.b16 %v4878
    %v5963 = vunpack.c.l.b16 %v4879
    %v5964 = vunpack.c.h.b16 %v4879
    %v5965 = vunpack.c.l.b16 %v4880
    %v5966 = vunpack.c.h.b16 %v4880
    %v5967 = vunpack.c.l.b16 %v4881
    %v5968 = vunpack.c.h.b16 %v4881
    %v5969 = vunpack.c.l.b16 %v4882
    %v5970 = vunpack.c.h.b16 %v4882
    %v5971 = vunpack.c.l.b16 %v4883
    %v5972 = vunpack.c.h.b16 %v4883
    %v5973 = vunpack.c.l.b16 %v4884
    %v5974 = vunpack.c.h.b16 %v4884
    %v5975 = vunpack.c.l.b16 %v4885
    %v5976 = vunpack.c.h.b16 %v4885
    %v5977 = vunpack.c.l.b16 %v4886
    %v5978 = vunpack.c.h.b16 %v4886
    %v5979 = vunpack.c.l.b16 %v4887
    %v5980 = vunpack.c.h.b16 %v4887
    %v5981 = vunpack.c.l.b16 %v4888
    %v5982 = vunpack.c.h.b16 %v4888
    %v5983 = vunpack.c.l.b16 %v4889
    %v5984 = vunpack.c.h.b16 %v4889
    %v5985 = vunpack.c.l.b16 %v4890
    %v5986 = vunpack.c.h.b16 %v4890
    %v5987 = vunpack.c.l.b16 %v4891
    %v5988 = vunpack.c.h.b16 %v4891
    %v5989 = vunpack.c.l.b16 %v4892
    %v5990 = vunpack.c.h.b16 %v4892
    %v5991 = vunpack.c.l.b16 %v4893
    %v5992 = vunpack.c.h.b16 %v4893
    %v5993 = vunpack.c.l.b16 %v4894
    %v5994 = vunpack.c.h.b16 %v4894
    %v5995 = vunpack.c.l.b16 %v4895
    %v5996 = vunpack.c.h.b16 %v4895
    %v5997 = vunpack.c.l.b16 %v4896
    %v5998 = vunpack.c.h.b16 %v4896
    %v5999 = vunpack.c.l.b16 %v4897
    %v6000 = vunpack.c.h.b16 %v4897
    %v6001 = vunpack.c.l.b16 %v4898
    %v6002 = vunpack.c.h.b16 %v4898
    %v6003 = vunpack.c.l.b16 %v4899
    %v6004 = vunpack.c.h.b16 %v4899
    %v6005 = vunpack.c.l.b16 %v4900
    %v6006 = vunpack.c.h.b16 %v4900
    %v6007 = vunpack.c.l.b16 %v4901
    %v6008 = vunpack.c.h.b16 %v4901
    %v6009 = vunpack.c.l.b16 %v4902
    %v6010 = vunpack.c.h.b16 %v4902
    %v6011 = vunpack.c.l.b16 %v4903
    %v6012 = vunpack.c.h.b16 %v4903
    %v6013 = vunpack.c.l.b16 %v4904
    %v6014 = vunpack.c.h.b16 %v4904
    %v6015 = vunpack.c.l.b16 %v4905
    %v6016 = vunpack.c.h.b16 %v4905
    %v6017 = vunpack.c.l.b16 %v4906
    %v6018 = vunpack.c.h.b16 %v4906
    %v6019 = vunpack.c.l.b16 %v4907
    %v6020 = vunpack.c.h.b16 %v4907
    %v6021 = vunpack.c.l.b16 %v4908
    %v6022 = vunpack.c.h.b16 %v4908
    %v6023 = vunpack.c.l.b16 %v4909
    %v6024 = vunpack.c.h.b16 %v4909
    %v6025 = vunpack.c.l.b16 %v4910
    %v6026 = vunpack.c.h.b16 %v4910
    %v6027 = vunpack.c.l.b16 %v4911
    %v6028 = vunpack.c.h.b16 %v4911
    %v6029 = vunpack.c.l.b16 %v4912
    %v6030 = vunpack.c.h.b16 %v4912
    %v6031 = vunpack.c.l.b16 %v4913
    %v6032 = vunpack.c.h.b16 %v4913
    %v6033 = vunpack.c.l.b16 %v4914
    %v6034 = vunpack.c.h.b16 %v4914
    %v6035 = vunpack.c.l.b16 %v4915
    %v6036 = vunpack.c.h.b16 %v4915
    %v6037 = vunpack.c.l.b16 %v4916
    %v6038 = vunpack.c.h.b16 %v4916
    %v6039 = vunpack.c.l.b16 %v4917
    %v6040 = vunpack.c.h.b16 %v4917
    %v6041 = vunpack.c.l.b16 %v4918
    %v6042 = vunpack.c.h.b16 %v4918
    %v6043 = vunpack.c.l.b16 %v4919
    %v6044 = vunpack.c.h.b16 %v4919
    %v6045 = vunpack.c.l.b16 %v4920
    %v6046 = vunpack.c.h.b16 %v4920
    %v6047 = vunpack.c.l.b16 %v4921
    %v6048 = vunpack.c.h.b16 %v4921
    %v6049 = vunpack.c.l.b16 %v4922
    %v6050 = vunpack.c.h.b16 %v4922
    %v6051 = vunpack.c.l.b16 %v4923
    %v6052 = vunpack.c.h.b16 %v4923
    %v6053 = vunpack.c.l.b16 %v4924
    %v6054 = vunpack.c.h.b16 %v4924
    %v6055 = vunpack.c.l.b16 %v4925
    %v6056 = vunpack.c.h.b16 %v4925
    %v6057 = vunpack.c.l.b16 %v4926
    %v6058 = vunpack.c.h.b16 %v4926
    %v6059 = vunpack.c.l.b16 %v4927
    %v6060 = vunpack.c.h.b16 %v4927
    %v6061 = vunpack.c.l.b16 %v4928
    %v6062 = vunpack.c.h.b16 %v4928
    %v6063 = vunpack.c.l.b16 %v4929
    %v6064 = vunpack.c.h.b16 %v4929
    %v6065 = vunpack.c.l.b16 %v4930
    %v6066 = vunpack.c.h.b16 %v4930
    %v6067 = vunpack.c.l.b16 %v4931
    %v6068 = vunpack.c.h.b16 %v4931
    %v6069 = vunpack.c.l.b16 %v4932
    %v6070 = vunpack.c.h.b16 %v4932
    %v6071 = vunpack.c.l.b16 %v4933
    %v6072 = vunpack.c.h.b16 %v4933
    %v6073 = vunpack.c.l.b16 %v4934
    %v6074 = vunpack.c.h.b16 %v4934
    %v6075 = vunpack.c.l.b16 %v4935
    %v6076 = vunpack.c.h.b16 %v4935
    %v6077 = vunpack.c.l.b16 %v4936
    %v6078 = vunpack.c.h.b16 %v4936
    %v6079 = vunpack.c.l.b16 %v4937
    %v6080 = vunpack.c.h.b16 %v4937
    %v6081 = vunpack.c.l.b16 %v4938
    %v6082 = vunpack.c.h.b16 %v4938
    %v6083 = vunpack.c.l.b16 %v4939
    %v6084 = vunpack.c.h.b16 %v4939
    %v6085 = vunpack.c.l.b16 %v4940
    %v6086 = vunpack.c.h.b16 %v4940
    %v6087 = vunpack.c.l.b16 %v4941
    %v6088 = vunpack.c.h.b16 %v4941
    %v6089 = vunpack.c.l.b16 %v4942
    %v6090 = vunpack.c.h.b16 %v4942
    %v6091 = vunpack.c.l.b16 %v4943
    %v6092 = vunpack.c.h.b16 %v4943
    %v6093 = vunpack.c.l.b16 %v4944
    %v6094 = vunpack.c.h.b16 %v4944
    %v6095 = vunpack.c.l.b16 %v4945
    %v6096 = vunpack.c.h.b16 %v4945
    %v6097 = vunpack.c.l.b16 %v4946
    %v6098 = vunpack.c.h.b16 %v4946
    %v6099 = vunpack.c.l.b16 %v4947
    %v6100 = vunpack.c.h.b16 %v4947
    %v6101 = vunpack.c.l.b16 %v4948
    %v6102 = vunpack.c.h.b16 %v4948
    %v6103 = vunpack.c.l.b16 %v4949
    %v6104 = vunpack.c.h.b16 %v4949
    %v6105 = vunpack.c.l.b16 %v4950
    %v6106 = vunpack.c.h.b16 %v4950
    %v6107 = vunpack.c.l.b16 %v4951
    %v6108 = vunpack.c.h.b16 %v4951
    %v6109 = vunpack.c.l.b16 %v4952
    %v6110 = vunpack.c.h.b16 %v4952
    %v6111 = vunpack.c.l.b16 %v4953
    %v6112 = vunpack.c.h.b16 %v4953
    %v6113 = vunpack.c.l.b16 %v4954
    %v6114 = vunpack.c.h.b16 %v4954
    %v6115 = vunpack.c.l.b16 %v4955
    %v6116 = vunpack.c.h.b16 %v4955
    %v6117 = vunpack.c.l.b16 %v4956
    %v6118 = vunpack.c.h.b16 %v4956
    %v6119 = vunpack.c.l.b16 %v4957
    %v6120 = vunpack.c.h.b16 %v4957
    %v6121 = vunpack.c.l.b16 %v4958
    %v6122 = vunpack.c.h.b16 %v4958
    %v6123 = vunpack.c.l.b16 %v4959
    %v6124 = vunpack.c.h.b16 %v4959
    %v6125 = vunpack.c.l.b16 %v4960
    %v6126 = vunpack.c.h.b16 %v4960
    %v6127 = vunpack.c.l.b16 %v4961
    %v6128 = vunpack.c.h.b16 %v4961
    %v6129 = vunpack.c.l.b16 %v4962
    %v6130 = vunpack.c.h.b16 %v4962
    %v6131 = vunpack.c.l.b16 %v4963
    %v6132 = vunpack.c.h.b16 %v4963
    %v6133 = vunpack.c.l.b16 %v4964
    %v6134 = vunpack.c.h.b16 %v4964
    %v6135 = vunpack.c.l.b16 %v4965
    %v6136 = vunpack.c.h.b16 %v4965
    %v6137 = vunpack.c.l.b16 %v4966
    %v6138 = vunpack.c.h.b16 %v4966
    %v6139 = vunpack.c.l.b16 %v4967
    %v6140 = vunpack.c.h.b16 %v4967
    %v6141 = vunpack.c.l.b16 %v4968
    %v6142 = vunpack.c.h.b16 %v4968
    %v6143 = vunpack.c.l.b16 %v4969
    %v6144 = vunpack.c.h.b16 %v4969
    %v6145 = vunpack.c.l.b16 %v4970
    %v6146 = vunpack.c.h.b16 %v4970
    %v6147 = vunpack.c.l.b16 %v4971
    %v6148 = vunpack.c.h.b16 %v4971
    %v6149 = vunpack.c.l.b16 %v4972
    %v6150 = vunpack.c.h.b16 %v4972
    %v6151 = vunpack.c.l.b16 %v4973
    %v6152 = vunpack.c.h.b16 %v4973
    %v6153 = vunpack.c.l.b16 %v4974
    %v6154 = vunpack.c.h.b16 %v4974
    %v6155 = vunpack.c.l.b16 %v4975
    %v6156 = vunpack.c.h.b16 %v4975
    %v6157 = vunpack.c.l.b16 %v4976
    %v6158 = vunpack.c.h.b16 %v4976
    %v6159 = vunpack.c.l.b16 %v4977
    %v6160 = vunpack.c.h.b16 %v4977
    %v6161 = vunpack.c.l.b16 %v4978
    %v6162 = vunpack.c.h.b16 %v4978
    %v6163 = vunpack.c.l.b16 %v4979
    %v6164 = vunpack.c.h.b16 %v4979
    %v6165 = vunpack.c.l.b16 %v4980
    %v6166 = vunpack.c.h.b16 %v4980
    %v6167 = vunpack.c.l.b16 %v4981
    %v6168 = vunpack.c.h.b16 %v4981
    %v6169 = vunpack.c.l.b16 %v4982
    %v6170 = vunpack.c.h.b16 %v4982
    %v6171 = vunpack.c.l.b16 %v4983
    %v6172 = vunpack.c.h.b16 %v4983
    %v6173 = vunpack.c.l.b16 %v4984
    %v6174 = vunpack.c.h.b16 %v4984
    %v6175 = vunpack.c.l.b16 %v4985
    %v6176 = vunpack.c.h.b16 %v4985
    %v6177 = vunpack.c.l.b16 %v4986
    %v6178 = vunpack.c.h.b16 %v4986
    %v6179 = vunpack.c.l.b16 %v4987
    %v6180 = vunpack.c.h.b16 %v4987
    %v6181 = vunpack.c.l.b16 %v4988
    %v6182 = vunpack.c.h.b16 %v4988
    %v6183 = vunpack.c.l.b16 %v4989
    %v6184 = vunpack.c.h.b16 %v4989
    %v6185 = vunpack.c.l.b16 %v4990
    %v6186 = vunpack.c.h.b16 %v4990
    %v6187 = vunpack.c.l.b16 %v4991
    %v6188 = vunpack.c.h.b16 %v4991
    %v6189 = vunpack.c.l.b16 %v4992
    %v6190 = vunpack.c.h.b16 %v4992
    %v6191 = vunpack.c.l.b16 %v4993
    %v6192 = vunpack.c.h.b16 %v4993
    %v6193 = vunpack.c.l.b16 %v4994
    %v6194 = vunpack.c.h.b16 %v4994
    %v6195 = vunpack.c.l.b16 %v4995
    %v6196 = vunpack.c.h.b16 %v4995
    %v6197 = vunpack.c.l.b16 %v4996
    %v6198 = vunpack.c.h.b16 %v4996
    %v6199 = vunpack.c.l.b16 %v4997
    %v6200 = vunpack.c.h.b16 %v4997
    %v6201 = vunpack.c.l.b16 %v4998
    %v6202 = vunpack.c.h.b16 %v4998
    %v6203 = vunpack.c.l.b16 %v4999
    %v6204 = vunpack.c.h.b16 %v4999
    %v6205 = vunpack.c.l.b16 %v5000
    %v6206 = vunpack.c.h.b16 %v5000
    %v6207 = vunpack.c.l.b16 %v5001
    %v6208 = vunpack.c.h.b16 %v5001
    %v6209 = vunpack.c.l.b16 %v5002
    %v6210 = vunpack.c.h.b16 %v5002
    %v6211 = vunpack.c.l.b16 %v5003
    %v6212 = vunpack.c.h.b16 %v5003
    %v6213 = vunpack.c.l.b16 %v5004
    %v6214 = vunpack.c.h.b16 %v5004
    %v6215 = vunpack.c.l.b16 %v5005
    %v6216 = vunpack.c.h.b16 %v5005
    %v6217 = vunpack.c.l.b16 %v5006
    %v6218 = vunpack.c.h.b16 %v5006
    %v6219 = vunpack.c.l.b16 %v5007
    %v6220 = vunpack.c.h.b16 %v5007
    %v6221 = vunpack.c.l.b16 %v5008
    %v6222 = vunpack.c.h.b16 %v5008
    %v6223 = vunpack.c.l.b16 %v5009
    %v6224 = vunpack.c.h.b16 %v5009
    %v6225 = vunpack.c.l.b16 %v5010
    %v6226 = vunpack.c.h.b16 %v5010
    %v6227 = vunpack.c.l.b16 %v5011
    %v6228 = vunpack.c.h.b16 %v5011
    %v6229 = vunpack.c.l.b16 %v5012
    %v6230 = vunpack.c.h.b16 %v5012
    %v6231 = vunpack.c.l.b16 %v5013
    %v6232 = vunpack.c.h.b16 %v5013
    %v6233 = vunpack.c.l.b16 %v5014
    %v6234 = vunpack.c.h.b16 %v5014
    %v6235 = vunpack.c.l.b16 %v5015
    %v6236 = vunpack.c.h.b16 %v5015
    %v6237 = vunpack.c.l.b16 %v5016
    %v6238 = vunpack.c.h.b16 %v5016
    %v6239 = vunpack.c.l.b16 %v5017
    %v6240 = vunpack.c.h.b16 %v5017
    %v6241 = vunpack.c.l.b16 %v5018
    %v6242 = vunpack.c.h.b16 %v5018
    %v6243 = vunpack.c.l.b16 %v5019
    %v6244 = vunpack.c.h.b16 %v5019
    %v6245 = vunpack.c.l.b16 %v5020
    %v6246 = vunpack.c.h.b16 %v5020
    %v6247 = vunpack.c.l.b16 %v5021
    %v6248 = vunpack.c.h.b16 %v5021
    %v6249 = vunpack.c.l.b16 %v5022
    %v6250 = vunpack.c.h.b16 %v5022
    %v6251 = vunpack.c.l.b16 %v5023
    %v6252 = vunpack.c.h.b16 %v5023
    %v6253 = vunpack.c.l.b16 %v5024
    %v6254 = vunpack.c.h.b16 %v5024
    %v6255 = vunpack.c.l.b16 %v5025
    %v6256 = vunpack.c.h.b16 %v5025
    %v6257 = vunpack.c.l.b16 %v5026
    %v6258 = vunpack.c.h.b16 %v5026
    %v6259 = vunpack.c.l.b16 %v5027
    %v6260 = vunpack.c.h.b16 %v5027
    %v6261 = vunpack.c.l.b16 %v5028
    %v6262 = vunpack.c.h.b16 %v5028
    %v6263 = vunpack.c.l.b16 %v5029
    %v6264 = vunpack.c.h.b16 %v5029
    %v6265 = vunpack.c.l.b16 %v5030
    %v6266 = vunpack.c.h.b16 %v5030
    %v6267 = vunpack.c.l.b16 %v5031
    %v6268 = vunpack.c.h.b16 %v5031
    %v6269 = vunpack.c.l.b16 %v5032
    %v6270 = vunpack.c.h.b16 %v5032
    %v6271 = vunpack.c.l.b16 %v5033
    %v6272 = vunpack.c.h.b16 %v5033
    %v6273 = vunpack.c.l.b16 %v5034
    %v6274 = vunpack.c.h.b16 %v5034
    %v6275 = vunpack.c.l.b16 %v5035
    %v6276 = vunpack.c.h.b16 %v5035
    %v6277 = vunpack.c.l.b16 %v5036
    %v6278 = vunpack.c.h.b16 %v5036
    %v6279 = vunpack.c.l.b16 %v5037
    %v6280 = vunpack.c.h.b16 %v5037
    %v6281 = vunpack.c.l.b16 %v5038
    %v6282 = vunpack.c.h.b16 %v5038
    %v6283 = vunpack.c.l.b16 %v5039
    %v6284 = vunpack.c.h.b16 %v5039
    %v6285 = vunpack.c.l.b16 %v5040
    %v6286 = vunpack.c.h.b16 %v5040
    %v6287 = vunpack.c.l.b16 %v5041
    %v6288 = vunpack.c.h.b16 %v5041
    %v6289 = vunpack.c.l.b16 %v5042
    %v6290 = vunpack.c.h.b16 %v5042
    %v6291 = vunpack.c.l.b16 %v5043
    %v6292 = vunpack.c.h.b16 %v5043
    %v6293 = vunpack.c.l.b16 %v5044
    %v6294 = vunpack.c.h.b16 %v5044
    %v6295 = vunpack.c.l.b16 %v5045
    %v6296 = vunpack.c.h.b16 %v5045
    %v6297 = vunpack.c.l.b16 %v5046
    %v6298 = vunpack.c.h.b16 %v5046
    %v6299 = vunpack.c.l.b16 %v5047
    %v6300 = vunpack.c.h.b16 %v5047
    %v6301 = vunpack.c.l.b16 %v5048
    %v6302 = vunpack.c.h.b16 %v5048
    %v6303 = vunpack.c.l.b16 %v5049
    %v6304 = vunpack.c.h.b16 %v5049
    %v6305 = vunpack.c.l.b16 %v5050
    %v6306 = vunpack.c.h.b16 %v5050
    %v6307 = vunpack.c.l.b16 %v5051
    %v6308 = vunpack.c.h.b16 %v5051
    %v6309 = vunpack.c.l.b16 %v5052
    %v6310 = vunpack.c.h.b16 %v5052
    %v6311 = vunpack.c.l.b16 %v5053
    %v6312 = vunpack.c.h.b16 %v5053
    %v6313 = vunpack.c.l.b16 %v5054
    %v6314 = vunpack.c.h.b16 %v5054
    %v6315 = vunpack.c.l.b16 %v5055
    %v6316 = vunpack.c.h.b16 %v5055
    %v6317 = vunpack.c.l.b16 %v5056
    %v6318 = vunpack.c.h.b16 %v5056
    %v6319 = vunpack.c.l.b16 %v5057
    %v6320 = vunpack.c.h.b16 %v5057
    %v6321 = vunpack.c.l.b16 %v5058
    %v6322 = vunpack.c.h.b16 %v5058
    %v6323 = vunpack.c.l.b16 %v5059
    %v6324 = vunpack.c.h.b16 %v5059
    %v6325 = vunpack.c.l.b16 %v5060
    %v6326 = vunpack.c.h.b16 %v5060
    %v6327 = vunpack.c.l.b16 %v5061
    %v6328 = vunpack.c.h.b16 %v5061
    %v6329 = vunpack.c.l.b16 %v5062
    %v6330 = vunpack.c.h.b16 %v5062
    %v6331 = vunpack.c.l.b16 %v5063
    %v6332 = vunpack.c.h.b16 %v5063
    %v6333 = vunpack.c.l.b16 %v5064
    %v6334 = vunpack.c.h.b16 %v5064
    %v6335 = vunpack.c.l.b16 %v5065
    %v6336 = vunpack.c.h.b16 %v5065
    %v6337 = vunpack.c.l.b16 %v5066
    %v6338 = vunpack.c.h.b16 %v5066
    %v6339 = vunpack.c.l.b16 %v5067
    %v6340 = vunpack.c.h.b16 %v5067
    %v6341 = vunpack.c.l.b16 %v5068
    %v6342 = vunpack.c.h.b16 %v5068
    %v6343 = vunpack.c.l.b16 %v5069
    %v6344 = vunpack.c.h.b16 %v5069
    %v6345 = vunpack.c.l.b16 %v5070
    %v6346 = vunpack.c.h.b16 %v5070
    %v6347 = vunpack.c.l.b16 %v5071
    %v6348 = vunpack.c.h.b16 %v5071
    %v6349 = vunpack.c.l.b16 %v5072
    %v6350 = vunpack.c.h.b16 %v5072
    %v6351 = vunpack.c.l.b16 %v5073
    %v6352 = vunpack.c.h.b16 %v5073
    %v6353 = vunpack.c.l.b16 %v5074
    %v6354 = vunpack.c.h.b16 %v5074
    %v6355 = vunpack.c.l.b16 %v5075
    %v6356 = vunpack.c.h.b16 %v5075
    %v6357 = vunpack.c.l.b16 %v5076
    %v6358 = vunpack.c.h.b16 %v5076
    %v6359 = vunpack.c.l.b16 %v5077
    %v6360 = vunpack.c.h.b16 %v5077
    %v6361 = vunpack.c.l.b16 %v5078
    %v6362 = vunpack.c.h.b16 %v5078
    %v6363 = vunpack.c.l.b16 %v5079
    %v6364 = vunpack.c.h.b16 %v5079
    %v6365 = vunpack.c.l.b16 %v5080
    %v6366 = vunpack.c.h.b16 %v5080
    %v6367 = vunpack.c.l.b16 %v5081
    %v6368 = vunpack.c.h.b16 %v5081
    %v6369 = vunpack.c.l.b16 %v5082
    %v6370 = vunpack.c.h.b16 %v5082
    %v6371 = vunpack.c.l.b16 %v5083
    %v6372 = vunpack.c.h.b16 %v5083
    %v6373 = vunpack.c.l.b16 %v5084
    %v6374 = vunpack.c.h.b16 %v5084
    %v6375 = vunpack.c.l.b16 %v5085
    %v6376 = vunpack.c.h.b16 %v5085
    %v6377 = vunpack.c.l.b16 %v5086
    %v6378 = vunpack.c.h.b16 %v5086
    %v6379 = vunpack.c.l.b16 %v5087
    %v6380 = vunpack.c.h.b16 %v5087
    %v6381 = vunpack.c.l.b16 %v5088
    %v6382 = vunpack.c.h.b16 %v5088
    %v6383 = vunpack.c.l.b16 %v5089
    %v6384 = vunpack.c.h.b16 %v5089
    %v6385 = vunpack.c.l.b16 %v5090
    %v6386 = vunpack.c.h.b16 %v5090
    %v6387 = vunpack.c.l.b16 %v5091
    %v6388 = vunpack.c.h.b16 %v5091
    %v6389 = vunpack.c.l.b16 %v5092
    %v6390 = vunpack.c.h.b16 %v5092
    %v6391 = vunpack.c.l.b16 %v5093
    %v6392 = vunpack.c.h.b16 %v5093
    %v6393 = vunpack.c.l.b16 %v5094
    %v6394 = vunpack.c.h.b16 %v5094
    %v6395 = vunpack.c.l.b16 %v5095
    %v6396 = vunpack.c.h.b16 %v5095
    %v6397 = vunpack.c.l.b16 %v5096
    %v6398 = vunpack.c.h.b16 %v5096
    %v6399 = vunpack.c.l.b16 %v5097
    %v6400 = vunpack.c.h.b16 %v5097
    %v6401 = vunpack.c.l.b16 %v5098
    %v6402 = vunpack.c.h.b16 %v5098
    %v6403 = vunpack.c.l.b16 %v5099
    %v6404 = vunpack.c.h.b16 %v5099
    %v6405 = vunpack.c.l.b16 %v5100
    %v6406 = vunpack.c.h.b16 %v5100
    %v6407 = vunpack.c.l.b16 %v5101
    %v6408 = vunpack.c.h.b16 %v5101
    %v6409 = vunpack.c.l.b16 %v5102
    %v6410 = vunpack.c.h.b16 %v5102
    %v6411 = vunpack.c.l.b16 %v5103
    %v6412 = vunpack.c.h.b16 %v5103
    %v6413 = vunpack.c.l.b16 %v5104
    %v6414 = vunpack.c.h.b16 %v5104
    %v6415 = vunpack.c.l.b16 %v5105
    %v6416 = vunpack.c.h.b16 %v5105
    %v6417 = vunpack.c.l.b16 %v5106
    %v6418 = vunpack.c.h.b16 %v5106
    %v6419 = vunpack.c.l.b16 %v5107
    %v6420 = vunpack.c.h.b16 %v5107
    %v6421 = vunpack.c.l.b16 %v5108
    %v6422 = vunpack.c.h.b16 %v5108
    %v6423 = vunpack.c.l.b16 %v5109
    %v6424 = vunpack.c.h.b16 %v5109
    %v6425 = vunpack.c.l.b16 %v5110
    %v6426 = vunpack.c.h.b16 %v5110
    %v6427 = vunpack.c.l.b16 %v5111
    %v6428 = vunpack.c.h.b16 %v5111
    %v6429 = vunpack.c.l.b16 %v5112
    %v6430 = vunpack.c.h.b16 %v5112
    %v6431 = vunpack.c.l.b16 %v5113
    %v6432 = vunpack.c.h.b16 %v5113
    %v6433 = vunpack.c.l.b16 %v5114
    %v6434 = vunpack.c.h.b16 %v5114
    %v6435 = vunpack.c.l.b16 %v5115
    %v6436 = vunpack.c.h.b16 %v5115
    %v6437 = vunpack.c.l.b16 %v5116
    %v6438 = vunpack.c.h.b16 %v5116
    %v6439 = vunpack.c.l.b16 %v5117
    %v6440 = vunpack.c.h.b16 %v5117
    %v6441 = vunpack.c.l.b16 %v5118
    %v6442 = vunpack.c.h.b16 %v5118
    %v6443 = vunpack.c.l.b16 %v5119
    %v6444 = vunpack.c.h.b16 %v5119
    %v6445 = vunpack.c.l.b16 %v5120
    %v6446 = vunpack.c.h.b16 %v5120
    %v6447 = vunpack.c.l.b16 %v5121
    %v6448 = vunpack.c.h.b16 %v5121
    %v6449 = vunpack.c.l.b16 %v5122
    %v6450 = vunpack.c.h.b16 %v5122
    %v6451 = vunpack.c.l.b16 %v5123
    %v6452 = vunpack.c.h.b16 %v5123
    %v6453 = vunpack.c.l.b16 %v5124
    %v6454 = vunpack.c.h.b16 %v5124
    %v6455 = vunpack.c.l.b16 %v5125
    %v6456 = vunpack.c.h.b16 %v5125
    %v6457 = vunpack.c.l.b16 %v5126
    %v6458 = vunpack.c.h.b16 %v5126
    %v6459 = vunpack.c.l.b16 %v5127
    %v6460 = vunpack.c.h.b16 %v5127
    %v6461 = vunpack.c.l.b16 %v5128
    %v6462 = vunpack.c.h.b16 %v5128
    %v6463 = vunpack.c.l.b16 %v5129
    %v6464 = vunpack.c.h.b16 %v5129
    %v6465 = vunpack.c.l.b16 %v5130
    %v6466 = vunpack.c.h.b16 %v5130
    %v6467 = vunpack.c.l.b16 %v5131
    %v6468 = vunpack.c.h.b16 %v5131
    %v6469 = vunpack.c.l.b16 %v5132
    %v6470 = vunpack.c.h.b16 %v5132
    %v6471 = vunpack.c.l.b16 %v5133
    %v6472 = vunpack.c.h.b16 %v5133
    %v6473 = vunpack.c.l.b16 %v5134
    %v6474 = vunpack.c.h.b16 %v5134
    %v6475 = vunpack.c.l.b16 %v5135
    %v6476 = vunpack.c.h.b16 %v5135
    %v6477 = vunpack.c.l.b16 %v5136
    %v6478 = vunpack.c.h.b16 %v5136
    %v6479 = vunpack.c.l.b16 %v5137
    %v6480 = vunpack.c.h.b16 %v5137
    %v6481 = vunpack.c.l.b16 %v5138
    %v6482 = vunpack.c.h.b16 %v5138
    %v6483 = vunpack.c.l.b16 %v5139
    %v6484 = vunpack.c.h.b16 %v5139
    %v6485 = vunpack.c.l.b16 %v5140
    %v6486 = vunpack.c.h.b16 %v5140
    %v6487 = vunpack.c.l.b16 %v5141
    %v6488 = vunpack.c.h.b16 %v5141
    %v6489 = vunpack.c.l.b16 %v5142
    %v6490 = vunpack.c.h.b16 %v5142
    %v6491 = vunpack.c.l.b16 %v5143
    %v6492 = vunpack.c.h.b16 %v5143
    %v6493 = vunpack.c.l.b16 %v5144
    %v6494 = vunpack.c.h.b16 %v5144
    %v6495 = vunpack.c.l.b16 %v5145
    %v6496 = vunpack.c.h.b16 %v5145
    %v6497 = vunpack.c.l.b16 %v5146
    %v6498 = vunpack.c.h.b16 %v5146
    %v6499 = vunpack.c.l.b16 %v5147
    %v6500 = vunpack.c.h.b16 %v5147
    %v6501 = vunpack.c.l.b16 %v5148
    %v6502 = vunpack.c.h.b16 %v5148
    %v6503 = vunpack.c.l.b16 %v5149
    %v6504 = vunpack.c.h.b16 %v5149
    %v6505 = vunpack.c.l.b16 %v5150
    %v6506 = vunpack.c.h.b16 %v5150
    %v6507 = vunpack.c.l.b16 %v5151
    %v6508 = vunpack.c.h.b16 %v5151
    %v6509 = vunpack.c.l.b16 %v5152
    %v6510 = vunpack.c.h.b16 %v5152
    %v6511 = vunpack.c.l.b16 %v5153
    %v6512 = vunpack.c.h.b16 %v5153
    %v6513 = vunpack.c.l.b16 %v5154
    %v6514 = vunpack.c.h.b16 %v5154
    %v6515 = vunpack.c.l.b16 %v5155
    %v6516 = vunpack.c.h.b16 %v5155
    %v6517 = vunpack.c.l.b16 %v5156
    %v6518 = vunpack.c.h.b16 %v5156
    %v6519 = vunpack.c.l.b16 %v5157
    %v6520 = vunpack.c.h.b16 %v5157
    %v6521 = vunpack.c.l.b16 %v5158
    %v6522 = vunpack.c.h.b16 %v5158
    %v6523 = vunpack.c.l.b16 %v5159
    %v6524 = vunpack.c.h.b16 %v5159
    %v6525 = vunpack.c.l.b16 %v5160
    %v6526 = vunpack.c.h.b16 %v5160
    %v6527 = vunpack.c.l.b16 %v5161
    %v6528 = vunpack.c.h.b16 %v5161
    %v6529 = vunpack.c.l.b16 %v5162
    %v6530 = vunpack.c.h.b16 %v5162
    %v6531 = vunpack.c.l.b16 %v5163
    %v6532 = vunpack.c.h.b16 %v5163
    %v6533 = vunpack.c.l.b16 %v5164
    %v6534 = vunpack.c.h.b16 %v5164
    %v6535 = vunpack.c.l.b16 %v5165
    %v6536 = vunpack.c.h.b16 %v5165
    %v6537 = vunpack.c.l.b16 %v5166
    %v6538 = vunpack.c.h.b16 %v5166
    %v6539 = vunpack.c.l.b16 %v5167
    %v6540 = vunpack.c.h.b16 %v5167
    %v6541 = vunpack.c.l.b16 %v5168
    %v6542 = vunpack.c.h.b16 %v5168
    %v6543 = vunpack.c.l.b16 %v5169
    %v6544 = vunpack.c.h.b16 %v5169
    %v6545 = vunpack.c.l.b16 %v5170
    %v6546 = vunpack.c.h.b16 %v5170
    %v6547 = vunpack.c.l.b16 %v5171
    %v6548 = vunpack.c.h.b16 %v5171
    %v6549 = vunpack.c.l.b16 %v5172
    %v6550 = vunpack.c.h.b16 %v5172
    %v6551 = vunpack.c.l.b16 %v5173
    %v6552 = vunpack.c.h.b16 %v5173
    %v6553 = vunpack.c.l.b16 %v5174
    %v6554 = vunpack.c.h.b16 %v5174
    %v6555 = vunpack.c.l.b16 %v5175
    %v6556 = vunpack.c.h.b16 %v5175
    %v6557 = vunpack.c.l.b16 %v5176
    %v6558 = vunpack.c.h.b16 %v5176
    %v6559 = vunpack.c.l.b16 %v5177
    %v6560 = vunpack.c.h.b16 %v5177
    %v6561 = vunpack.c.l.b16 %v5178
    %v6562 = vunpack.c.h.b16 %v5178
    %v6563 = vunpack.c.l.b16 %v5179
    %v6564 = vunpack.c.h.b16 %v5179
    %v6565 = vunpack.c.l.b16 %v5180
    %v6566 = vunpack.c.h.b16 %v5180
    %v6567 = vunpack.c.l.b16 %v5181
    %v6568 = vunpack.c.h.b16 %v5181
    %v6569 = vunpack.c.l.b16 %v5182
    %v6570 = vunpack.c.h.b16 %v5182
    %v6571 = vunpack.c.l.b16 %v5183
    %v6572 = vunpack.c.h.b16 %v5183
    %v6573 = vunpack.c.l.b16 %v5184
    %v6574 = vunpack.c.h.b16 %v5184
    %v6575 = vunpack.c.l.b16 %v5185
    %v6576 = vunpack.c.h.b16 %v5185
    %v6577 = vunpack.c.l.b16 %v5186
    %v6578 = vunpack.c.h.b16 %v5186
    %v6579 = vunpack.c.l.b16 %v5187
    %v6580 = vunpack.c.h.b16 %v5187
    %v6581 = vunpack.c.l.b16 %v5188
    %v6582 = vunpack.c.h.b16 %v5188
    %v6583 = vunpack.c.l.b16 %v5189
    %v6584 = vunpack.c.h.b16 %v5189
    %v6585 = vunpack.c.l.b16 %v5190
    %v6586 = vunpack.c.h.b16 %v5190
    %v6587 = vunpack.c.l.b16 %v5191
    %v6588 = vunpack.c.h.b16 %v5191
    %v6589 = vunpack.c.l.b16 %v5192
    %v6590 = vunpack.c.h.b16 %v5192
    %v6591 = vunpack.c.l.b16 %v5193
    %v6592 = vunpack.c.h.b16 %v5193
    %v6593 = vunpack.c.l.b16 %v5194
    %v6594 = vunpack.c.h.b16 %v5194
    %v6595 = vunpack.c.l.b16 %v5195
    %v6596 = vunpack.c.h.b16 %v5195
    %v6597 = vunpack.c.l.b16 %v5196
    %v6598 = vunpack.c.h.b16 %v5196
    %v6599 = vunpack.c.l.b16 %v5197
    %v6600 = vunpack.c.h.b16 %v5197
    %v6601 = vunpack.c.l.b16 %v5198
    %v6602 = vunpack.c.h.b16 %v5198
    %v6603 = vunpack.c.l.b16 %v5199
    %v6604 = vunpack.c.h.b16 %v5199
    %v6605 = vunpack.c.l.b16 %v5200
    %v6606 = vunpack.c.h.b16 %v5200
    %v6607 = vunpack.c.l.b16 %v5201
    %v6608 = vunpack.c.h.b16 %v5201
    %v6609 = vunpack.c.l.b16 %v5202
    %v6610 = vunpack.c.h.b16 %v5202
    %v6611 = vunpack.c.l.b16 %v5203
    %v6612 = vunpack.c.h.b16 %v5203
    %v6613 = vunpack.c.l.b16 %v5204
    %v6614 = vunpack.c.h.b16 %v5204
    %v6615 = vunpack.c.l.b16 %v5205
    %v6616 = vunpack.c.h.b16 %v5205
    %v6617 = vunpack.c.l.b16 %v5206
    %v6618 = vunpack.c.h.b16 %v5206
    %v6619 = vunpack.c.l.b16 %v5207
    %v6620 = vunpack.c.h.b16 %v5207
    %v6621 = vunpack.c.l.b16 %v5208
    %v6622 = vunpack.c.h.b16 %v5208
    %v6623 = vunpack.c.l.b16 %v5209
    %v6624 = vunpack.c.h.b16 %v5209
    %v6625 = vunpack.c.l.b16 %v5210
    %v6626 = vunpack.c.h.b16 %v5210
    %v6627 = vunpack.c.l.b16 %v5211
    %v6628 = vunpack.c.h.b16 %v5211
    %v6629 = vunpack.c.l.b16 %v5212
    %v6630 = vunpack.c.h.b16 %v5212
    %v6631 = vunpack.c.l.b16 %v5213
    %v6632 = vunpack.c.h.b16 %v5213
    %v6633 = vunpack.c.l.b16 %v5214
    %v6634 = vunpack.c.h.b16 %v5214
    %v6635 = vunpack.c.l.b16 %v5215
    %v6636 = vunpack.c.h.b16 %v5215
    %v6637 = vunpack.c.l.b16 %v5216
    %v6638 = vunpack.c.h.b16 %v5216
    %v6639 = vunpack.c.l.b16 %v5217
    %v6640 = vunpack.c.h.b16 %v5217
    %v6641 = vunpack.c.l.b16 %v5218
    %v6642 = vunpack.c.h.b16 %v5218
    %v6643 = vunpack.c.l.b16 %v5219
    %v6644 = vunpack.c.h.b16 %v5219
    %v6645 = vunpack.c.l.b16 %v5220
    %v6646 = vunpack.c.h.b16 %v5220
    %v6647 = vunpack.c.l.b16 %v5221
    %v6648 = vunpack.c.h.b16 %v5221
    %v6649 = vunpack.c.l.b16 %v5222
    %v6650 = vunpack.c.h.b16 %v5222
    %v6651 = vunpack.c.l.b16 %v5223
    %v6652 = vunpack.c.h.b16 %v5223
    %v6653 = vunpack.c.l.b16 %v5224
    %v6654 = vunpack.c.h.b16 %v5224
    %v6655 = vunpack.c.l.b16 %v5225
    %v6656 = vunpack.c.h.b16 %v5225
    %v6657 = vunpack.c.l.b16 %v5226
    %v6658 = vunpack.c.h.b16 %v5226
    %v6659 = vunpack.c.l.b16 %v5227
    %v6660 = vunpack.c.h.b16 %v5227
    %v6661 = vunpack.c.l.b16 %v5228
    %v6662 = vunpack.c.h.b16 %v5228
    %v6663 = vunpack.c.l.b16 %v5229
    %v6664 = vunpack.c.h.b16 %v5229
    %v6665 = vunpack.c.l.b16 %v5230
    %v6666 = vunpack.c.h.b16 %v5230
    %v6667 = vunpack.c.l.b16 %v5231
    %v6668 = vunpack.c.h.b16 %v5231
    %v6669 = vunpack.c.l.b16 %v5232
    %v6670 = vunpack.c.h.b16 %v5232
    %v6671 = vunpack.c.l.b16 %v5233
    %v6672 = vunpack.c.h.b16 %v5233
    %v6673 = vunpack.c.l.b16 %v5234
    %v6674 = vunpack.c.h.b16 %v5234
    %v6675 = vunpack.c.l.b16 %v5235
    %v6676 = vunpack.c.h.b16 %v5235
    %v6677 = vunpack.c.l.b16 %v5236
    %v6678 = vunpack.c.h.b16 %v5236
    %v6679 = vunpack.c.l.b16 %v5237
    %v6680 = vunpack.c.h.b16 %v5237
    %v6681 = vunpack.c.l.b16 %v5238
    %v6682 = vunpack.c.h.b16 %v5238
    %v6683 = vunpack.c.l.b16 %v5239
    %v6684 = vunpack.c.h.b16 %v5239
    %v6685 = vunpack.c.l.b16 %v5240
    %v6686 = vunpack.c.h.b16 %v5240
    %v6687 = vunpack.c.l.b16 %v5241
    %v6688 = vunpack.c.h.b16 %v5241
    %v6689 = vunpack.c.l.b16 %v5242
    %v6690 = vunpack.c.h.b16 %v5242
    %v6691 = vunpack.c.l.b16 %v5243
    %v6692 = vunpack.c.h.b16 %v5243
    %v6693 = vunpack.c.l.b16 %v5244
    %v6694 = vunpack.c.h.b16 %v5244
    %v6695 = vunpack.c.l.b16 %v5245
    %v6696 = vunpack.c.h.b16 %v5245
    %v6697 = vunpack.c.l.b16 %v5246
    %v6698 = vunpack.c.h.b16 %v5246
    %v6699 = vunpack.c.l.b16 %v5247
    %v6700 = vunpack.c.h.b16 %v5247
    %v6701 = vunpack.c.l.b16 %v5248
    %v6702 = vunpack.c.h.b16 %v5248
    %v6703 = vunpack.c.l.b16 %v5249
    %v6704 = vunpack.c.h.b16 %v5249
    %v6705 = vunpack.c.l.b16 %v5250
    %v6706 = vunpack.c.h.b16 %v5250
    %v6707 = vunpack.c.l.b16 %v5251
    %v6708 = vunpack.c.h.b16 %v5251
    %v6709 = vunpack.c.l.b16 %v5252
    %v6710 = vunpack.c.h.b16 %v5252
    %v6711 = vunpack.c.l.b16 %v5253
    %v6712 = vunpack.c.h.b16 %v5253
    %v6713 = vunpack.c.l.b16 %v5254
    %v6714 = vunpack.c.h.b16 %v5254
    %v6715 = vunpack.c.l.b16 %v5255
    %v6716 = vunpack.c.h.b16 %v5255
    %v6717 = vunpack.c.l.b16 %v5256
    %v6718 = vunpack.c.h.b16 %v5256
    %v6719 = vunpack.c.l.b16 %v5257
    %v6720 = vunpack.c.h.b16 %v5257
    %v6721 = vunpack.c.l.b16 %v5258
    %v6722 = vunpack.c.h.b16 %v5258
    %v6723 = vunpack.c.l.b16 %v5259
    %v6724 = vunpack.c.h.b16 %v5259
    %v6725 = vunpack.c.l.b16 %v5260
    %v6726 = vunpack.c.h.b16 %v5260
    %v6727 = vunpack.c.l.b16 %v5261
    %v6728 = vunpack.c.h.b16 %v5261
    %v6729 = vunpack.c.l.b16 %v5262
    %v6730 = vunpack.c.h.b16 %v5262
    %v6731 = vunpack.c.l.b16 %v5263
    %v6732 = vunpack.c.h.b16 %v5263
    %v6733 = vunpack.c.l.b16 %v5264
    %v6734 = vunpack.c.h.b16 %v5264
    %v6735 = vunpack.c.l.b16 %v5265
    %v6736 = vunpack.c.h.b16 %v5265
    %v6737 = vunpack.c.l.b16 %v5266
    %v6738 = vunpack.c.h.b16 %v5266
    %v6739 = vunpack.c.l.b16 %v5267
    %v6740 = vunpack.c.h.b16 %v5267
    %v6741 = vunpack.c.l.b16 %v5268
    %v6742 = vunpack.c.h.b16 %v5268
    %v6743 = vunpack.c.l.b16 %v5269
    %v6744 = vunpack.c.h.b16 %v5269
    %v6745 = vunpack.c.l.b16 %v5270
    %v6746 = vunpack.c.h.b16 %v5270
    %v6747 = vunpack.c.l.b16 %v5271
    %v6748 = vunpack.c.h.b16 %v5271
    %v6749 = vunpack.c.l.b16 %v5272
    %v6750 = vunpack.c.h.b16 %v5272
    %v6751 = vunpack.c.l.b16 %v5273
    %v6752 = vunpack.c.h.b16 %v5273
    %v6753 = vunpack.c.l.b16 %v5274
    %v6754 = vunpack.c.h.b16 %v5274
    %v6755 = vunpack.c.l.b16 %v5275
    %v6756 = vunpack.c.h.b16 %v5275
    %v6757 = vunpack.c.l.b16 %v5276
    %v6758 = vunpack.c.h.b16 %v5276
    %v6759 = vunpack.c.l.b16 %v5277
    %v6760 = vunpack.c.h.b16 %v5277
    %v6761 = vunpack.c.l.b16 %v5278
    %v6762 = vunpack.c.h.b16 %v5278
    %v6763 = vunpack.c.l.b16 %v5279
    %v6764 = vunpack.c.h.b16 %v5279
    %v6765 = vunpack.c.l.b16 %v5280
    %v6766 = vunpack.c.h.b16 %v5280
    %v6767 = vunpack.c.l.b16 %v5281
    %v6768 = vunpack.c.h.b16 %v5281
    %v6769 = vunpack.c.l.b16 %v5282
    %v6770 = vunpack.c.h.b16 %v5282
    %v6771 = vunpack.c.l.b16 %v5283
    %v6772 = vunpack.c.h.b16 %v5283
    %v6773 = vunpack.c.l.b16 %v5284
    %v6774 = vunpack.c.h.b16 %v5284
    %v6775 = vunpack.c.l.b16 %v5285
    %v6776 = vunpack.c.h.b16 %v5285
    %v6777 = vunpack.c.l.b16 %v5286
    %v6778 = vunpack.c.h.b16 %v5286
    %v6779 = vunpack.c.l.b16 %v5287
    %v6780 = vunpack.c.h.b16 %v5287
    %v6781 = vunpack.c.l.b16 %v5288
    %v6782 = vunpack.c.h.b16 %v5288
    %v6783 = vunpack.c.l.b16 %v5289
    %v6784 = vunpack.c.h.b16 %v5289
    %v6785 = vunpack.c.l.b16 %v5290
    %v6786 = vunpack.c.h.b16 %v5290
    %v6787 = vunpack.c.l.b16 %v5291
    %v6788 = vunpack.c.h.b16 %v5291
    %v6789 = vunpack.c.l.b16 %v5292
    %v6790 = vunpack.c.h.b16 %v5292
    %v6791 = vunpack.c.l.b16 %v5293
    %v6792 = vunpack.c.h.b16 %v5293
    %v6793 = vunpack.c.l.b16 %v5294
    %v6794 = vunpack.c.h.b16 %v5294
    %v6795 = vunpack.c.l.b16 %v5295
    %v6796 = vunpack.c.h.b16 %v5295
    %v6797 = vunpack.c.l.b16 %v5296
    %v6798 = vunpack.c.h.b16 %v5296
    %v6799 = vunpack.c.l.b16 %v5297
    %v6800 = vunpack.c.h.b16 %v5297
    %v6801 = vunpack.c.l.b16 %v5298
    %v6802 = vunpack.c.h.b16 %v5298
    %v6803 = vunpack.c.l.b16 %v5299
    %v6804 = vunpack.c.h.b16 %v5299
    %v6805 = vunpack.c.l.b16 %v5300
    %v6806 = vunpack.c.h.b16 %v5300
    %v6807 = vunpack.c.l.b16 %v5301
    %v6808 = vunpack.c.h.b16 %v5301
    %v6809 = vunpack.c.l.b16 %v5302
    %v6810 = vunpack.c.h.b16 %v5302
    %v6811 = vunpack.c.l.b16 %v5303
    %v6812 = vunpack.c.h.b16 %v5303
    %v6813 = vunpack.c.l.b16 %v5304
    %v6814 = vunpack.c.h.b16 %v5304
    %v6815 = vunpack.c.l.b16 %v5305
    %v6816 = vunpack.c.h.b16 %v5305
    %v6817 = vunpack.c.l.b16 %v5306
    %v6818 = vunpack.c.h.b16 %v5306
    %v6819 = vunpack.c.l.b16 %v5307
    %v6820 = vunpack.c.h.b16 %v5307
    %v6821 = vunpack.c.l.b16 %v5308
    %v6822 = vunpack.c.h.b16 %v5308
    %v6823 = vunpack.c.l.b16 %v5309
    %v6824 = vunpack.c.h.b16 %v5309
    %v6825 = vunpack.c.l.b16 %v5310
    %v6826 = vunpack.c.h.b16 %v5310
    %v6827 = vunpack.c.l.b16 %v5311
    %v6828 = vunpack.c.h.b16 %v5311
    %v6829 = vunpack.c.l.b16 %v5312
    %v6830 = vunpack.c.h.b16 %v5312
    %v6831 = vunpack.c.l.b16 %v5313
    %v6832 = vunpack.c.h.b16 %v5313
    %v6833 = vunpack.c.l.b16 %v5314
    %v6834 = vunpack.c.h.b16 %v5314
    %v6835 = vunpack.c.l.b16 %v5315
    %v6836 = vunpack.c.h.b16 %v5315
    %v6837 = vunpack.c.l.b16 %v5316
    %v6838 = vunpack.c.h.b16 %v5316
    %v6839 = vunpack.c.l.b16 %v5317
    %v6840 = vunpack.c.h.b16 %v5317
    %v6841 = vunpack.c.l.b16 %v5318
    %v6842 = vunpack.c.h.b16 %v5318
    %v6843 = vunpack.c.l.b16 %v5319
    %v6844 = vunpack.c.h.b16 %v5319
    %v6845 = vunpack.c.l.b16 %v5320
    %v6846 = vunpack.c.h.b16 %v5320
    %v6847 = vunpack.c.l.b16 %v5321
    %v6848 = vunpack.c.h.b16 %v5321
    %v6849 = vunpack.c.l.b16 %v5322
    %v6850 = vunpack.c.h.b16 %v5322
    %v6851 = vunpack.c.l.b16 %v5323
    %v6852 = vunpack.c.h.b16 %v5323
    %v6853 = vunpack.c.l.b16 %v5324
    %v6854 = vunpack.c.h.b16 %v5324
    %v6855 = vunpack.c.l.b16 %v5325
    %v6856 = vunpack.c.h.b16 %v5325
    %v6857 = vunpack.c.l.b16 %v5326
    %v6858 = vunpack.c.h.b16 %v5326
    %v6859 = vunpack.c.l.b16 %v5327
    %v6860 = vunpack.c.h.b16 %v5327
    %v6861 = vunpack.c.l.b16 %v5328
    %v6862 = vunpack.c.h.b16 %v5328
    %v6863 = vunpack.c.l.b16 %v5329
    %v6864 = vunpack.c.h.b16 %v5329
    %v6865 = vunpack.c.l.b16 %v5330
    %v6866 = vunpack.c.h.b16 %v5330
    %v6867 = vunpack.c.l.b16 %v5331
    %v6868 = vunpack.c.h.b16 %v5331
    %v6869 = vpack.c.b16 %v5853, %v5845
    %v6870 = vpack.c.b16 %v5854, %v5846
    %v6871 = vpack.c.b16 %v5855, %v5847
    %v6872 = vpack.c.b16 %v5856, %v5848
    %v6873 = vpack.c.b16 %v5857, %v5849
    %v6874 = vpack.c.b16 %v5858, %v5850
    %v6875 = vpack.c.b16 %v5859, %v5851
    %v6876 = vpack.c.b16 %v5860, %v5852
    %v6877 = vpack.c.b16 %v5869, %v5861
    %v6878 = vpack.c.b16 %v5870, %v5862
    %v6879 = vpack.c.b16 %v5871, %v5863
    %v6880 = vpack.c.b16 %v5872, %v5864
    %v6881 = vpack.c.b16 %v5873, %v5865
    %v6882 = vpack.c.b16 %v5874, %v5866
    %v6883 = vpack.c.b16 %v5875, %v5867
    %v6884 = vpack.c.b16 %v5876, %v5868
    %v6885 = vpack.c.b16 %v5885, %v5877
    %v6886 = vpack.c.b16 %v5886, %v5878
    %v6887 = vpack.c.b16 %v5887, %v5879
    %v6888 = vpack.c.b16 %v5888, %v5880
    %v6889 = vpack.c.b16 %v5889, %v5881
    %v6890 = vpack.c.b16 %v5890, %v5882
    %v6891 = vpack.c.b16 %v5891, %v5883
    %v6892 = vpack.c.b16 %v5892, %v5884
    %v6893 = vpack.c.b16 %v5901, %v5893
    %v6894 = vpack.c.b16 %v5902, %v5894
    %v6895 = vpack.c.b16 %v5903, %v5895
    %v6896 = vpack.c.b16 %v5904, %v5896
    %v6897 = vpack.c.b16 %v5905, %v5897
    %v6898 = vpack.c.b16 %v5906, %v5898
    %v6899 = vpack.c.b16 %v5907, %v5899
    %v6900 = vpack.c.b16 %v5908, %v5900
    %v6901 = vpack.c.b16 %v5917, %v5909
    %v6902 = vpack.c.b16 %v5918, %v5910
    %v6903 = vpack.c.b16 %v5919, %v5911
    %v6904 = vpack.c.b16 %v5920, %v5912
    %v6905 = vpack.c.b16 %v5921, %v5913
    %v6906 = vpack.c.b16 %v5922, %v5914
    %v6907 = vpack.c.b16 %v5923, %v5915
    %v6908 = vpack.c.b16 %v5924, %v5916
    %v6909 = vpack.c.b16 %v5933, %v5925
    %v6910 = vpack.c.b16 %v5934, %v5926
    %v6911 = vpack.c.b16 %v5935, %v5927
    %v6912 = vpack.c.b16 %v5936, %v5928
    %v6913 = vpack.c.b16 %v5937, %v5929
    %v6914 = vpack.c.b16 %v5938, %v5930
    %v6915 = vpack.c.b16 %v5939, %v5931
    %v6916 = vpack.c.b16 %v5940, %v5932
    %v6917 = vpack.c.b16 %v5949, %v5941
    %v6918 = vpack.c.b16 %v5950, %v5942
    %v6919 = vpack.c.b16 %v5951, %v5943
    %v6920 = vpack.c.b16 %v5952, %v5944
    %v6921 = vpack.c.b16 %v5953, %v5945
    %v6922 = vpack.c.b16 %v5954, %v5946
    %v6923 = vpack.c.b16 %v5955, %v5947
    %v6924 = vpack.c.b16 %v5956, %v5948
    %v6925 = vpack.c.b16 %v5965, %v5957
    %v6926 = vpack.c.b16 %v5966, %v5958
    %v6927 = vpack.c.b16 %v5967, %v5959
    %v6928 = vpack.c.b16 %v5968, %v5960
    %v6929 = vpack.c.b16 %v5969, %v5961
    %v6930 = vpack.c.b16 %v5970, %v5962
    %v6931 = vpack.c.b16 %v5971, %v5963
    %v6932 = vpack.c.b16 %v5972, %v5964
    %v6933 = vpack.c.b16 %v5981, %v5973
    %v6934 = vpack.c.b16 %v5982, %v5974
    %v6935 = vpack.c.b16 %v5983, %v5975
    %v6936 = vpack.c.b16 %v5984, %v5976
    %v6937 = vpack.c.b16 %v5985, %v5977
    %v6938 = vpack.c.b16 %v5986, %v5978
    %v6939 = vpack.c.b16 %v5987, %v5979
    %v6940 = vpack.c.b16 %v5988, %v5980
    %v6941 = vpack.c.b16 %v5997, %v5989
    %v6942 = vpack.c.b16 %v5998, %v5990
    %v6943 = vpack.c.b16 %v5999, %v5991
    %v6944 = vpack.c.b16 %v6000, %v5992
    %v6945 = vpack.c.b16 %v6001, %v5993
    %v6946 = vpack.c.b16 %v6002, %v5994
    %v6947 = vpack.c.b16 %v6003, %v5995
    %v6948 = vpack.c.b16 %v6004, %v5996
    %v6949 = vpack.c.b16 %v6013, %v6005
    %v6950 = vpack.c.b16 %v6014, %v6006
    %v6951 = vpack.c.b16 %v6015, %v6007
    %v6952 = vpack.c.b16 %v6016, %v6008
    %v6953 = vpack.c.b16 %v6017, %v6009
    %v6954 = vpack.c.b16 %v6018, %v6010
    %v6955 = vpack.c.b16 %v6019, %v6011
    %v6956 = vpack.c.b16 %v6020, %v6012
    %v6957 = vpack.c.b16 %v6029, %v6021
    %v6958 = vpack.c.b16 %v6030, %v6022
    %v6959 = vpack.c.b16 %v6031, %v6023
    %v6960 = vpack.c.b16 %v6032, %v6024
    %v6961 = vpack.c.b16 %v6033, %v6025
    %v6962 = vpack.c.b16 %v6034, %v6026
    %v6963 = vpack.c.b16 %v6035, %v6027
    %v6964 = vpack.c.b16 %v6036, %v6028
    %v6965 = vpack.c.b16 %v6045, %v6037
    %v6966 = vpack.c.b16 %v6046, %v6038
    %v6967 = vpack.c.b16 %v6047, %v6039
    %v6968 = vpack.c.b16 %v6048, %v6040
    %v6969 = vpack.c.b16 %v6049, %v6041
    %v6970 = vpack.c.b16 %v6050, %v6042
    %v6971 = vpack.c.b16 %v6051, %v6043
    %v6972 = vpack.c.b16 %v6052, %v6044
    %v6973 = vpack.c.b16 %v6061, %v6053
    %v6974 = vpack.c.b16 %v6062, %v6054
    %v6975 = vpack.c.b16 %v6063, %v6055
    %v6976 = vpack.c.b16 %v6064, %v6056
    %v6977 = vpack.c.b16 %v6065, %v6057
    %v6978 = vpack.c.b16 %v6066, %v6058
    %v6979 = vpack.c.b16 %v6067, %v6059
    %v6980 = vpack.c.b16 %v6068, %v6060
    %v6981 = vpack.c.b16 %v6077, %v6069
    %v6982 = vpack.c.b16 %v6078, %v6070
    %v6983 = vpack.c.b16 %v6079, %v6071
    %v6984 = vpack.c.b16 %v6080, %v6072
    %v6985 = vpack.c.b16 %v6081, %v6073
    %v6986 = vpack.c.b16 %v6082, %v6074
    %v6987 = vpack.c.b16 %v6083, %v6075
    %v6988 = vpack.c.b16 %v6084, %v6076
    %v6989 = vpack.c.b16 %v6093, %v6085
    %v6990 = vpack.c.b16 %v6094, %v6086
    %v6991 = vpack.c.b16 %v6095, %v6087
    %v6992 = vpack.c.b16 %v6096, %v6088
    %v6993 = vpack.c.b16 %v6097, %v6089
    %v6994 = vpack.c.b16 %v6098, %v6090
    %v6995 = vpack.c.b16 %v6099, %v6091
    %v6996 = vpack.c.b16 %v6100, %v6092
    %v6997 = vpack.c.b16 %v6109, %v6101
    %v6998 = vpack.c.b16 %v6110, %v6102
    %v6999 = vpack.c.b16 %v6111, %v6103
    %v7000 = vpack.c.b16 %v6112, %v6104
    %v7001 = vpack.c.b16 %v6113, %v6105
    %v7002 = vpack.c.b16 %v6114, %v6106
    %v7003 = vpack.c.b16 %v6115, %v6107
    %v7004 = vpack.c.b16 %v6116, %v6108
    %v7005 = vpack.c.b16 %v6125, %v6117
    %v7006 = vpack.c.b16 %v6126, %v6118
    %v7007 = vpack.c.b16 %v6127, %v6119
    %v7008 = vpack.c.b16 %v6128, %v6120
    %v7009 = vpack.c.b16 %v6129, %v6121
    %v7010 = vpack.c.b16 %v6130, %v6122
    %v7011 = vpack.c.b16 %v6131, %v6123
    %v7012 = vpack.c.b16 %v6132, %v6124
    %v7013 = vpack.c.b16 %v6141, %v6133
    %v7014 = vpack.c.b16 %v6142, %v6134
    %v7015 = vpack.c.b16 %v6143, %v6135
    %v7016 = vpack.c.b16 %v6144, %v6136
    %v7017 = vpack.c.b16 %v6145, %v6137
    %v7018 = vpack.c.b16 %v6146, %v6138
    %v7019 = vpack.c.b16 %v6147, %v6139
    %v7020 = vpack.c.b16 %v6148, %v6140
    %v7021 = vpack.c.b16 %v6157, %v6149
    %v7022 = vpack.c.b16 %v6158, %v6150
    %v7023 = vpack.c.b16 %v6159, %v6151
    %v7024 = vpack.c.b16 %v6160, %v6152
    %v7025 = vpack.c.b16 %v6161, %v6153
    %v7026 = vpack.c.b16 %v6162, %v6154
    %v7027 = vpack.c.b16 %v6163, %v6155
    %v7028 = vpack.c.b16 %v6164, %v6156
    %v7029 = vpack.c.b16 %v6173, %v6165
    %v7030 = vpack.c.b16 %v6174, %v6166
    %v7031 = vpack.c.b16 %v6175, %v6167
    %v7032 = vpack.c.b16 %v6176, %v6168
    %v7033 = vpack.c.b16 %v6177, %v6169
    %v7034 = vpack.c.b16 %v6178, %v6170
    %v7035 = vpack.c.b16 %v6179, %v6171
    %v7036 = vpack.c.b16 %v6180, %v6172
    %v7037 = vpack.c.b16 %v6189, %v6181
    %v7038 = vpack.c.b16 %v6190, %v6182
    %v7039 = vpack.c.b16 %v6191, %v6183
    %v7040 = vpack.c.b16 %v6192, %v6184
    %v7041 = vpack.c.b16 %v6193, %v6185
    %v7042 = vpack.c.b16 %v6194, %v6186
    %v7043 = vpack.c.b16 %v6195, %v6187
    %v7044 = vpack.c.b16 %v6196, %v6188
    %v7045 = vpack.c.b16 %v6205, %v6197
    %v7046 = vpack.c.b16 %v6206, %v6198
    %v7047 = vpack.c.b16 %v6207, %v6199
    %v7048 = vpack.c.b16 %v6208, %v6200
    %v7049 = vpack.c.b16 %v6209, %v6201
    %v7050 = vpack.c.b16 %v6210, %v6202
    %v7051 = vpack.c.b16 %v6211, %v6203
    %v7052 = vpack.c.b16 %v6212, %v6204
    %v7053 = vpack.c.b16 %v6221, %v6213
    %v7054 = vpack.c.b16 %v6222, %v6214
    %v7055 = vpack.c.b16 %v6223, %v6215
    %v7056 = vpack.c.b16 %v6224, %v6216
    %v7057 = vpack.c.b16 %v6225, %v6217
    %v7058 = vpack.c.b16 %v6226, %v6218
    %v7059 = vpack.c.b16 %v6227, %v6219
    %v7060 = vpack.c.b16 %v6228, %v6220
    %v7061 = vpack.c.b16 %v6237, %v6229
    %v7062 = vpack.c.b16 %v6238, %v6230
    %v7063 = vpack.c.b16 %v6239, %v6231
    %v7064 = vpack.c.b16 %v6240, %v6232
    %v7065 = vpack.c.b16 %v6241, %v6233
    %v7066 = vpack.c.b16 %v6242, %v6234
    %v7067 = vpack.c.b16 %v6243, %v6235
    %v7068 = vpack.c.b16 %v6244, %v6236
    %v7069 = vpack.c.b16 %v6253, %v6245
    %v7070 = vpack.c.b16 %v6254, %v6246
    %v7071 = vpack.c.b16 %v6255, %v6247
    %v7072 = vpack.c.b16 %v6256, %v6248
    %v7073 = vpack.c.b16 %v6257, %v6249
    %v7074 = vpack.c.b16 %v6258, %v6250
    %v7075 = vpack.c.b16 %v6259, %v6251
    %v7076 = vpack.c.b16 %v6260, %v6252
    %v7077 = vpack.c.b16 %v6269, %v6261
    %v7078 = vpack.c.b16 %v6270, %v6262
    %v7079 = vpack.c.b16 %v6271, %v6263
    %v7080 = vpack.c.b16 %v6272, %v6264
    %v7081 = vpack.c.b16 %v6273, %v6265
    %v7082 = vpack.c.b16 %v6274, %v6266
    %v7083 = vpack.c.b16 %v6275, %v6267
    %v7084 = vpack.c.b16 %v6276, %v6268
    %v7085 = vpack.c.b16 %v6285, %v6277
    %v7086 = vpack.c.b16 %v6286, %v6278
    %v7087 = vpack.c.b16 %v6287, %v6279
    %v7088 = vpack.c.b16 %v6288, %v6280
    %v7089 = vpack.c.b16 %v6289, %v6281
    %v7090 = vpack.c.b16 %v6290, %v6282
    %v7091 = vpack.c.b16 %v6291, %v6283
    %v7092 = vpack.c.b16 %v6292, %v6284
    %v7093 = vpack.c.b16 %v6301, %v6293
    %v7094 = vpack.c.b16 %v6302, %v6294
    %v7095 = vpack.c.b16 %v6303, %v6295
    %v7096 = vpack.c.b16 %v6304, %v6296
    %v7097 = vpack.c.b16 %v6305, %v6297
    %v7098 = vpack.c.b16 %v6306, %v6298
    %v7099 = vpack.c.b16 %v6307, %v6299
    %v7100 = vpack.c.b16 %v6308, %v6300
    %v7101 = vpack.c.b16 %v6317, %v6309
    %v7102 = vpack.c.b16 %v6318, %v6310
    %v7103 = vpack.c.b16 %v6319, %v6311
    %v7104 = vpack.c.b16 %v6320, %v6312
    %v7105 = vpack.c.b16 %v6321, %v6313
    %v7106 = vpack.c.b16 %v6322, %v6314
    %v7107 = vpack.c.b16 %v6323, %v6315
    %v7108 = vpack.c.b16 %v6324, %v6316
    %v7109 = vpack.c.b16 %v6333, %v6325
    %v7110 = vpack.c.b16 %v6334, %v6326
    %v7111 = vpack.c.b16 %v6335, %v6327
    %v7112 = vpack.c.b16 %v6336, %v6328
    %v7113 = vpack.c.b16 %v6337, %v6329
    %v7114 = vpack.c.b16 %v6338, %v6330
    %v7115 = vpack.c.b16 %v6339, %v6331
    %v7116 = vpack.c.b16 %v6340, %v6332
    %v7117 = vpack.c.b16 %v6349, %v6341
    %v7118 = vpack.c.b16 %v6350, %v6342
    %v7119 = vpack.c.b16 %v6351, %v6343
    %v7120 = vpack.c.b16 %v6352, %v6344
    %v7121 = vpack.c.b16 %v6353, %v6345
    %v7122 = vpack.c.b16 %v6354, %v6346
    %v7123 = vpack.c.b16 %v6355, %v6347
    %v7124 = vpack.c.b16 %v6356, %v6348
    %v7125 = vpack.c.b16 %v6365, %v6357
    %v7126 = vpack.c.b16 %v6366, %v6358
    %v7127 = vpack.c.b16 %v6367, %v6359
    %v7128 = vpack.c.b16 %v6368, %v6360
    %v7129 = vpack.c.b16 %v6369, %v6361
    %v7130 = vpack.c.b16 %v6370, %v6362
    %v7131 = vpack.c.b16 %v6371, %v6363
    %v7132 = vpack.c.b16 %v6372, %v6364
    %v7133 = vpack.c.b16 %v6381, %v6373
    %v7134 = vpack.c.b16 %v6382, %v6374
    %v7135 = vpack.c.b16 %v6383, %v6375
    %v7136 = vpack.c.b16 %v6384, %v6376
    %v7137 = vpack.c.b16 %v6385, %v6377
    %v7138 = vpack.c.b16 %v6386, %v6378
    %v7139 = vpack.c.b16 %v6387, %v6379
    %v7140 = vpack.c.b16 %v6388, %v6380
    %v7141 = vpack.c.b16 %v6397, %v6389
    %v7142 = vpack.c.b16 %v6398, %v6390
    %v7143 = vpack.c.b16 %v6399, %v6391
    %v7144 = vpack.c.b16 %v6400, %v6392
    %v7145 = vpack.c.b16 %v6401, %v6393
    %v7146 = vpack.c.b16 %v6402, %v6394
    %v7147 = vpack.c.b16 %v6403, %v6395
    %v7148 = vpack.c.b16 %v6404, %v6396
    %v7149 = vpack.c.b16 %v6413, %v6405
    %v7150 = vpack.c.b16 %v6414, %v6406
    %v7151 = vpack.c.b16 %v6415, %v6407
    %v7152 = vpack.c.b16 %v6416, %v6408
    %v7153 = vpack.c.b16 %v6417, %v6409
    %v7154 = vpack.c.b16 %v6418, %v6410
    %v7155 = vpack.c.b16 %v6419, %v6411
    %v7156 = vpack.c.b16 %v6420, %v6412
    %v7157 = vpack.c.b16 %v6429, %v6421
    %v7158 = vpack.c.b16 %v6430, %v6422
    %v7159 = vpack.c.b16 %v6431, %v6423
    %v7160 = vpack.c.b16 %v6432, %v6424
    %v7161 = vpack.c.b16 %v6433, %v6425
    %v7162 = vpack.c.b16 %v6434, %v6426
    %v7163 = vpack.c.b16 %v6435, %v6427
    %v7164 = vpack.c.b16 %v6436, %v6428
    %v7165 = vpack.c.b16 %v6445, %v6437
    %v7166 = vpack.c.b16 %v6446, %v6438
    %v7167 = vpack.c.b16 %v6447, %v6439
    %v7168 = vpack.c.b16 %v6448, %v6440
    %v7169 = vpack.c.b16 %v6449, %v6441
    %v7170 = vpack.c.b16 %v6450, %v6442
    %v7171 = vpack.c.b16 %v6451, %v6443
    %v7172 = vpack.c.b16 %v6452, %v6444
    %v7173 = vpack.c.b16 %v6461, %v6453
    %v7174 = vpack.c.b16 %v6462, %v6454
    %v7175 = vpack.c.b16 %v6463, %v6455
    %v7176 = vpack.c.b16 %v6464, %v6456
    %v7177 = vpack.c.b16 %v6465, %v6457
    %v7178 = vpack.c.b16 %v6466, %v6458
    %v7179 = vpack.c.b16 %v6467, %v6459
    %v7180 = vpack.c.b16 %v6468, %v6460
    %v7181 = vpack.c.b16 %v6477, %v6469
    %v7182 = vpack.c.b16 %v6478, %v6470
    %v7183 = vpack.c.b16 %v6479, %v6471
    %v7184 = vpack.c.b16 %v6480, %v6472
    %v7185 = vpack.c.b16 %v6481, %v6473
    %v7186 = vpack.c.b16 %v6482, %v6474
    %v7187 = vpack.c.b16 %v6483, %v6475
    %v7188 = vpack.c.b16 %v6484, %v6476
    %v7189 = vpack.c.b16 %v6493, %v6485
    %v7190 = vpack.c.b16 %v6494, %v6486
    %v7191 = vpack.c.b16 %v6495, %v6487
    %v7192 = vpack.c.b16 %v6496, %v6488
    %v7193 = vpack.c.b16 %v6497, %v6489
    %v7194 = vpack.c.b16 %v6498, %v6490
    %v7195 = vpack.c.b16 %v6499, %v6491
    %v7196 = vpack.c.b16 %v6500, %v6492
    %v7197 = vpack.c.b16 %v6509, %v6501
    %v7198 = vpack.c.b16 %v6510, %v6502
    %v7199 = vpack.c.b16 %v6511, %v6503
    %v7200 = vpack.c.b16 %v6512, %v6504
    %v7201 = vpack.c.b16 %v6513, %v6505
    %v7202 = vpack.c.b16 %v6514, %v6506
    %v7203 = vpack.c.b16 %v6515, %v6507
    %v7204 = vpack.c.b16 %v6516, %v6508
    %v7205 = vpack.c.b16 %v6525, %v6517
    %v7206 = vpack.c.b16 %v6526, %v6518
    %v7207 = vpack.c.b16 %v6527, %v6519
    %v7208 = vpack.c.b16 %v6528, %v6520
    %v7209 = vpack.c.b16 %v6529, %v6521
    %v7210 = vpack.c.b16 %v6530, %v6522
    %v7211 = vpack.c.b16 %v6531, %v6523
    %v7212 = vpack.c.b16 %v6532, %v6524
    %v7213 = vpack.c.b16 %v6541, %v6533
    %v7214 = vpack.c.b16 %v6542, %v6534
    %v7215 = vpack.c.b16 %v6543, %v6535
    %v7216 = vpack.c.b16 %v6544, %v6536
    %v7217 = vpack.c.b16 %v6545, %v6537
    %v7218 = vpack.c.b16 %v6546, %v6538
    %v7219 = vpack.c.b16 %v6547, %v6539
    %v7220 = vpack.c.b16 %v6548, %v6540
    %v7221 = vpack.c.b16 %v6557, %v6549
    %v7222 = vpack.c.b16 %v6558, %v6550
    %v7223 = vpack.c.b16 %v6559, %v6551
    %v7224 = vpack.c.b16 %v6560, %v6552
    %v7225 = vpack.c.b16 %v6561, %v6553
    %v7226 = vpack.c.b16 %v6562, %v6554
    %v7227 = vpack.c.b16 %v6563, %v6555
    %v7228 = vpack.c.b16 %v6564, %v6556
    %v7229 = vpack.c.b16 %v6573, %v6565
    %v7230 = vpack.c.b16 %v6574, %v6566
    %v7231 = vpack.c.b16 %v6575, %v6567
    %v7232 = vpack.c.b16 %v6576, %v6568
    %v7233 = vpack.c.b16 %v6577, %v6569
    %v7234 = vpack.c.b16 %v6578, %v6570
    %v7235 = vpack.c.b16 %v6579, %v6571
    %v7236 = vpack.c.b16 %v6580, %v6572
    %v7237 = vpack.c.b16 %v6589, %v6581
    %v7238 = vpack.c.b16 %v6590, %v6582
    %v7239 = vpack.c.b16 %v6591, %v6583
    %v7240 = vpack.c.b16 %v6592, %v6584
    %v7241 = vpack.c.b16 %v6593, %v6585
    %v7242 = vpack.c.b16 %v6594, %v6586
    %v7243 = vpack.c.b16 %v6595, %v6587
    %v7244 = vpack.c.b16 %v6596, %v6588
    %v7245 = vpack.c.b16 %v6605, %v6597
    %v7246 = vpack.c.b16 %v6606, %v6598
    %v7247 = vpack.c.b16 %v6607, %v6599
    %v7248 = vpack.c.b16 %v6608, %v6600
    %v7249 = vpack.c.b16 %v6609, %v6601
    %v7250 = vpack.c.b16 %v6610, %v6602
    %v7251 = vpack.c.b16 %v6611, %v6603
    %v7252 = vpack.c.b16 %v6612, %v6604
    %v7253 = vpack.c.b16 %v6621, %v6613
    %v7254 = vpack.c.b16 %v6622, %v6614
    %v7255 = vpack.c.b16 %v6623, %v6615
    %v7256 = vpack.c.b16 %v6624, %v6616
    %v7257 = vpack.c.b16 %v6625, %v6617
    %v7258 = vpack.c.b16 %v6626, %v6618
    %v7259 = vpack.c.b16 %v6627, %v6619
    %v7260 = vpack.c.b16 %v6628, %v6620
    %v7261 = vpack.c.b16 %v6637, %v6629
    %v7262 = vpack.c.b16 %v6638, %v6630
    %v7263 = vpack.c.b16 %v6639, %v6631
    %v7264 = vpack.c.b16 %v6640, %v6632
    %v7265 = vpack.c.b16 %v6641, %v6633
    %v7266 = vpack.c.b16 %v6642, %v6634
    %v7267 = vpack.c.b16 %v6643, %v6635
    %v7268 = vpack.c.b16 %v6644, %v6636
    %v7269 = vpack.c.b16 %v6653, %v6645
    %v7270 = vpack.c.b16 %v6654, %v6646
    %v7271 = vpack.c.b16 %v6655, %v6647
    %v7272 = vpack.c.b16 %v6656, %v6648
    %v7273 = vpack.c.b16 %v6657, %v6649
    %v7274 = vpack.c.b16 %v6658, %v6650
    %v7275 = vpack.c.b16 %v6659, %v6651
    %v7276 = vpack.c.b16 %v6660, %v6652
    %v7277 = vpack.c.b16 %v6669, %v6661
    %v7278 = vpack.c.b16 %v6670, %v6662
    %v7279 = vpack.c.b16 %v6671, %v6663
    %v7280 = vpack.c.b16 %v6672, %v6664
    %v7281 = vpack.c.b16 %v6673, %v6665
    %v7282 = vpack.c.b16 %v6674, %v6666
    %v7283 = vpack.c.b16 %v6675, %v6667
    %v7284 = vpack.c.b16 %v6676, %v6668
    %v7285 = vpack.c.b16 %v6685, %v6677
    %v7286 = vpack.c.b16 %v6686, %v6678
    %v7287 = vpack.c.b16 %v6687, %v6679
    %v7288 = vpack.c.b16 %v6688, %v6680
    %v7289 = vpack.c.b16 %v6689, %v6681
    %v7290 = vpack.c.b16 %v6690, %v6682
    %v7291 = vpack.c.b16 %v6691, %v6683
    %v7292 = vpack.c.b16 %v6692, %v6684
    %v7293 = vpack.c.b16 %v6701, %v6693
    %v7294 = vpack.c.b16 %v6702, %v6694
    %v7295 = vpack.c.b16 %v6703, %v6695
    %v7296 = vpack.c.b16 %v6704, %v6696
    %v7297 = vpack.c.b16 %v6705, %v6697
    %v7298 = vpack.c.b16 %v6706, %v6698
    %v7299 = vpack.c.b16 %v6707, %v6699
    %v7300 = vpack.c.b16 %v6708, %v6700
    %v7301 = vpack.c.b16 %v6717, %v6709
    %v7302 = vpack.c.b16 %v6718, %v6710
    %v7303 = vpack.c.b16 %v6719, %v6711
    %v7304 = vpack.c.b16 %v6720, %v6712
    %v7305 = vpack.c.b16 %v6721, %v6713
    %v7306 = vpack.c.b16 %v6722, %v6714
    %v7307 = vpack.c.b16 %v6723, %v6715
    %v7308 = vpack.c.b16 %v6724, %v6716
    %v7309 = vpack.c.b16 %v6733, %v6725
    %v7310 = vpack.c.b16 %v6734, %v6726
    %v7311 = vpack.c.b16 %v6735, %v6727
    %v7312 = vpack.c.b16 %v6736, %v6728
    %v7313 = vpack.c.b16 %v6737, %v6729
    %v7314 = vpack.c.b16 %v6738, %v6730
    %v7315 = vpack.c.b16 %v6739, %v6731
    %v7316 = vpack.c.b16 %v6740, %v6732
    %v7317 = vpack.c.b16 %v6749, %v6741
    %v7318 = vpack.c.b16 %v6750, %v6742
    %v7319 = vpack.c.b16 %v6751, %v6743
    %v7320 = vpack.c.b16 %v6752, %v6744
    %v7321 = vpack.c.b16 %v6753, %v6745
    %v7322 = vpack.c.b16 %v6754, %v6746
    %v7323 = vpack.c.b16 %v6755, %v6747
    %v7324 = vpack.c.b16 %v6756, %v6748
    %v7325 = vpack.c.b16 %v6765, %v6757
    %v7326 = vpack.c.b16 %v6766, %v6758
    %v7327 = vpack.c.b16 %v6767, %v6759
    %v7328 = vpack.c.b16 %v6768, %v6760
    %v7329 = vpack.c.b16 %v6769, %v6761
    %v7330 = vpack.c.b16 %v6770, %v6762
    %v7331 = vpack.c.b16 %v6771, %v6763
    %v7332 = vpack.c.b16 %v6772, %v6764
    %v7333 = vpack.c.b16 %v6781, %v6773
    %v7334 = vpack.c.b16 %v6782, %v6774
    %v7335 = vpack.c.b16 %v6783, %v6775
    %v7336 = vpack.c.b16 %v6784, %v6776
    %v7337 = vpack.c.b16 %v6785, %v6777
    %v7338 = vpack.c.b16 %v6786, %v6778
    %v7339 = vpack.c.b16 %v6787, %v6779
    %v7340 = vpack.c.b16 %v6788, %v6780
    %v7341 = vpack.c.b16 %v6797, %v6789
    %v7342 = vpack.c.b16 %v6798, %v6790
    %v7343 = vpack.c.b16 %v6799, %v6791
    %v7344 = vpack.c.b16 %v6800, %v6792
    %v7345 = vpack.c.b16 %v6801, %v6793
    %v7346 = vpack.c.b16 %v6802, %v6794
    %v7347 = vpack.c.b16 %v6803, %v6795
    %v7348 = vpack.c.b16 %v6804, %v6796
    %v7349 = vpack.c.b16 %v6813, %v6805
    %v7350 = vpack.c.b16 %v6814, %v6806
    %v7351 = vpack.c.b16 %v6815, %v6807
    %v7352 = vpack.c.b16 %v6816, %v6808
    %v7353 = vpack.c.b16 %v6817, %v6809
    %v7354 = vpack.c.b16 %v6818, %v6810
    %v7355 = vpack.c.b16 %v6819, %v6811
    %v7356 = vpack.c.b16 %v6820, %v6812
    %v7357 = vpack.c.b16 %v6829, %v6821
    %v7358 = vpack.c.b16 %v6830, %v6822
    %v7359 = vpack.c.b16 %v6831, %v6823
    %v7360 = vpack.c.b16 %v6832, %v6824
    %v7361 = vpack.c.b16 %v6833, %v6825
    %v7362 = vpack.c.b16 %v6834, %v6826
    %v7363 = vpack.c.b16 %v6835, %v6827
    %v7364 = vpack.c.b16 %v6836, %v6828
    %v7365 = vpack.c.b16 %v6845, %v6837
    %v7366 = vpack.c.b16 %v6846, %v6838
    %v7367 = vpack.c.b16 %v6847, %v6839
    %v7368 = vpack.c.b16 %v6848, %v6840
    %v7369 = vpack.c.b16 %v6849, %v6841
    %v7370 = vpack.c.b16 %v6850, %v6842
    %v7371 = vpack.c.b16 %v6851, %v6843
    %v7372 = vpack.c.b16 %v6852, %v6844
    %v7373 = vpack.c.b16 %v6861, %v6853
    %v7374 = vpack.c.b16 %v6862, %v6854
    %v7375 = vpack.c.b16 %v6863, %v6855
    %v7376 = vpack.c.b16 %v6864, %v6856
    %v7377 = vpack.c.b16 %v6865, %v6857
    %v7378 = vpack.c.b16 %v6866, %v6858
    %v7379 = vpack.c.b16 %v6867, %v6859
    %v7380 = vpack.c.b16 %v6868, %v6860
    %7893 = vmatprep.subr.bf16.mxu0 %v6870
    %7894 = vmatpush1.bf16.msra.mxu0 %v6869
    %7895 = vmatprep.subr.bf16.mxu0 %v6878
    %7896 = vmatpush1.bf16.msra.mxu0 %v6877
    %7897 = vmatprep.subr.bf16.mxu0 %v6886
    %7898 = vmatpush1.bf16.msra.mxu0 %v6885
    %7899 = vmatprep.subr.bf16.mxu0 %v6894
    %7900 = vmatpush1.bf16.msra.mxu0 %v6893
    %7901 = vmatprep.subr.bf16.mxu0 %v6902
    %7902 = vmatpush1.bf16.msra.mxu0 %v6901
    %7903 = vmatprep.subr.bf16.mxu0 %v6910
    %7904 = vmatpush1.bf16.msra.mxu0 %v6909
    %7905 = vmatprep.subr.bf16.mxu0 %v6918
    %7906 = vmatpush1.bf16.msra.mxu0 %v6917
    %7907 = vmatprep.subr.bf16.mxu0 %v6926
    %7908 = vmatpush1.bf16.msra.mxu0 %v6925
    %7909 = vmatprep.subr.bf16.mxu0 %v6934
    %7910 = vmatpush1.bf16.msra.mxu0 %v6933
    %7911 = vmatprep.subr.bf16.mxu0 %v6942
    %7912 = vmatpush1.bf16.msra.mxu0 %v6941
    %7913 = vmatprep.subr.bf16.mxu0 %v6950
    %7914 = vmatpush1.bf16.msra.mxu0 %v6949
    %7915 = vmatprep.subr.bf16.mxu0 %v6958
    %7916 = vmatpush1.bf16.msra.mxu0 %v6957
    %7917 = vmatprep.subr.bf16.mxu0 %v6966
    %7918 = vmatpush1.bf16.msra.mxu0 %v6965
    %7919 = vmatprep.subr.bf16.mxu0 %v6974
    %7920 = vmatpush1.bf16.msra.mxu0 %v6973
    %7921 = vmatprep.subr.bf16.mxu0 %v6982
    %7922 = vmatpush1.bf16.msra.mxu0 %v6981
    %7923 = vmatprep.subr.bf16.mxu0 %v6990
    %7924 = vmatpush1.bf16.msra.mxu0 %v6989
    %7925 = vmatprep.mubr.bf16.mxu0 %v4813
    %7926 = vmatmul.mubr.bf16.gmra.mrb[0].mxu0 %v4812
    %v7927 = vpop.f32.mrb[0].mxu0
    %v7928 = vadd.f32 0.0, %v7927
    %v7929 = vpop.f32.mrb[0].mxu0
    %v7930 = vadd.f32 0.0, %v7929
    %v7931 = vpop.f32.mrb[0].mxu0
    %v7932 = vadd.f32 0.0, %v7931
    %v7933 = vpop.f32.mrb[0].mxu0
    %v7934 = vadd.f32 0.0, %v7933
    %7935 = vdwg.mxu0
    %7936 = vmatprep.subr.bf16.mxu0 %v6998
    %7937 = vmatpush1.bf16.msra.mxu0 %v6997
    %7938 = vmatprep.subr.bf16.mxu0 %v7006
    %7939 = vmatpush1.bf16.msra.mxu0 %v7005
    %7940 = vmatprep.subr.bf16.mxu0 %v7014
    %7941 = vmatpush1.bf16.msra.mxu0 %v7013
    %7942 = vmatprep.subr.bf16.mxu0 %v7022
    %7943 = vmatpush1.bf16.msra.mxu0 %v7021
    %7944 = vmatprep.subr.bf16.mxu0 %v7030
    %7945 = vmatpush1.bf16.msra.mxu0 %v7029
    %7946 = vmatprep.subr.bf16.mxu0 %v7038
    %7947 = vmatpush1.bf16.msra.mxu0 %v7037
    %7948 = vmatprep.subr.bf16.mxu0 %v7046
    %7949 = vmatpush1.bf16.msra.mxu0 %v7045
    %7950 = vmatprep.subr.bf16.mxu0 %v7054
    %7951 = vmatpush1.bf16.msra.mxu0 %v7053
    %7952 = vmatprep.subr.bf16.mxu0 %v7062
    %7953 = vmatpush1.bf16.msra.mxu0 %v7061
    %7954 = vmatprep.subr.bf16.mxu0 %v7070
    %7955 = vmatpush1.bf16.msra.mxu0 %v7069
    %7956 = vmatprep.subr.bf16.mxu0 %v7078
    %7957 = vmatpush1.bf16.msra.mxu0 %v7077
    %7958 = vmatprep.subr.bf16.mxu0 %v7086
    %7959 = vmatpush1.bf16.msra.mxu0 %v7085
    %7960 = vmatprep.subr.bf16.mxu0 %v7094
    %7961 = vmatpush1.bf16.msra.mxu0 %v7093
    %7962 = vmatprep.subr.bf16.mxu0 %v7102
    %7963 = vmatpush1.bf16.msra.mxu0 %v7101
    %7964 = vmatprep.subr.bf16.mxu0 %v7110
    %7965 = vmatpush1.bf16.msra.mxu0 %v7109
    %7966 = vmatprep.subr.bf16.mxu0 %v7118
    %7967 = vmatpush1.bf16.msra.mxu0 %v7117
    %7968 = vmatprep.mubr.bf16.mxu0 %v4815
    %7969 = vmatmul.mubr.bf16.gmra.mrb[0].mxu0 %v4814
    %v7970 = vpop.f32.mrb[0].mxu0
    %v7971 = vadd.f32 %v7928, %v7970
    %v7972 = vpop.f32.mrb[0].mxu0
    %v7973 = vadd.f32 %v7930, %v7972
    %v7974 = vpop.f32.mrb[0].mxu0
    %v7975 = vadd.f32 %v7932, %v7974
    %v7976 = vpop.f32.mrb[0].mxu0
    %v7977 = vadd.f32 %v7934, %v7976
    %7978 = vdwg.mxu0
    %7979 = vmatprep.subr.bf16.mxu0 %v7126
    %7980 = vmatpush1.bf16.msra.mxu0 %v7125
    %7981 = vmatprep.subr.bf16.mxu0 %v7134
    %7982 = vmatpush1.bf16.msra.mxu0 %v7133
    %7983 = vmatprep.subr.bf16.mxu0 %v7142
    %7984 = vmatpush1.bf16.msra.mxu0 %v7141
    %7985 = vmatprep.subr.bf16.mxu0 %v7150
    %7986 = vmatpush1.bf16.msra.mxu0 %v7149
    %7987 = vmatprep.subr.bf16.mxu0 %v7158
    %7988 = vmatpush1.bf16.msra.mxu0 %v7157
    %7989 = vmatprep.subr.bf16.mxu0 %v7166
    %7990 = vmatpush1.bf16.msra.mxu0 %v7165
    %7991 = vmatprep.subr.bf16.mxu0 %v7174
    %7992 = vmatpush1.bf16.msra.mxu0 %v7173
    %7993 = vmatprep.subr.bf16.mxu0 %v7182
    %7994 = vmatpush1.bf16.msra.mxu0 %v7181
    %7995 = vmatprep.subr.bf16.mxu0 %v7190
    %7996 = vmatpush1.bf16.msra.mxu0 %v7189
    %7997 = vmatprep.subr.bf16.mxu0 %v7198
    %7998 = vmatpush1.bf16.msra.mxu0 %v7197
    %7999 = vmatprep.subr.bf16.mxu0 %v7206
    %8000 = vmatpush1.bf16.msra.mxu0 %v7205
    %8001 = vmatprep.subr.bf16.mxu0 %v7214
    %8002 = vmatpush1.bf16.msra.mxu0 %v7213
    %8003 = vmatprep.subr.bf16.mxu0 %v7222
    %8004 = vmatpush1.bf16.msra.mxu0 %v7221
    %8005 = vmatprep.subr.bf16.mxu0 %v7230
    %8006 = vmatpush1.bf16.msra.mxu0 %v7229
    %8007 = vmatprep.subr.bf16.mxu0 %v7238
    %8008 = vmatpush1.bf16.msra.mxu0 %v7237
    %8009 = vmatprep.subr.bf16.mxu0 %v7246
    %8010 = vmatpush1.bf16.msra.mxu0 %v7245
    %8011 = vmatprep.mubr.bf16.mxu0 %v4817
    %8012 = vmatmul.mubr.bf16.gmra.mrb[0].mxu0 %v4816
    %v8013 = vpop.f32.mrb[0].mxu0
    %v8014 = vadd.f32 %v7971, %v8013
    %v8015 = vpop.f32.mrb[0].mxu0
    %v8016 = vadd.f32 %v7973, %v8015
    %v8017 = vpop.f32.mrb[0].mxu0
    %v8018 = vadd.f32 %v7975, %v8017
    %v8019 = vpop.f32.mrb[0].mxu0
    %v8020 = vadd.f32 %v7977, %v8019
    %8021 = vdwg.mxu0
    %8022 = vmatprep.subr.bf16.mxu0 %v7254
    %8023 = vmatpush1.bf16.msra.mxu0 %v7253
    %8024 = vmatprep.subr.bf16.mxu0 %v7262
    %8025 = vmatpush1.bf16.msra.mxu0 %v7261
    %8026 = vmatprep.subr.bf16.mxu0 %v7270
    %8027 = vmatpush1.bf16.msra.mxu0 %v7269
    %8028 = vmatprep.subr.bf16.mxu0 %v7278
    %8029 = vmatpush1.bf16.msra.mxu0 %v7277
    %8030 = vmatprep.subr.bf16.mxu0 %v7286
    %8031 = vmatpush1.bf16.msra.mxu0 %v7285
    %8032 = vmatprep.subr.bf16.mxu0 %v7294
    %8033 = vmatpush1.bf16.msra.mxu0 %v7293
    %8034 = vmatprep.subr.bf16.mxu0 %v7302
    %8035 = vmatpush1.bf16.msra.mxu0 %v7301
    %8036 = vmatprep.subr.bf16.mxu0 %v7310
    %8037 = vmatpush1.bf16.msra.mxu0 %v7309
    %8038 = vmatprep.subr.bf16.mxu0 %v7318
    %8039 = vmatpush1.bf16.msra.mxu0 %v7317
    %8040 = vmatprep.subr.bf16.mxu0 %v7326
    %8041 = vmatpush1.bf16.msra.mxu0 %v7325
    %8042 = vmatprep.subr.bf16.mxu0 %v7334
    %8043 = vmatpush1.bf16.msra.mxu0 %v7333
    %8044 = vmatprep.subr.bf16.mxu0 %v7342
    %8045 = vmatpush1.bf16.msra.mxu0 %v7341
    %8046 = vmatprep.subr.bf16.mxu0 %v7350
    %8047 = vmatpush1.bf16.msra.mxu0 %v7349
    %8048 = vmatprep.subr.bf16.mxu0 %v7358
    %8049 = vmatpush1.bf16.msra.mxu0 %v7357
    %8050 = vmatprep.subr.bf16.mxu0 %v7366
    %8051 = vmatpush1.bf16.msra.mxu0 %v7365
    %8052 = vmatprep.subr.bf16.mxu0 %v7374
    %8053 = vmatpush1.bf16.msra.mxu0 %v7373
    %8054 = vmatprep.mubr.bf16.mxu0 %v4819
    %8055 = vmatmul.mubr.bf16.gmra.mrb[0].mxu0 %v4818
    %v8056 = vpop.f32.mrb[0].mxu0
    %v8057 = vadd.f32 %v8014, %v8056
    %v8058 = vpop.f32.mrb[0].mxu0
    %v8059 = vadd.f32 %v8016, %v8058
    %v8060 = vpop.f32.mrb[0].mxu0
    %v8061 = vadd.f32 %v8018, %v8060
    %v8062 = vpop.f32.mrb[0].mxu0
    %v8063 = vadd.f32 %v8020, %v8062
    %8064 = vdwg.mxu0
    %8065 = vmatprep.subr.bf16.mxu0 %v6872
    %8066 = vmatpush1.bf16.msra.mxu0 %v6871
    %8067 = vmatprep.subr.bf16.mxu0 %v6880
    %8068 = vmatpush1.bf16.msra.mxu0 %v6879
    %8069 = vmatprep.subr.bf16.mxu0 %v6888
    %8070 = vmatpush1.bf16.msra.mxu0 %v6887
    %8071 = vmatprep.subr.bf16.mxu0 %v6896
    %8072 = vmatpush1.bf16.msra.mxu0 %v6895
    %8073 = vmatprep.subr.bf16.mxu0 %v6904
    %8074 = vmatpush1.bf16.msra.mxu0 %v6903
    %8075 = vmatprep.subr.bf16.mxu0 %v6912
    %8076 = vmatpush1.bf16.msra.mxu0 %v6911
    %8077 = vmatprep.subr.bf16.mxu0 %v6920
    %8078 = vmatpush1.bf16.msra.mxu0 %v6919
    %8079 = vmatprep.subr.bf16.mxu0 %v6928
    %8080 = vmatpush1.bf16.msra.mxu0 %v6927
    %8081 = vmatprep.subr.bf16.mxu0 %v6936
    %8082 = vmatpush1.bf16.msra.mxu0 %v6935
    %8083 = vmatprep.subr.bf16.mxu0 %v6944
    %8084 = vmatpush1.bf16.msra.mxu0 %v6943
    %8085 = vmatprep.subr.bf16.mxu0 %v6952
    %8086 = vmatpush1.bf16.msra.mxu0 %v6951
    %8087 = vmatprep.subr.bf16.mxu0 %v6960
    %8088 = vmatpush1.bf16.msra.mxu0 %v6959
    %8089 = vmatprep.subr.bf16.mxu0 %v6968
    %8090 = vmatpush1.bf16.msra.mxu0 %v6967
    %8091 = vmatprep.subr.bf16.mxu0 %v6976
    %8092 = vmatpush1.bf16.msra.mxu0 %v6975
    %8093 = vmatprep.subr.bf16.mxu0 %v6984
    %8094 = vmatpush1.bf16.msra.mxu0 %v6983
    %8095 = vmatprep.subr.bf16.mxu0 %v6992
    %8096 = vmatpush1.bf16.msra.mxu0 %v6991
    %8097 = vmatprep.mubr.bf16.mxu0 %v4813
    %8098 = vmatmul.mubr.bf16.gmra.mrb[0].mxu0 %v4812
    %v8099 = vpop.f32.mrb[0].mxu0
    %v8100 = vadd.f32 0.0, %v8099
    %v8101 = vpop.f32.mrb[0].mxu0
    %v8102 = vadd.f32 0.0, %v8101
    %v8103 = vpop.f32.mrb[0].mxu0
    %v8104 = vadd.f32 0.0, %v8103
    %v8105 = vpop.f32.mrb[0].mxu0
    %v8106 = vadd.f32 0.0, %v8105
    %8107 = vdwg.mxu0
    %8108 = vmatprep.subr.bf16.mxu0 %v7000
    %8109 = vmatpush1.bf16.msra.mxu0 %v6999
    %8110 = vmatprep.subr.bf16.mxu0 %v7008
    %8111 = vmatpush1.bf16.msra.mxu0 %v7007
    %8112 = vmatprep.subr.bf16.mxu0 %v7016
    %8113 = vmatpush1.bf16.msra.mxu0 %v7015
    %8114 = vmatprep.subr.bf16.mxu0 %v7024
    %8115 = vmatpush1.bf16.msra.mxu0 %v7023
    %8116 = vmatprep.subr.bf16.mxu0 %v7032
    %8117 = vmatpush1.bf16.msra.mxu0 %v7031
    %8118 = vmatprep.subr.bf16.mxu0 %v7040
    %8119 = vmatpush1.bf16.msra.mxu0 %v7039
    %8120 = vmatprep.subr.bf16.mxu0 %v7048
    %8121 = vmatpush1.bf16.msra.mxu0 %v7047
    %8122 = vmatprep.subr.bf16.mxu0 %v7056
    %8123 = vmatpush1.bf16.msra.mxu0 %v7055
    %8124 = vmatprep.subr.bf16.mxu0 %v7064
    %8125 = vmatpush1.bf16.msra.mxu0 %v7063
    %8126 = vmatprep.subr.bf16.mxu0 %v7072
    %8127 = vmatpush1.bf16.msra.mxu0 %v7071
    %8128 = vmatprep.subr.bf16.mxu0 %v7080
    %8129 = vmatpush1.bf16.msra.mxu0 %v7079
    %8130 = vmatprep.subr.bf16.mxu0 %v7088
    %8131 = vmatpush1.bf16.msra.mxu0 %v7087
    %8132 = vmatprep.subr.bf16.mxu0 %v7096
    %8133 = vmatpush1.bf16.msra.mxu0 %v7095
    %8134 = vmatprep.subr.bf16.mxu0 %v7104
    %8135 = vmatpush1.bf16.msra.mxu0 %v7103
    %8136 = vmatprep.subr.bf16.mxu0 %v7112
    %8137 = vmatpush1.bf16.msra.mxu0 %v7111
    %8138 = vmatprep.subr.bf16.mxu0 %v7120
    %8139 = vmatpush1.bf16.msra.mxu0 %v7119
    %8140 = vmatprep.mubr.bf16.mxu0 %v4815
    %8141 = vmatmul.mubr.bf16.gmra.mrb[0].mxu0 %v4814
    %v8142 = vpop.f32.mrb[0].mxu0
    %v8143 = vadd.f32 %v8100, %v8142
    %v8144 = vpop.f32.mrb[0].mxu0
    %v8145 = vadd.f32 %v8102, %v8144
    %v8146 = vpop.f32.mrb[0].mxu0
    %v8147 = vadd.f32 %v8104, %v8146
    %v8148 = vpop.f32.mrb[0].mxu0
    %v8149 = vadd.f32 %v8106, %v8148
    %8150 = vdwg.mxu0
    %8151 = vmatprep.subr.bf16.mxu0 %v7128
    %8152 = vmatpush1.bf16.msra.mxu0 %v7127
    %8153 = vmatprep.subr.bf16.mxu0 %v7136
    %8154 = vmatpush1.bf16.msra.mxu0 %v7135
    %8155 = vmatprep.subr.bf16.mxu0 %v7144
    %8156 = vmatpush1.bf16.msra.mxu0 %v7143
    %8157 = vmatprep.subr.bf16.mxu0 %v7152
    %8158 = vmatpush1.bf16.msra.mxu0 %v7151
    %8159 = vmatprep.subr.bf16.mxu0 %v7160
    %8160 = vmatpush1.bf16.msra.mxu0 %v7159
    %8161 = vmatprep.subr.bf16.mxu0 %v7168
    %8162 = vmatpush1.bf16.msra.mxu0 %v7167
    %8163 = vmatprep.subr.bf16.mxu0 %v7176
    %8164 = vmatpush1.bf16.msra.mxu0 %v7175
    %8165 = vmatprep.subr.bf16.mxu0 %v7184
    %8166 = vmatpush1.bf16.msra.mxu0 %v7183
    %8167 = vmatprep.subr.bf16.mxu0 %v7192
    %8168 = vmatpush1.bf16.msra.mxu0 %v7191
    %8169 = vmatprep.subr.bf16.mxu0 %v7200
    %8170 = vmatpush1.bf16.msra.mxu0 %v7199
    %8171 = vmatprep.subr.bf16.mxu0 %v7208
    %8172 = vmatpush1.bf16.msra.mxu0 %v7207
    %8173 = vmatprep.subr.bf16.mxu0 %v7216
    %8174 = vmatpush1.bf16.msra.mxu0 %v7215
    %8175 = vmatprep.subr.bf16.mxu0 %v7224
    %8176 = vmatpush1.bf16.msra.mxu0 %v7223
    %8177 = vmatprep.subr.bf16.mxu0 %v7232
    %8178 = vmatpush1.bf16.msra.mxu0 %v7231
    %8179 = vmatprep.subr.bf16.mxu0 %v7240
    %8180 = vmatpush1.bf16.msra.mxu0 %v7239
    %8181 = vmatprep.subr.bf16.mxu0 %v7248
    %8182 = vmatpush1.bf16.msra.mxu0 %v7247
    %8183 = vmatprep.mubr.bf16.mxu0 %v4817
    %8184 = vmatmul.mubr.bf16.gmra.mrb[0].mxu0 %v4816
    %v8185 = vpop.f32.mrb[0].mxu0
    %v8186 = vadd.f32 %v8143, %v8185
    %v8187 = vpop.f32.mrb[0].mxu0
    %v8188 = vadd.f32 %v8145, %v8187
    %v8189 = vpop.f32.mrb[0].mxu0
    %v8190 = vadd.f32 %v8147, %v8189
    %v8191 = vpop.f32.mrb[0].mxu0
    %v8192 = vadd.f32 %v8149, %v8191
    %8193 = vdwg.mxu0
    %8194 = vmatprep.subr.bf16.mxu0 %v7256
    %8195 = vmatpush1.bf16.msra.mxu0 %v7255
    %8196 = vmatprep.subr.bf16.mxu0 %v7264
    %8197 = vmatpush1.bf16.msra.mxu0 %v7263
    %8198 = vmatprep.subr.bf16.mxu0 %v7272
    %8199 = vmatpush1.bf16.msra.mxu0 %v7271
    %8200 = vmatprep.subr.bf16.mxu0 %v7280
    %8201 = vmatpush1.bf16.msra.mxu0 %v7279
    %8202 = vmatprep.subr.bf16.mxu0 %v7288
    %8203 = vmatpush1.bf16.msra.mxu0 %v7287
    %8204 = vmatprep.subr.bf16.mxu0 %v7296
    %8205 = vmatpush1.bf16.msra.mxu0 %v7295
    %8206 = vmatprep.subr.bf16.mxu0 %v7304
    %8207 = vmatpush1.bf16.msra.mxu0 %v7303
    %8208 = vmatprep.subr.bf16.mxu0 %v7312
    %8209 = vmatpush1.bf16.msra.mxu0 %v7311
    %8210 = vmatprep.subr.bf16.mxu0 %v7320
    %8211 = vmatpush1.bf16.msra.mxu0 %v7319
    %8212 = vmatprep.subr.bf16.mxu0 %v7328
    %8213 = vmatpush1.bf16.msra.mxu0 %v7327
    %8214 = vmatprep.subr.bf16.mxu0 %v7336
    %8215 = vmatpush1.bf16.msra.mxu0 %v7335
    %8216 = vmatprep.subr.bf16.mxu0 %v7344
    %8217 = vmatpush1.bf16.msra.mxu0 %v7343
    %8218 = vmatprep.subr.bf16.mxu0 %v7352
    %8219 = vmatpush1.bf16.msra.mxu0 %v7351
    %8220 = vmatprep.subr.bf16.mxu0 %v7360
    %8221 = vmatpush1.bf16.msra.mxu0 %v7359
    %8222 = vmatprep.subr.bf16.mxu0 %v7368
    %8223 = vmatpush1.bf16.msra.mxu0 %v7367
    %8224 = vmatprep.subr.bf16.mxu0 %v7376
    %8225 = vmatpush1.bf16.msra.mxu0 %v7375
    %8226 = vmatprep.mubr.bf16.mxu0 %v4819
    %8227 = vmatmul.mubr.bf16.gmra.mrb[0].mxu0 %v4818
    %v8228 = vpop.f32.mrb[0].mxu0
    %v8229 = vadd.f32 %v8186, %v8228
    %v8230 = vpop.f32.mrb[0].mxu0
    %v8231 = vadd.f32 %v8188, %v8230
    %v8232 = vpop.f32.mrb[0].mxu0
    %v8233 = vadd.f32 %v8190, %v8232
    %v8234 = vpop.f32.mrb[0].mxu0
    %v8235 = vadd.f32 %v8192, %v8234
    %8236 = vdwg.mxu0
    %8237 = vmatprep.subr.bf16.mxu0 %v6874
    %8238 = vmatpush1.bf16.msra.mxu0 %v6873
    %8239 = vmatprep.subr.bf16.mxu0 %v6882
    %8240 = vmatpush1.bf16.msra.mxu0 %v6881
    %8241 = vmatprep.subr.bf16.mxu0 %v6890
    %8242 = vmatpush1.bf16.msra.mxu0 %v6889
    %8243 = vmatprep.subr.bf16.mxu0 %v6898
    %8244 = vmatpush1.bf16.msra.mxu0 %v6897
    %8245 = vmatprep.subr.bf16.mxu0 %v6906
    %8246 = vmatpush1.bf16.msra.mxu0 %v6905
    %8247 = vmatprep.subr.bf16.mxu0 %v6914
    %8248 = vmatpush1.bf16.msra.mxu0 %v6913
    %8249 = vmatprep.subr.bf16.mxu0 %v6922
    %8250 = vmatpush1.bf16.msra.mxu0 %v6921
    %8251 = vmatprep.subr.bf16.mxu0 %v6930
    %8252 = vmatpush1.bf16.msra.mxu0 %v6929
    %8253 = vmatprep.subr.bf16.mxu0 %v6938
    %8254 = vmatpush1.bf16.msra.mxu0 %v6937
    %8255 = vmatprep.subr.bf16.mxu0 %v6946
    %8256 = vmatpush1.bf16.msra.mxu0 %v6945
    %8257 = vmatprep.subr.bf16.mxu0 %v6954
    %8258 = vmatpush1.bf16.msra.mxu0 %v6953
    %8259 = vmatprep.subr.bf16.mxu0 %v6962
    %8260 = vmatpush1.bf16.msra.mxu0 %v6961
    %8261 = vmatprep.subr.bf16.mxu0 %v6970
    %8262 = vmatpush1.bf16.msra.mxu0 %v6969
    %8263 = vmatprep.subr.bf16.mxu0 %v6978
    %8264 = vmatpush1.bf16.msra.mxu0 %v6977
    %8265 = vmatprep.subr.bf16.mxu0 %v6986
    %8266 = vmatpush1.bf16.msra.mxu0 %v6985
    %8267 = vmatprep.subr.bf16.mxu0 %v6994
    %8268 = vmatpush1.bf16.msra.mxu0 %v6993
    %8269 = vmatprep.mubr.bf16.mxu0 %v4813
    %8270 = vmatmul.mubr.bf16.gmra.mrb[0].mxu0 %v4812
    %v8271 = vpop.f32.mrb[0].mxu0
    %v8272 = vadd.f32 0.0, %v8271
    %v8273 = vpop.f32.mrb[0].mxu0
    %v8274 = vadd.f32 0.0, %v8273
    %v8275 = vpop.f32.mrb[0].mxu0
    %v8276 = vadd.f32 0.0, %v8275
    %v8277 = vpop.f32.mrb[0].mxu0
    %v8278 = vadd.f32 0.0, %v8277
    %8279 = vdwg.mxu0
    %8280 = vmatprep.subr.bf16.mxu0 %v7002
    %8281 = vmatpush1.bf16.msra.mxu0 %v7001
    %8282 = vmatprep.subr.bf16.mxu0 %v7010
    %8283 = vmatpush1.bf16.msra.mxu0 %v7009
    %8284 = vmatprep.subr.bf16.mxu0 %v7018
    %8285 = vmatpush1.bf16.msra.mxu0 %v7017
    %8286 = vmatprep.subr.bf16.mxu0 %v7026
    %8287 = vmatpush1.bf16.msra.mxu0 %v7025
    %8288 = vmatprep.subr.bf16.mxu0 %v7034
    %8289 = vmatpush1.bf16.msra.mxu0 %v7033
    %8290 = vmatprep.subr.bf16.mxu0 %v7042
    %8291 = vmatpush1.bf16.msra.mxu0 %v7041
    %8292 = vmatprep.subr.bf16.mxu0 %v7050
    %8293 = vmatpush1.bf16.msra.mxu0 %v7049
    %8294 = vmatprep.subr.bf16.mxu0 %v7058
    %8295 = vmatpush1.bf16.msra.mxu0 %v7057
    %8296 = vmatprep.subr.bf16.mxu0 %v7066
    %8297 = vmatpush1.bf16.msra.mxu0 %v7065
    %8298 = vmatprep.subr.bf16.mxu0 %v7074
    %8299 = vmatpush1.bf16.msra.mxu0 %v7073
    %8300 = vmatprep.subr.bf16.mxu0 %v7082
    %8301 = vmatpush1.bf16.msra.mxu0 %v7081
    %8302 = vmatprep.subr.bf16.mxu0 %v7090
    %8303 = vmatpush1.bf16.msra.mxu0 %v7089
    %8304 = vmatprep.subr.bf16.mxu0 %v7098
    %8305 = vmatpush1.bf16.msra.mxu0 %v7097
    %8306 = vmatprep.subr.bf16.mxu0 %v7106
    %8307 = vmatpush1.bf16.msra.mxu0 %v7105
    %8308 = vmatprep.subr.bf16.mxu0 %v7114
    %8309 = vmatpush1.bf16.msra.mxu0 %v7113
    %8310 = vmatprep.subr.bf16.mxu0 %v7122
    %8311 = vmatpush1.bf16.msra.mxu0 %v7121
    %8312 = vmatprep.mubr.bf16.mxu0 %v4815
    %8313 = vmatmul.mubr.bf16.gmra.mrb[0].mxu0 %v4814
    %v8314 = vpop.f32.mrb[0].mxu0
    %v8315 = vadd.f32 %v8272, %v8314
    %v8316 = vpop.f32.mrb[0].mxu0
    %v8317 = vadd.f32 %v8274, %v8316
    %v8318 = vpop.f32.mrb[0].mxu0
    %v8319 = vadd.f32 %v8276, %v8318
    %v8320 = vpop.f32.mrb[0].mxu0
    %v8321 = vadd.f32 %v8278, %v8320
    %8322 = vdwg.mxu0
    %8323 = vmatprep.subr.bf16.mxu0 %v7130
    %8324 = vmatpush1.bf16.msra.mxu0 %v7129
    %8325 = vmatprep.subr.bf16.mxu0 %v7138
    %8326 = vmatpush1.bf16.msra.mxu0 %v7137
    %8327 = vmatprep.subr.bf16.mxu0 %v7146
    %8328 = vmatpush1.bf16.msra.mxu0 %v7145
    %8329 = vmatprep.subr.bf16.mxu0 %v7154
    %8330 = vmatpush1.bf16.msra.mxu0 %v7153
    %8331 = vmatprep.subr.bf16.mxu0 %v7162
    %8332 = vmatpush1.bf16.msra.mxu0 %v7161
    %8333 = vmatprep.subr.bf16.mxu0 %v7170
    %8334 = vmatpush1.bf16.msra.mxu0 %v7169
    %8335 = vmatprep.subr.bf16.mxu0 %v7178
    %8336 = vmatpush1.bf16.msra.mxu0 %v7177
    %8337 = vmatprep.subr.bf16.mxu0 %v7186
    %8338 = vmatpush1.bf16.msra.mxu0 %v7185
    %8339 = vmatprep.subr.bf16.mxu0 %v7194
    %8340 = vmatpush1.bf16.msra.mxu0 %v7193
    %8341 = vmatprep.subr.bf16.mxu0 %v7202
    %8342 = vmatpush1.bf16.msra.mxu0 %v7201
    %8343 = vmatprep.subr.bf16.mxu0 %v7210
    %8344 = vmatpush1.bf16.msra.mxu0 %v7209
    %8345 = vmatprep.subr.bf16.mxu0 %v7218
    %8346 = vmatpush1.bf16.msra.mxu0 %v7217
    %8347 = vmatprep.subr.bf16.mxu0 %v7226
    %8348 = vmatpush1.bf16.msra.mxu0 %v7225
    %8349 = vmatprep.subr.bf16.mxu0 %v7234
    %8350 = vmatpush1.bf16.msra.mxu0 %v7233
    %8351 = vmatprep.subr.bf16.mxu0 %v7242
    %8352 = vmatpush1.bf16.msra.mxu0 %v7241
    %8353 = vmatprep.subr.bf16.mxu0 %v7250
    %8354 = vmatpush1.bf16.msra.mxu0 %v7249
    %8355 = vmatprep.mubr.bf16.mxu0 %v4817
    %8356 = vmatmul.mubr.bf16.gmra.mrb[0].mxu0 %v4816
    %v8357 = vpop.f32.mrb[0].mxu0
    %v8358 = vadd.f32 %v8315, %v8357
    %v8359 = vpop.f32.mrb[0].mxu0
    %v8360 = vadd.f32 %v8317, %v8359
    %v8361 = vpop.f32.mrb[0].mxu0
    %v8362 = vadd.f32 %v8319, %v8361
    %v8363 = vpop.f32.mrb[0].mxu0
    %v8364 = vadd.f32 %v8321, %v8363
    %8365 = vdwg.mxu0
    %8366 = vmatprep.subr.bf16.mxu0 %v7258
    %8367 = vmatpush1.bf16.msra.mxu0 %v7257
    %8368 = vmatprep.subr.bf16.mxu0 %v7266
    %8369 = vmatpush1.bf16.msra.mxu0 %v7265
    %8370 = vmatprep.subr.bf16.mxu0 %v7274
    %8371 = vmatpush1.bf16.msra.mxu0 %v7273
    %8372 = vmatprep.subr.bf16.mxu0 %v7282
    %8373 = vmatpush1.bf16.msra.mxu0 %v7281
    %8374 = vmatprep.subr.bf16.mxu0 %v7290
    %8375 = vmatpush1.bf16.msra.mxu0 %v7289
    %8376 = vmatprep.subr.bf16.mxu0 %v7298
    %8377 = vmatpush1.bf16.msra.mxu0 %v7297
    %8378 = vmatprep.subr.bf16.mxu0 %v7306
    %8379 = vmatpush1.bf16.msra.mxu0 %v7305
    %8380 = vmatprep.subr.bf16.mxu0 %v7314
    %8381 = vmatpush1.bf16.msra.mxu0 %v7313
    %8382 = vmatprep.subr.bf16.mxu0 %v7322
    %8383 = vmatpush1.bf16.msra.mxu0 %v7321
    %8384 = vmatprep.subr.bf16.mxu0 %v7330
    %8385 = vmatpush1.bf16.msra.mxu0 %v7329
    %8386 = vmatprep.subr.bf16.mxu0 %v7338
    %8387 = vmatpush1.bf16.msra.mxu0 %v7337
    %8388 = vmatprep.subr.bf16.mxu0 %v7346
    %8389 = vmatpush1.bf16.msra.mxu0 %v7345
    %8390 = vmatprep.subr.bf16.mxu0 %v7354
    %8391 = vmatpush1.bf16.msra.mxu0 %v7353
    %8392 = vmatprep.subr.bf16.mxu0 %v7362
    %8393 = vmatpush1.bf16.msra.mxu0 %v7361
    %8394 = vmatprep.subr.bf16.mxu0 %v7370
    %8395 = vmatpush1.bf16.msra.mxu0 %v7369
    %8396 = vmatprep.subr.bf16.mxu0 %v7378
    %8397 = vmatpush1.bf16.msra.mxu0 %v7377
    %8398 = vmatprep.mubr.bf16.mxu0 %v4819
    %8399 = vmatmul.mubr.bf16.gmra.mrb[0].mxu0 %v4818
    %v8400 = vpop.f32.mrb[0].mxu0
    %v8401 = vadd.f32 %v8358, %v8400
    %v8402 = vpop.f32.mrb[0].mxu0
    %v8403 = vadd.f32 %v8360, %v8402
    %v8404 = vpop.f32.mrb[0].mxu0
    %v8405 = vadd.f32 %v8362, %v8404
    %v8406 = vpop.f32.mrb[0].mxu0
    %v8407 = vadd.f32 %v8364, %v8406
    %8408 = vdwg.mxu0
    %8409 = vmatprep.subr.bf16.mxu0 %v6876
    %8410 = vmatpush1.bf16.msra.mxu0 %v6875
    %8411 = vmatprep.subr.bf16.mxu0 %v6884
    %8412 = vmatpush1.bf16.msra.mxu0 %v6883
    %8413 = vmatprep.subr.bf16.mxu0 %v6892
    %8414 = vmatpush1.bf16.msra.mxu0 %v6891
    %8415 = vmatprep.subr.bf16.mxu0 %v6900
    %8416 = vmatpush1.bf16.msra.mxu0 %v6899
    %8417 = vmatprep.subr.bf16.mxu0 %v6908
    %8418 = vmatpush1.bf16.msra.mxu0 %v6907
    %8419 = vmatprep.subr.bf16.mxu0 %v6916
    %8420 = vmatpush1.bf16.msra.mxu0 %v6915
    %8421 = vmatprep.subr.bf16.mxu0 %v6924
    %8422 = vmatpush1.bf16.msra.mxu0 %v6923
    %8423 = vmatprep.subr.bf16.mxu0 %v6932
    %8424 = vmatpush1.bf16.msra.mxu0 %v6931
    %8425 = vmatprep.subr.bf16.mxu0 %v6940
    %8426 = vmatpush1.bf16.msra.mxu0 %v6939
    %8427 = vmatprep.subr.bf16.mxu0 %v6948
    %8428 = vmatpush1.bf16.msra.mxu0 %v6947
    %8429 = vmatprep.subr.bf16.mxu0 %v6956
    %8430 = vmatpush1.bf16.msra.mxu0 %v6955
    %8431 = vmatprep.subr.bf16.mxu0 %v6964
    %8432 = vmatpush1.bf16.msra.mxu0 %v6963
    %8433 = vmatprep.subr.bf16.mxu0 %v6972
    %8434 = vmatpush1.bf16.msra.mxu0 %v6971
    %8435 = vmatprep.subr.bf16.mxu0 %v6980
    %8436 = vmatpush1.bf16.msra.mxu0 %v6979
    %8437 = vmatprep.subr.bf16.mxu0 %v6988
    %8438 = vmatpush1.bf16.msra.mxu0 %v6987
    %8439 = vmatprep.subr.bf16.mxu0 %v6996
    %8440 = vmatpush1.bf16.msra.mxu0 %v6995
    %8441 = vmatprep.mubr.bf16.mxu0 %v4813
    %8442 = vmatmul.mubr.bf16.gmra.mrb[0].mxu0 %v4812
    %v8443 = vpop.f32.mrb[0].mxu0
    %v8444 = vadd.f32 0.0, %v8443
    %v8445 = vpop.f32.mrb[0].mxu0
    %v8446 = vadd.f32 0.0, %v8445
    %v8447 = vpop.f32.mrb[0].mxu0
    %v8448 = vadd.f32 0.0, %v8447
    %v8449 = vpop.f32.mrb[0].mxu0
    %v8450 = vadd.f32 0.0, %v8449
    %8451 = vdwg.mxu0
    %8452 = vmatprep.subr.bf16.mxu0 %v7004
    %8453 = vmatpush1.bf16.msra.mxu0 %v7003
    %8454 = vmatprep.subr.bf16.mxu0 %v7012
    %8455 = vmatpush1.bf16.msra.mxu0 %v7011
    %8456 = vmatprep.subr.bf16.mxu0 %v7020
    %8457 = vmatpush1.bf16.msra.mxu0 %v7019
    %8458 = vmatprep.subr.bf16.mxu0 %v7028
    %8459 = vmatpush1.bf16.msra.mxu0 %v7027
    %8460 = vmatprep.subr.bf16.mxu0 %v7036
    %8461 = vmatpush1.bf16.msra.mxu0 %v7035
    %8462 = vmatprep.subr.bf16.mxu0 %v7044
    %8463 = vmatpush1.bf16.msra.mxu0 %v7043
    %8464 = vmatprep.subr.bf16.mxu0 %v7052
    %8465 = vmatpush1.bf16.msra.mxu0 %v7051
    %8466 = vmatprep.subr.bf16.mxu0 %v7060
    %8467 = vmatpush1.bf16.msra.mxu0 %v7059
    %8468 = vmatprep.subr.bf16.mxu0 %v7068
    %8469 = vmatpush1.bf16.msra.mxu0 %v7067
    %8470 = vmatprep.subr.bf16.mxu0 %v7076
    %8471 = vmatpush1.bf16.msra.mxu0 %v7075
    %8472 = vmatprep.subr.bf16.mxu0 %v7084
    %8473 = vmatpush1.bf16.msra.mxu0 %v7083
    %8474 = vmatprep.subr.bf16.mxu0 %v7092
    %8475 = vmatpush1.bf16.msra.mxu0 %v7091
    %8476 = vmatprep.subr.bf16.mxu0 %v7100
    %8477 = vmatpush1.bf16.msra.mxu0 %v7099
    %8478 = vmatprep.subr.bf16.mxu0 %v7108
    %8479 = vmatpush1.bf16.msra.mxu0 %v7107
    %8480 = vmatprep.subr.bf16.mxu0 %v7116
    %8481 = vmatpush1.bf16.msra.mxu0 %v7115
    %8482 = vmatprep.subr.bf16.mxu0 %v7124
    %8483 = vmatpush1.bf16.msra.mxu0 %v7123
    %8484 = vmatprep.mubr.bf16.mxu0 %v4815
    %8485 = vmatmul.mubr.bf16.gmra.mrb[0].mxu0 %v4814
    %v8486 = vpop.f32.mrb[0].mxu0
    %v8487 = vadd.f32 %v8444, %v8486
    %v8488 = vpop.f32.mrb[0].mxu0
    %v8489 = vadd.f32 %v8446, %v8488
    %v8490 = vpop.f32.mrb[0].mxu0
    %v8491 = vadd.f32 %v8448, %v8490
    %v8492 = vpop.f32.mrb[0].mxu0
    %v8493 = vadd.f32 %v8450, %v8492
    %8494 = vdwg.mxu0
    %8495 = vmatprep.subr.bf16.mxu0 %v7132
    %8496 = vmatpush1.bf16.msra.mxu0 %v7131
    %8497 = vmatprep.subr.bf16.mxu0 %v7140
    %8498 = vmatpush1.bf16.msra.mxu0 %v7139
    %8499 = vmatprep.subr.bf16.mxu0 %v7148
    %8500 = vmatpush1.bf16.msra.mxu0 %v7147
    %8501 = vmatprep.subr.bf16.mxu0 %v7156
    %8502 = vmatpush1.bf16.msra.mxu0 %v7155
    %8503 = vmatprep.subr.bf16.mxu0 %v7164
    %8504 = vmatpush1.bf16.msra.mxu0 %v7163
    %8505 = vmatprep.subr.bf16.mxu0 %v7172
    %8506 = vmatpush1.bf16.msra.mxu0 %v7171
    %8507 = vmatprep.subr.bf16.mxu0 %v7180
    %8508 = vmatpush1.bf16.msra.mxu0 %v7179
    %8509 = vmatprep.subr.bf16.mxu0 %v7188
    %8510 = vmatpush1.bf16.msra.mxu0 %v7187
    %8511 = vmatprep.subr.bf16.mxu0 %v7196
    %8512 = vmatpush1.bf16.msra.mxu0 %v7195
    %8513 = vmatprep.subr.bf16.mxu0 %v7204
    %8514 = vmatpush1.bf16.msra.mxu0 %v7203
    %8515 = vmatprep.subr.bf16.mxu0 %v7212
    %8516 = vmatpush1.bf16.msra.mxu0 %v7211
    %8517 = vmatprep.subr.bf16.mxu0 %v7220
    %8518 = vmatpush1.bf16.msra.mxu0 %v7219
    %8519 = vmatprep.subr.bf16.mxu0 %v7228
    %8520 = vmatpush1.bf16.msra.mxu0 %v7227
    %8521 = vmatprep.subr.bf16.mxu0 %v7236
    %8522 = vmatpush1.bf16.msra.mxu0 %v7235
    %8523 = vmatprep.subr.bf16.mxu0 %v7244
    %8524 = vmatpush1.bf16.msra.mxu0 %v7243
    %8525 = vmatprep.subr.bf16.mxu0 %v7252
    %8526 = vmatpush1.bf16.msra.mxu0 %v7251
    %8527 = vmatprep.mubr.bf16.mxu0 %v4817
    %8528 = vmatmul.mubr.bf16.gmra.mrb[0].mxu0 %v4816
    %v8529 = vpop.f32.mrb[0].mxu0
    %v8530 = vadd.f32 %v8487, %v8529
    %v8531 = vpop.f32.mrb[0].mxu0
    %v8532 = vadd.f32 %v8489, %v8531
    %v8533 = vpop.f32.mrb[0].mxu0
    %v8534 = vadd.f32 %v8491, %v8533
    %v8535 = vpop.f32.mrb[0].mxu0
    %v8536 = vadd.f32 %v8493, %v8535
    %8537 = vdwg.mxu0
    %8538 = vmatprep.subr.bf16.mxu0 %v7260
    %8539 = vmatpush1.bf16.msra.mxu0 %v7259
    %8540 = vmatprep.subr.bf16.mxu0 %v7268
    %8541 = vmatpush1.bf16.msra.mxu0 %v7267
    %8542 = vmatprep.subr.bf16.mxu0 %v7276
    %8543 = vmatpush1.bf16.msra.mxu0 %v7275
    %8544 = vmatprep.subr.bf16.mxu0 %v7284
    %8545 = vmatpush1.bf16.msra.mxu0 %v7283
    %8546 = vmatprep.subr.bf16.mxu0 %v7292
    %8547 = vmatpush1.bf16.msra.mxu0 %v7291
    %8548 = vmatprep.subr.bf16.mxu0 %v7300
    %8549 = vmatpush1.bf16.msra.mxu0 %v7299
    %8550 = vmatprep.subr.bf16.mxu0 %v7308
    %8551 = vmatpush1.bf16.msra.mxu0 %v7307
    %8552 = vmatprep.subr.bf16.mxu0 %v7316
    %8553 = vmatpush1.bf16.msra.mxu0 %v7315
    %8554 = vmatprep.subr.bf16.mxu0 %v7324
    %8555 = vmatpush1.bf16.msra.mxu0 %v7323
    %8556 = vmatprep.subr.bf16.mxu0 %v7332
    %8557 = vmatpush1.bf16.msra.mxu0 %v7331
    %8558 = vmatprep.subr.bf16.mxu0 %v7340
    %8559 = vmatpush1.bf16.msra.mxu0 %v7339
    %8560 = vmatprep.subr.bf16.mxu0 %v7348
    %8561 = vmatpush1.bf16.msra.mxu0 %v7347
    %8562 = vmatprep.subr.bf16.mxu0 %v7356
    %8563 = vmatpush1.bf16.msra.mxu0 %v7355
    %8564 = vmatprep.subr.bf16.mxu0 %v7364
    %8565 = vmatpush1.bf16.msra.mxu0 %v7363
    %8566 = vmatprep.subr.bf16.mxu0 %v7372
    %8567 = vmatpush1.bf16.msra.mxu0 %v7371
    %8568 = vmatprep.subr.bf16.mxu0 %v7380
    %8569 = vmatpush1.bf16.msra.mxu0 %v7379
    %8570 = vmatprep.mubr.bf16.mxu0 %v4819
    %8571 = vmatmul.mubr.bf16.gmra.mrb[0].mxu0 %v4818
    %v8572 = vpop.f32.mrb[0].mxu0
    %v8573 = vadd.f32 %v8530, %v8572
    %v8574 = vpop.f32.mrb[0].mxu0
    %v8575 = vadd.f32 %v8532, %v8574
    %v8576 = vpop.f32.mrb[0].mxu0
    %v8577 = vadd.f32 %v8534, %v8576
    %v8578 = vpop.f32.mrb[0].mxu0
    %v8579 = vadd.f32 %v8536, %v8578
    %8580 = vdwg.mxu0
    %v8581 = vpack.c.bf16 %v8061, %v8057
    %v8582 = vpack.c.bf16 %v8063, %v8059
    %v8583 = vpack.c.bf16 %v8233, %v8229
    %v8584 = vpack.c.bf16 %v8235, %v8231
    %v8585 = vpack.c.bf16 %v8405, %v8401
    %v8586 = vpack.c.bf16 %v8407, %v8403
    %v8587 = vpack.c.bf16 %v8577, %v8573
    %v8588 = vpack.c.bf16 %v8579, %v8575
    %v8590 = vlaneseq
    %v8591 = vshrl.u32 %v8590, 7
    %v8592 = vsub.s32 0, %v8591
    %v8593 = vrot.slane %v5332, %v8592
    %v8594 = vlaneseq
    %v8595 = vshrl.u32 %v8594, 7
    %v8596 = vsub.s32 1, %v8595
    %v8597 = vrot.slane %v5332, %v8596
    %v8598 = vlaneseq
    %v8599 = vshrl.u32 %v8598, 7
    %v8600 = vsub.s32 2, %v8599
    %v8601 = vrot.slane %v5332, %v8600
    %v8602 = vlaneseq
    %v8603 = vshrl.u32 %v8602, 7
    %v8604 = vsub.s32 3, %v8603
    %v8605 = vrot.slane %v5332, %v8604
    %v8606 = vlaneseq
    %v8607 = vshrl.u32 %v8606, 7
    %v8608 = vsub.s32 4, %v8607
    %v8609 = vrot.slane %v5332, %v8608
    %v8610 = vlaneseq
    %v8611 = vshrl.u32 %v8610, 7
    %v8612 = vsub.s32 5, %v8611
    %v8613 = vrot.slane %v5332, %v8612
    %v8614 = vlaneseq
    %v8615 = vshrl.u32 %v8614, 7
    %v8616 = vsub.s32 6, %v8615
    %v8617 = vrot.slane %v5332, %v8616
    %v8618 = vlaneseq
    %v8619 = vshrl.u32 %v8618, 7
    %v8620 = vsub.s32 7, %v8619
    %v8621 = vrot.slane %v5332, %v8620
    %8630 = vmatprep.subr.bf16.mxu0 %v8582
    %8631 = vmatpush1.bf16.msra.mxu0 %v8581
    %8632 = vmatprep.subr.bf16.mxu0 0
    %8633 = vmatpush1.bf16.msra.mxu0 0
    %8634 = vmatprep.subr.bf16.mxu0 0
    %8635 = vmatpush1.bf16.msra.mxu0 0
    %8636 = vmatprep.subr.bf16.mxu0 0
    %8637 = vmatpush1.bf16.msra.mxu0 0
    %8638 = vmatprep.subr.bf16.mxu0 0
    %8639 = vmatpush1.bf16.msra.mxu0 0
    %8640 = vmatprep.subr.bf16.mxu0 0
    %8641 = vmatpush1.bf16.msra.mxu0 0
    %8642 = vmatprep.subr.bf16.mxu0 0
    %8643 = vmatpush1.bf16.msra.mxu0 0
    %8644 = vmatprep.subr.bf16.mxu0 0
    %8645 = vmatpush1.bf16.msra.mxu0 0
    %8646 = vmatprep.subr.bf16.mxu0 0
    %8647 = vmatpush1.bf16.msra.mxu0 0
    %8648 = vmatprep.subr.bf16.mxu0 0
    %8649 = vmatpush1.bf16.msra.mxu0 0
    %8650 = vmatprep.subr.bf16.mxu0 0
    %8651 = vmatpush1.bf16.msra.mxu0 0
    %8652 = vmatprep.subr.bf16.mxu0 0
    %8653 = vmatpush1.bf16.msra.mxu0 0
    %8654 = vmatprep.subr.bf16.mxu0 0
    %8655 = vmatpush1.bf16.msra.mxu0 0
    %8656 = vmatprep.subr.bf16.mxu0 0
    %8657 = vmatpush1.bf16.msra.mxu0 0
    %8658 = vmatprep.subr.bf16.mxu0 0
    %8659 = vmatpush1.bf16.msra.mxu0 0
    %8660 = vmatprep.subr.bf16.mxu0 0
    %8661 = vmatpush1.bf16.msra.mxu0 0
    %8662 = vmatprep.mubr.bf16.mxu0 0
    %8663 = vmatmul.mubr.bf16.gmra.mrb[0].mxu0 %v616
    %v8664 = vpop.f32.mrb[0].mxu0
    %v8665 = vadd.f32 %v8593, %v8664
    %v8666 = vpop.f32.mrb[0].mxu0
    %v8667 = vadd.f32 %v8597, %v8666
    %v8668 = vpop.f32.mrb[0].mxu0
    %v8669 = vadd.f32 %v8593, %v8668
    %v8670 = vpop.f32.mrb[0].mxu0
    %v8671 = vadd.f32 %v8597, %v8670
    %8672 = vdwg.mxu0
    %8673 = vmatprep.subr.bf16.mxu0 %v8584
    %8674 = vmatpush1.bf16.msra.mxu0 %v8583
    %8675 = vmatprep.subr.bf16.mxu0 0
    %8676 = vmatpush1.bf16.msra.mxu0 0
    %8677 = vmatprep.subr.bf16.mxu0 0
    %8678 = vmatpush1.bf16.msra.mxu0 0
    %8679 = vmatprep.subr.bf16.mxu0 0
    %8680 = vmatpush1.bf16.msra.mxu0 0
    %8681 = vmatprep.subr.bf16.mxu0 0
    %8682 = vmatpush1.bf16.msra.mxu0 0
    %8683 = vmatprep.subr.bf16.mxu0 0
    %8684 = vmatpush1.bf16.msra.mxu0 0
    %8685 = vmatprep.subr.bf16.mxu0 0
    %8686 = vmatpush1.bf16.msra.mxu0 0
    %8687 = vmatprep.subr.bf16.mxu0 0
    %8688 = vmatpush1.bf16.msra.mxu0 0
    %8689 = vmatprep.subr.bf16.mxu0 0
    %8690 = vmatpush1.bf16.msra.mxu0 0
    %8691 = vmatprep.subr.bf16.mxu0 0
    %8692 = vmatpush1.bf16.msra.mxu0 0
    %8693 = vmatprep.subr.bf16.mxu0 0
    %8694 = vmatpush1.bf16.msra.mxu0 0
    %8695 = vmatprep.subr.bf16.mxu0 0
    %8696 = vmatpush1.bf16.msra.mxu0 0
    %8697 = vmatprep.subr.bf16.mxu0 0
    %8698 = vmatpush1.bf16.msra.mxu0 0
    %8699 = vmatprep.subr.bf16.mxu0 0
    %8700 = vmatpush1.bf16.msra.mxu0 0
    %8701 = vmatprep.subr.bf16.mxu0 0
    %8702 = vmatpush1.bf16.msra.mxu0 0
    %8703 = vmatprep.subr.bf16.mxu0 0
    %8704 = vmatpush1.bf16.msra.mxu0 0
    %8705 = vmatprep.mubr.bf16.mxu0 0
    %8706 = vmatmul.mubr.bf16.gmra.mrb[0].mxu0 %v616
    %v8707 = vpop.f32.mrb[0].mxu0
    %v8708 = vadd.f32 %v8601, %v8707
    %v8709 = vpop.f32.mrb[0].mxu0
    %v8710 = vadd.f32 %v8605, %v8709
    %v8711 = vpop.f32.mrb[0].mxu0
    %v8712 = vadd.f32 %v8601, %v8711
    %v8713 = vpop.f32.mrb[0].mxu0
    %v8714 = vadd.f32 %v8605, %v8713
    %8715 = vdwg.mxu0
    %8716 = vmatprep.subr.bf16.mxu0 %v8586
    %8717 = vmatpush1.bf16.msra.mxu0 %v8585
    %8718 = vmatprep.subr.bf16.mxu0 0
    %8719 = vmatpush1.bf16.msra.mxu0 0
    %8720 = vmatprep.subr.bf16.mxu0 0
    %8721 = vmatpush1.bf16.msra.mxu0 0
    %8722 = vmatprep.subr.bf16.mxu0 0
    %8723 = vmatpush1.bf16.msra.mxu0 0
    %8724 = vmatprep.subr.bf16.mxu0 0
    %8725 = vmatpush1.bf16.msra.mxu0 0
    %8726 = vmatprep.subr.bf16.mxu0 0
    %8727 = vmatpush1.bf16.msra.mxu0 0
    %8728 = vmatprep.subr.bf16.mxu0 0
    %8729 = vmatpush1.bf16.msra.mxu0 0
    %8730 = vmatprep.subr.bf16.mxu0 0
    %8731 = vmatpush1.bf16.msra.mxu0 0
    %8732 = vmatprep.subr.bf16.mxu0 0
    %8733 = vmatpush1.bf16.msra.mxu0 0
    %8734 = vmatprep.subr.bf16.mxu0 0
    %8735 = vmatpush1.bf16.msra.mxu0 0
    %8736 = vmatprep.subr.bf16.mxu0 0
    %8737 = vmatpush1.bf16.msra.mxu0 0
    %8738 = vmatprep.subr.bf16.mxu0 0
    %8739 = vmatpush1.bf16.msra.mxu0 0
    %8740 = vmatprep.subr.bf16.mxu0 0
    %8741 = vmatpush1.bf16.msra.mxu0 0
    %8742 = vmatprep.subr.bf16.mxu0 0
    %8743 = vmatpush1.bf16.msra.mxu0 0
    %8744 = vmatprep.subr.bf16.mxu0 0
    %8745 = vmatpush1.bf16.msra.mxu0 0
    %8746 = vmatprep.subr.bf16.mxu0 0
    %8747 = vmatpush1.bf16.msra.mxu0 0
    %8748 = vmatprep.mubr.bf16.mxu0 0
    %8749 = vmatmul.mubr.bf16.gmra.mrb[0].mxu0 %v616
    %v8750 = vpop.f32.mrb[0].mxu0
    %v8751 = vadd.f32 %v8609, %v8750
    %v8752 = vpop.f32.mrb[0].mxu0
    %v8753 = vadd.f32 %v8613, %v8752
    %v8754 = vpop.f32.mrb[0].mxu0
    %v8755 = vadd.f32 %v8609, %v8754
    %v8756 = vpop.f32.mrb[0].mxu0
    %v8757 = vadd.f32 %v8613, %v8756
    %8758 = vdwg.mxu0
    %8759 = vmatprep.subr.bf16.mxu0 %v8588
    %8760 = vmatpush1.bf16.msra.mxu0 %v8587
    %8761 = vmatprep.subr.bf16.mxu0 0
    %8762 = vmatpush1.bf16.msra.mxu0 0
    %8763 = vmatprep.subr.bf16.mxu0 0
    %8764 = vmatpush1.bf16.msra.mxu0 0
    %8765 = vmatprep.subr.bf16.mxu0 0
    %8766 = vmatpush1.bf16.msra.mxu0 0
    %8767 = vmatprep.subr.bf16.mxu0 0
    %8768 = vmatpush1.bf16.msra.mxu0 0
    %8769 = vmatprep.subr.bf16.mxu0 0
    %8770 = vmatpush1.bf16.msra.mxu0 0
    %8771 = vmatprep.subr.bf16.mxu0 0
    %8772 = vmatpush1.bf16.msra.mxu0 0
    %8773 = vmatprep.subr.bf16.mxu0 0
    %8774 = vmatpush1.bf16.msra.mxu0 0
    %8775 = vmatprep.subr.bf16.mxu0 0
    %8776 = vmatpush1.bf16.msra.mxu0 0
    %8777 = vmatprep.subr.bf16.mxu0 0
    %8778 = vmatpush1.bf16.msra.mxu0 0
    %8779 = vmatprep.subr.bf16.mxu0 0
    %8780 = vmatpush1.bf16.msra.mxu0 0
    %8781 = vmatprep.subr.bf16.mxu0 0
    %8782 = vmatpush1.bf16.msra.mxu0 0
    %8783 = vmatprep.subr.bf16.mxu0 0
    %8784 = vmatpush1.bf16.msra.mxu0 0
    %8785 = vmatprep.subr.bf16.mxu0 0
    %8786 = vmatpush1.bf16.msra.mxu0 0
    %8787 = vmatprep.subr.bf16.mxu0 0
    %8788 = vmatpush1.bf16.msra.mxu0 0
    %8789 = vmatprep.subr.bf16.mxu0 0
    %8790 = vmatpush1.bf16.msra.mxu0 0
    %8791 = vmatprep.mubr.bf16.mxu0 0
    %8792 = vmatmul.mubr.bf16.gmra.mrb[0].mxu0 %v616
    %v8793 = vpop.f32.mrb[0].mxu0
    %v8794 = vadd.f32 %v8617, %v8793
    %v8795 = vpop.f32.mrb[0].mxu0
    %v8796 = vadd.f32 %v8621, %v8795
    %v8797 = vpop.f32.mrb[0].mxu0
    %v8798 = vadd.f32 %v8617, %v8797
    %v8799 = vpop.f32.mrb[0].mxu0
    %v8800 = vadd.f32 %v8621, %v8799
    %8801 = vdwg.mxu0
    %v8802 = vmax.f32 %v8665, 0.0
    %v8803 = vmax.f32 %v8667, 0.0
    %v8804 = vmax.f32 %v8708, 0.0
    %v8805 = vmax.f32 %v8710, 0.0
    %v8806 = vmax.f32 %v8751, 0.0
    %v8807 = vmax.f32 %v8753, 0.0
    %v8808 = vmax.f32 %v8794, 0.0
    %v8809 = vmax.f32 %v8796, 0.0
    %v8810 = vmax.f32 %v8669, 0.0
    %v8811 = vmax.f32 %v8671, 0.0
    %v8812 = vmax.f32 %v8712, 0.0
    %v8813 = vmax.f32 %v8714, 0.0
    %v8814 = vmax.f32 %v8755, 0.0
    %v8815 = vmax.f32 %v8757, 0.0
    %v8816 = vmax.f32 %v8798, 0.0
    %v8817 = vmax.f32 %v8800, 0.0
    %v8818 = vpack.c.bf16 %v8810, %v8802
    %v8819 = vpack.c.bf16 %v8811, %v8803
    %v8820 = vpack.c.bf16 %v8812, %v8804
    %v8821 = vpack.c.bf16 %v8813, %v8805
    %v8822 = vpack.c.bf16 %v8814, %v8806
    %v8823 = vpack.c.bf16 %v8815, %v8807
    %v8824 = vpack.c.bf16 %v8816, %v8808
    %v8825 = vpack.c.bf16 %v8817, %v8809
    %v8826 = vld [vmem:[#allocation12] sm:$0xff]
    %v8827 = vld [vmem:[#allocation12 + $0x8] sm:$0xff]
    %v8828 = vld [vmem:[#allocation12 + $0x10] sm:$0xff]
    %v8829 = vld [vmem:[#allocation12 + $0x18] sm:$0xff]
    %v8830 = vld [vmem:[#allocation12 + $0x20] sm:$0xff]
    %v8831 = vld [vmem:[#allocation12 + $0x28] sm:$0xff]
    %v8832 = vld [vmem:[#allocation12 + $0x30] sm:$0xff]
    %v8833 = vld [vmem:[#allocation12 + $0x38] sm:$0xff]
    %v8834 = vld [vmem:[#allocation12 + $0x40] sm:$0xff]
    %v8835 = vld [vmem:[#allocation12 + $0x48] sm:$0xff]
    %v8836 = vld [vmem:[#allocation12 + $0x50] sm:$0xff]
    %v8837 = vld [vmem:[#allocation12 + $0x58] sm:$0xff]
    %v8838 = vld [vmem:[#allocation12 + $0x60] sm:$0xff]
    %v8839 = vld [vmem:[#allocation12 + $0x68] sm:$0xff]
    %v8840 = vld [vmem:[#allocation12 + $0x70] sm:$0xff]
    %v8841 = vld [vmem:[#allocation12 + $0x78] sm:$0xff]
    %v8842 = vld [vmem:[#allocation12 + $0x80] sm:$0xff]
    %v8843 = vld [vmem:[#allocation12 + $0x88] sm:$0xff]
    %v8844 = vld [vmem:[#allocation12 + $0x90] sm:$0xff]
    %v8845 = vld [vmem:[#allocation12 + $0x98] sm:$0xff]
    %v8846 = vld [vmem:[#allocation12 + $0xa0] sm:$0xff]
    %v8847 = vld [vmem:[#allocation12 + $0xa8] sm:$0xff]
    %v8848 = vld [vmem:[#allocation12 + $0xb0] sm:$0xff]
    %v8849 = vld [vmem:[#allocation12 + $0xb8] sm:$0xff]
    %v8850 = vld [vmem:[#allocation12 + $0xc0] sm:$0xff]
    %v8851 = vld [vmem:[#allocation12 + $0xc8] sm:$0xff]
    %v8852 = vld [vmem:[#allocation12 + $0xd0] sm:$0xff]
    %v8853 = vld [vmem:[#allocation12 + $0xd8] sm:$0xff]
    %v8854 = vld [vmem:[#allocation12 + $0xe0] sm:$0xff]
    %v8855 = vld [vmem:[#allocation12 + $0xe8] sm:$0xff]
    %v8856 = vld [vmem:[#allocation12 + $0xf0] sm:$0xff]
    %v8857 = vld [vmem:[#allocation12 + $0xf8] sm:$0xff]
    %v8858 = vld [vmem:[#allocation12 + $0x100] sm:$0xff]
    %v8859 = vld [vmem:[#allocation12 + $0x108] sm:$0xff]
    %v8860 = vld [vmem:[#allocation12 + $0x110] sm:$0xff]
    %v8861 = vld [vmem:[#allocation12 + $0x118] sm:$0xff]
    %v8862 = vld [vmem:[#allocation12 + $0x120] sm:$0xff]
    %v8863 = vld [vmem:[#allocation12 + $0x128] sm:$0xff]
    %v8864 = vld [vmem:[#allocation12 + $0x130] sm:$0xff]
    %v8865 = vld [vmem:[#allocation12 + $0x138] sm:$0xff]
    %v8866 = vld [vmem:[#allocation12 + $0x140] sm:$0xff]
    %v8867 = vld [vmem:[#allocation12 + $0x148] sm:$0xff]
    %v8868 = vld [vmem:[#allocation12 + $0x150] sm:$0xff]
    %v8869 = vld [vmem:[#allocation12 + $0x158] sm:$0xff]
    %v8870 = vld [vmem:[#allocation12 + $0x160] sm:$0xff]
    %v8871 = vld [vmem:[#allocation12 + $0x168] sm:$0xff]
    %v8872 = vld [vmem:[#allocation12 + $0x170] sm:$0xff]
    %v8873 = vld [vmem:[#allocation12 + $0x178] sm:$0xff]
    %v8874 = vld [vmem:[#allocation12 + $0x180] sm:$0xff]
    %v8875 = vld [vmem:[#allocation12 + $0x188] sm:$0xff]
    %v8876 = vld [vmem:[#allocation12 + $0x190] sm:$0xff]
    %v8877 = vld [vmem:[#allocation12 + $0x198] sm:$0xff]
    %v8878 = vld [vmem:[#allocation12 + $0x1a0] sm:$0xff]
    %v8879 = vld [vmem:[#allocation12 + $0x1a8] sm:$0xff]
    %v8880 = vld [vmem:[#allocation12 + $0x1b0] sm:$0xff]
    %v8881 = vld [vmem:[#allocation12 + $0x1b8] sm:$0xff]
    %v8882 = vld [vmem:[#allocation12 + $0x1c0] sm:$0xff]
    %v8883 = vld [vmem:[#allocation12 + $0x1c8] sm:$0xff]
    %v8884 = vld [vmem:[#allocation12 + $0x1d0] sm:$0xff]
    %v8885 = vld [vmem:[#allocation12 + $0x1d8] sm:$0xff]
    %v8886 = vld [vmem:[#allocation12 + $0x1e0] sm:$0xff]
    %v8887 = vld [vmem:[#allocation12 + $0x1e8] sm:$0xff]
    %v8888 = vld [vmem:[#allocation12 + $0x1f0] sm:$0xff]
    %v8889 = vld [vmem:[#allocation12 + $0x1f8] sm:$0xff]
    %v8890 = vld [vmem:[#allocation12 + $0x200] sm:$0xff]
    %v8891 = vld [vmem:[#allocation12 + $0x208] sm:$0xff]
    %v8892 = vld [vmem:[#allocation12 + $0x210] sm:$0xff]
    %v8893 = vld [vmem:[#allocation12 + $0x218] sm:$0xff]
    %v8894 = vld [vmem:[#allocation12 + $0x220] sm:$0xff]
    %v8895 = vld [vmem:[#allocation12 + $0x228] sm:$0xff]
    %v8896 = vld [vmem:[#allocation12 + $0x230] sm:$0xff]
    %v8897 = vld [vmem:[#allocation12 + $0x238] sm:$0xff]
    %v8898 = vld [vmem:[#allocation12 + $0x240] sm:$0xff]
    %v8899 = vld [vmem:[#allocation12 + $0x248] sm:$0xff]
    %v8900 = vld [vmem:[#allocation12 + $0x250] sm:$0xff]
    %v8901 = vld [vmem:[#allocation12 + $0x258] sm:$0xff]
    %v8902 = vld [vmem:[#allocation12 + $0x260] sm:$0xff]
    %v8903 = vld [vmem:[#allocation12 + $0x268] sm:$0xff]
    %v8904 = vld [vmem:[#allocation12 + $0x270] sm:$0xff]
    %v8905 = vld [vmem:[#allocation12 + $0x278] sm:$0xff]
    %v8906 = vld [vmem:[#allocation12 + $0x280] sm:$0xff]
    %v8907 = vld [vmem:[#allocation12 + $0x288] sm:$0xff]
    %v8908 = vld [vmem:[#allocation12 + $0x290] sm:$0xff]
    %v8909 = vld [vmem:[#allocation12 + $0x298] sm:$0xff]
    %v8910 = vld [vmem:[#allocation12 + $0x2a0] sm:$0xff]
    %v8911 = vld [vmem:[#allocation12 + $0x2a8] sm:$0xff]
    %v8912 = vld [vmem:[#allocation12 + $0x2b0] sm:$0xff]
    %v8913 = vld [vmem:[#allocation12 + $0x2b8] sm:$0xff]
    %v8914 = vld [vmem:[#allocation12 + $0x2c0] sm:$0xff]
    %v8915 = vld [vmem:[#allocation12 + $0x2c8] sm:$0xff]
    %v8916 = vld [vmem:[#allocation12 + $0x2d0] sm:$0xff]
    %v8917 = vld [vmem:[#allocation12 + $0x2d8] sm:$0xff]
    %v8918 = vld [vmem:[#allocation12 + $0x2e0] sm:$0xff]
    %v8919 = vld [vmem:[#allocation12 + $0x2e8] sm:$0xff]
    %v8920 = vld [vmem:[#allocation12 + $0x2f0] sm:$0xff]
    %v8921 = vld [vmem:[#allocation12 + $0x2f8] sm:$0xff]
    %v8922 = vld [vmem:[#allocation12 + $0x300] sm:$0xff]
    %v8923 = vld [vmem:[#allocation12 + $0x308] sm:$0xff]
    %v8924 = vld [vmem:[#allocation12 + $0x310] sm:$0xff]
    %v8925 = vld [vmem:[#allocation12 + $0x318] sm:$0xff]
    %v8926 = vld [vmem:[#allocation12 + $0x320] sm:$0xff]
    %v8927 = vld [vmem:[#allocation12 + $0x328] sm:$0xff]
    %v8928 = vld [vmem:[#allocation12 + $0x330] sm:$0xff]
    %v8929 = vld [vmem:[#allocation12 + $0x338] sm:$0xff]
    %v8930 = vld [vmem:[#allocation12 + $0x340] sm:$0xff]
    %v8931 = vld [vmem:[#allocation12 + $0x348] sm:$0xff]
    %v8932 = vld [vmem:[#allocation12 + $0x350] sm:$0xff]
    %v8933 = vld [vmem:[#allocation12 + $0x358] sm:$0xff]
    %v8934 = vld [vmem:[#allocation12 + $0x360] sm:$0xff]
    %v8935 = vld [vmem:[#allocation12 + $0x368] sm:$0xff]
    %v8936 = vld [vmem:[#allocation12 + $0x370] sm:$0xff]
    %v8937 = vld [vmem:[#allocation12 + $0x378] sm:$0xff]
    %v8938 = vld [vmem:[#allocation12 + $0x380] sm:$0xff]
    %v8939 = vld [vmem:[#allocation12 + $0x388] sm:$0xff]
    %v8940 = vld [vmem:[#allocation12 + $0x390] sm:$0xff]
    %v8941 = vld [vmem:[#allocation12 + $0x398] sm:$0xff]
    %v8942 = vld [vmem:[#allocation12 + $0x3a0] sm:$0xff]
    %v8943 = vld [vmem:[#allocation12 + $0x3a8] sm:$0xff]
    %v8944 = vld [vmem:[#allocation12 + $0x3b0] sm:$0xff]
    %v8945 = vld [vmem:[#allocation12 + $0x3b8] sm:$0xff]
    %v8946 = vld [vmem:[#allocation12 + $0x3c0] sm:$0xff]
    %v8947 = vld [vmem:[#allocation12 + $0x3c8] sm:$0xff]
    %v8948 = vld [vmem:[#allocation12 + $0x3d0] sm:$0xff]
    %v8949 = vld [vmem:[#allocation12 + $0x3d8] sm:$0xff]
    %v8950 = vld [vmem:[#allocation12 + $0x3e0] sm:$0xff]
    %v8951 = vld [vmem:[#allocation12 + $0x3e8] sm:$0xff]
    %v8952 = vld [vmem:[#allocation12 + $0x3f0] sm:$0xff]
    %v8953 = vld [vmem:[#allocation12 + $0x3f8] sm:$0xff]
    %v8954 = vld [vmem:[#allocation12 + $0x400] sm:$0xff]
    %v8955 = vld [vmem:[#allocation12 + $0x408] sm:$0xff]
    %v8956 = vld [vmem:[#allocation12 + $0x410] sm:$0xff]
    %v8957 = vld [vmem:[#allocation12 + $0x418] sm:$0xff]
    %v8958 = vld [vmem:[#allocation12 + $0x420] sm:$0xff]
    %v8959 = vld [vmem:[#allocation12 + $0x428] sm:$0xff]
    %v8960 = vld [vmem:[#allocation12 + $0x430] sm:$0xff]
    %v8961 = vld [vmem:[#allocation12 + $0x438] sm:$0xff]
    %v8962 = vld [vmem:[#allocation12 + $0x440] sm:$0xff]
    %v8963 = vld [vmem:[#allocation12 + $0x448] sm:$0xff]
    %v8964 = vld [vmem:[#allocation12 + $0x450] sm:$0xff]
    %v8965 = vld [vmem:[#allocation12 + $0x458] sm:$0xff]
    %v8966 = vld [vmem:[#allocation12 + $0x460] sm:$0xff]
    %v8967 = vld [vmem:[#allocation12 + $0x468] sm:$0xff]
    %v8968 = vld [vmem:[#allocation12 + $0x470] sm:$0xff]
    %v8969 = vld [vmem:[#allocation12 + $0x478] sm:$0xff]
    %v8970 = vld [vmem:[#allocation12 + $0x480] sm:$0xff]
    %v8971 = vld [vmem:[#allocation12 + $0x488] sm:$0xff]
    %v8972 = vld [vmem:[#allocation12 + $0x490] sm:$0xff]
    %v8973 = vld [vmem:[#allocation12 + $0x498] sm:$0xff]
    %v8974 = vld [vmem:[#allocation12 + $0x4a0] sm:$0xff]
    %v8975 = vld [vmem:[#allocation12 + $0x4a8] sm:$0xff]
    %v8976 = vld [vmem:[#allocation12 + $0x4b0] sm:$0xff]
    %v8977 = vld [vmem:[#allocation12 + $0x4b8] sm:$0xff]
    %v8978 = vld [vmem:[#allocation12 + $0x4c0] sm:$0xff]
    %v8979 = vld [vmem:[#allocation12 + $0x4c8] sm:$0xff]
    %v8980 = vld [vmem:[#allocation12 + $0x4d0] sm:$0xff]
    %v8981 = vld [vmem:[#allocation12 + $0x4d8] sm:$0xff]
    %v8982 = vld [vmem:[#allocation12 + $0x4e0] sm:$0xff]
    %v8983 = vld [vmem:[#allocation12 + $0x4e8] sm:$0xff]
    %v8984 = vld [vmem:[#allocation12 + $0x4f0] sm:$0xff]
    %v8985 = vld [vmem:[#allocation12 + $0x4f8] sm:$0xff]
    %v8986 = vld [vmem:[#allocation12 + $0x500] sm:$0xff]
    %v8987 = vld [vmem:[#allocation12 + $0x508] sm:$0xff]
    %v8988 = vld [vmem:[#allocation12 + $0x510] sm:$0xff]
    %v8989 = vld [vmem:[#allocation12 + $0x518] sm:$0xff]
    %v8990 = vld [vmem:[#allocation12 + $0x520] sm:$0xff]
    %v8991 = vld [vmem:[#allocation12 + $0x528] sm:$0xff]
    %v8992 = vld [vmem:[#allocation12 + $0x530] sm:$0xff]
    %v8993 = vld [vmem:[#allocation12 + $0x538] sm:$0xff]
    %v8994 = vld [vmem:[#allocation12 + $0x540] sm:$0xff]
    %v8995 = vld [vmem:[#allocation12 + $0x548] sm:$0xff]
    %v8996 = vld [vmem:[#allocation12 + $0x550] sm:$0xff]
    %v8997 = vld [vmem:[#allocation12 + $0x558] sm:$0xff]
    %v8998 = vld [vmem:[#allocation12 + $0x560] sm:$0xff]
    %v8999 = vld [vmem:[#allocation12 + $0x568] sm:$0xff]
    %v9000 = vld [vmem:[#allocation12 + $0x570] sm:$0xff]
    %v9001 = vld [vmem:[#allocation12 + $0x578] sm:$0xff]
    %v9002 = vld [vmem:[#allocation12 + $0x580] sm:$0xff]
    %v9003 = vld [vmem:[#allocation12 + $0x588] sm:$0xff]
    %v9004 = vld [vmem:[#allocation12 + $0x590] sm:$0xff]
    %v9005 = vld [vmem:[#allocation12 + $0x598] sm:$0xff]
    %v9006 = vld [vmem:[#allocation12 + $0x5a0] sm:$0xff]
    %v9007 = vld [vmem:[#allocation12 + $0x5a8] sm:$0xff]
    %v9008 = vld [vmem:[#allocation12 + $0x5b0] sm:$0xff]
    %v9009 = vld [vmem:[#allocation12 + $0x5b8] sm:$0xff]
    %v9010 = vld [vmem:[#allocation12 + $0x5c0] sm:$0xff]
    %v9011 = vld [vmem:[#allocation12 + $0x5c8] sm:$0xff]
    %v9012 = vld [vmem:[#allocation12 + $0x5d0] sm:$0xff]
    %v9013 = vld [vmem:[#allocation12 + $0x5d8] sm:$0xff]
    %v9014 = vld [vmem:[#allocation12 + $0x5e0] sm:$0xff]
    %v9015 = vld [vmem:[#allocation12 + $0x5e8] sm:$0xff]
    %v9016 = vld [vmem:[#allocation12 + $0x5f0] sm:$0xff]
    %v9017 = vld [vmem:[#allocation12 + $0x5f8] sm:$0xff]
    %v9018 = vld [vmem:[#allocation12 + $0x600] sm:$0xff]
    %v9019 = vld [vmem:[#allocation12 + $0x608] sm:$0xff]
    %v9020 = vld [vmem:[#allocation12 + $0x610] sm:$0xff]
    %v9021 = vld [vmem:[#allocation12 + $0x618] sm:$0xff]
    %v9022 = vld [vmem:[#allocation12 + $0x620] sm:$0xff]
    %v9023 = vld [vmem:[#allocation12 + $0x628] sm:$0xff]
    %v9024 = vld [vmem:[#allocation12 + $0x630] sm:$0xff]
    %v9025 = vld [vmem:[#allocation12 + $0x638] sm:$0xff]
    %v9026 = vld [vmem:[#allocation12 + $0x640] sm:$0xff]
    %v9027 = vld [vmem:[#allocation12 + $0x648] sm:$0xff]
    %v9028 = vld [vmem:[#allocation12 + $0x650] sm:$0xff]
    %v9029 = vld [vmem:[#allocation12 + $0x658] sm:$0xff]
    %v9030 = vld [vmem:[#allocation12 + $0x660] sm:$0xff]
    %v9031 = vld [vmem:[#allocation12 + $0x668] sm:$0xff]
    %v9032 = vld [vmem:[#allocation12 + $0x670] sm:$0xff]
    %v9033 = vld [vmem:[#allocation12 + $0x678] sm:$0xff]
    %v9034 = vld [vmem:[#allocation12 + $0x680] sm:$0xff]
    %v9035 = vld [vmem:[#allocation12 + $0x688] sm:$0xff]
    %v9036 = vld [vmem:[#allocation12 + $0x690] sm:$0xff]
    %v9037 = vld [vmem:[#allocation12 + $0x698] sm:$0xff]
    %v9038 = vld [vmem:[#allocation12 + $0x6a0] sm:$0xff]
    %v9039 = vld [vmem:[#allocation12 + $0x6a8] sm:$0xff]
    %v9040 = vld [vmem:[#allocation12 + $0x6b0] sm:$0xff]
    %v9041 = vld [vmem:[#allocation12 + $0x6b8] sm:$0xff]
    %v9042 = vld [vmem:[#allocation12 + $0x6c0] sm:$0xff]
    %v9043 = vld [vmem:[#allocation12 + $0x6c8] sm:$0xff]
    %v9044 = vld [vmem:[#allocation12 + $0x6d0] sm:$0xff]
    %v9045 = vld [vmem:[#allocation12 + $0x6d8] sm:$0xff]
    %v9046 = vld [vmem:[#allocation12 + $0x6e0] sm:$0xff]
    %v9047 = vld [vmem:[#allocation12 + $0x6e8] sm:$0xff]
    %v9048 = vld [vmem:[#allocation12 + $0x6f0] sm:$0xff]
    %v9049 = vld [vmem:[#allocation12 + $0x6f8] sm:$0xff]
    %v9050 = vld [vmem:[#allocation12 + $0x700] sm:$0xff]
    %v9051 = vld [vmem:[#allocation12 + $0x708] sm:$0xff]
    %v9052 = vld [vmem:[#allocation12 + $0x710] sm:$0xff]
    %v9053 = vld [vmem:[#allocation12 + $0x718] sm:$0xff]
    %v9054 = vld [vmem:[#allocation12 + $0x720] sm:$0xff]
    %v9055 = vld [vmem:[#allocation12 + $0x728] sm:$0xff]
    %v9056 = vld [vmem:[#allocation12 + $0x730] sm:$0xff]
    %v9057 = vld [vmem:[#allocation12 + $0x738] sm:$0xff]
    %v9058 = vld [vmem:[#allocation12 + $0x740] sm:$0xff]
    %v9059 = vld [vmem:[#allocation12 + $0x748] sm:$0xff]
    %v9060 = vld [vmem:[#allocation12 + $0x750] sm:$0xff]
    %v9061 = vld [vmem:[#allocation12 + $0x758] sm:$0xff]
    %v9062 = vld [vmem:[#allocation12 + $0x760] sm:$0xff]
    %v9063 = vld [vmem:[#allocation12 + $0x768] sm:$0xff]
    %v9064 = vld [vmem:[#allocation12 + $0x770] sm:$0xff]
    %v9065 = vld [vmem:[#allocation12 + $0x778] sm:$0xff]
    %v9066 = vld [vmem:[#allocation12 + $0x780] sm:$0xff]
    %v9067 = vld [vmem:[#allocation12 + $0x788] sm:$0xff]
    %v9068 = vld [vmem:[#allocation12 + $0x790] sm:$0xff]
    %v9069 = vld [vmem:[#allocation12 + $0x798] sm:$0xff]
    %v9070 = vld [vmem:[#allocation12 + $0x7a0] sm:$0xff]
    %v9071 = vld [vmem:[#allocation12 + $0x7a8] sm:$0xff]
    %v9072 = vld [vmem:[#allocation12 + $0x7b0] sm:$0xff]
    %v9073 = vld [vmem:[#allocation12 + $0x7b8] sm:$0xff]
    %v9074 = vld [vmem:[#allocation12 + $0x7c0] sm:$0xff]
    %v9075 = vld [vmem:[#allocation12 + $0x7c8] sm:$0xff]
    %v9076 = vld [vmem:[#allocation12 + $0x7d0] sm:$0xff]
    %v9077 = vld [vmem:[#allocation12 + $0x7d8] sm:$0xff]
    %v9078 = vld [vmem:[#allocation12 + $0x7e0] sm:$0xff]
    %v9079 = vld [vmem:[#allocation12 + $0x7e8] sm:$0xff]
    %v9080 = vld [vmem:[#allocation12 + $0x7f0] sm:$0xff]
    %v9081 = vld [vmem:[#allocation12 + $0x7f8] sm:$0xff]
    %v9082 = vld [vmem:[#allocation13] sm:$0xf]
    %v9339 = vunpack.c.l.b16 %v8826
    %v9340 = vunpack.c.h.b16 %v8826
    %v9341 = vunpack.c.l.b16 %v8827
    %v9342 = vunpack.c.h.b16 %v8827
    %v9343 = vunpack.c.l.b16 %v8828
    %v9344 = vunpack.c.h.b16 %v8828
    %v9345 = vunpack.c.l.b16 %v8829
    %v9346 = vunpack.c.h.b16 %v8829
    %v9347 = vunpack.c.l.b16 %v8830
    %v9348 = vunpack.c.h.b16 %v8830
    %v9349 = vunpack.c.l.b16 %v8831
    %v9350 = vunpack.c.h.b16 %v8831
    %v9351 = vunpack.c.l.b16 %v8832
    %v9352 = vunpack.c.h.b16 %v8832
    %v9353 = vunpack.c.l.b16 %v8833
    %v9354 = vunpack.c.h.b16 %v8833
    %v9355 = vunpack.c.l.b16 %v8834
    %v9356 = vunpack.c.h.b16 %v8834
    %v9357 = vunpack.c.l.b16 %v8835
    %v9358 = vunpack.c.h.b16 %v8835
    %v9359 = vunpack.c.l.b16 %v8836
    %v9360 = vunpack.c.h.b16 %v8836
    %v9361 = vunpack.c.l.b16 %v8837
    %v9362 = vunpack.c.h.b16 %v8837
    %v9363 = vunpack.c.l.b16 %v8838
    %v9364 = vunpack.c.h.b16 %v8838
    %v9365 = vunpack.c.l.b16 %v8839
    %v9366 = vunpack.c.h.b16 %v8839
    %v9367 = vunpack.c.l.b16 %v8840
    %v9368 = vunpack.c.h.b16 %v8840
    %v9369 = vunpack.c.l.b16 %v8841
    %v9370 = vunpack.c.h.b16 %v8841
    %v9371 = vunpack.c.l.b16 %v8842
    %v9372 = vunpack.c.h.b16 %v8842
    %v9373 = vunpack.c.l.b16 %v8843
    %v9374 = vunpack.c.h.b16 %v8843
    %v9375 = vunpack.c.l.b16 %v8844
    %v9376 = vunpack.c.h.b16 %v8844
    %v9377 = vunpack.c.l.b16 %v8845
    %v9378 = vunpack.c.h.b16 %v8845
    %v9379 = vunpack.c.l.b16 %v8846
    %v9380 = vunpack.c.h.b16 %v8846
    %v9381 = vunpack.c.l.b16 %v8847
    %v9382 = vunpack.c.h.b16 %v8847
    %v9383 = vunpack.c.l.b16 %v8848
    %v9384 = vunpack.c.h.b16 %v8848
    %v9385 = vunpack.c.l.b16 %v8849
    %v9386 = vunpack.c.h.b16 %v8849
    %v9387 = vunpack.c.l.b16 %v8850
    %v9388 = vunpack.c.h.b16 %v8850
    %v9389 = vunpack.c.l.b16 %v8851
    %v9390 = vunpack.c.h.b16 %v8851
    %v9391 = vunpack.c.l.b16 %v8852
    %v9392 = vunpack.c.h.b16 %v8852
    %v9393 = vunpack.c.l.b16 %v8853
    %v9394 = vunpack.c.h.b16 %v8853
    %v9395 = vunpack.c.l.b16 %v8854
    %v9396 = vunpack.c.h.b16 %v8854
    %v9397 = vunpack.c.l.b16 %v8855
    %v9398 = vunpack.c.h.b16 %v8855
    %v9399 = vunpack.c.l.b16 %v8856
    %v9400 = vunpack.c.h.b16 %v8856
    %v9401 = vunpack.c.l.b16 %v8857
    %v9402 = vunpack.c.h.b16 %v8857
    %v9403 = vunpack.c.l.b16 %v8858
    %v9404 = vunpack.c.h.b16 %v8858
    %v9405 = vunpack.c.l.b16 %v8859
    %v9406 = vunpack.c.h.b16 %v8859
    %v9407 = vunpack.c.l.b16 %v8860
    %v9408 = vunpack.c.h.b16 %v8860
    %v9409 = vunpack.c.l.b16 %v8861
    %v9410 = vunpack.c.h.b16 %v8861
    %v9411 = vunpack.c.l.b16 %v8862
    %v9412 = vunpack.c.h.b16 %v8862
    %v9413 = vunpack.c.l.b16 %v8863
    %v9414 = vunpack.c.h.b16 %v8863
    %v9415 = vunpack.c.l.b16 %v8864
    %v9416 = vunpack.c.h.b16 %v8864
    %v9417 = vunpack.c.l.b16 %v8865
    %v9418 = vunpack.c.h.b16 %v8865
    %v9419 = vunpack.c.l.b16 %v8866
    %v9420 = vunpack.c.h.b16 %v8866
    %v9421 = vunpack.c.l.b16 %v8867
    %v9422 = vunpack.c.h.b16 %v8867
    %v9423 = vunpack.c.l.b16 %v8868
    %v9424 = vunpack.c.h.b16 %v8868
    %v9425 = vunpack.c.l.b16 %v8869
    %v9426 = vunpack.c.h.b16 %v8869
    %v9427 = vunpack.c.l.b16 %v8870
    %v9428 = vunpack.c.h.b16 %v8870
    %v9429 = vunpack.c.l.b16 %v8871
    %v9430 = vunpack.c.h.b16 %v8871
    %v9431 = vunpack.c.l.b16 %v8872
    %v9432 = vunpack.c.h.b16 %v8872
    %v9433 = vunpack.c.l.b16 %v8873
    %v9434 = vunpack.c.h.b16 %v8873
    %v9435 = vunpack.c.l.b16 %v8874
    %v9436 = vunpack.c.h.b16 %v8874
    %v9437 = vunpack.c.l.b16 %v8875
    %v9438 = vunpack.c.h.b16 %v8875
    %v9439 = vunpack.c.l.b16 %v8876
    %v9440 = vunpack.c.h.b16 %v8876
    %v9441 = vunpack.c.l.b16 %v8877
    %v9442 = vunpack.c.h.b16 %v8877
    %v9443 = vunpack.c.l.b16 %v8878
    %v9444 = vunpack.c.h.b16 %v8878
    %v9445 = vunpack.c.l.b16 %v8879
    %v9446 = vunpack.c.h.b16 %v8879
    %v9447 = vunpack.c.l.b16 %v8880
    %v9448 = vunpack.c.h.b16 %v8880
    %v9449 = vunpack.c.l.b16 %v8881
    %v9450 = vunpack.c.h.b16 %v8881
    %v9451 = vunpack.c.l.b16 %v8882
    %v9452 = vunpack.c.h.b16 %v8882
    %v9453 = vunpack.c.l.b16 %v8883
    %v9454 = vunpack.c.h.b16 %v8883
    %v9455 = vunpack.c.l.b16 %v8884
    %v9456 = vunpack.c.h.b16 %v8884
    %v9457 = vunpack.c.l.b16 %v8885
    %v9458 = vunpack.c.h.b16 %v8885
    %v9459 = vunpack.c.l.b16 %v8886
    %v9460 = vunpack.c.h.b16 %v8886
    %v9461 = vunpack.c.l.b16 %v8887
    %v9462 = vunpack.c.h.b16 %v8887
    %v9463 = vunpack.c.l.b16 %v8888
    %v9464 = vunpack.c.h.b16 %v8888
    %v9465 = vunpack.c.l.b16 %v8889
    %v9466 = vunpack.c.h.b16 %v8889
    %v9467 = vunpack.c.l.b16 %v8890
    %v9468 = vunpack.c.h.b16 %v8890
    %v9469 = vunpack.c.l.b16 %v8891
    %v9470 = vunpack.c.h.b16 %v8891
    %v9471 = vunpack.c.l.b16 %v8892
    %v9472 = vunpack.c.h.b16 %v8892
    %v9473 = vunpack.c.l.b16 %v8893
    %v9474 = vunpack.c.h.b16 %v8893
    %v9475 = vunpack.c.l.b16 %v8894
    %v9476 = vunpack.c.h.b16 %v8894
    %v9477 = vunpack.c.l.b16 %v8895
    %v9478 = vunpack.c.h.b16 %v8895
    %v9479 = vunpack.c.l.b16 %v8896
    %v9480 = vunpack.c.h.b16 %v8896
    %v9481 = vunpack.c.l.b16 %v8897
    %v9482 = vunpack.c.h.b16 %v8897
    %v9483 = vunpack.c.l.b16 %v8898
    %v9484 = vunpack.c.h.b16 %v8898
    %v9485 = vunpack.c.l.b16 %v8899
    %v9486 = vunpack.c.h.b16 %v8899
    %v9487 = vunpack.c.l.b16 %v8900
    %v9488 = vunpack.c.h.b16 %v8900
    %v9489 = vunpack.c.l.b16 %v8901
    %v9490 = vunpack.c.h.b16 %v8901
    %v9491 = vunpack.c.l.b16 %v8902
    %v9492 = vunpack.c.h.b16 %v8902
    %v9493 = vunpack.c.l.b16 %v8903
    %v9494 = vunpack.c.h.b16 %v8903
    %v9495 = vunpack.c.l.b16 %v8904
    %v9496 = vunpack.c.h.b16 %v8904
    %v9497 = vunpack.c.l.b16 %v8905
    %v9498 = vunpack.c.h.b16 %v8905
    %v9499 = vunpack.c.l.b16 %v8906
    %v9500 = vunpack.c.h.b16 %v8906
    %v9501 = vunpack.c.l.b16 %v8907
    %v9502 = vunpack.c.h.b16 %v8907
    %v9503 = vunpack.c.l.b16 %v8908
    %v9504 = vunpack.c.h.b16 %v8908
    %v9505 = vunpack.c.l.b16 %v8909
    %v9506 = vunpack.c.h.b16 %v8909
    %v9507 = vunpack.c.l.b16 %v8910
    %v9508 = vunpack.c.h.b16 %v8910
    %v9509 = vunpack.c.l.b16 %v8911
    %v9510 = vunpack.c.h.b16 %v8911
    %v9511 = vunpack.c.l.b16 %v8912
    %v9512 = vunpack.c.h.b16 %v8912
    %v9513 = vunpack.c.l.b16 %v8913
    %v9514 = vunpack.c.h.b16 %v8913
    %v9515 = vunpack.c.l.b16 %v8914
    %v9516 = vunpack.c.h.b16 %v8914
    %v9517 = vunpack.c.l.b16 %v8915
    %v9518 = vunpack.c.h.b16 %v8915
    %v9519 = vunpack.c.l.b16 %v8916
    %v9520 = vunpack.c.h.b16 %v8916
    %v9521 = vunpack.c.l.b16 %v8917
    %v9522 = vunpack.c.h.b16 %v8917
    %v9523 = vunpack.c.l.b16 %v8918
    %v9524 = vunpack.c.h.b16 %v8918
    %v9525 = vunpack.c.l.b16 %v8919
    %v9526 = vunpack.c.h.b16 %v8919
    %v9527 = vunpack.c.l.b16 %v8920
    %v9528 = vunpack.c.h.b16 %v8920
    %v9529 = vunpack.c.l.b16 %v8921
    %v9530 = vunpack.c.h.b16 %v8921
    %v9531 = vunpack.c.l.b16 %v8922
    %v9532 = vunpack.c.h.b16 %v8922
    %v9533 = vunpack.c.l.b16 %v8923
    %v9534 = vunpack.c.h.b16 %v8923
    %v9535 = vunpack.c.l.b16 %v8924
    %v9536 = vunpack.c.h.b16 %v8924
    %v9537 = vunpack.c.l.b16 %v8925
    %v9538 = vunpack.c.h.b16 %v8925
    %v9539 = vunpack.c.l.b16 %v8926
    %v9540 = vunpack.c.h.b16 %v8926
    %v9541 = vunpack.c.l.b16 %v8927
    %v9542 = vunpack.c.h.b16 %v8927
    %v9543 = vunpack.c.l.b16 %v8928
    %v9544 = vunpack.c.h.b16 %v8928
    %v9545 = vunpack.c.l.b16 %v8929
    %v9546 = vunpack.c.h.b16 %v8929
    %v9547 = vunpack.c.l.b16 %v8930
    %v9548 = vunpack.c.h.b16 %v8930
    %v9549 = vunpack.c.l.b16 %v8931
    %v9550 = vunpack.c.h.b16 %v8931
    %v9551 = vunpack.c.l.b16 %v8932
    %v9552 = vunpack.c.h.b16 %v8932
    %v9553 = vunpack.c.l.b16 %v8933
    %v9554 = vunpack.c.h.b16 %v8933
    %v9555 = vunpack.c.l.b16 %v8934
    %v9556 = vunpack.c.h.b16 %v8934
    %v9557 = vunpack.c.l.b16 %v8935
    %v9558 = vunpack.c.h.b16 %v8935
    %v9559 = vunpack.c.l.b16 %v8936
    %v9560 = vunpack.c.h.b16 %v8936
    %v9561 = vunpack.c.l.b16 %v8937
    %v9562 = vunpack.c.h.b16 %v8937
    %v9563 = vunpack.c.l.b16 %v8938
    %v9564 = vunpack.c.h.b16 %v8938
    %v9565 = vunpack.c.l.b16 %v8939
    %v9566 = vunpack.c.h.b16 %v8939
    %v9567 = vunpack.c.l.b16 %v8940
    %v9568 = vunpack.c.h.b16 %v8940
    %v9569 = vunpack.c.l.b16 %v8941
    %v9570 = vunpack.c.h.b16 %v8941
    %v9571 = vunpack.c.l.b16 %v8942
    %v9572 = vunpack.c.h.b16 %v8942
    %v9573 = vunpack.c.l.b16 %v8943
    %v9574 = vunpack.c.h.b16 %v8943
    %v9575 = vunpack.c.l.b16 %v8944
    %v9576 = vunpack.c.h.b16 %v8944
    %v9577 = vunpack.c.l.b16 %v8945
    %v9578 = vunpack.c.h.b16 %v8945
    %v9579 = vunpack.c.l.b16 %v8946
    %v9580 = vunpack.c.h.b16 %v8946
    %v9581 = vunpack.c.l.b16 %v8947
    %v9582 = vunpack.c.h.b16 %v8947
    %v9583 = vunpack.c.l.b16 %v8948
    %v9584 = vunpack.c.h.b16 %v8948
    %v9585 = vunpack.c.l.b16 %v8949
    %v9586 = vunpack.c.h.b16 %v8949
    %v9587 = vunpack.c.l.b16 %v8950
    %v9588 = vunpack.c.h.b16 %v8950
    %v9589 = vunpack.c.l.b16 %v8951
    %v9590 = vunpack.c.h.b16 %v8951
    %v9591 = vunpack.c.l.b16 %v8952
    %v9592 = vunpack.c.h.b16 %v8952
    %v9593 = vunpack.c.l.b16 %v8953
    %v9594 = vunpack.c.h.b16 %v8953
    %v9595 = vunpack.c.l.b16 %v8954
    %v9596 = vunpack.c.h.b16 %v8954
    %v9597 = vunpack.c.l.b16 %v8955
    %v9598 = vunpack.c.h.b16 %v8955
    %v9599 = vunpack.c.l.b16 %v8956
    %v9600 = vunpack.c.h.b16 %v8956
    %v9601 = vunpack.c.l.b16 %v8957
    %v9602 = vunpack.c.h.b16 %v8957
    %v9603 = vunpack.c.l.b16 %v8958
    %v9604 = vunpack.c.h.b16 %v8958
    %v9605 = vunpack.c.l.b16 %v8959
    %v9606 = vunpack.c.h.b16 %v8959
    %v9607 = vunpack.c.l.b16 %v8960
    %v9608 = vunpack.c.h.b16 %v8960
    %v9609 = vunpack.c.l.b16 %v8961
    %v9610 = vunpack.c.h.b16 %v8961
    %v9611 = vunpack.c.l.b16 %v8962
    %v9612 = vunpack.c.h.b16 %v8962
    %v9613 = vunpack.c.l.b16 %v8963
    %v9614 = vunpack.c.h.b16 %v8963
    %v9615 = vunpack.c.l.b16 %v8964
    %v9616 = vunpack.c.h.b16 %v8964
    %v9617 = vunpack.c.l.b16 %v8965
    %v9618 = vunpack.c.h.b16 %v8965
    %v9619 = vunpack.c.l.b16 %v8966
    %v9620 = vunpack.c.h.b16 %v8966
    %v9621 = vunpack.c.l.b16 %v8967
    %v9622 = vunpack.c.h.b16 %v8967
    %v9623 = vunpack.c.l.b16 %v8968
    %v9624 = vunpack.c.h.b16 %v8968
    %v9625 = vunpack.c.l.b16 %v8969
    %v9626 = vunpack.c.h.b16 %v8969
    %v9627 = vunpack.c.l.b16 %v8970
    %v9628 = vunpack.c.h.b16 %v8970
    %v9629 = vunpack.c.l.b16 %v8971
    %v9630 = vunpack.c.h.b16 %v8971
    %v9631 = vunpack.c.l.b16 %v8972
    %v9632 = vunpack.c.h.b16 %v8972
    %v9633 = vunpack.c.l.b16 %v8973
    %v9634 = vunpack.c.h.b16 %v8973
    %v9635 = vunpack.c.l.b16 %v8974
    %v9636 = vunpack.c.h.b16 %v8974
    %v9637 = vunpack.c.l.b16 %v8975
    %v9638 = vunpack.c.h.b16 %v8975
    %v9639 = vunpack.c.l.b16 %v8976
    %v9640 = vunpack.c.h.b16 %v8976
    %v9641 = vunpack.c.l.b16 %v8977
    %v9642 = vunpack.c.h.b16 %v8977
    %v9643 = vunpack.c.l.b16 %v8978
    %v9644 = vunpack.c.h.b16 %v8978
    %v9645 = vunpack.c.l.b16 %v8979
    %v9646 = vunpack.c.h.b16 %v8979
    %v9647 = vunpack.c.l.b16 %v8980
    %v9648 = vunpack.c.h.b16 %v8980
    %v9649 = vunpack.c.l.b16 %v8981
    %v9650 = vunpack.c.h.b16 %v8981
    %v9651 = vunpack.c.l.b16 %v8982
    %v9652 = vunpack.c.h.b16 %v8982
    %v9653 = vunpack.c.l.b16 %v8983
    %v9654 = vunpack.c.h.b16 %v8983
    %v9655 = vunpack.c.l.b16 %v8984
    %v9656 = vunpack.c.h.b16 %v8984
    %v9657 = vunpack.c.l.b16 %v8985
    %v9658 = vunpack.c.h.b16 %v8985
    %v9659 = vunpack.c.l.b16 %v8986
    %v9660 = vunpack.c.h.b16 %v8986
    %v9661 = vunpack.c.l.b16 %v8987
    %v9662 = vunpack.c.h.b16 %v8987
    %v9663 = vunpack.c.l.b16 %v8988
    %v9664 = vunpack.c.h.b16 %v8988
    %v9665 = vunpack.c.l.b16 %v8989
    %v9666 = vunpack.c.h.b16 %v8989
    %v9667 = vunpack.c.l.b16 %v8990
    %v9668 = vunpack.c.h.b16 %v8990
    %v9669 = vunpack.c.l.b16 %v8991
    %v9670 = vunpack.c.h.b16 %v8991
    %v9671 = vunpack.c.l.b16 %v8992
    %v9672 = vunpack.c.h.b16 %v8992
    %v9673 = vunpack.c.l.b16 %v8993
    %v9674 = vunpack.c.h.b16 %v8993
    %v9675 = vunpack.c.l.b16 %v8994
    %v9676 = vunpack.c.h.b16 %v8994
    %v9677 = vunpack.c.l.b16 %v8995
    %v9678 = vunpack.c.h.b16 %v8995
    %v9679 = vunpack.c.l.b16 %v8996
    %v9680 = vunpack.c.h.b16 %v8996
    %v9681 = vunpack.c.l.b16 %v8997
    %v9682 = vunpack.c.h.b16 %v8997
    %v9683 = vunpack.c.l.b16 %v8998
    %v9684 = vunpack.c.h.b16 %v8998
    %v9685 = vunpack.c.l.b16 %v8999
    %v9686 = vunpack.c.h.b16 %v8999
    %v9687 = vunpack.c.l.b16 %v9000
    %v9688 = vunpack.c.h.b16 %v9000
    %v9689 = vunpack.c.l.b16 %v9001
    %v9690 = vunpack.c.h.b16 %v9001
    %v9691 = vunpack.c.l.b16 %v9002
    %v9692 = vunpack.c.h.b16 %v9002
    %v9693 = vunpack.c.l.b16 %v9003
    %v9694 = vunpack.c.h.b16 %v9003
    %v9695 = vunpack.c.l.b16 %v9004
    %v9696 = vunpack.c.h.b16 %v9004
    %v9697 = vunpack.c.l.b16 %v9005
    %v9698 = vunpack.c.h.b16 %v9005
    %v9699 = vunpack.c.l.b16 %v9006
    %v9700 = vunpack.c.h.b16 %v9006
    %v9701 = vunpack.c.l.b16 %v9007
    %v9702 = vunpack.c.h.b16 %v9007
    %v9703 = vunpack.c.l.b16 %v9008
    %v9704 = vunpack.c.h.b16 %v9008
    %v9705 = vunpack.c.l.b16 %v9009
    %v9706 = vunpack.c.h.b16 %v9009
    %v9707 = vunpack.c.l.b16 %v9010
    %v9708 = vunpack.c.h.b16 %v9010
    %v9709 = vunpack.c.l.b16 %v9011
    %v9710 = vunpack.c.h.b16 %v9011
    %v9711 = vunpack.c.l.b16 %v9012
    %v9712 = vunpack.c.h.b16 %v9012
    %v9713 = vunpack.c.l.b16 %v9013
    %v9714 = vunpack.c.h.b16 %v9013
    %v9715 = vunpack.c.l.b16 %v9014
    %v9716 = vunpack.c.h.b16 %v9014
    %v9717 = vunpack.c.l.b16 %v9015
    %v9718 = vunpack.c.h.b16 %v9015
    %v9719 = vunpack.c.l.b16 %v9016
    %v9720 = vunpack.c.h.b16 %v9016
    %v9721 = vunpack.c.l.b16 %v9017
    %v9722 = vunpack.c.h.b16 %v9017
    %v9723 = vunpack.c.l.b16 %v9018
    %v9724 = vunpack.c.h.b16 %v9018
    %v9725 = vunpack.c.l.b16 %v9019
    %v9726 = vunpack.c.h.b16 %v9019
    %v9727 = vunpack.c.l.b16 %v9020
    %v9728 = vunpack.c.h.b16 %v9020
    %v9729 = vunpack.c.l.b16 %v9021
    %v9730 = vunpack.c.h.b16 %v9021
    %v9731 = vunpack.c.l.b16 %v9022
    %v9732 = vunpack.c.h.b16 %v9022
    %v9733 = vunpack.c.l.b16 %v9023
    %v9734 = vunpack.c.h.b16 %v9023
    %v9735 = vunpack.c.l.b16 %v9024
    %v9736 = vunpack.c.h.b16 %v9024
    %v9737 = vunpack.c.l.b16 %v9025
    %v9738 = vunpack.c.h.b16 %v9025
    %v9739 = vunpack.c.l.b16 %v9026
    %v9740 = vunpack.c.h.b16 %v9026
    %v9741 = vunpack.c.l.b16 %v9027
    %v9742 = vunpack.c.h.b16 %v9027
    %v9743 = vunpack.c.l.b16 %v9028
    %v9744 = vunpack.c.h.b16 %v9028
    %v9745 = vunpack.c.l.b16 %v9029
    %v9746 = vunpack.c.h.b16 %v9029
    %v9747 = vunpack.c.l.b16 %v9030
    %v9748 = vunpack.c.h.b16 %v9030
    %v9749 = vunpack.c.l.b16 %v9031
    %v9750 = vunpack.c.h.b16 %v9031
    %v9751 = vunpack.c.l.b16 %v9032
    %v9752 = vunpack.c.h.b16 %v9032
    %v9753 = vunpack.c.l.b16 %v9033
    %v9754 = vunpack.c.h.b16 %v9033
    %v9755 = vunpack.c.l.b16 %v9034
    %v9756 = vunpack.c.h.b16 %v9034
    %v9757 = vunpack.c.l.b16 %v9035
    %v9758 = vunpack.c.h.b16 %v9035
    %v9759 = vunpack.c.l.b16 %v9036
    %v9760 = vunpack.c.h.b16 %v9036
    %v9761 = vunpack.c.l.b16 %v9037
    %v9762 = vunpack.c.h.b16 %v9037
    %v9763 = vunpack.c.l.b16 %v9038
    %v9764 = vunpack.c.h.b16 %v9038
    %v9765 = vunpack.c.l.b16 %v9039
    %v9766 = vunpack.c.h.b16 %v9039
    %v9767 = vunpack.c.l.b16 %v9040
    %v9768 = vunpack.c.h.b16 %v9040
    %v9769 = vunpack.c.l.b16 %v9041
    %v9770 = vunpack.c.h.b16 %v9041
    %v9771 = vunpack.c.l.b16 %v9042
    %v9772 = vunpack.c.h.b16 %v9042
    %v9773 = vunpack.c.l.b16 %v9043
    %v9774 = vunpack.c.h.b16 %v9043
    %v9775 = vunpack.c.l.b16 %v9044
    %v9776 = vunpack.c.h.b16 %v9044
    %v9777 = vunpack.c.l.b16 %v9045
    %v9778 = vunpack.c.h.b16 %v9045
    %v9779 = vunpack.c.l.b16 %v9046
    %v9780 = vunpack.c.h.b16 %v9046
    %v9781 = vunpack.c.l.b16 %v9047
    %v9782 = vunpack.c.h.b16 %v9047
    %v9783 = vunpack.c.l.b16 %v9048
    %v9784 = vunpack.c.h.b16 %v9048
    %v9785 = vunpack.c.l.b16 %v9049
    %v9786 = vunpack.c.h.b16 %v9049
    %v9787 = vunpack.c.l.b16 %v9050
    %v9788 = vunpack.c.h.b16 %v9050
    %v9789 = vunpack.c.l.b16 %v9051
    %v9790 = vunpack.c.h.b16 %v9051
    %v9791 = vunpack.c.l.b16 %v9052
    %v9792 = vunpack.c.h.b16 %v9052
    %v9793 = vunpack.c.l.b16 %v9053
    %v9794 = vunpack.c.h.b16 %v9053
    %v9795 = vunpack.c.l.b16 %v9054
    %v9796 = vunpack.c.h.b16 %v9054
    %v9797 = vunpack.c.l.b16 %v9055
    %v9798 = vunpack.c.h.b16 %v9055
    %v9799 = vunpack.c.l.b16 %v9056
    %v9800 = vunpack.c.h.b16 %v9056
    %v9801 = vunpack.c.l.b16 %v9057
    %v9802 = vunpack.c.h.b16 %v9057
    %v9803 = vunpack.c.l.b16 %v9058
    %v9804 = vunpack.c.h.b16 %v9058
    %v9805 = vunpack.c.l.b16 %v9059
    %v9806 = vunpack.c.h.b16 %v9059
    %v9807 = vunpack.c.l.b16 %v9060
    %v9808 = vunpack.c.h.b16 %v9060
    %v9809 = vunpack.c.l.b16 %v9061
    %v9810 = vunpack.c.h.b16 %v9061
    %v9811 = vunpack.c.l.b16 %v9062
    %v9812 = vunpack.c.h.b16 %v9062
    %v9813 = vunpack.c.l.b16 %v9063
    %v9814 = vunpack.c.h.b16 %v9063
    %v9815 = vunpack.c.l.b16 %v9064
    %v9816 = vunpack.c.h.b16 %v9064
    %v9817 = vunpack.c.l.b16 %v9065
    %v9818 = vunpack.c.h.b16 %v9065
    %v9819 = vunpack.c.l.b16 %v9066
    %v9820 = vunpack.c.h.b16 %v9066
    %v9821 = vunpack.c.l.b16 %v9067
    %v9822 = vunpack.c.h.b16 %v9067
    %v9823 = vunpack.c.l.b16 %v9068
    %v9824 = vunpack.c.h.b16 %v9068
    %v9825 = vunpack.c.l.b16 %v9069
    %v9826 = vunpack.c.h.b16 %v9069
    %v9827 = vunpack.c.l.b16 %v9070
    %v9828 = vunpack.c.h.b16 %v9070
    %v9829 = vunpack.c.l.b16 %v9071
    %v9830 = vunpack.c.h.b16 %v9071
    %v9831 = vunpack.c.l.b16 %v9072
    %v9832 = vunpack.c.h.b16 %v9072
    %v9833 = vunpack.c.l.b16 %v9073
    %v9834 = vunpack.c.h.b16 %v9073
    %v9835 = vunpack.c.l.b16 %v9074
    %v9836 = vunpack.c.h.b16 %v9074
    %v9837 = vunpack.c.l.b16 %v9075
    %v9838 = vunpack.c.h.b16 %v9075
    %v9839 = vunpack.c.l.b16 %v9076
    %v9840 = vunpack.c.h.b16 %v9076
    %v9841 = vunpack.c.l.b16 %v9077
    %v9842 = vunpack.c.h.b16 %v9077
    %v9843 = vunpack.c.l.b16 %v9078
    %v9844 = vunpack.c.h.b16 %v9078
    %v9845 = vunpack.c.l.b16 %v9079
    %v9846 = vunpack.c.h.b16 %v9079
    %v9847 = vunpack.c.l.b16 %v9080
    %v9848 = vunpack.c.h.b16 %v9080
    %v9849 = vunpack.c.l.b16 %v9081
    %v9850 = vunpack.c.h.b16 %v9081
    %v9851 = vpack.c.b16 %v9343, %v9339
    %v9852 = vpack.c.b16 %v9344, %v9340
    %v9853 = vpack.c.b16 %v9345, %v9341
    %v9854 = vpack.c.b16 %v9346, %v9342
    %v9855 = vpack.c.b16 %v9351, %v9347
    %v9856 = vpack.c.b16 %v9352, %v9348
    %v9857 = vpack.c.b16 %v9353, %v9349
    %v9858 = vpack.c.b16 %v9354, %v9350
    %v9859 = vpack.c.b16 %v9359, %v9355
    %v9860 = vpack.c.b16 %v9360, %v9356
    %v9861 = vpack.c.b16 %v9361, %v9357
    %v9862 = vpack.c.b16 %v9362, %v9358
    %v9863 = vpack.c.b16 %v9367, %v9363
    %v9864 = vpack.c.b16 %v9368, %v9364
    %v9865 = vpack.c.b16 %v9369, %v9365
    %v9866 = vpack.c.b16 %v9370, %v9366
    %v9867 = vpack.c.b16 %v9375, %v9371
    %v9868 = vpack.c.b16 %v9376, %v9372
    %v9869 = vpack.c.b16 %v9377, %v9373
    %v9870 = vpack.c.b16 %v9378, %v9374
    %v9871 = vpack.c.b16 %v9383, %v9379
    %v9872 = vpack.c.b16 %v9384, %v9380
    %v9873 = vpack.c.b16 %v9385, %v9381
    %v9874 = vpack.c.b16 %v9386, %v9382
    %v9875 = vpack.c.b16 %v9391, %v9387
    %v9876 = vpack.c.b16 %v9392, %v9388
    %v9877 = vpack.c.b16 %v9393, %v9389
    %v9878 = vpack.c.b16 %v9394, %v9390
    %v9879 = vpack.c.b16 %v9399, %v9395
    %v9880 = vpack.c.b16 %v9400, %v9396
    %v9881 = vpack.c.b16 %v9401, %v9397
    %v9882 = vpack.c.b16 %v9402, %v9398
    %v9883 = vpack.c.b16 %v9407, %v9403
    %v9884 = vpack.c.b16 %v9408, %v9404
    %v9885 = vpack.c.b16 %v9409, %v9405
    %v9886 = vpack.c.b16 %v9410, %v9406
    %v9887 = vpack.c.b16 %v9415, %v9411
    %v9888 = vpack.c.b16 %v9416, %v9412
    %v9889 = vpack.c.b16 %v9417, %v9413
    %v9890 = vpack.c.b16 %v9418, %v9414
    %v9891 = vpack.c.b16 %v9423, %v9419
    %v9892 = vpack.c.b16 %v9424, %v9420
    %v9893 = vpack.c.b16 %v9425, %v9421
    %v9894 = vpack.c.b16 %v9426, %v9422
    %v9895 = vpack.c.b16 %v9431, %v9427
    %v9896 = vpack.c.b16 %v9432, %v9428
    %v9897 = vpack.c.b16 %v9433, %v9429
    %v9898 = vpack.c.b16 %v9434, %v9430
    %v9899 = vpack.c.b16 %v9439, %v9435
    %v9900 = vpack.c.b16 %v9440, %v9436
    %v9901 = vpack.c.b16 %v9441, %v9437
    %v9902 = vpack.c.b16 %v9442, %v9438
    %v9903 = vpack.c.b16 %v9447, %v9443
    %v9904 = vpack.c.b16 %v9448, %v9444
    %v9905 = vpack.c.b16 %v9449, %v9445
    %v9906 = vpack.c.b16 %v9450, %v9446
    %v9907 = vpack.c.b16 %v9455, %v9451
    %v9908 = vpack.c.b16 %v9456, %v9452
    %v9909 = vpack.c.b16 %v9457, %v9453
    %v9910 = vpack.c.b16 %v9458, %v9454
    %v9911 = vpack.c.b16 %v9463, %v9459
    %v9912 = vpack.c.b16 %v9464, %v9460
    %v9913 = vpack.c.b16 %v9465, %v9461
    %v9914 = vpack.c.b16 %v9466, %v9462
    %v9915 = vpack.c.b16 %v9471, %v9467
    %v9916 = vpack.c.b16 %v9472, %v9468
    %v9917 = vpack.c.b16 %v9473, %v9469
    %v9918 = vpack.c.b16 %v9474, %v9470
    %v9919 = vpack.c.b16 %v9479, %v9475
    %v9920 = vpack.c.b16 %v9480, %v9476
    %v9921 = vpack.c.b16 %v9481, %v9477
    %v9922 = vpack.c.b16 %v9482, %v9478
    %v9923 = vpack.c.b16 %v9487, %v9483
    %v9924 = vpack.c.b16 %v9488, %v9484
    %v9925 = vpack.c.b16 %v9489, %v9485
    %v9926 = vpack.c.b16 %v9490, %v9486
    %v9927 = vpack.c.b16 %v9495, %v9491
    %v9928 = vpack.c.b16 %v9496, %v9492
    %v9929 = vpack.c.b16 %v9497, %v9493
    %v9930 = vpack.c.b16 %v9498, %v9494
    %v9931 = vpack.c.b16 %v9503, %v9499
    %v9932 = vpack.c.b16 %v9504, %v9500
    %v9933 = vpack.c.b16 %v9505, %v9501
    %v9934 = vpack.c.b16 %v9506, %v9502
    %v9935 = vpack.c.b16 %v9511, %v9507
    %v9936 = vpack.c.b16 %v9512, %v9508
    %v9937 = vpack.c.b16 %v9513, %v9509
    %v9938 = vpack.c.b16 %v9514, %v9510
    %v9939 = vpack.c.b16 %v9519, %v9515
    %v9940 = vpack.c.b16 %v9520, %v9516
    %v9941 = vpack.c.b16 %v9521, %v9517
    %v9942 = vpack.c.b16 %v9522, %v9518
    %v9943 = vpack.c.b16 %v9527, %v9523
    %v9944 = vpack.c.b16 %v9528, %v9524
    %v9945 = vpack.c.b16 %v9529, %v9525
    %v9946 = vpack.c.b16 %v9530, %v9526
    %v9947 = vpack.c.b16 %v9535, %v9531
    %v9948 = vpack.c.b16 %v9536, %v9532
    %v9949 = vpack.c.b16 %v9537, %v9533
    %v9950 = vpack.c.b16 %v9538, %v9534
    %v9951 = vpack.c.b16 %v9543, %v9539
    %v9952 = vpack.c.b16 %v9544, %v9540
    %v9953 = vpack.c.b16 %v9545, %v9541
    %v9954 = vpack.c.b16 %v9546, %v9542
    %v9955 = vpack.c.b16 %v9551, %v9547
    %v9956 = vpack.c.b16 %v9552, %v9548
    %v9957 = vpack.c.b16 %v9553, %v9549
    %v9958 = vpack.c.b16 %v9554, %v9550
    %v9959 = vpack.c.b16 %v9559, %v9555
    %v9960 = vpack.c.b16 %v9560, %v9556
    %v9961 = vpack.c.b16 %v9561, %v9557
    %v9962 = vpack.c.b16 %v9562, %v9558
    %v9963 = vpack.c.b16 %v9567, %v9563
    %v9964 = vpack.c.b16 %v9568, %v9564
    %v9965 = vpack.c.b16 %v9569, %v9565
    %v9966 = vpack.c.b16 %v9570, %v9566
    %v9967 = vpack.c.b16 %v9575, %v9571
    %v9968 = vpack.c.b16 %v9576, %v9572
    %v9969 = vpack.c.b16 %v9577, %v9573
    %v9970 = vpack.c.b16 %v9578, %v9574
    %v9971 = vpack.c.b16 %v9583, %v9579
    %v9972 = vpack.c.b16 %v9584, %v9580
    %v9973 = vpack.c.b16 %v9585, %v9581
    %v9974 = vpack.c.b16 %v9586, %v9582
    %v9975 = vpack.c.b16 %v9591, %v9587
    %v9976 = vpack.c.b16 %v9592, %v9588
    %v9977 = vpack.c.b16 %v9593, %v9589
    %v9978 = vpack.c.b16 %v9594, %v9590
    %v9979 = vpack.c.b16 %v9599, %v9595
    %v9980 = vpack.c.b16 %v9600, %v9596
    %v9981 = vpack.c.b16 %v9601, %v9597
    %v9982 = vpack.c.b16 %v9602, %v9598
    %v9983 = vpack.c.b16 %v9607, %v9603
    %v9984 = vpack.c.b16 %v9608, %v9604
    %v9985 = vpack.c.b16 %v9609, %v9605
    %v9986 = vpack.c.b16 %v9610, %v9606
    %v9987 = vpack.c.b16 %v9615, %v9611
    %v9988 = vpack.c.b16 %v9616, %v9612
    %v9989 = vpack.c.b16 %v9617, %v9613
    %v9990 = vpack.c.b16 %v9618, %v9614
    %v9991 = vpack.c.b16 %v9623, %v9619
    %v9992 = vpack.c.b16 %v9624, %v9620
    %v9993 = vpack.c.b16 %v9625, %v9621
    %v9994 = vpack.c.b16 %v9626, %v9622
    %v9995 = vpack.c.b16 %v9631, %v9627
    %v9996 = vpack.c.b16 %v9632, %v9628
    %v9997 = vpack.c.b16 %v9633, %v9629
    %v9998 = vpack.c.b16 %v9634, %v9630
    %v9999 = vpack.c.b16 %v9639, %v9635
    %v10000 = vpack.c.b16 %v9640, %v9636
    %v10001 = vpack.c.b16 %v9641, %v9637
    %v10002 = vpack.c.b16 %v9642, %v9638
    %v10003 = vpack.c.b16 %v9647, %v9643
    %v10004 = vpack.c.b16 %v9648, %v9644
    %v10005 = vpack.c.b16 %v9649, %v9645
    %v10006 = vpack.c.b16 %v9650, %v9646
    %v10007 = vpack.c.b16 %v9655, %v9651
    %v10008 = vpack.c.b16 %v9656, %v9652
    %v10009 = vpack.c.b16 %v9657, %v9653
    %v10010 = vpack.c.b16 %v9658, %v9654
    %v10011 = vpack.c.b16 %v9663, %v9659
    %v10012 = vpack.c.b16 %v9664, %v9660
    %v10013 = vpack.c.b16 %v9665, %v9661
    %v10014 = vpack.c.b16 %v9666, %v9662
    %v10015 = vpack.c.b16 %v9671, %v9667
    %v10016 = vpack.c.b16 %v9672, %v9668
    %v10017 = vpack.c.b16 %v9673, %v9669
    %v10018 = vpack.c.b16 %v9674, %v9670
    %v10019 = vpack.c.b16 %v9679, %v9675
    %v10020 = vpack.c.b16 %v9680, %v9676
    %v10021 = vpack.c.b16 %v9681, %v9677
    %v10022 = vpack.c.b16 %v9682, %v9678
    %v10023 = vpack.c.b16 %v9687, %v9683
    %v10024 = vpack.c.b16 %v9688, %v9684
    %v10025 = vpack.c.b16 %v9689, %v9685
    %v10026 = vpack.c.b16 %v9690, %v9686
    %v10027 = vpack.c.b16 %v9695, %v9691
    %v10028 = vpack.c.b16 %v9696, %v9692
    %v10029 = vpack.c.b16 %v9697, %v9693
    %v10030 = vpack.c.b16 %v9698, %v9694
    %v10031 = vpack.c.b16 %v9703, %v9699
    %v10032 = vpack.c.b16 %v9704, %v9700
    %v10033 = vpack.c.b16 %v9705, %v9701
    %v10034 = vpack.c.b16 %v9706, %v9702
    %v10035 = vpack.c.b16 %v9711, %v9707
    %v10036 = vpack.c.b16 %v9712, %v9708
    %v10037 = vpack.c.b16 %v9713, %v9709
    %v10038 = vpack.c.b16 %v9714, %v9710
    %v10039 = vpack.c.b16 %v9719, %v9715
    %v10040 = vpack.c.b16 %v9720, %v9716
    %v10041 = vpack.c.b16 %v9721, %v9717
    %v10042 = vpack.c.b16 %v9722, %v9718
    %v10043 = vpack.c.b16 %v9727, %v9723
    %v10044 = vpack.c.b16 %v9728, %v9724
    %v10045 = vpack.c.b16 %v9729, %v9725
    %v10046 = vpack.c.b16 %v9730, %v9726
    %v10047 = vpack.c.b16 %v9735, %v9731
    %v10048 = vpack.c.b16 %v9736, %v9732
    %v10049 = vpack.c.b16 %v9737, %v9733
    %v10050 = vpack.c.b16 %v9738, %v9734
    %v10051 = vpack.c.b16 %v9743, %v9739
    %v10052 = vpack.c.b16 %v9744, %v9740
    %v10053 = vpack.c.b16 %v9745, %v9741
    %v10054 = vpack.c.b16 %v9746, %v9742
    %v10055 = vpack.c.b16 %v9751, %v9747
    %v10056 = vpack.c.b16 %v9752, %v9748
    %v10057 = vpack.c.b16 %v9753, %v9749
    %v10058 = vpack.c.b16 %v9754, %v9750
    %v10059 = vpack.c.b16 %v9759, %v9755
    %v10060 = vpack.c.b16 %v9760, %v9756
    %v10061 = vpack.c.b16 %v9761, %v9757
    %v10062 = vpack.c.b16 %v9762, %v9758
    %v10063 = vpack.c.b16 %v9767, %v9763
    %v10064 = vpack.c.b16 %v9768, %v9764
    %v10065 = vpack.c.b16 %v9769, %v9765
    %v10066 = vpack.c.b16 %v9770, %v9766
    %v10067 = vpack.c.b16 %v9775, %v9771
    %v10068 = vpack.c.b16 %v9776, %v9772
    %v10069 = vpack.c.b16 %v9777, %v9773
    %v10070 = vpack.c.b16 %v9778, %v9774
    %v10071 = vpack.c.b16 %v9783, %v9779
    %v10072 = vpack.c.b16 %v9784, %v9780
    %v10073 = vpack.c.b16 %v9785, %v9781
    %v10074 = vpack.c.b16 %v9786, %v9782
    %v10075 = vpack.c.b16 %v9791, %v9787
    %v10076 = vpack.c.b16 %v9792, %v9788
    %v10077 = vpack.c.b16 %v9793, %v9789
    %v10078 = vpack.c.b16 %v9794, %v9790
    %v10079 = vpack.c.b16 %v9799, %v9795
    %v10080 = vpack.c.b16 %v9800, %v9796
    %v10081 = vpack.c.b16 %v9801, %v9797
    %v10082 = vpack.c.b16 %v9802, %v9798
    %v10083 = vpack.c.b16 %v9807, %v9803
    %v10084 = vpack.c.b16 %v9808, %v9804
    %v10085 = vpack.c.b16 %v9809, %v9805
    %v10086 = vpack.c.b16 %v9810, %v9806
    %v10087 = vpack.c.b16 %v9815, %v9811
    %v10088 = vpack.c.b16 %v9816, %v9812
    %v10089 = vpack.c.b16 %v9817, %v9813
    %v10090 = vpack.c.b16 %v9818, %v9814
    %v10091 = vpack.c.b16 %v9823, %v9819
    %v10092 = vpack.c.b16 %v9824, %v9820
    %v10093 = vpack.c.b16 %v9825, %v9821
    %v10094 = vpack.c.b16 %v9826, %v9822
    %v10095 = vpack.c.b16 %v9831, %v9827
    %v10096 = vpack.c.b16 %v9832, %v9828
    %v10097 = vpack.c.b16 %v9833, %v9829
    %v10098 = vpack.c.b16 %v9834, %v9830
    %v10099 = vpack.c.b16 %v9839, %v9835
    %v10100 = vpack.c.b16 %v9840, %v9836
    %v10101 = vpack.c.b16 %v9841, %v9837
    %v10102 = vpack.c.b16 %v9842, %v9838
    %v10103 = vpack.c.b16 %v9847, %v9843
    %v10104 = vpack.c.b16 %v9848, %v9844
    %v10105 = vpack.c.b16 %v9849, %v9845
    %v10106 = vpack.c.b16 %v9850, %v9846
    %10363 = vmatprep.subr.bf16.mxu0 %v9852
    %10364 = vmatpush1.bf16.msra.mxu0 %v9851
    %10365 = vmatprep.subr.bf16.mxu0 %v9856
    %10366 = vmatpush1.bf16.msra.mxu0 %v9855
    %10367 = vmatprep.subr.bf16.mxu0 %v9860
    %10368 = vmatpush1.bf16.msra.mxu0 %v9859
    %10369 = vmatprep.subr.bf16.mxu0 %v9864
    %10370 = vmatpush1.bf16.msra.mxu0 %v9863
    %10371 = vmatprep.subr.bf16.mxu0 %v9868
    %10372 = vmatpush1.bf16.msra.mxu0 %v9867
    %10373 = vmatprep.subr.bf16.mxu0 %v9872
    %10374 = vmatpush1.bf16.msra.mxu0 %v9871
    %10375 = vmatprep.subr.bf16.mxu0 %v9876
    %10376 = vmatpush1.bf16.msra.mxu0 %v9875
    %10377 = vmatprep.subr.bf16.mxu0 %v9880
    %10378 = vmatpush1.bf16.msra.mxu0 %v9879
    %10379 = vmatprep.subr.bf16.mxu0 %v9884
    %10380 = vmatpush1.bf16.msra.mxu0 %v9883
    %10381 = vmatprep.subr.bf16.mxu0 %v9888
    %10382 = vmatpush1.bf16.msra.mxu0 %v9887
    %10383 = vmatprep.subr.bf16.mxu0 %v9892
    %10384 = vmatpush1.bf16.msra.mxu0 %v9891
    %10385 = vmatprep.subr.bf16.mxu0 %v9896
    %10386 = vmatpush1.bf16.msra.mxu0 %v9895
    %10387 = vmatprep.subr.bf16.mxu0 %v9900
    %10388 = vmatpush1.bf16.msra.mxu0 %v9899
    %10389 = vmatprep.subr.bf16.mxu0 %v9904
    %10390 = vmatpush1.bf16.msra.mxu0 %v9903
    %10391 = vmatprep.subr.bf16.mxu0 %v9908
    %10392 = vmatpush1.bf16.msra.mxu0 %v9907
    %10393 = vmatprep.subr.bf16.mxu0 %v9912
    %10394 = vmatpush1.bf16.msra.mxu0 %v9911
    %10395 = vmatprep.mubr.bf16.mxu0 %v8819
    %10396 = vmatmul.mubr.bf16.gmra.mrb[0].mxu0 %v8818
    %v10397 = vpop.f32.mrb[0].mxu0
    %v10398 = vadd.f32 0.0, %v10397
    %v10399 = vpop.f32.mrb[0].mxu0
    %v10400 = vadd.f32 0.0, %v10399
    %v10401 = vpop.f32.mrb[0].mxu0
    %v10402 = vadd.f32 0.0, %v10401
    %v10403 = vpop.f32.mrb[0].mxu0
    %v10404 = vadd.f32 0.0, %v10403
    %10405 = vdwg.mxu0
    %10406 = vmatprep.subr.bf16.mxu0 %v9916
    %10407 = vmatpush1.bf16.msra.mxu0 %v9915
    %10408 = vmatprep.subr.bf16.mxu0 %v9920
    %10409 = vmatpush1.bf16.msra.mxu0 %v9919
    %10410 = vmatprep.subr.bf16.mxu0 %v9924
    %10411 = vmatpush1.bf16.msra.mxu0 %v9923
    %10412 = vmatprep.subr.bf16.mxu0 %v9928
    %10413 = vmatpush1.bf16.msra.mxu0 %v9927
    %10414 = vmatprep.subr.bf16.mxu0 %v9932
    %10415 = vmatpush1.bf16.msra.mxu0 %v9931
    %10416 = vmatprep.subr.bf16.mxu0 %v9936
    %10417 = vmatpush1.bf16.msra.mxu0 %v9935
    %10418 = vmatprep.subr.bf16.mxu0 %v9940
    %10419 = vmatpush1.bf16.msra.mxu0 %v9939
    %10420 = vmatprep.subr.bf16.mxu0 %v9944
    %10421 = vmatpush1.bf16.msra.mxu0 %v9943
    %10422 = vmatprep.subr.bf16.mxu0 %v9948
    %10423 = vmatpush1.bf16.msra.mxu0 %v9947
    %10424 = vmatprep.subr.bf16.mxu0 %v9952
    %10425 = vmatpush1.bf16.msra.mxu0 %v9951
    %10426 = vmatprep.subr.bf16.mxu0 %v9956
    %10427 = vmatpush1.bf16.msra.mxu0 %v9955
    %10428 = vmatprep.subr.bf16.mxu0 %v9960
    %10429 = vmatpush1.bf16.msra.mxu0 %v9959
    %10430 = vmatprep.subr.bf16.mxu0 %v9964
    %10431 = vmatpush1.bf16.msra.mxu0 %v9963
    %10432 = vmatprep.subr.bf16.mxu0 %v9968
    %10433 = vmatpush1.bf16.msra.mxu0 %v9967
    %10434 = vmatprep.subr.bf16.mxu0 %v9972
    %10435 = vmatpush1.bf16.msra.mxu0 %v9971
    %10436 = vmatprep.subr.bf16.mxu0 %v9976
    %10437 = vmatpush1.bf16.msra.mxu0 %v9975
    %10438 = vmatprep.mubr.bf16.mxu0 %v8821
    %10439 = vmatmul.mubr.bf16.gmra.mrb[0].mxu0 %v8820
    %v10440 = vpop.f32.mrb[0].mxu0
    %v10441 = vadd.f32 %v10398, %v10440
    %v10442 = vpop.f32.mrb[0].mxu0
    %v10443 = vadd.f32 %v10400, %v10442
    %v10444 = vpop.f32.mrb[0].mxu0
    %v10445 = vadd.f32 %v10402, %v10444
    %v10446 = vpop.f32.mrb[0].mxu0
    %v10447 = vadd.f32 %v10404, %v10446
    %10448 = vdwg.mxu0
    %10449 = vmatprep.subr.bf16.mxu0 %v9980
    %10450 = vmatpush1.bf16.msra.mxu0 %v9979
    %10451 = vmatprep.subr.bf16.mxu0 %v9984
    %10452 = vmatpush1.bf16.msra.mxu0 %v9983
    %10453 = vmatprep.subr.bf16.mxu0 %v9988
    %10454 = vmatpush1.bf16.msra.mxu0 %v9987
    %10455 = vmatprep.subr.bf16.mxu0 %v9992
    %10456 = vmatpush1.bf16.msra.mxu0 %v9991
    %10457 = vmatprep.subr.bf16.mxu0 %v9996
    %10458 = vmatpush1.bf16.msra.mxu0 %v9995
    %10459 = vmatprep.subr.bf16.mxu0 %v10000
    %10460 = vmatpush1.bf16.msra.mxu0 %v9999
    %10461 = vmatprep.subr.bf16.mxu0 %v10004
    %10462 = vmatpush1.bf16.msra.mxu0 %v10003
    %10463 = vmatprep.subr.bf16.mxu0 %v10008
    %10464 = vmatpush1.bf16.msra.mxu0 %v10007
    %10465 = vmatprep.subr.bf16.mxu0 %v10012
    %10466 = vmatpush1.bf16.msra.mxu0 %v10011
    %10467 = vmatprep.subr.bf16.mxu0 %v10016
    %10468 = vmatpush1.bf16.msra.mxu0 %v10015
    %10469 = vmatprep.subr.bf16.mxu0 %v10020
    %10470 = vmatpush1.bf16.msra.mxu0 %v10019
    %10471 = vmatprep.subr.bf16.mxu0 %v10024
    %10472 = vmatpush1.bf16.msra.mxu0 %v10023
    %10473 = vmatprep.subr.bf16.mxu0 %v10028
    %10474 = vmatpush1.bf16.msra.mxu0 %v10027
    %10475 = vmatprep.subr.bf16.mxu0 %v10032
    %10476 = vmatpush1.bf16.msra.mxu0 %v10031
    %10477 = vmatprep.subr.bf16.mxu0 %v10036
    %10478 = vmatpush1.bf16.msra.mxu0 %v10035
    %10479 = vmatprep.subr.bf16.mxu0 %v10040
    %10480 = vmatpush1.bf16.msra.mxu0 %v10039
    %10481 = vmatprep.mubr.bf16.mxu0 %v8823
    %10482 = vmatmul.mubr.bf16.gmra.mrb[0].mxu0 %v8822
    %v10483 = vpop.f32.mrb[0].mxu0
    %v10484 = vadd.f32 %v10441, %v10483
    %v10485 = vpop.f32.mrb[0].mxu0
    %v10486 = vadd.f32 %v10443, %v10485
    %v10487 = vpop.f32.mrb[0].mxu0
    %v10488 = vadd.f32 %v10445, %v10487
    %v10489 = vpop.f32.mrb[0].mxu0
    %v10490 = vadd.f32 %v10447, %v10489
    %10491 = vdwg.mxu0
    %10492 = vmatprep.subr.bf16.mxu0 %v10044
    %10493 = vmatpush1.bf16.msra.mxu0 %v10043
    %10494 = vmatprep.subr.bf16.mxu0 %v10048
    %10495 = vmatpush1.bf16.msra.mxu0 %v10047
    %10496 = vmatprep.subr.bf16.mxu0 %v10052
    %10497 = vmatpush1.bf16.msra.mxu0 %v10051
    %10498 = vmatprep.subr.bf16.mxu0 %v10056
    %10499 = vmatpush1.bf16.msra.mxu0 %v10055
    %10500 = vmatprep.subr.bf16.mxu0 %v10060
    %10501 = vmatpush1.bf16.msra.mxu0 %v10059
    %10502 = vmatprep.subr.bf16.mxu0 %v10064
    %10503 = vmatpush1.bf16.msra.mxu0 %v10063
    %10504 = vmatprep.subr.bf16.mxu0 %v10068
    %10505 = vmatpush1.bf16.msra.mxu0 %v10067
    %10506 = vmatprep.subr.bf16.mxu0 %v10072
    %10507 = vmatpush1.bf16.msra.mxu0 %v10071
    %10508 = vmatprep.subr.bf16.mxu0 %v10076
    %10509 = vmatpush1.bf16.msra.mxu0 %v10075
    %10510 = vmatprep.subr.bf16.mxu0 %v10080
    %10511 = vmatpush1.bf16.msra.mxu0 %v10079
    %10512 = vmatprep.subr.bf16.mxu0 %v10084
    %10513 = vmatpush1.bf16.msra.mxu0 %v10083
    %10514 = vmatprep.subr.bf16.mxu0 %v10088
    %10515 = vmatpush1.bf16.msra.mxu0 %v10087
    %10516 = vmatprep.subr.bf16.mxu0 %v10092
    %10517 = vmatpush1.bf16.msra.mxu0 %v10091
    %10518 = vmatprep.subr.bf16.mxu0 %v10096
    %10519 = vmatpush1.bf16.msra.mxu0 %v10095
    %10520 = vmatprep.subr.bf16.mxu0 %v10100
    %10521 = vmatpush1.bf16.msra.mxu0 %v10099
    %10522 = vmatprep.subr.bf16.mxu0 %v10104
    %10523 = vmatpush1.bf16.msra.mxu0 %v10103
    %10524 = vmatprep.mubr.bf16.mxu0 %v8825
    %10525 = vmatmul.mubr.bf16.gmra.mrb[0].mxu0 %v8824
    %v10526 = vpop.f32.mrb[0].mxu0
    %v10527 = vadd.f32 %v10484, %v10526
    %v10528 = vpop.f32.mrb[0].mxu0
    %v10529 = vadd.f32 %v10486, %v10528
    %v10530 = vpop.f32.mrb[0].mxu0
    %v10531 = vadd.f32 %v10488, %v10530
    %v10532 = vpop.f32.mrb[0].mxu0
    %v10533 = vadd.f32 %v10490, %v10532
    %10534 = vdwg.mxu0
    %10535 = vmatprep.subr.bf16.mxu0 %v9854
    %10536 = vmatpush1.bf16.msra.mxu0 %v9853
    %10537 = vmatprep.subr.bf16.mxu0 %v9858
    %10538 = vmatpush1.bf16.msra.mxu0 %v9857
    %10539 = vmatprep.subr.bf16.mxu0 %v9862
    %10540 = vmatpush1.bf16.msra.mxu0 %v9861
    %10541 = vmatprep.subr.bf16.mxu0 %v9866
    %10542 = vmatpush1.bf16.msra.mxu0 %v9865
    %10543 = vmatprep.subr.bf16.mxu0 %v9870
    %10544 = vmatpush1.bf16.msra.mxu0 %v9869
    %10545 = vmatprep.subr.bf16.mxu0 %v9874
    %10546 = vmatpush1.bf16.msra.mxu0 %v9873
    %10547 = vmatprep.subr.bf16.mxu0 %v9878
    %10548 = vmatpush1.bf16.msra.mxu0 %v9877
    %10549 = vmatprep.subr.bf16.mxu0 %v9882
    %10550 = vmatpush1.bf16.msra.mxu0 %v9881
    %10551 = vmatprep.subr.bf16.mxu0 %v9886
    %10552 = vmatpush1.bf16.msra.mxu0 %v9885
    %10553 = vmatprep.subr.bf16.mxu0 %v9890
    %10554 = vmatpush1.bf16.msra.mxu0 %v9889
    %10555 = vmatprep.subr.bf16.mxu0 %v9894
    %10556 = vmatpush1.bf16.msra.mxu0 %v9893
    %10557 = vmatprep.subr.bf16.mxu0 %v9898
    %10558 = vmatpush1.bf16.msra.mxu0 %v9897
    %10559 = vmatprep.subr.bf16.mxu0 %v9902
    %10560 = vmatpush1.bf16.msra.mxu0 %v9901
    %10561 = vmatprep.subr.bf16.mxu0 %v9906
    %10562 = vmatpush1.bf16.msra.mxu0 %v9905
    %10563 = vmatprep.subr.bf16.mxu0 %v9910
    %10564 = vmatpush1.bf16.msra.mxu0 %v9909
    %10565 = vmatprep.subr.bf16.mxu0 %v9914
    %10566 = vmatpush1.bf16.msra.mxu0 %v9913
    %10567 = vmatprep.mubr.bf16.mxu0 %v8819
    %10568 = vmatmul.mubr.bf16.gmra.mrb[0].mxu0 %v8818
    %v10569 = vpop.f32.mrb[0].mxu0
    %v10570 = vadd.f32 0.0, %v10569
    %v10571 = vpop.f32.mrb[0].mxu0
    %v10572 = vadd.f32 0.0, %v10571
    %v10573 = vpop.f32.mrb[0].mxu0
    %v10574 = vadd.f32 0.0, %v10573
    %v10575 = vpop.f32.mrb[0].mxu0
    %v10576 = vadd.f32 0.0, %v10575
    %10577 = vdwg.mxu0
    %10578 = vmatprep.subr.bf16.mxu0 %v9918
    %10579 = vmatpush1.bf16.msra.mxu0 %v9917
    %10580 = vmatprep.subr.bf16.mxu0 %v9922
    %10581 = vmatpush1.bf16.msra.mxu0 %v9921
    %10582 = vmatprep.subr.bf16.mxu0 %v9926
    %10583 = vmatpush1.bf16.msra.mxu0 %v9925
    %10584 = vmatprep.subr.bf16.mxu0 %v9930
    %10585 = vmatpush1.bf16.msra.mxu0 %v9929
    %10586 = vmatprep.subr.bf16.mxu0 %v9934
    %10587 = vmatpush1.bf16.msra.mxu0 %v9933
    %10588 = vmatprep.subr.bf16.mxu0 %v9938
    %10589 = vmatpush1.bf16.msra.mxu0 %v9937
    %10590 = vmatprep.subr.bf16.mxu0 %v9942
    %10591 = vmatpush1.bf16.msra.mxu0 %v9941
    %10592 = vmatprep.subr.bf16.mxu0 %v9946
    %10593 = vmatpush1.bf16.msra.mxu0 %v9945
    %10594 = vmatprep.subr.bf16.mxu0 %v9950
    %10595 = vmatpush1.bf16.msra.mxu0 %v9949
    %10596 = vmatprep.subr.bf16.mxu0 %v9954
    %10597 = vmatpush1.bf16.msra.mxu0 %v9953
    %10598 = vmatprep.subr.bf16.mxu0 %v9958
    %10599 = vmatpush1.bf16.msra.mxu0 %v9957
    %10600 = vmatprep.subr.bf16.mxu0 %v9962
    %10601 = vmatpush1.bf16.msra.mxu0 %v9961
    %10602 = vmatprep.subr.bf16.mxu0 %v9966
    %10603 = vmatpush1.bf16.msra.mxu0 %v9965
    %10604 = vmatprep.subr.bf16.mxu0 %v9970
    %10605 = vmatpush1.bf16.msra.mxu0 %v9969
    %10606 = vmatprep.subr.bf16.mxu0 %v9974
    %10607 = vmatpush1.bf16.msra.mxu0 %v9973
    %10608 = vmatprep.subr.bf16.mxu0 %v9978
    %10609 = vmatpush1.bf16.msra.mxu0 %v9977
    %10610 = vmatprep.mubr.bf16.mxu0 %v8821
    %10611 = vmatmul.mubr.bf16.gmra.mrb[0].mxu0 %v8820
    %v10612 = vpop.f32.mrb[0].mxu0
    %v10613 = vadd.f32 %v10570, %v10612
    %v10614 = vpop.f32.mrb[0].mxu0
    %v10615 = vadd.f32 %v10572, %v10614
    %v10616 = vpop.f32.mrb[0].mxu0
    %v10617 = vadd.f32 %v10574, %v10616
    %v10618 = vpop.f32.mrb[0].mxu0
    %v10619 = vadd.f32 %v10576, %v10618
    %10620 = vdwg.mxu0
    %10621 = vmatprep.subr.bf16.mxu0 %v9982
    %10622 = vmatpush1.bf16.msra.mxu0 %v9981
    %10623 = vmatprep.subr.bf16.mxu0 %v9986
    %10624 = vmatpush1.bf16.msra.mxu0 %v9985
    %10625 = vmatprep.subr.bf16.mxu0 %v9990
    %10626 = vmatpush1.bf16.msra.mxu0 %v9989
    %10627 = vmatprep.subr.bf16.mxu0 %v9994
    %10628 = vmatpush1.bf16.msra.mxu0 %v9993
    %10629 = vmatprep.subr.bf16.mxu0 %v9998
    %10630 = vmatpush1.bf16.msra.mxu0 %v9997
    %10631 = vmatprep.subr.bf16.mxu0 %v10002
    %10632 = vmatpush1.bf16.msra.mxu0 %v10001
    %10633 = vmatprep.subr.bf16.mxu0 %v10006
    %10634 = vmatpush1.bf16.msra.mxu0 %v10005
    %10635 = vmatprep.subr.bf16.mxu0 %v10010
    %10636 = vmatpush1.bf16.msra.mxu0 %v10009
    %10637 = vmatprep.subr.bf16.mxu0 %v10014
    %10638 = vmatpush1.bf16.msra.mxu0 %v10013
    %10639 = vmatprep.subr.bf16.mxu0 %v10018
    %10640 = vmatpush1.bf16.msra.mxu0 %v10017
    %10641 = vmatprep.subr.bf16.mxu0 %v10022
    %10642 = vmatpush1.bf16.msra.mxu0 %v10021
    %10643 = vmatprep.subr.bf16.mxu0 %v10026
    %10644 = vmatpush1.bf16.msra.mxu0 %v10025
    %10645 = vmatprep.subr.bf16.mxu0 %v10030
    %10646 = vmatpush1.bf16.msra.mxu0 %v10029
    %10647 = vmatprep.subr.bf16.mxu0 %v10034
    %10648 = vmatpush1.bf16.msra.mxu0 %v10033
    %10649 = vmatprep.subr.bf16.mxu0 %v10038
    %10650 = vmatpush1.bf16.msra.mxu0 %v10037
    %10651 = vmatprep.subr.bf16.mxu0 %v10042
    %10652 = vmatpush1.bf16.msra.mxu0 %v10041
    %10653 = vmatprep.mubr.bf16.mxu0 %v8823
    %10654 = vmatmul.mubr.bf16.gmra.mrb[0].mxu0 %v8822
    %v10655 = vpop.f32.mrb[0].mxu0
    %v10656 = vadd.f32 %v10613, %v10655
    %v10657 = vpop.f32.mrb[0].mxu0
    %v10658 = vadd.f32 %v10615, %v10657
    %v10659 = vpop.f32.mrb[0].mxu0
    %v10660 = vadd.f32 %v10617, %v10659
    %v10661 = vpop.f32.mrb[0].mxu0
    %v10662 = vadd.f32 %v10619, %v10661
    %10663 = vdwg.mxu0
    %10664 = vmatprep.subr.bf16.mxu0 %v10046
    %10665 = vmatpush1.bf16.msra.mxu0 %v10045
    %10666 = vmatprep.subr.bf16.mxu0 %v10050
    %10667 = vmatpush1.bf16.msra.mxu0 %v10049
    %10668 = vmatprep.subr.bf16.mxu0 %v10054
    %10669 = vmatpush1.bf16.msra.mxu0 %v10053
    %10670 = vmatprep.subr.bf16.mxu0 %v10058
    %10671 = vmatpush1.bf16.msra.mxu0 %v10057
    %10672 = vmatprep.subr.bf16.mxu0 %v10062
    %10673 = vmatpush1.bf16.msra.mxu0 %v10061
    %10674 = vmatprep.subr.bf16.mxu0 %v10066
    %10675 = vmatpush1.bf16.msra.mxu0 %v10065
    %10676 = vmatprep.subr.bf16.mxu0 %v10070
    %10677 = vmatpush1.bf16.msra.mxu0 %v10069
    %10678 = vmatprep.subr.bf16.mxu0 %v10074
    %10679 = vmatpush1.bf16.msra.mxu0 %v10073
    %10680 = vmatprep.subr.bf16.mxu0 %v10078
    %10681 = vmatpush1.bf16.msra.mxu0 %v10077
    %10682 = vmatprep.subr.bf16.mxu0 %v10082
    %10683 = vmatpush1.bf16.msra.mxu0 %v10081
    %10684 = vmatprep.subr.bf16.mxu0 %v10086
    %10685 = vmatpush1.bf16.msra.mxu0 %v10085
    %10686 = vmatprep.subr.bf16.mxu0 %v10090
    %10687 = vmatpush1.bf16.msra.mxu0 %v10089
    %10688 = vmatprep.subr.bf16.mxu0 %v10094
    %10689 = vmatpush1.bf16.msra.mxu0 %v10093
    %10690 = vmatprep.subr.bf16.mxu0 %v10098
    %10691 = vmatpush1.bf16.msra.mxu0 %v10097
    %10692 = vmatprep.subr.bf16.mxu0 %v10102
    %10693 = vmatpush1.bf16.msra.mxu0 %v10101
    %10694 = vmatprep.subr.bf16.mxu0 %v10106
    %10695 = vmatpush1.bf16.msra.mxu0 %v10105
    %10696 = vmatprep.mubr.bf16.mxu0 %v8825
    %10697 = vmatmul.mubr.bf16.gmra.mrb[0].mxu0 %v8824
    %v10698 = vpop.f32.mrb[0].mxu0
    %v10699 = vadd.f32 %v10656, %v10698
    %v10700 = vpop.f32.mrb[0].mxu0
    %v10701 = vadd.f32 %v10658, %v10700
    %v10702 = vpop.f32.mrb[0].mxu0
    %v10703 = vadd.f32 %v10660, %v10702
    %v10704 = vpop.f32.mrb[0].mxu0
    %v10705 = vadd.f32 %v10662, %v10704
    %10706 = vdwg.mxu0
    %v10707 = vpack.c.bf16 %v10531, %v10527
    %v10708 = vpack.c.bf16 %v10533, %v10529
    %v10709 = vpack.c.bf16 %v10703, %v10699
    %v10710 = vpack.c.bf16 %v10705, %v10701
    %v10712 = vlaneseq
    %v10713 = vshrl.u32 %v10712, 7
    %v10714 = vsub.s32 0, %v10713
    %v10715 = vrot.slane %v9082, %v10714
    %v10716 = vlaneseq
    %v10717 = vshrl.u32 %v10716, 7
    %v10718 = vsub.s32 1, %v10717
    %v10719 = vrot.slane %v9082, %v10718
    %v10720 = vlaneseq
    %v10721 = vshrl.u32 %v10720, 7
    %v10722 = vsub.s32 2, %v10721
    %v10723 = vrot.slane %v9082, %v10722
    %v10724 = vlaneseq
    %v10725 = vshrl.u32 %v10724, 7
    %v10726 = vsub.s32 3, %v10725
    %v10727 = vrot.slane %v9082, %v10726
    %10732 = vmatprep.subr.bf16.mxu0 %v10708
    %10733 = vmatpush1.bf16.msra.mxu0 %v10707
    %10734 = vmatprep.subr.bf16.mxu0 0
    %10735 = vmatpush1.bf16.msra.mxu0 0
    %10736 = vmatprep.subr.bf16.mxu0 0
    %10737 = vmatpush1.bf16.msra.mxu0 0
    %10738 = vmatprep.subr.bf16.mxu0 0
    %10739 = vmatpush1.bf16.msra.mxu0 0
    %10740 = vmatprep.subr.bf16.mxu0 0
    %10741 = vmatpush1.bf16.msra.mxu0 0
    %10742 = vmatprep.subr.bf16.mxu0 0
    %10743 = vmatpush1.bf16.msra.mxu0 0
    %10744 = vmatprep.subr.bf16.mxu0 0
    %10745 = vmatpush1.bf16.msra.mxu0 0
    %10746 = vmatprep.subr.bf16.mxu0 0
    %10747 = vmatpush1.bf16.msra.mxu0 0
    %10748 = vmatprep.subr.bf16.mxu0 0
    %10749 = vmatpush1.bf16.msra.mxu0 0
    %10750 = vmatprep.subr.bf16.mxu0 0
    %10751 = vmatpush1.bf16.msra.mxu0 0
    %10752 = vmatprep.subr.bf16.mxu0 0
    %10753 = vmatpush1.bf16.msra.mxu0 0
    %10754 = vmatprep.subr.bf16.mxu0 0
    %10755 = vmatpush1.bf16.msra.mxu0 0
    %10756 = vmatprep.subr.bf16.mxu0 0
    %10757 = vmatpush1.bf16.msra.mxu0 0
    %10758 = vmatprep.subr.bf16.mxu0 0
    %10759 = vmatpush1.bf16.msra.mxu0 0
    %10760 = vmatprep.subr.bf16.mxu0 0
    %10761 = vmatpush1.bf16.msra.mxu0 0
    %10762 = vmatprep.subr.bf16.mxu0 0
    %10763 = vmatpush1.bf16.msra.mxu0 0
    %10764 = vmatprep.mubr.bf16.mxu0 0
    %10765 = vmatmul.mubr.bf16.gmra.mrb[0].mxu0 %v616
    %v10766 = vpop.f32.mrb[0].mxu0
    %v10767 = vadd.f32 %v10715, %v10766
    %v10768 = vpop.f32.mrb[0].mxu0
    %v10769 = vadd.f32 %v10719, %v10768
    %v10770 = vpop.f32.mrb[0].mxu0
    %v10771 = vadd.f32 %v10715, %v10770
    %v10772 = vpop.f32.mrb[0].mxu0
    %v10773 = vadd.f32 %v10719, %v10772
    %10774 = vdwg.mxu0
    %10775 = vmatprep.subr.bf16.mxu0 %v10710
    %10776 = vmatpush1.bf16.msra.mxu0 %v10709
    %10777 = vmatprep.subr.bf16.mxu0 0
    %10778 = vmatpush1.bf16.msra.mxu0 0
    %10779 = vmatprep.subr.bf16.mxu0 0
    %10780 = vmatpush1.bf16.msra.mxu0 0
    %10781 = vmatprep.subr.bf16.mxu0 0
    %10782 = vmatpush1.bf16.msra.mxu0 0
    %10783 = vmatprep.subr.bf16.mxu0 0
    %10784 = vmatpush1.bf16.msra.mxu0 0
    %10785 = vmatprep.subr.bf16.mxu0 0
    %10786 = vmatpush1.bf16.msra.mxu0 0
    %10787 = vmatprep.subr.bf16.mxu0 0
    %10788 = vmatpush1.bf16.msra.mxu0 0
    %10789 = vmatprep.subr.bf16.mxu0 0
    %10790 = vmatpush1.bf16.msra.mxu0 0
    %10791 = vmatprep.subr.bf16.mxu0 0
    %10792 = vmatpush1.bf16.msra.mxu0 0
    %10793 = vmatprep.subr.bf16.mxu0 0
    %10794 = vmatpush1.bf16.msra.mxu0 0
    %10795 = vmatprep.subr.bf16.mxu0 0
    %10796 = vmatpush1.bf16.msra.mxu0 0
    %10797 = vmatprep.subr.bf16.mxu0 0
    %10798 = vmatpush1.bf16.msra.mxu0 0
    %10799 = vmatprep.subr.bf16.mxu0 0
    %10800 = vmatpush1.bf16.msra.mxu0 0
    %10801 = vmatprep.subr.bf16.mxu0 0
    %10802 = vmatpush1.bf16.msra.mxu0 0
    %10803 = vmatprep.subr.bf16.mxu0 0
    %10804 = vmatpush1.bf16.msra.mxu0 0
    %10805 = vmatprep.subr.bf16.mxu0 0
    %10806 = vmatpush1.bf16.msra.mxu0 0
    %10807 = vmatprep.mubr.bf16.mxu0 0
    %10808 = vmatmul.mubr.bf16.gmra.mrb[0].mxu0 %v616
    %v10809 = vpop.f32.mrb[0].mxu0
    %v10810 = vadd.f32 %v10723, %v10809
    %v10811 = vpop.f32.mrb[0].mxu0
    %v10812 = vadd.f32 %v10727, %v10811
    %v10813 = vpop.f32.mrb[0].mxu0
    %v10814 = vadd.f32 %v10723, %v10813
    %v10815 = vpop.f32.mrb[0].mxu0
    %v10816 = vadd.f32 %v10727, %v10815
    %10817 = vdwg.mxu0
    %v10818 = vmax.f32 %v10767, 0.0
    %v10819 = vmax.f32 %v10769, 0.0
    %v10820 = vmax.f32 %v10810, 0.0
    %v10821 = vmax.f32 %v10812, 0.0
    %v10822 = vmax.f32 %v10771, 0.0
    %v10823 = vmax.f32 %v10773, 0.0
    %v10824 = vmax.f32 %v10814, 0.0
    %v10825 = vmax.f32 %v10816, 0.0
    %v10826 = vpack.c.bf16 %v10822, %v10818
    %v10827 = vpack.c.bf16 %v10823, %v10819
    %v10828 = vpack.c.bf16 %v10824, %v10820
    %v10829 = vpack.c.bf16 %v10825, %v10821
    %v10830 = vld [vmem:[#allocation15] sm:$0xff]
    %v10831 = vld [vmem:[#allocation15 + $0x8] sm:$0xff]
    %v10832 = vld [vmem:[#allocation15 + $0x10] sm:$0xff]
    %v10833 = vld [vmem:[#allocation15 + $0x18] sm:$0xff]
    %v10834 = vld [vmem:[#allocation15 + $0x20] sm:$0xff]
    %v10835 = vld [vmem:[#allocation15 + $0x28] sm:$0xff]
    %v10836 = vld [vmem:[#allocation15 + $0x30] sm:$0xff]
    %v10837 = vld [vmem:[#allocation15 + $0x38] sm:$0xff]
    %v10838 = vld [vmem:[#allocation15 + $0x40] sm:$0xff]
    %v10839 = vld [vmem:[#allocation15 + $0x48] sm:$0xff]
    %v10840 = vld [vmem:[#allocation15 + $0x50] sm:$0xff]
    %v10841 = vld [vmem:[#allocation15 + $0x58] sm:$0xff]
    %v10842 = vld [vmem:[#allocation15 + $0x60] sm:$0xff]
    %v10843 = vld [vmem:[#allocation15 + $0x68] sm:$0xff]
    %v10844 = vld [vmem:[#allocation15 + $0x70] sm:$0xff]
    %v10845 = vld [vmem:[#allocation15 + $0x78] sm:$0xff]
    %v10846 = vld [vmem:[#allocation15 + $0x80] sm:$0xff]
    %v10847 = vld [vmem:[#allocation15 + $0x88] sm:$0xff]
    %v10848 = vld [vmem:[#allocation15 + $0x90] sm:$0xff]
    %v10849 = vld [vmem:[#allocation15 + $0x98] sm:$0xff]
    %v10850 = vld [vmem:[#allocation15 + $0xa0] sm:$0xff]
    %v10851 = vld [vmem:[#allocation15 + $0xa8] sm:$0xff]
    %v10852 = vld [vmem:[#allocation15 + $0xb0] sm:$0xff]
    %v10853 = vld [vmem:[#allocation15 + $0xb8] sm:$0xff]
    %v10854 = vld [vmem:[#allocation15 + $0xc0] sm:$0xff]
    %v10855 = vld [vmem:[#allocation15 + $0xc8] sm:$0xff]
    %v10856 = vld [vmem:[#allocation15 + $0xd0] sm:$0xff]
    %v10857 = vld [vmem:[#allocation15 + $0xd8] sm:$0xff]
    %v10858 = vld [vmem:[#allocation15 + $0xe0] sm:$0xff]
    %v10859 = vld [vmem:[#allocation15 + $0xe8] sm:$0xff]
    %v10860 = vld [vmem:[#allocation15 + $0xf0] sm:$0xff]
    %v10861 = vld [vmem:[#allocation15 + $0xf8] sm:$0xff]
    %v10862 = vld [vmem:[#allocation15 + $0x100] sm:$0xff]
    %v10863 = vld [vmem:[#allocation15 + $0x108] sm:$0xff]
    %v10864 = vld [vmem:[#allocation15 + $0x110] sm:$0xff]
    %v10865 = vld [vmem:[#allocation15 + $0x118] sm:$0xff]
    %v10866 = vld [vmem:[#allocation15 + $0x120] sm:$0xff]
    %v10867 = vld [vmem:[#allocation15 + $0x128] sm:$0xff]
    %v10868 = vld [vmem:[#allocation15 + $0x130] sm:$0xff]
    %v10869 = vld [vmem:[#allocation15 + $0x138] sm:$0xff]
    %v10870 = vld [vmem:[#allocation15 + $0x140] sm:$0xff]
    %v10871 = vld [vmem:[#allocation15 + $0x148] sm:$0xff]
    %v10872 = vld [vmem:[#allocation15 + $0x150] sm:$0xff]
    %v10873 = vld [vmem:[#allocation15 + $0x158] sm:$0xff]
    %v10874 = vld [vmem:[#allocation15 + $0x160] sm:$0xff]
    %v10875 = vld [vmem:[#allocation15 + $0x168] sm:$0xff]
    %v10876 = vld [vmem:[#allocation15 + $0x170] sm:$0xff]
    %v10877 = vld [vmem:[#allocation15 + $0x178] sm:$0xff]
    %v10878 = vld [vmem:[#allocation15 + $0x180] sm:$0xff]
    %v10879 = vld [vmem:[#allocation15 + $0x188] sm:$0xff]
    %v10880 = vld [vmem:[#allocation15 + $0x190] sm:$0xff]
    %v10881 = vld [vmem:[#allocation15 + $0x198] sm:$0xff]
    %v10882 = vld [vmem:[#allocation15 + $0x1a0] sm:$0xff]
    %v10883 = vld [vmem:[#allocation15 + $0x1a8] sm:$0xff]
    %v10884 = vld [vmem:[#allocation15 + $0x1b0] sm:$0xff]
    %v10885 = vld [vmem:[#allocation15 + $0x1b8] sm:$0xff]
    %v10886 = vld [vmem:[#allocation15 + $0x1c0] sm:$0xff]
    %v10887 = vld [vmem:[#allocation15 + $0x1c8] sm:$0xff]
    %v10888 = vld [vmem:[#allocation15 + $0x1d0] sm:$0xff]
    %v10889 = vld [vmem:[#allocation15 + $0x1d8] sm:$0xff]
    %v10890 = vld [vmem:[#allocation15 + $0x1e0] sm:$0xff]
    %v10891 = vld [vmem:[#allocation15 + $0x1e8] sm:$0xff]
    %v10892 = vld [vmem:[#allocation15 + $0x1f0] sm:$0xff]
    %v10893 = vld [vmem:[#allocation15 + $0x1f8] sm:$0xff]
    %v10894 = vld [vmem:[#allocation16] sm:$0x3]
    %v10959 = vunpack.c.l.b16 %v10830
    %v10960 = vunpack.c.h.b16 %v10830
    %v10961 = vunpack.c.l.b16 %v10831
    %v10962 = vunpack.c.h.b16 %v10831
    %v10963 = vunpack.c.l.b16 %v10832
    %v10964 = vunpack.c.h.b16 %v10832
    %v10965 = vunpack.c.l.b16 %v10833
    %v10966 = vunpack.c.h.b16 %v10833
    %v10967 = vunpack.c.l.b16 %v10834
    %v10968 = vunpack.c.h.b16 %v10834
    %v10969 = vunpack.c.l.b16 %v10835
    %v10970 = vunpack.c.h.b16 %v10835
    %v10971 = vunpack.c.l.b16 %v10836
    %v10972 = vunpack.c.h.b16 %v10836
    %v10973 = vunpack.c.l.b16 %v10837
    %v10974 = vunpack.c.h.b16 %v10837
    %v10975 = vunpack.c.l.b16 %v10838
    %v10976 = vunpack.c.h.b16 %v10838
    %v10977 = vunpack.c.l.b16 %v10839
    %v10978 = vunpack.c.h.b16 %v10839
    %v10979 = vunpack.c.l.b16 %v10840
    %v10980 = vunpack.c.h.b16 %v10840
    %v10981 = vunpack.c.l.b16 %v10841
    %v10982 = vunpack.c.h.b16 %v10841
    %v10983 = vunpack.c.l.b16 %v10842
    %v10984 = vunpack.c.h.b16 %v10842
    %v10985 = vunpack.c.l.b16 %v10843
    %v10986 = vunpack.c.h.b16 %v10843
    %v10987 = vunpack.c.l.b16 %v10844
    %v10988 = vunpack.c.h.b16 %v10844
    %v10989 = vunpack.c.l.b16 %v10845
    %v10990 = vunpack.c.h.b16 %v10845
    %v10991 = vunpack.c.l.b16 %v10846
    %v10992 = vunpack.c.h.b16 %v10846
    %v10993 = vunpack.c.l.b16 %v10847
    %v10994 = vunpack.c.h.b16 %v10847
    %v10995 = vunpack.c.l.b16 %v10848
    %v10996 = vunpack.c.h.b16 %v10848
    %v10997 = vunpack.c.l.b16 %v10849
    %v10998 = vunpack.c.h.b16 %v10849
    %v10999 = vunpack.c.l.b16 %v10850
    %v11000 = vunpack.c.h.b16 %v10850
    %v11001 = vunpack.c.l.b16 %v10851
    %v11002 = vunpack.c.h.b16 %v10851
    %v11003 = vunpack.c.l.b16 %v10852
    %v11004 = vunpack.c.h.b16 %v10852
    %v11005 = vunpack.c.l.b16 %v10853
    %v11006 = vunpack.c.h.b16 %v10853
    %v11007 = vunpack.c.l.b16 %v10854
    %v11008 = vunpack.c.h.b16 %v10854
    %v11009 = vunpack.c.l.b16 %v10855
    %v11010 = vunpack.c.h.b16 %v10855
    %v11011 = vunpack.c.l.b16 %v10856
    %v11012 = vunpack.c.h.b16 %v10856
    %v11013 = vunpack.c.l.b16 %v10857
    %v11014 = vunpack.c.h.b16 %v10857
    %v11015 = vunpack.c.l.b16 %v10858
    %v11016 = vunpack.c.h.b16 %v10858
    %v11017 = vunpack.c.l.b16 %v10859
    %v11018 = vunpack.c.h.b16 %v10859
    %v11019 = vunpack.c.l.b16 %v10860
    %v11020 = vunpack.c.h.b16 %v10860
    %v11021 = vunpack.c.l.b16 %v10861
    %v11022 = vunpack.c.h.b16 %v10861
    %v11023 = vunpack.c.l.b16 %v10862
    %v11024 = vunpack.c.h.b16 %v10862
    %v11025 = vunpack.c.l.b16 %v10863
    %v11026 = vunpack.c.h.b16 %v10863
    %v11027 = vunpack.c.l.b16 %v10864
    %v11028 = vunpack.c.h.b16 %v10864
    %v11029 = vunpack.c.l.b16 %v10865
    %v11030 = vunpack.c.h.b16 %v10865
    %v11031 = vunpack.c.l.b16 %v10866
    %v11032 = vunpack.c.h.b16 %v10866
    %v11033 = vunpack.c.l.b16 %v10867
    %v11034 = vunpack.c.h.b16 %v10867
    %v11035 = vunpack.c.l.b16 %v10868
    %v11036 = vunpack.c.h.b16 %v10868
    %v11037 = vunpack.c.l.b16 %v10869
    %v11038 = vunpack.c.h.b16 %v10869
    %v11039 = vunpack.c.l.b16 %v10870
    %v11040 = vunpack.c.h.b16 %v10870
    %v11041 = vunpack.c.l.b16 %v10871
    %v11042 = vunpack.c.h.b16 %v10871
    %v11043 = vunpack.c.l.b16 %v10872
    %v11044 = vunpack.c.h.b16 %v10872
    %v11045 = vunpack.c.l.b16 %v10873
    %v11046 = vunpack.c.h.b16 %v10873
    %v11047 = vunpack.c.l.b16 %v10874
    %v11048 = vunpack.c.h.b16 %v10874
    %v11049 = vunpack.c.l.b16 %v10875
    %v11050 = vunpack.c.h.b16 %v10875
    %v11051 = vunpack.c.l.b16 %v10876
    %v11052 = vunpack.c.h.b16 %v10876
    %v11053 = vunpack.c.l.b16 %v10877
    %v11054 = vunpack.c.h.b16 %v10877
    %v11055 = vunpack.c.l.b16 %v10878
    %v11056 = vunpack.c.h.b16 %v10878
    %v11057 = vunpack.c.l.b16 %v10879
    %v11058 = vunpack.c.h.b16 %v10879
    %v11059 = vunpack.c.l.b16 %v10880
    %v11060 = vunpack.c.h.b16 %v10880
    %v11061 = vunpack.c.l.b16 %v10881
    %v11062 = vunpack.c.h.b16 %v10881
    %v11063 = vunpack.c.l.b16 %v10882
    %v11064 = vunpack.c.h.b16 %v10882
    %v11065 = vunpack.c.l.b16 %v10883
    %v11066 = vunpack.c.h.b16 %v10883
    %v11067 = vunpack.c.l.b16 %v10884
    %v11068 = vunpack.c.h.b16 %v10884
    %v11069 = vunpack.c.l.b16 %v10885
    %v11070 = vunpack.c.h.b16 %v10885
    %v11071 = vunpack.c.l.b16 %v10886
    %v11072 = vunpack.c.h.b16 %v10886
    %v11073 = vunpack.c.l.b16 %v10887
    %v11074 = vunpack.c.h.b16 %v10887
    %v11075 = vunpack.c.l.b16 %v10888
    %v11076 = vunpack.c.h.b16 %v10888
    %v11077 = vunpack.c.l.b16 %v10889
    %v11078 = vunpack.c.h.b16 %v10889
    %v11079 = vunpack.c.l.b16 %v10890
    %v11080 = vunpack.c.h.b16 %v10890
    %v11081 = vunpack.c.l.b16 %v10891
    %v11082 = vunpack.c.h.b16 %v10891
    %v11083 = vunpack.c.l.b16 %v10892
    %v11084 = vunpack.c.h.b16 %v10892
    %v11085 = vunpack.c.l.b16 %v10893
    %v11086 = vunpack.c.h.b16 %v10893
    %v11087 = vpack.c.b16 %v10961, %v10959
    %v11088 = vpack.c.b16 %v10962, %v10960
    %v11089 = vpack.c.b16 %v10965, %v10963
    %v11090 = vpack.c.b16 %v10966, %v10964
    %v11091 = vpack.c.b16 %v10969, %v10967
    %v11092 = vpack.c.b16 %v10970, %v10968
    %v11093 = vpack.c.b16 %v10973, %v10971
    %v11094 = vpack.c.b16 %v10974, %v10972
    %v11095 = vpack.c.b16 %v10977, %v10975
    %v11096 = vpack.c.b16 %v10978, %v10976
    %v11097 = vpack.c.b16 %v10981, %v10979
    %v11098 = vpack.c.b16 %v10982, %v10980
    %v11099 = vpack.c.b16 %v10985, %v10983
    %v11100 = vpack.c.b16 %v10986, %v10984
    %v11101 = vpack.c.b16 %v10989, %v10987
    %v11102 = vpack.c.b16 %v10990, %v10988
    %v11103 = vpack.c.b16 %v10993, %v10991
    %v11104 = vpack.c.b16 %v10994, %v10992
    %v11105 = vpack.c.b16 %v10997, %v10995
    %v11106 = vpack.c.b16 %v10998, %v10996
    %v11107 = vpack.c.b16 %v11001, %v10999
    %v11108 = vpack.c.b16 %v11002, %v11000
    %v11109 = vpack.c.b16 %v11005, %v11003
    %v11110 = vpack.c.b16 %v11006, %v11004
    %v11111 = vpack.c.b16 %v11009, %v11007
    %v11112 = vpack.c.b16 %v11010, %v11008
    %v11113 = vpack.c.b16 %v11013, %v11011
    %v11114 = vpack.c.b16 %v11014, %v11012
    %v11115 = vpack.c.b16 %v11017, %v11015
    %v11116 = vpack.c.b16 %v11018, %v11016
    %v11117 = vpack.c.b16 %v11021, %v11019
    %v11118 = vpack.c.b16 %v11022, %v11020
    %v11119 = vpack.c.b16 %v11025, %v11023
    %v11120 = vpack.c.b16 %v11026, %v11024
    %v11121 = vpack.c.b16 %v11029, %v11027
    %v11122 = vpack.c.b16 %v11030, %v11028
    %v11123 = vpack.c.b16 %v11033, %v11031
    %v11124 = vpack.c.b16 %v11034, %v11032
    %v11125 = vpack.c.b16 %v11037, %v11035
    %v11126 = vpack.c.b16 %v11038, %v11036
    %v11127 = vpack.c.b16 %v11041, %v11039
    %v11128 = vpack.c.b16 %v11042, %v11040
    %v11129 = vpack.c.b16 %v11045, %v11043
    %v11130 = vpack.c.b16 %v11046, %v11044
    %v11131 = vpack.c.b16 %v11049, %v11047
    %v11132 = vpack.c.b16 %v11050, %v11048
    %v11133 = vpack.c.b16 %v11053, %v11051
    %v11134 = vpack.c.b16 %v11054, %v11052
    %v11135 = vpack.c.b16 %v11057, %v11055
    %v11136 = vpack.c.b16 %v11058, %v11056
    %v11137 = vpack.c.b16 %v11061, %v11059
    %v11138 = vpack.c.b16 %v11062, %v11060
    %v11139 = vpack.c.b16 %v11065, %v11063
    %v11140 = vpack.c.b16 %v11066, %v11064
    %v11141 = vpack.c.b16 %v11069, %v11067
    %v11142 = vpack.c.b16 %v11070, %v11068
    %v11143 = vpack.c.b16 %v11073, %v11071
    %v11144 = vpack.c.b16 %v11074, %v11072
    %v11145 = vpack.c.b16 %v11077, %v11075
    %v11146 = vpack.c.b16 %v11078, %v11076
    %v11147 = vpack.c.b16 %v11081, %v11079
    %v11148 = vpack.c.b16 %v11082, %v11080
    %v11149 = vpack.c.b16 %v11085, %v11083
    %v11150 = vpack.c.b16 %v11086, %v11084
    %11215 = vmatprep.subr.bf16.mxu0 %v11088
    %11216 = vmatpush1.bf16.msra.mxu0 %v11087
    %11217 = vmatprep.subr.bf16.mxu0 %v11090
    %11218 = vmatpush1.bf16.msra.mxu0 %v11089
    %11219 = vmatprep.subr.bf16.mxu0 %v11092
    %11220 = vmatpush1.bf16.msra.mxu0 %v11091
    %11221 = vmatprep.subr.bf16.mxu0 %v11094
    %11222 = vmatpush1.bf16.msra.mxu0 %v11093
    %11223 = vmatprep.subr.bf16.mxu0 %v11096
    %11224 = vmatpush1.bf16.msra.mxu0 %v11095
    %11225 = vmatprep.subr.bf16.mxu0 %v11098
    %11226 = vmatpush1.bf16.msra.mxu0 %v11097
    %11227 = vmatprep.subr.bf16.mxu0 %v11100
    %11228 = vmatpush1.bf16.msra.mxu0 %v11099
    %11229 = vmatprep.subr.bf16.mxu0 %v11102
    %11230 = vmatpush1.bf16.msra.mxu0 %v11101
    %11231 = vmatprep.subr.bf16.mxu0 %v11104
    %11232 = vmatpush1.bf16.msra.mxu0 %v11103
    %11233 = vmatprep.subr.bf16.mxu0 %v11106
    %11234 = vmatpush1.bf16.msra.mxu0 %v11105
    %11235 = vmatprep.subr.bf16.mxu0 %v11108
    %11236 = vmatpush1.bf16.msra.mxu0 %v11107
    %11237 = vmatprep.subr.bf16.mxu0 %v11110
    %11238 = vmatpush1.bf16.msra.mxu0 %v11109
    %11239 = vmatprep.subr.bf16.mxu0 %v11112
    %11240 = vmatpush1.bf16.msra.mxu0 %v11111
    %11241 = vmatprep.subr.bf16.mxu0 %v11114
    %11242 = vmatpush1.bf16.msra.mxu0 %v11113
    %11243 = vmatprep.subr.bf16.mxu0 %v11116
    %11244 = vmatpush1.bf16.msra.mxu0 %v11115
    %11245 = vmatprep.subr.bf16.mxu0 %v11118
    %11246 = vmatpush1.bf16.msra.mxu0 %v11117
    %11247 = vmatprep.mubr.bf16.mxu0 %v10827
    %11248 = vmatmul.mubr.bf16.gmra.mrb[0].mxu0 %v10826
    %v11249 = vpop.f32.mrb[0].mxu0
    %v11250 = vadd.f32 0.0, %v11249
    %v11251 = vpop.f32.mrb[0].mxu0
    %v11252 = vadd.f32 0.0, %v11251
    %v11253 = vpop.f32.mrb[0].mxu0
    %v11254 = vadd.f32 0.0, %v11253
    %v11255 = vpop.f32.mrb[0].mxu0
    %v11256 = vadd.f32 0.0, %v11255
    %11257 = vdwg.mxu0
    %11258 = vmatprep.subr.bf16.mxu0 %v11120
    %11259 = vmatpush1.bf16.msra.mxu0 %v11119
    %11260 = vmatprep.subr.bf16.mxu0 %v11122
    %11261 = vmatpush1.bf16.msra.mxu0 %v11121
    %11262 = vmatprep.subr.bf16.mxu0 %v11124
    %11263 = vmatpush1.bf16.msra.mxu0 %v11123
    %11264 = vmatprep.subr.bf16.mxu0 %v11126
    %11265 = vmatpush1.bf16.msra.mxu0 %v11125
    %11266 = vmatprep.subr.bf16.mxu0 %v11128
    %11267 = vmatpush1.bf16.msra.mxu0 %v11127
    %11268 = vmatprep.subr.bf16.mxu0 %v11130
    %11269 = vmatpush1.bf16.msra.mxu0 %v11129
    %11270 = vmatprep.subr.bf16.mxu0 %v11132
    %11271 = vmatpush1.bf16.msra.mxu0 %v11131
    %11272 = vmatprep.subr.bf16.mxu0 %v11134
    %11273 = vmatpush1.bf16.msra.mxu0 %v11133
    %11274 = vmatprep.subr.bf16.mxu0 %v11136
    %11275 = vmatpush1.bf16.msra.mxu0 %v11135
    %11276 = vmatprep.subr.bf16.mxu0 %v11138
    %11277 = vmatpush1.bf16.msra.mxu0 %v11137
    %11278 = vmatprep.subr.bf16.mxu0 %v11140
    %11279 = vmatpush1.bf16.msra.mxu0 %v11139
    %11280 = vmatprep.subr.bf16.mxu0 %v11142
    %11281 = vmatpush1.bf16.msra.mxu0 %v11141
    %11282 = vmatprep.subr.bf16.mxu0 %v11144
    %11283 = vmatpush1.bf16.msra.mxu0 %v11143
    %11284 = vmatprep.subr.bf16.mxu0 %v11146
    %11285 = vmatpush1.bf16.msra.mxu0 %v11145
    %11286 = vmatprep.subr.bf16.mxu0 %v11148
    %11287 = vmatpush1.bf16.msra.mxu0 %v11147
    %11288 = vmatprep.subr.bf16.mxu0 %v11150
    %11289 = vmatpush1.bf16.msra.mxu0 %v11149
    %11290 = vmatprep.mubr.bf16.mxu0 %v10829
    %11291 = vmatmul.mubr.bf16.gmra.mrb[0].mxu0 %v10828
    %v11292 = vpop.f32.mrb[0].mxu0
    %v11293 = vadd.f32 %v11250, %v11292
    %v11294 = vpop.f32.mrb[0].mxu0
    %v11295 = vadd.f32 %v11252, %v11294
    %v11296 = vpop.f32.mrb[0].mxu0
    %v11297 = vadd.f32 %v11254, %v11296
    %v11298 = vpop.f32.mrb[0].mxu0
    %v11299 = vadd.f32 %v11256, %v11298
    %11300 = vdwg.mxu0
    %v11301 = vpack.c.bf16 %v11297, %v11293
    %v11302 = vpack.c.bf16 %v11299, %v11295
    %v11304 = vlaneseq
    %v11305 = vshrl.u32 %v11304, 7
    %v11306 = vsub.s32 0, %v11305
    %v11307 = vrot.slane %v10894, %v11306
    %v11308 = vlaneseq
    %v11309 = vshrl.u32 %v11308, 7
    %v11310 = vsub.s32 1, %v11309
    %v11311 = vrot.slane %v10894, %v11310
    %11314 = vmatprep.subr.bf16.mxu0 %v11302
    %11315 = vmatpush1.bf16.msra.mxu0 %v11301
    %11316 = vmatprep.subr.bf16.mxu0 0
    %11317 = vmatpush1.bf16.msra.mxu0 0
    %11318 = vmatprep.subr.bf16.mxu0 0
    %11319 = vmatpush1.bf16.msra.mxu0 0
    %11320 = vmatprep.subr.bf16.mxu0 0
    %11321 = vmatpush1.bf16.msra.mxu0 0
    %11322 = vmatprep.subr.bf16.mxu0 0
    %11323 = vmatpush1.bf16.msra.mxu0 0
    %11324 = vmatprep.subr.bf16.mxu0 0
    %11325 = vmatpush1.bf16.msra.mxu0 0
    %11326 = vmatprep.subr.bf16.mxu0 0
    %11327 = vmatpush1.bf16.msra.mxu0 0
    %11328 = vmatprep.subr.bf16.mxu0 0
    %11329 = vmatpush1.bf16.msra.mxu0 0
    %11330 = vmatprep.subr.bf16.mxu0 0
    %11331 = vmatpush1.bf16.msra.mxu0 0
    %11332 = vmatprep.subr.bf16.mxu0 0
    %11333 = vmatpush1.bf16.msra.mxu0 0
    %11334 = vmatprep.subr.bf16.mxu0 0
    %11335 = vmatpush1.bf16.msra.mxu0 0
    %11336 = vmatprep.subr.bf16.mxu0 0
    %11337 = vmatpush1.bf16.msra.mxu0 0
    %11338 = vmatprep.subr.bf16.mxu0 0
    %11339 = vmatpush1.bf16.msra.mxu0 0
    %11340 = vmatprep.subr.bf16.mxu0 0
    %11341 = vmatpush1.bf16.msra.mxu0 0
    %11342 = vmatprep.subr.bf16.mxu0 0
    %11343 = vmatpush1.bf16.msra.mxu0 0
    %11344 = vmatprep.subr.bf16.mxu0 0
    %11345 = vmatpush1.bf16.msra.mxu0 0
    %11346 = vmatprep.mubr.bf16.mxu0 0
    %11347 = vmatmul.mubr.bf16.gmra.mrb[0].mxu0 %v616
    %v11348 = vpop.f32.mrb[0].mxu0
    %v11349 = vadd.f32 %v11307, %v11348
    %v11350 = vpop.f32.mrb[0].mxu0
    %v11351 = vadd.f32 %v11311, %v11350
    %v11352 = vpop.f32.mrb[0].mxu0
    %v11353 = vadd.f32 %v11307, %v11352
    %v11354 = vpop.f32.mrb[0].mxu0
    %v11355 = vadd.f32 %v11311, %v11354
    %11356 = vdwg.mxu0
    %v11357 = vmax.f32 %v11349, 0.0
    %v11358 = vmax.f32 %v11351, 0.0
    %v11359 = vmax.f32 %v11353, 0.0
    %v11360 = vmax.f32 %v11355, 0.0
    %v11361 = vpack.c.bf16 %v11359, %v11357
    %v11362 = vpack.c.bf16 %v11360, %v11358
    %v11363 = vld [vmem:[#allocation18] sm:$0xf]
    %v11364 = vld [vmem:[#allocation18 + $0x4] sm:$0xf]
    %v11365 = vld [vmem:[#allocation18 + $0x8] sm:$0xf]
    %v11366 = vld [vmem:[#allocation18 + $0xc] sm:$0xf]
    %v11367 = vld [vmem:[#allocation18 + $0x10] sm:$0xf]
    %v11368 = vld [vmem:[#allocation18 + $0x14] sm:$0xf]
    %v11369 = vld [vmem:[#allocation18 + $0x18] sm:$0xf]
    %v11370 = vld [vmem:[#allocation18 + $0x1c] sm:$0xf]
    %v11371 = vld [vmem:[#allocation18 + $0x20] sm:$0xf]
    %v11372 = vld [vmem:[#allocation18 + $0x24] sm:$0xf]
    %v11373 = vld [vmem:[#allocation18 + $0x28] sm:$0xf]
    %v11374 = vld [vmem:[#allocation18 + $0x2c] sm:$0xf]
    %v11375 = vld [vmem:[#allocation18 + $0x30] sm:$0xf]
    %v11376 = vld [vmem:[#allocation18 + $0x34] sm:$0xf]
    %v11377 = vld [vmem:[#allocation18 + $0x38] sm:$0xf]
    %v11378 = vld [vmem:[#allocation18 + $0x3c] sm:$0xf]
    %v11379 = vld [vmem:[#allocation18 + $0x40] sm:$0xf]
    %v11380 = vld [vmem:[#allocation18 + $0x44] sm:$0xf]
    %v11381 = vld [vmem:[#allocation18 + $0x48] sm:$0xf]
    %v11382 = vld [vmem:[#allocation18 + $0x4c] sm:$0xf]
    %v11383 = vld [vmem:[#allocation18 + $0x50] sm:$0xf]
    %v11384 = vld [vmem:[#allocation18 + $0x54] sm:$0xf]
    %v11385 = vld [vmem:[#allocation18 + $0x58] sm:$0xf]
    %v11386 = vld [vmem:[#allocation18 + $0x5c] sm:$0xf]
    %v11387 = vld [vmem:[#allocation18 + $0x60] sm:$0xf]
    %v11388 = vld [vmem:[#allocation18 + $0x64] sm:$0xf]
    %v11389 = vld [vmem:[#allocation18 + $0x68] sm:$0xf]
    %v11390 = vld [vmem:[#allocation18 + $0x6c] sm:$0xf]
    %v11391 = vld [vmem:[#allocation18 + $0x70] sm:$0xf]
    %v11392 = vld [vmem:[#allocation18 + $0x74] sm:$0xf]
    %v11393 = vld [vmem:[#allocation18 + $0x78] sm:$0xf]
    %v11394 = vld [vmem:[#allocation18 + $0x7c] sm:$0xf]
    %v11395 = vld [vmem:[#allocation19] sm:$0x1]
    %v11428 = vunpack.c.l.b16 %v11363
    %v11429 = vunpack.c.l.b16 %v11364
    %v11430 = vunpack.c.l.b16 %v11365
    %v11431 = vunpack.c.l.b16 %v11366
    %v11432 = vunpack.c.l.b16 %v11367
    %v11433 = vunpack.c.l.b16 %v11368
    %v11434 = vunpack.c.l.b16 %v11369
    %v11435 = vunpack.c.l.b16 %v11370
    %v11436 = vunpack.c.l.b16 %v11371
    %v11437 = vunpack.c.l.b16 %v11372
    %v11438 = vunpack.c.l.b16 %v11373
    %v11439 = vunpack.c.l.b16 %v11374
    %v11440 = vunpack.c.l.b16 %v11375
    %v11441 = vunpack.c.l.b16 %v11376
    %v11442 = vunpack.c.l.b16 %v11377
    %v11443 = vunpack.c.l.b16 %v11378
    %v11444 = vunpack.c.l.b16 %v11379
    %v11445 = vunpack.c.l.b16 %v11380
    %v11446 = vunpack.c.l.b16 %v11381
    %v11447 = vunpack.c.l.b16 %v11382
    %v11448 = vunpack.c.l.b16 %v11383
    %v11449 = vunpack.c.l.b16 %v11384
    %v11450 = vunpack.c.l.b16 %v11385
    %v11451 = vunpack.c.l.b16 %v11386
    %v11452 = vunpack.c.l.b16 %v11387
    %v11453 = vunpack.c.l.b16 %v11388
    %v11454 = vunpack.c.l.b16 %v11389
    %v11455 = vunpack.c.l.b16 %v11390
    %v11456 = vunpack.c.l.b16 %v11391
    %v11457 = vunpack.c.l.b16 %v11392
    %v11458 = vunpack.c.l.b16 %v11393
    %v11459 = vunpack.c.l.b16 %v11394
    %v11460 = vpack.c.b16 %v11429, %v11428
    %v11461 = vpack.c.b16 %v11431, %v11430
    %v11462 = vpack.c.b16 %v11433, %v11432
    %v11463 = vpack.c.b16 %v11435, %v11434
    %v11464 = vpack.c.b16 %v11437, %v11436
    %v11465 = vpack.c.b16 %v11439, %v11438
    %v11466 = vpack.c.b16 %v11441, %v11440
    %v11467 = vpack.c.b16 %v11443, %v11442
    %v11468 = vpack.c.b16 %v11445, %v11444
    %v11469 = vpack.c.b16 %v11447, %v11446
    %v11470 = vpack.c.b16 %v11449, %v11448
    %v11471 = vpack.c.b16 %v11451, %v11450
    %v11472 = vpack.c.b16 %v11453, %v11452
    %v11473 = vpack.c.b16 %v11455, %v11454
    %v11474 = vpack.c.b16 %v11457, %v11456
    %v11475 = vpack.c.b16 %v11459, %v11458
    %11492 = vmatprep.subr.bf16.mxu0 0
    %11493 = vmatpush1.bf16.msra.mxu0 %v11460
    %11494 = vmatprep.subr.bf16.mxu0 0
    %11495 = vmatpush1.bf16.msra.mxu0 %v11461
    %11496 = vmatprep.subr.bf16.mxu0 0
    %11497 = vmatpush1.bf16.msra.mxu0 %v11462
    %11498 = vmatprep.subr.bf16.mxu0 0
    %11499 = vmatpush1.bf16.msra.mxu0 %v11463
    %11500 = vmatprep.subr.bf16.mxu0 0
    %11501 = vmatpush1.bf16.msra.mxu0 %v11464
    %11502 = vmatprep.subr.bf16.mxu0 0
    %11503 = vmatpush1.bf16.msra.mxu0 %v11465
    %11504 = vmatprep.subr.bf16.mxu0 0
    %11505 = vmatpush1.bf16.msra.mxu0 %v11466
    %11506 = vmatprep.subr.bf16.mxu0 0
    %11507 = vmatpush1.bf16.msra.mxu0 %v11467
    %11508 = vmatprep.subr.bf16.mxu0 0
    %11509 = vmatpush1.bf16.msra.mxu0 %v11468
    %11510 = vmatprep.subr.bf16.mxu0 0
    %11511 = vmatpush1.bf16.msra.mxu0 %v11469
    %11512 = vmatprep.subr.bf16.mxu0 0
    %11513 = vmatpush1.bf16.msra.mxu0 %v11470
    %11514 = vmatprep.subr.bf16.mxu0 0
    %11515 = vmatpush1.bf16.msra.mxu0 %v11471
    %11516 = vmatprep.subr.bf16.mxu0 0
    %11517 = vmatpush1.bf16.msra.mxu0 %v11472
    %11518 = vmatprep.subr.bf16.mxu0 0
    %11519 = vmatpush1.bf16.msra.mxu0 %v11473
    %11520 = vmatprep.subr.bf16.mxu0 0
    %11521 = vmatpush1.bf16.msra.mxu0 %v11474
    %11522 = vmatprep.subr.bf16.mxu0 0
    %11523 = vmatpush1.bf16.msra.mxu0 %v11475
    %11524 = vmatprep.mubr.bf16.mxu0 %v11362
    %11525 = vmatmul.mubr.bf16.gmra.mrb[0].mxu0 %v11361
    %v11526 = vpop.f32.mrb[0].mxu0
    %v11527 = vadd.f32 0.0, %v11526
    %v11528 = vpop.f32.mrb[0].mxu0
    %v11529 = vpop.f32.mrb[0].mxu0
    %v11530 = vadd.f32 0.0, %v11529
    %v11531 = vpop.f32.mrb[0].mxu0
    %11532 = vdwg.mxu0
    %v11533 = vpack.c.bf16 %v11530, %v11527
    %v11535 = vlaneseq
    %v11536 = vshrl.u32 %v11535, 7
    %v11537 = vsub.s32 0, %v11536
    %v11538 = vrot.slane %v11395, %v11537
    %11540 = vmatprep.subr.bf16.mxu0 0
    %11541 = vmatpush1.bf16.msra.mxu0 %v11533
    %11542 = vmatprep.subr.bf16.mxu0 0
    %11543 = vmatpush1.bf16.msra.mxu0 0
    %11544 = vmatprep.subr.bf16.mxu0 0
    %11545 = vmatpush1.bf16.msra.mxu0 0
    %11546 = vmatprep.subr.bf16.mxu0 0
    %11547 = vmatpush1.bf16.msra.mxu0 0
    %11548 = vmatprep.subr.bf16.mxu0 0
    %11549 = vmatpush1.bf16.msra.mxu0 0
    %11550 = vmatprep.subr.bf16.mxu0 0
    %11551 = vmatpush1.bf16.msra.mxu0 0
    %11552 = vmatprep.subr.bf16.mxu0 0
    %11553 = vmatpush1.bf16.msra.mxu0 0
    %11554 = vmatprep.subr.bf16.mxu0 0
    %11555 = vmatpush1.bf16.msra.mxu0 0
    %11556 = vmatprep.subr.bf16.mxu0 0
    %11557 = vmatpush1.bf16.msra.mxu0 0
    %11558 = vmatprep.subr.bf16.mxu0 0
    %11559 = vmatpush1.bf16.msra.mxu0 0
    %11560 = vmatprep.subr.bf16.mxu0 0
    %11561 = vmatpush1.bf16.msra.mxu0 0
    %11562 = vmatprep.subr.bf16.mxu0 0
    %11563 = vmatpush1.bf16.msra.mxu0 0
    %11564 = vmatprep.subr.bf16.mxu0 0
    %11565 = vmatpush1.bf16.msra.mxu0 0
    %11566 = vmatprep.subr.bf16.mxu0 0
    %11567 = vmatpush1.bf16.msra.mxu0 0
    %11568 = vmatprep.subr.bf16.mxu0 0
    %11569 = vmatpush1.bf16.msra.mxu0 0
    %11570 = vmatprep.subr.bf16.mxu0 0
    %11571 = vmatpush1.bf16.msra.mxu0 0
    %11572 = vmatprep.mubr.bf16.mxu0 0
    %11573 = vmatmul.mubr.bf16.gmra.mrb[0].mxu0 %v616
    %v11574 = vpop.f32.mrb[0].mxu0
    %v11575 = vadd.f32 %v11538, %v11574
    %v11576 = vpop.f32.mrb[0].mxu0
    %v11577 = vpop.f32.mrb[0].mxu0
    %v11578 = vadd.f32 %v11538, %v11577
    %v11579 = vpop.f32.mrb[0].mxu0
    %11580 = vdwg.mxu0
    %v11581 = vmax.f32 %v11575, 0.0
    %v11582 = vmax.f32 %v11578, 0.0
    %v11583 = vpack.c.bf16 %v11582, %v11581
    %v11584 = vld [vmem:[#allocation21] sm:$0xf]
    %v11585 = vld [vmem:[#allocation21 + $0x4] sm:$0xf]
    %v11586 = vld [vmem:[#allocation21 + $0x8] sm:$0xf]
    %v11587 = vld [vmem:[#allocation21 + $0xc] sm:$0xf]
    %v11588 = vld [vmem:[#allocation21 + $0x10] sm:$0xf]
    %v11589 = vld [vmem:[#allocation21 + $0x14] sm:$0xf]
    %v11590 = vld [vmem:[#allocation21 + $0x18] sm:$0xf]
    %v11591 = vld [vmem:[#allocation21 + $0x1c] sm:$0xf]
    %v11592 = vld [vmem:[#allocation21 + $0x20] sm:$0xf]
    %v11593 = vld [vmem:[#allocation21 + $0x24] sm:$0xf]
    %v11594 = vld [vmem:[#allocation21 + $0x28] sm:$0xf]
    %v11595 = vld [vmem:[#allocation21 + $0x2c] sm:$0xf]
    %v11596 = vld [vmem:[#allocation21 + $0x30] sm:$0xf]
    %v11597 = vld [vmem:[#allocation21 + $0x34] sm:$0xf]
    %v11598 = vld [vmem:[#allocation21 + $0x38] sm:$0xf]
    %v11599 = vld [vmem:[#allocation21 + $0x3c] sm:$0xf]
    %v11600 = vld [vmem:[#allocation22] sm:$0x1]
    %v11617 = vunpack.c.l.b16 %v11584
    %v11618 = vunpack.c.l.b16 %v11585
    %v11619 = vunpack.c.l.b16 %v11586
    %v11620 = vunpack.c.l.b16 %v11587
    %v11621 = vunpack.c.l.b16 %v11588
    %v11622 = vunpack.c.l.b16 %v11589
    %v11623 = vunpack.c.l.b16 %v11590
    %v11624 = vunpack.c.l.b16 %v11591
    %v11625 = vunpack.c.l.b16 %v11592
    %v11626 = vunpack.c.l.b16 %v11593
    %v11627 = vunpack.c.l.b16 %v11594
    %v11628 = vunpack.c.l.b16 %v11595
    %v11629 = vunpack.c.l.b16 %v11596
    %v11630 = vunpack.c.l.b16 %v11597
    %v11631 = vunpack.c.l.b16 %v11598
    %v11632 = vunpack.c.l.b16 %v11599
    %v11633 = vpack.c.b16 %v11618, %v11617
    %v11634 = vpack.c.b16 %v11620, %v11619
    %v11635 = vpack.c.b16 %v11622, %v11621
    %v11636 = vpack.c.b16 %v11624, %v11623
    %v11637 = vpack.c.b16 %v11626, %v11625
    %v11638 = vpack.c.b16 %v11628, %v11627
    %v11639 = vpack.c.b16 %v11630, %v11629
    %v11640 = vpack.c.b16 %v11632, %v11631
    %11649 = vmatprep.subr.bf16.mxu0 0
    %11650 = vmatpush1.bf16.msra.mxu0 %v11633
    %11651 = vmatprep.subr.bf16.mxu0 0
    %11652 = vmatpush1.bf16.msra.mxu0 %v11634
    %11653 = vmatprep.subr.bf16.mxu0 0
    %11654 = vmatpush1.bf16.msra.mxu0 %v11635
    %11655 = vmatprep.subr.bf16.mxu0 0
    %11656 = vmatpush1.bf16.msra.mxu0 %v11636
    %11657 = vmatprep.subr.bf16.mxu0 0
    %11658 = vmatpush1.bf16.msra.mxu0 %v11637
    %11659 = vmatprep.subr.bf16.mxu0 0
    %11660 = vmatpush1.bf16.msra.mxu0 %v11638
    %11661 = vmatprep.subr.bf16.mxu0 0
    %11662 = vmatpush1.bf16.msra.mxu0 %v11639
    %11663 = vmatprep.subr.bf16.mxu0 0
    %11664 = vmatpush1.bf16.msra.mxu0 %v11640
    %11665 = vmatprep.subr.bf16.mxu0 0
    %11666 = vmatpush1.bf16.msra.mxu0 0
    %11667 = vmatprep.subr.bf16.mxu0 0
    %11668 = vmatpush1.bf16.msra.mxu0 0
    %11669 = vmatprep.subr.bf16.mxu0 0
    %11670 = vmatpush1.bf16.msra.mxu0 0
    %11671 = vmatprep.subr.bf16.mxu0 0
    %11672 = vmatpush1.bf16.msra.mxu0 0
    %11673 = vmatprep.subr.bf16.mxu0 0
    %11674 = vmatpush1.bf16.msra.mxu0 0
    %11675 = vmatprep.subr.bf16.mxu0 0
    %11676 = vmatpush1.bf16.msra.mxu0 0
    %11677 = vmatprep.subr.bf16.mxu0 0
    %11678 = vmatpush1.bf16.msra.mxu0 0
    %11679 = vmatprep.subr.bf16.mxu0 0
    %11680 = vmatpush1.bf16.msra.mxu0 0
    %11681 = vmatprep.mubr.bf16.mxu0 0
    %11682 = vmatmul.mubr.bf16.gmra.mrb[0].mxu0 %v11583
    %v11683 = vpop.f32.mrb[0].mxu0
    %v11684 = vadd.f32 0.0, %v11683
    %v11685 = vpop.f32.mrb[0].mxu0
    %v11686 = vpop.f32.mrb[0].mxu0
    %v11687 = vadd.f32 0.0, %v11686
    %v11688 = vpop.f32.mrb[0].mxu0
    %11689 = vdwg.mxu0
    %v11690 = vpack.c.bf16 %v11687, %v11684
    %v11692 = vlaneseq
    %v11693 = vshrl.u32 %v11692, 7
    %v11694 = vsub.s32 0, %v11693
    %v11695 = vrot.slane %v11600, %v11694
    %11697 = vmatprep.subr.bf16.mxu0 0
    %11698 = vmatpush1.bf16.msra.mxu0 %v11690
    %11699 = vmatprep.subr.bf16.mxu0 0
    %11700 = vmatpush1.bf16.msra.mxu0 0
    %11701 = vmatprep.subr.bf16.mxu0 0
    %11702 = vmatpush1.bf16.msra.mxu0 0
    %11703 = vmatprep.subr.bf16.mxu0 0
    %11704 = vmatpush1.bf16.msra.mxu0 0
    %11705 = vmatprep.subr.bf16.mxu0 0
    %11706 = vmatpush1.bf16.msra.mxu0 0
    %11707 = vmatprep.subr.bf16.mxu0 0
    %11708 = vmatpush1.bf16.msra.mxu0 0
    %11709 = vmatprep.subr.bf16.mxu0 0
    %11710 = vmatpush1.bf16.msra.mxu0 0
    %11711 = vmatprep.subr.bf16.mxu0 0
    %11712 = vmatpush1.bf16.msra.mxu0 0
    %11713 = vmatprep.subr.bf16.mxu0 0
    %11714 = vmatpush1.bf16.msra.mxu0 0
    %11715 = vmatprep.subr.bf16.mxu0 0
    %11716 = vmatpush1.bf16.msra.mxu0 0
    %11717 = vmatprep.subr.bf16.mxu0 0
    %11718 = vmatpush1.bf16.msra.mxu0 0
    %11719 = vmatprep.subr.bf16.mxu0 0
    %11720 = vmatpush1.bf16.msra.mxu0 0
    %11721 = vmatprep.subr.bf16.mxu0 0
    %11722 = vmatpush1.bf16.msra.mxu0 0
    %11723 = vmatprep.subr.bf16.mxu0 0
    %11724 = vmatpush1.bf16.msra.mxu0 0
    %11725 = vmatprep.subr.bf16.mxu0 0
    %11726 = vmatpush1.bf16.msra.mxu0 0
    %11727 = vmatprep.subr.bf16.mxu0 0
    %11728 = vmatpush1.bf16.msra.mxu0 0
    %11729 = vmatprep.mubr.bf16.mxu0 0
    %11730 = vmatmul.mubr.bf16.gmra.mrb[0].mxu0 %v616
    %v11731 = vpop.f32.mrb[0].mxu0
    %v11732 = vadd.f32 %v11695, %v11731
    %v11733 = vpop.f32.mrb[0].mxu0
    %v11734 = vpop.f32.mrb[0].mxu0
    %v11735 = vadd.f32 %v11695, %v11734
    %v11736 = vpop.f32.mrb[0].mxu0
    %11737 = vdwg.mxu0
    %v11738 = vmax.f32 %v11732, 0.0
    %v11739 = vmax.f32 %v11735, 0.0
    %v11740 = vpack.c.bf16 %v11739, %v11738
    %v11741 = vld [vmem:[%s16] sm:$0xf]
    %v11742 = vld [vmem:[%s16 + $0x4] sm:$0xf]
    %v11743 = vld [vmem:[%s16 + $0x8] sm:$0xf]
    %v11744 = vld [vmem:[%s16 + $0xc] sm:$0xf]
    %v11745 = vld [vmem:[%s16 + $0x10] sm:$0xf]
    %v11746 = vld [vmem:[%s16 + $0x14] sm:$0xf]
    %v11747 = vld [vmem:[%s16 + $0x18] sm:$0xf]
    %v11748 = vld [vmem:[%s16 + $0x1c] sm:$0xf]
    %v11749 = vld [vmem:[%s16 + $0x20] sm:$0xf]
    %v11750 = vld [vmem:[%s16 + $0x24] sm:$0xf]
    %v11751 = vld [vmem:[%s16 + $0x28] sm:$0xf]
    %v11752 = vld [vmem:[%s16 + $0x2c] sm:$0xf]
    %v11753 = vld [vmem:[%s16 + $0x30] sm:$0xf]
    %v11754 = vld [vmem:[%s16 + $0x34] sm:$0xf]
    %v11755 = vld [vmem:[%s16 + $0x38] sm:$0xf]
    %v11756 = vld [vmem:[%s16 + $0x3c] sm:$0xf]
    %v11757 = vld [vmem:[#allocation24] sm:$0x1]
    %v11774 = vunpack.c.l.b16 %v11741
    %v11775 = vunpack.c.l.b16 %v11742
    %v11776 = vunpack.c.l.b16 %v11743
    %v11777 = vunpack.c.l.b16 %v11744
    %v11778 = vunpack.c.l.b16 %v11745
    %v11779 = vunpack.c.l.b16 %v11746
    %v11780 = vunpack.c.l.b16 %v11747
    %v11781 = vunpack.c.l.b16 %v11748
    %v11782 = vunpack.c.l.b16 %v11749
    %v11783 = vunpack.c.l.b16 %v11750
    %v11784 = vunpack.c.l.b16 %v11751
    %v11785 = vunpack.c.l.b16 %v11752
    %v11786 = vunpack.c.l.b16 %v11753
    %v11787 = vunpack.c.l.b16 %v11754
    %v11788 = vunpack.c.l.b16 %v11755
    %v11789 = vunpack.c.l.b16 %v11756
    %v11790 = vpack.c.b16 %v11775, %v11774
    %v11791 = vpack.c.b16 %v11777, %v11776
    %v11792 = vpack.c.b16 %v11779, %v11778
    %v11793 = vpack.c.b16 %v11781, %v11780
    %v11794 = vpack.c.b16 %v11783, %v11782
    %v11795 = vpack.c.b16 %v11785, %v11784
    %v11796 = vpack.c.b16 %v11787, %v11786
    %v11797 = vpack.c.b16 %v11789, %v11788
    %11806 = vmatprep.subr.bf16.mxu0 0
    %11807 = vmatpush1.bf16.msra.mxu0 %v11790
    %11808 = vmatprep.subr.bf16.mxu0 0
    %11809 = vmatpush1.bf16.msra.mxu0 %v11791
    %11810 = vmatprep.subr.bf16.mxu0 0
    %11811 = vmatpush1.bf16.msra.mxu0 %v11792
    %11812 = vmatprep.subr.bf16.mxu0 0
    %11813 = vmatpush1.bf16.msra.mxu0 %v11793
    %11814 = vmatprep.subr.bf16.mxu0 0
    %11815 = vmatpush1.bf16.msra.mxu0 %v11794
    %11816 = vmatprep.subr.bf16.mxu0 0
    %11817 = vmatpush1.bf16.msra.mxu0 %v11795
    %11818 = vmatprep.subr.bf16.mxu0 0
    %11819 = vmatpush1.bf16.msra.mxu0 %v11796
    %11820 = vmatprep.subr.bf16.mxu0 0
    %11821 = vmatpush1.bf16.msra.mxu0 %v11797
    %11822 = vmatprep.subr.bf16.mxu0 0
    %11823 = vmatpush1.bf16.msra.mxu0 0
    %11824 = vmatprep.subr.bf16.mxu0 0
    %11825 = vmatpush1.bf16.msra.mxu0 0
    %11826 = vmatprep.subr.bf16.mxu0 0
    %11827 = vmatpush1.bf16.msra.mxu0 0
    %11828 = vmatprep.subr.bf16.mxu0 0
    %11829 = vmatpush1.bf16.msra.mxu0 0
    %11830 = vmatprep.subr.bf16.mxu0 0
    %11831 = vmatpush1.bf16.msra.mxu0 0
    %11832 = vmatprep.subr.bf16.mxu0 0
    %11833 = vmatpush1.bf16.msra.mxu0 0
    %11834 = vmatprep.subr.bf16.mxu0 0
    %11835 = vmatpush1.bf16.msra.mxu0 0
    %11836 = vmatprep.subr.bf16.mxu0 0
    %11837 = vmatpush1.bf16.msra.mxu0 0
    %11838 = vmatprep.mubr.bf16.mxu0 0
    %11839 = vmatmul.mubr.bf16.gmra.mrb[0].mxu0 %v11740
    %v11840 = vpop.f32.mrb[0].mxu0
    %v11841 = vadd.f32 0.0, %v11840
    %v11842 = vpop.f32.mrb[0].mxu0
    %v11843 = vpop.f32.mrb[0].mxu0
    %v11844 = vadd.f32 0.0, %v11843
    %v11845 = vpop.f32.mrb[0].mxu0
    %11846 = vdwg.mxu0
    %v11847 = vpack.c.bf16 %v11844, %v11841
    %v11849 = vlaneseq
    %v11850 = vshrl.u32 %v11849, 7
    %v11851 = vsub.s32 0, %v11850
    %v11852 = vrot.slane %v11757, %v11851
    %11854 = vmatprep.subr.bf16.mxu0 0
    %11855 = vmatpush1.bf16.msra.mxu0 %v11847
    %11856 = vmatprep.subr.bf16.mxu0 0
    %11857 = vmatpush1.bf16.msra.mxu0 0
    %11858 = vmatprep.subr.bf16.mxu0 0
    %11859 = vmatpush1.bf16.msra.mxu0 0
    %11860 = vmatprep.subr.bf16.mxu0 0
    %11861 = vmatpush1.bf16.msra.mxu0 0
    %11862 = vmatprep.subr.bf16.mxu0 0
    %11863 = vmatpush1.bf16.msra.mxu0 0
    %11864 = vmatprep.subr.bf16.mxu0 0
    %11865 = vmatpush1.bf16.msra.mxu0 0
    %11866 = vmatprep.subr.bf16.mxu0 0
    %11867 = vmatpush1.bf16.msra.mxu0 0
    %11868 = vmatprep.subr.bf16.mxu0 0
    %11869 = vmatpush1.bf16.msra.mxu0 0
    %11870 = vmatprep.subr.bf16.mxu0 0
    %11871 = vmatpush1.bf16.msra.mxu0 0
    %11872 = vmatprep.subr.bf16.mxu0 0
    %11873 = vmatpush1.bf16.msra.mxu0 0
    %11874 = vmatprep.subr.bf16.mxu0 0
    %11875 = vmatpush1.bf16.msra.mxu0 0
    %11876 = vmatprep.subr.bf16.mxu0 0
    %11877 = vmatpush1.bf16.msra.mxu0 0
    %11878 = vmatprep.subr.bf16.mxu0 0
    %11879 = vmatpush1.bf16.msra.mxu0 0
    %11880 = vmatprep.subr.bf16.mxu0 0
    %11881 = vmatpush1.bf16.msra.mxu0 0
    %11882 = vmatprep.subr.bf16.mxu0 0
    %11883 = vmatpush1.bf16.msra.mxu0 0
    %11884 = vmatprep.subr.bf16.mxu0 0
    %11885 = vmatpush1.bf16.msra.mxu0 0
    %11886 = vmatprep.mubr.bf16.mxu0 0
    %11887 = vmatmul.mubr.bf16.gmra.mrb[0].mxu0 %v616
    %v11888 = vpop.f32.mrb[0].mxu0
    %v11889 = vadd.f32 %v11852, %v11888
    %v11890 = vpop.f32.mrb[0].mxu0
    %v11891 = vpop.f32.mrb[0].mxu0
    %v11892 = vadd.f32 %v11852, %v11891
    %v11893 = vpop.f32.mrb[0].mxu0
    %11894 = vdwg.mxu0
    %v11895 = vmax.f32 %v11889, 0.0
    %v11896 = vmax.f32 %v11892, 0.0
    %v11897 = vpack.c.bf16 %v11896, %v11895
    %v11898 = vld [vmem:[#allocation25] sm:$0xf]
    %v11899 = vld [vmem:[#allocation25 + $0x4] sm:$0xf]
    %v11900 = vld [vmem:[#allocation25 + $0x8] sm:$0xf]
    %v11901 = vld [vmem:[#allocation25 + $0xc] sm:$0xf]
    %v11902 = vld [vmem:[#allocation25 + $0x10] sm:$0xf]
    %v11903 = vld [vmem:[#allocation25 + $0x14] sm:$0xf]
    %v11904 = vld [vmem:[#allocation25 + $0x18] sm:$0xf]
    %v11905 = vld [vmem:[#allocation25 + $0x1c] sm:$0xf]
    %v11906 = vld [vmem:[#allocation27] sm:$0x1]
    %v11915 = vunpack.c.l.b16 %v11898
    %v11916 = vunpack.c.l.b16 %v11899
    %v11917 = vunpack.c.l.b16 %v11900
    %v11918 = vunpack.c.l.b16 %v11901
    %v11919 = vunpack.c.l.b16 %v11902
    %v11920 = vunpack.c.l.b16 %v11903
    %v11921 = vunpack.c.l.b16 %v11904
    %v11922 = vunpack.c.l.b16 %v11905
    %v11923 = vpack.c.b16 %v11916, %v11915
    %v11924 = vpack.c.b16 %v11918, %v11917
    %v11925 = vpack.c.b16 %v11920, %v11919
    %v11926 = vpack.c.b16 %v11922, %v11921
    %vm11931 = vcmask 523264
    %v11933 = vsel %vm11931, %v11897, 0
    %11935 = vmatprep.subr.bf16.mxu0 0
    %11936 = vmatpush1.bf16.msra.mxu0 %v11923
    %11937 = vmatprep.subr.bf16.mxu0 0
    %11938 = vmatpush1.bf16.msra.mxu0 %v11924
    %11939 = vmatprep.subr.bf16.mxu0 0
    %11940 = vmatpush1.bf16.msra.mxu0 %v11925
    %11941 = vmatprep.subr.bf16.mxu0 0
    %11942 = vmatpush1.bf16.msra.mxu0 %v11926
    %11943 = vmatprep.subr.bf16.mxu0 0
    %11944 = vmatpush1.bf16.msra.mxu0 0
    %11945 = vmatprep.subr.bf16.mxu0 0
    %11946 = vmatpush1.bf16.msra.mxu0 0
    %11947 = vmatprep.subr.bf16.mxu0 0
    %11948 = vmatpush1.bf16.msra.mxu0 0
    %11949 = vmatprep.subr.bf16.mxu0 0
    %11950 = vmatpush1.bf16.msra.mxu0 0
    %11951 = vmatprep.subr.bf16.mxu0 0
    %11952 = vmatpush1.bf16.msra.mxu0 0
    %11953 = vmatprep.subr.bf16.mxu0 0
    %11954 = vmatpush1.bf16.msra.mxu0 0
    %11955 = vmatprep.subr.bf16.mxu0 0
    %11956 = vmatpush1.bf16.msra.mxu0 0
    %11957 = vmatprep.subr.bf16.mxu0 0
    %11958 = vmatpush1.bf16.msra.mxu0 0
    %11959 = vmatprep.subr.bf16.mxu0 0
    %11960 = vmatpush1.bf16.msra.mxu0 0
    %11961 = vmatprep.subr.bf16.mxu0 0
    %11962 = vmatpush1.bf16.msra.mxu0 0
    %11963 = vmatprep.subr.bf16.mxu0 0
    %11964 = vmatpush1.bf16.msra.mxu0 0
    %11965 = vmatprep.subr.bf16.mxu0 0
    %11966 = vmatpush1.bf16.msra.mxu0 0
    %11967 = vmatprep.mubr.bf16.mxu0 0
    %11968 = vmatmul.mubr.bf16.gmra.mrb[0].mxu0 %v11933
    %v11969 = vpop.f32.mrb[0].mxu0
    %v11970 = vadd.f32 0.0, %v11969
    %v11971 = vpop.f32.mrb[0].mxu0
    %v11972 = vpop.f32.mrb[0].mxu0
    %v11973 = vadd.f32 0.0, %v11972
    %v11974 = vpop.f32.mrb[0].mxu0
    %11975 = vdwg.mxu0
    %v11976 = vpack.c.bf16 %v11973, %v11970
    %v11978 = vlaneseq
    %v11979 = vshrl.u32 %v11978, 7
    %v11980 = vsub.s32 0, %v11979
    %v11981 = vrot.slane %v11906, %v11980
    %11983 = vmatprep.subr.bf16.mxu0 0
    %11984 = vmatpush1.bf16.msra.mxu0 %v11976
    %11985 = vmatprep.subr.bf16.mxu0 0
    %11986 = vmatpush1.bf16.msra.mxu0 0
    %11987 = vmatprep.subr.bf16.mxu0 0
    %11988 = vmatpush1.bf16.msra.mxu0 0
    %11989 = vmatprep.subr.bf16.mxu0 0
    %11990 = vmatpush1.bf16.msra.mxu0 0
    %11991 = vmatprep.subr.bf16.mxu0 0
    %11992 = vmatpush1.bf16.msra.mxu0 0
    %11993 = vmatprep.subr.bf16.mxu0 0
    %11994 = vmatpush1.bf16.msra.mxu0 0
    %11995 = vmatprep.subr.bf16.mxu0 0
    %11996 = vmatpush1.bf16.msra.mxu0 0
    %11997 = vmatprep.subr.bf16.mxu0 0
    %11998 = vmatpush1.bf16.msra.mxu0 0
    %11999 = vmatprep.subr.bf16.mxu0 0
    %12000 = vmatpush1.bf16.msra.mxu0 0
    %12001 = vmatprep.subr.bf16.mxu0 0
    %12002 = vmatpush1.bf16.msra.mxu0 0
    %12003 = vmatprep.subr.bf16.mxu0 0
    %12004 = vmatpush1.bf16.msra.mxu0 0
    %12005 = vmatprep.subr.bf16.mxu0 0
    %12006 = vmatpush1.bf16.msra.mxu0 0
    %12007 = vmatprep.subr.bf16.mxu0 0
    %12008 = vmatpush1.bf16.msra.mxu0 0
    %12009 = vmatprep.subr.bf16.mxu0 0
    %12010 = vmatpush1.bf16.msra.mxu0 0
    %12011 = vmatprep.subr.bf16.mxu0 0
    %12012 = vmatpush1.bf16.msra.mxu0 0
    %12013 = vmatprep.subr.bf16.mxu0 0
    %12014 = vmatpush1.bf16.msra.mxu0 0
    %12015 = vmatprep.mubr.bf16.mxu0 0
    %12016 = vmatmul.mubr.bf16.gmra.mrb[0].mxu0 %v616
    %v12017 = vpop.f32.mrb[0].mxu0
    %v12018 = vadd.f32 %v11981, %v12017
    %v12019 = vpop.f32.mrb[0].mxu0
    %v12020 = vpop.f32.mrb[0].mxu0
    %v12021 = vadd.f32 %v11981, %v12020
    %v12022 = vpop.f32.mrb[0].mxu0
    %12023 = vdwg.mxu0
    %v12024 = vmax.f32 %v12018, 0.0
    %v12025 = vmax.f32 %v12021, 0.0
    %v12026 = vlaneseq
    %v12027 = vand.u32 %v12026, 127
    %vm12028 = vcmp.lt.s32.totalorder %v12027, 8
    %v12029 = vsel %vm12028, %v12024, -inf
    %v12030 = vsel %vm12028, %v12025, -inf
    %12031 = vmax.xlane.f32.xlu0 %v12029
    %v12032 = vpop.xlane.xlu0 %12031
    %12033 = vmax.xlane.f32.xlu0 %v12030
    %v12034 = vpop.xlane.xlu0 %12033
    %v12035 = vsub.f32 %v12024, %v12032
    %v12036 = vsub.f32 %v12025, %v12034
    %v12037 = vmul.f32 %v12035, 1.442695
    %v12038 = vpow.pop %v12037
    %v12039 = vmul.f32 %v12036, 1.442695
    %v12040 = vpow.pop %v12039
    %v12041 = vsel %vm12028, %v12038, 0.0
    %v12042 = vsel %vm12028, %v12040, 0.0
    %12043 = vadd.xlane.f32.xlu0 %v12041
    %v12044 = vpop.xlane.xlu0 %12043
    %12045 = vadd.xlane.f32.xlu0 %v12042
    %v12046 = vpop.xlane.xlu0 %12045
    %v12047 = vlog2.pop %v12044
    %v12048 = vmul.f32 %v12047, 0.6931472
    %v12049 = vlog2.pop %v12046
    %v12050 = vmul.f32 %v12049, 0.6931472
    %v12051 = vadd.f32 %v12048, %v12032
    %v12052 = vadd.f32 %v12050, %v12034
    %v12053 = vsub.f32 %v12024, %v12051
    %v12054 = vsub.f32 %v12025, %v12052
    %12055 = vst [vmem:[%s20] sm:$0xff] %v12053
    %12056 = vst [vmem:[%s20 + $0x8] sm:$0xff] %v12054
    // Predicated region
    $region150: #{gcn_ww_forward.1} parent=1 // pred_check
      _
    $region151: #{gcn_ww_forward.1} parent=1 // pred_check_branch
      %12058 = sbr.rel (0) target = $region153
    $region152: #{gcn_ww_forward.1} parent=1 // pred_region
      _
    $region153: #{gcn_ww_forward.1} parent=1 // pred_fallthru
      _
    // Predicated region
    $region154: #{gcn_ww_forward.1} parent=1 // pred_check
      _
    $region155: #{gcn_ww_forward.1} parent=1 // pred_check_branch
      %12060 = sbr.rel (0) target = $region157
    $region156: #{gcn_ww_forward.1} parent=1 // pred_region
      _
    $region157: #{gcn_ww_forward.1} parent=1 // pred_fallthru
      _
    %12061 = vsyncpa [#allocation3], 1
    %12062 = vsyncpa [#allocation5], 1
    %12063 = vsyncpa [#allocation8], 1
    %12064 = vsyncpa [#allocation11], 1
    %12065 = vsyncpa [#allocation14], 1
    %12066 = vsyncpa [#allocation17], 1
    %12067 = vsyncpa [#allocation20], 1
    %12068 = vsyncpa [#allocation23], 1
    %12069 = vsyncpa [#allocation26], 1

</llo_original>
